<compile_context>
chip_gen: v7x
topology: tpu7x:2x2x1
jax: 0.10.0
libtpu: 0.0.40
codegen_flags: <defaults>
</compile_context>

<pallas_src>
import jax
import jax.numpy as jnp
from jax.experimental import pallas as pl
from jax.experimental.pallas import tpu as pltpu


HP = 128  # per-gate padded hidden width (one full lane tile)


def _bigru_kernel(seq_ref, len_ref, w_ih_ref, w_hh_ref, b_ih_ref, b_hh_ref,
                  out_ref, act0_ref, act1_ref):
    """Whole-model bidirectional GRU.

    seq_ref : (B, T, D)              float32
    len_ref : (B, 1)                 int32
    w_ih_ref: (L, 2, IN_P, 3*HP)     float32  (pre-transposed, gate/lane padded)
    w_hh_ref: (L, 2, HP, 3*HP)       float32
    b_ih_ref: (L, 2, 1, 3*HP)        float32
    b_hh_ref: (L, 2, 1, 3*HP)        float32
    out_ref : (B, T, 2*HP)           float32  (fwd h in lanes [0:H], bwd in [HP:HP+H])
    act*_ref: (B, T, 2*HP)           float32  VMEM ping-pong layer activations
    """
    B, T, D = seq_ref.shape
    L = w_ih_ref.shape[0]
    hp = w_hh_ref.shape[2]
    gp = w_hh_ref.shape[3]          # 3 * hp

    lens = len_ref[...]                                           # (B, 1) int32
    # Precompute validity once, pre-broadcast over the padded hidden width so
    # the recurrence only does a cheap static sublane select per step.
    t_iota = jax.lax.broadcasted_iota(jnp.int32, (B, T, hp), 1)
    valid_h = t_iota < lens[:, :, None]                           # (B, T, hp)
    valid_out = (jax.lax.broadcasted_iota(jnp.int32, (B, T, 1), 1)
                 < lens[:, :, None])                              # (B, T, 1)

    acts = [act0_ref, act1_ref]

    def gate_step(gx_t, h, w_hh, b_hh):
        # gx_t already contains W_ih @ x + b_ih for this timestep.
        gh = jnp.dot(h, w_hh, preferred_element_type=jnp.float32) + b_hh
        r = jax.nn.sigmoid(gx_t[:, 0:hp] + gh[:, 0:hp])
        z = jax.nn.sigmoid(gx_t[:, hp:2 * hp] + gh[:, hp:2 * hp])
        n = jnp.tanh(gx_t[:, 2 * hp:gp] + r * gh[:, 2 * hp:gp])
        return (1.0 - z) * n + z * h

    for l in range(L):                                            # layers (static)
        in_l = D if l == 0 else 2 * hp
        src = seq_ref if l == 0 else acts[(l - 1) % 2]
        dst = acts[l % 2]

        # Hoisted input->hidden matmul: one (B*T, in_l) x (in_l, 3*hp) matmul
        # per direction, full sublane occupancy, off the serial chain.
        x2d = src[...].reshape(B * T, in_l)
        gx_f = (jnp.dot(x2d, w_ih_ref[l, 0, :in_l, :],
                        preferred_element_type=jnp.float32)
                + b_ih_ref[l, 0]).reshape(B, T, gp)
        gx_b = (jnp.dot(x2d, w_ih_ref[l, 1, :in_l, :],
                        preferred_element_type=jnp.float32)
                + b_ih_ref[l, 1]).reshape(B, T, gp)

        w_hh_f = w_hh_ref[l, 0]
        w_hh_b = w_hh_ref[l, 1]
        b_hh_f = b_hh_ref[l, 0]
        b_hh_b = b_hh_ref[l, 1]

        h_f = jnp.zeros((B, hp), jnp.float32)
        h_b = jnp.zeros((B, hp), jnp.float32)

        # Interleave the independent forward/backward chains in one time loop.
        for s in range(T):                                        # time (static, T small)
            tf = s
            tb = T - 1 - s
            hf_new = gate_step(gx_f[:, tf, :], h_f, w_hh_f, b_hh_f)
            hb_new = gate_step(gx_b[:, tb, :], h_b, w_hh_b, b_hh_b)
            # Freeze hidden state past each sample's length (packed-sequence
            # semantics).  Padded lanes [H:hp] stay exactly zero by induction.
            h_f = jnp.where(valid_h[:, tf, :], hf_new, h_f)
            h_b = jnp.where(valid_h[:, tb, :], hb_new, h_b)
            # Lane-aligned 128-wide stores into the VMEM activation buffer.
            dst[:, tf, 0:hp] = h_f
            dst[:, tb, hp:2 * hp] = h_b

    # Single lane-dense masked store of the final layer's activations.
    out_ref[...] = jnp.where(valid_out, acts[(L - 1) % 2][...], 0.0)


def _full_spec(shape):
    nd = len(shape)
    return pl.BlockSpec(shape, lambda i, nd=nd: (0,) * nd)


def inner_path_forward(seq, lengths, w_ih_p, w_hh_p, b_ih_p, b_hh_p,
                       hidden_size):
    B, T, D = seq.shape
    hp = w_hh_p.shape[2]
    lens2d = lengths.astype(jnp.int32).reshape(B, 1)

    out_padded = pl.pallas_call(
        _bigru_kernel,
        out_shape=jax.ShapeDtypeStruct((B, T, 2 * hp), jnp.float32),
        grid=(1,),
        in_specs=[
            _full_spec(seq.shape),
            _full_spec(lens2d.shape),
            _full_spec(w_ih_p.shape),
            _full_spec(w_hh_p.shape),
            _full_spec(b_ih_p.shape),
            _full_spec(b_hh_p.shape),
        ],
        out_specs=_full_spec((B, T, 2 * hp)),
        scratch_shapes=[
            pltpu.VMEM((B, T, 2 * hp), jnp.float32),
            pltpu.VMEM((B, T, 2 * hp), jnp.float32),
        ],
        compiler_params=pltpu.CompilerParams(
            dimension_semantics=("arbitrary",)),
    )(seq, lens2d, w_ih_p, w_hh_p, b_ih_p, b_hh_p)

    # Un-pad: forward hidden in lanes [0:H], backward hidden in lanes [hp:hp+H].
    return jnp.concatenate(
        [out_padded[..., :hidden_size], out_padded[..., hp:hp + hidden_size]],
        axis=-1)


def pack_gru_params(params, seq_dim, hidden_size, hp=HP):
    """Pack PyTorch-layout GRU params into gate-padded, pre-transposed arrays.

    params: [layer][direction] -> (w_ih (3H, in), w_hh (3H, H), b_ih (3H,), b_hh (3H,))
    Gate g occupies lanes [g*hp : g*hp + H]; layer-(l>0) input rows are laid out
    as [0:H] = forward hidden, [hp:hp+H] = backward hidden (matching the padded
    activation layout used inside the kernel).  All padding is zero.
    """
    L = len(params)
    H = hidden_size
    gp = 3 * hp
    in_p = max(seq_dim, 2 * hp)
    w_ih_p = jnp.zeros((L, 2, in_p, gp), jnp.float32)
    w_hh_p = jnp.zeros((L, 2, hp, gp), jnp.float32)
    b_ih_p = jnp.zeros((L, 2, 1, gp), jnp.float32)
    b_hh_p = jnp.zeros((L, 2, 1, gp), jnp.float32)
    for l in range(L):
        for d in range(2):
            w_ih, w_hh, b_ih, b_hh = params[l][d]
            for g in range(3):
                wg = w_ih[g * H:(g + 1) * H, :].T                 # (in_l, H)
                if l == 0:
                    w_ih_p = w_ih_p.at[l, d, :seq_dim,
                                       g * hp:g * hp + H].set(wg)
                else:
                    w_ih_p = w_ih_p.at[l, d, 0:H,
                                       g * hp:g * hp + H].set(wg[:H])
                    w_ih_p = w_ih_p.at[l, d, hp:hp + H,
                                       g * hp:g * hp + H].set(wg[H:2 * H])
                w_hh_p = w_hh_p.at[l, d, 0:H, g * hp:g * hp + H].set(
                    w_hh[g * H:(g + 1) * H, :].T)
                b_ih_p = b_ih_p.at[l, d, 0, g * hp:g * hp + H].set(
                    b_ih[g * H:(g + 1) * H])
                b_hh_p = b_hh_p.at[l, d, 0, g * hp:g * hp + H].set(
                    b_hh[g * H:(g + 1) * H])
    return w_ih_p, w_hh_p, b_ih_p, b_hh_p


def gru_reference(seq, lengths, params, hidden_size):
    """Pure-JAX reference on the raw (unpadded, PyTorch-layout) parameters."""
    B, T, D = seq.shape
    H = hidden_size
    x = seq
    for l in range(len(params)):
        outs = jnp.zeros((B, T, 2 * H), jnp.float32)
        for d in range(2):
            w_ih, w_hh, b_ih, b_hh = params[l][d]
            h = jnp.zeros((B, H), jnp.float32)
            order = range(T) if d == 0 else range(T - 1, -1, -1)
            for t in order:
                x_t = x[:, t, :]
                gx = x_t @ w_ih.T + b_ih
                gh = h @ w_hh.T + b_hh
                r = jax.nn.sigmoid(gx[:, :H] + gh[:, :H])
                z = jax.nn.sigmoid(gx[:, H:2 * H] + gh[:, H:2 * H])
                n = jnp.tanh(gx[:, 2 * H:] + r * gh[:, 2 * H:])
                h_new = (1.0 - z) * n + z * h
                valid = (t < lengths)[:, None]
                h = jnp.where(valid, h_new, h)
                outs = outs.at[:, t, d * H:(d + 1) * H].set(
                    jnp.where(valid, h, 0.0))
        x = outs
    return x


if __name__ == "__main__":
    # Module hyperparams: seq_dim=16, hidden_size=32, num_layers=2,
    # seq_max_len=8 (edge_num unused in forward).
    B, D, H, L, T = 2, 16, 32, 2, 8

    key = jax.random.PRNGKey(0)
    k_seq, k_par = jax.random.split(key)
    seq = jax.random.normal(k_seq, (B, T, D), jnp.float32)
    lengths = jnp.array([8, 5], dtype=jnp.int32)

    # Deterministic PyTorch-style GRU parameters: uniform(-1/sqrt(H), 1/sqrt(H)).
    bound = 1.0 / (H ** 0.5)
    keys = jax.random.split(k_par, L * 2 * 4)
    params = []
    ki = 0
    for l in range(L):
        in_l = D if l == 0 else 2 * H
        dirs = []
        for d in range(2):
            w_ih = jax.random.uniform(keys[ki], (3 * H, in_l), jnp.float32,
                                      -bound, bound); ki += 1
            w_hh = jax.random.uniform(keys[ki], (3 * H, H), jnp.float32,
                                      -bound, bound); ki += 1
            b_ih = jax.random.uniform(keys[ki], (3 * H,), jnp.float32,
                                      -bound, bound); ki += 1
            b_hh = jax.random.uniform(keys[ki], (3 * H,), jnp.float32,
                                      -bound, bound); ki += 1
            dirs.append((w_ih, w_hh, b_ih, b_hh))
        params.append(dirs)

    w_ih_p, w_hh_p, b_ih_p, b_hh_p = pack_gru_params(params, D, H)

    out = inner_path_forward(seq, lengths, w_ih_p, w_hh_p, b_ih_p, b_hh_p, H)
    out = jax.block_until_ready(out)

    ref = gru_reference(seq, lengths, params, H)
    assert out.shape == (B, T, 2 * H)
    max_diff = float(jnp.max(jnp.abs(out - ref)))
    assert jnp.allclose(out, ref, atol=1e-4, rtol=1e-4), f"max diff {max_diff}"

    print("KERNEL_OK")
</pallas_src>

<mosaic_0001>
module attributes {stable_mosaic.version = 11 : i64} {
  func.func @_bigru_kernel(%arg0: i32, %arg1: memref<2x8x16xf32, #tpu.memory_space<vmem>>, %arg2: memref<2x1xi32, #tpu.memory_space<vmem>>, %arg3: memref<2x2x256x384xf32, #tpu.memory_space<vmem>>, %arg4: memref<2x2x128x384xf32, #tpu.memory_space<vmem>>, %arg5: memref<2x2x1x384xf32, #tpu.memory_space<vmem>>, %arg6: memref<2x2x1x384xf32, #tpu.memory_space<vmem>>, %arg7: memref<2x8x256xf32, #tpu.memory_space<vmem>>, %arg8: memref<2x8x256xf32, #tpu.memory_space<vmem>>, %arg9: memref<2x8x256xf32, #tpu.memory_space<vmem>>) attributes {dimension_semantics = [#tpu.dimension_semantics<arbitrary>], iteration_bounds = array<i64: 1>, scalar_prefetch = 0 : i64, scratch_operands = 2 : i64, tpu.core_type = #tpu.core_type<tc>, window_params = [{pipeline_mode = #tpu.pipeline_mode<synchronous>, transform_indices = @transform_0, window_bounds = array<i64: 2, 8, 16>}, {pipeline_mode = #tpu.pipeline_mode<synchronous>, transform_indices = @transform_1, window_bounds = array<i64: 2, 1>}, {pipeline_mode = #tpu.pipeline_mode<synchronous>, transform_indices = @transform_2, window_bounds = array<i64: 2, 2, 256, 384>}, {pipeline_mode = #tpu.pipeline_mode<synchronous>, transform_indices = @transform_3, window_bounds = array<i64: 2, 2, 128, 384>}, {pipeline_mode = #tpu.pipeline_mode<synchronous>, transform_indices = @transform_4, window_bounds = array<i64: 2, 2, 1, 384>}, {pipeline_mode = #tpu.pipeline_mode<synchronous>, transform_indices = @transform_5, window_bounds = array<i64: 2, 2, 1, 384>}, {pipeline_mode = #tpu.pipeline_mode<synchronous>, transform_indices = @transform_6, window_bounds = array<i64: 2, 8, 256>}]} {
    %c0 = arith.constant 0 : index
    %c0_0 = arith.constant 0 : index
    %0 = vector.load %arg2[%c0, %c0_0] : memref<2x1xi32, #tpu.memory_space<vmem>>, vector<2x1xi32>
    %1 = tpu.iota {dimensions = array<i32: 1>} : vector<2x8x128xi32>
    %2 = vector.shape_cast %0 : vector<2x1xi32> to vector<2x1x1xi32>
    %3 = vector.broadcast %2 : vector<2x1x1xi32> to vector<2x8x128xi32>
    %4 = arith.cmpi slt, %1, %3 : vector<2x8x128xi32>
    %5 = tpu.iota {dimensions = array<i32: 1>} : vector<2x8x1xi32>
    %6 = vector.shape_cast %0 : vector<2x1xi32> to vector<2x1x1xi32>
    %7 = vector.broadcast %6 : vector<2x1x1xi32> to vector<2x8x1xi32>
    %8 = arith.cmpi slt, %5, %7 : vector<2x8x1xi32>
    %c0_1 = arith.constant 0 : index
    %c0_2 = arith.constant 0 : index
    %c0_3 = arith.constant 0 : index
    %9 = vector.load %arg1[%c0_1, %c0_2, %c0_3] : memref<2x8x16xf32, #tpu.memory_space<vmem>>, vector<2x8x16xf32>
    %10 = vector.shape_cast %9 : vector<2x8x16xf32> to vector<16x16xf32>
    %c0_4 = arith.constant 0 : index
    %c0_5 = arith.constant 0 : index
    %c0_6 = arith.constant 0 : index
    %c0_7 = arith.constant 0 : index
    %11 = vector.load %arg3[%c0_4, %c0_5, %c0_6, %c0_7] : memref<2x2x256x384xf32, #tpu.memory_space<vmem>>, vector<1x1x16x384xf32>
    %12 = vector.shape_cast %11 : vector<1x1x16x384xf32> to vector<16x384xf32>
    %cst = arith.constant dense<0.000000e+00> : vector<16x384xf32>
    %13 = tpu.matmul %10, %12, %cst {dimension_numbers = #tpu.dot_dimension_numbers<[1], [0], [0], [1], [0, 0, 1, 1], [], []>} : vector<16x16xf32>, vector<16x384xf32>, vector<16x384xf32> -> vector<16x384xf32>
    %c0_8 = arith.constant 0 : index
    %c0_9 = arith.constant 0 : index
    %c0_10 = arith.constant 0 : index
    %c0_11 = arith.constant 0 : index
    %14 = vector.load %arg5[%c0_8, %c0_9, %c0_10, %c0_11] : memref<2x2x1x384xf32, #tpu.memory_space<vmem>>, vector<1x1x1x384xf32>
    %15 = vector.shape_cast %14 : vector<1x1x1x384xf32> to vector<1x384xf32>
    %16 = vector.broadcast %15 : vector<1x384xf32> to vector<16x384xf32>
    %17 = arith.addf %13, %16 : vector<16x384xf32>
    %18 = vector.shape_cast %17 : vector<16x384xf32> to vector<2x8x384xf32>
    %c0_12 = arith.constant 0 : index
    %c1 = arith.constant 1 : index
    %c0_13 = arith.constant 0 : index
    %c0_14 = arith.constant 0 : index
    %19 = vector.load %arg3[%c0_12, %c1, %c0_13, %c0_14] : memref<2x2x256x384xf32, #tpu.memory_space<vmem>>, vector<1x1x16x384xf32>
    %20 = vector.shape_cast %19 : vector<1x1x16x384xf32> to vector<16x384xf32>
    %cst_15 = arith.constant dense<0.000000e+00> : vector<16x384xf32>
    %21 = tpu.matmul %10, %20, %cst_15 {dimension_numbers = #tpu.dot_dimension_numbers<[1], [0], [0], [1], [0, 0, 1, 1], [], []>} : vector<16x16xf32>, vector<16x384xf32>, vector<16x384xf32> -> vector<16x384xf32>
    %c0_16 = arith.constant 0 : index
    %c1_17 = arith.constant 1 : index
    %c0_18 = arith.constant 0 : index
    %c0_19 = arith.constant 0 : index
    %22 = vector.load %arg5[%c0_16, %c1_17, %c0_18, %c0_19] : memref<2x2x1x384xf32, #tpu.memory_space<vmem>>, vector<1x1x1x384xf32>
    %23 = vector.shape_cast %22 : vector<1x1x1x384xf32> to vector<1x384xf32>
    %24 = vector.broadcast %23 : vector<1x384xf32> to vector<16x384xf32>
    %25 = arith.addf %21, %24 : vector<16x384xf32>
    %26 = vector.shape_cast %25 : vector<16x384xf32> to vector<2x8x384xf32>
    %c0_20 = arith.constant 0 : index
    %c0_21 = arith.constant 0 : index
    %c0_22 = arith.constant 0 : index
    %c0_23 = arith.constant 0 : index
    %27 = vector.load %arg4[%c0_20, %c0_21, %c0_22, %c0_23] : memref<2x2x128x384xf32, #tpu.memory_space<vmem>>, vector<1x1x128x384xf32>
    %28 = vector.shape_cast %27 : vector<1x1x128x384xf32> to vector<128x384xf32>
    %c0_24 = arith.constant 0 : index
    %c1_25 = arith.constant 1 : index
    %c0_26 = arith.constant 0 : index
    %c0_27 = arith.constant 0 : index
    %29 = vector.load %arg4[%c0_24, %c1_25, %c0_26, %c0_27] : memref<2x2x128x384xf32, #tpu.memory_space<vmem>>, vector<1x1x128x384xf32>
    %30 = vector.shape_cast %29 : vector<1x1x128x384xf32> to vector<128x384xf32>
    %c0_28 = arith.constant 0 : index
    %c0_29 = arith.constant 0 : index
    %c0_30 = arith.constant 0 : index
    %c0_31 = arith.constant 0 : index
    %31 = vector.load %arg6[%c0_28, %c0_29, %c0_30, %c0_31] : memref<2x2x1x384xf32, #tpu.memory_space<vmem>>, vector<1x1x1x384xf32>
    %32 = vector.shape_cast %31 : vector<1x1x1x384xf32> to vector<1x384xf32>
    %c0_32 = arith.constant 0 : index
    %c1_33 = arith.constant 1 : index
    %c0_34 = arith.constant 0 : index
    %c0_35 = arith.constant 0 : index
    %33 = vector.load %arg6[%c0_32, %c1_33, %c0_34, %c0_35] : memref<2x2x1x384xf32, #tpu.memory_space<vmem>>, vector<1x1x1x384xf32>
    %34 = vector.shape_cast %33 : vector<1x1x1x384xf32> to vector<1x384xf32>
    %cst_36 = arith.constant 0.000000e+00 : f32
    %35 = vector.broadcast %cst_36 : f32 to vector<2x128xf32>
    %cst_37 = arith.constant 0.000000e+00 : f32
    %36 = vector.broadcast %cst_37 : f32 to vector<2x128xf32>
    %37 = vector.extract_strided_slice %18 {offsets = [0, 0, 0], sizes = [2, 1, 384], strides = [1, 1, 1]} : vector<2x8x384xf32> to vector<2x1x384xf32>
    %38 = vector.shape_cast %37 : vector<2x1x384xf32> to vector<2x384xf32>
    %cst_38 = arith.constant dense<0.000000e+00> : vector<2x384xf32>
    %39 = tpu.matmul %35, %28, %cst_38 {dimension_numbers = #tpu.dot_dimension_numbers<[1], [0], [0], [1], [0, 0, 1, 1], [], []>} : vector<2x128xf32>, vector<128x384xf32>, vector<2x384xf32> -> vector<2x384xf32>
    %40 = vector.broadcast %32 : vector<1x384xf32> to vector<2x384xf32>
    %41 = arith.addf %39, %40 : vector<2x384xf32>
    %42 = vector.extract_strided_slice %38 {offsets = [0, 0], sizes = [2, 128], strides = [1, 1]} : vector<2x384xf32> to vector<2x128xf32>
    %43 = vector.extract_strided_slice %41 {offsets = [0, 0], sizes = [2, 128], strides = [1, 1]} : vector<2x384xf32> to vector<2x128xf32>
    %44 = arith.addf %42, %43 : vector<2x128xf32>
    %45 = arith.negf %44 : vector<2x128xf32>
    %46 = math.exp %45 : vector<2x128xf32>
    %cst_39 = arith.constant 1.000000e+00 : f32
    %47 = vector.broadcast %cst_39 : f32 to vector<2x128xf32>
    %48 = arith.addf %47, %46 : vector<2x128xf32>
    %49 = arith.divf %47, %48 : vector<2x128xf32>
    %50 = vector.extract_strided_slice %38 {offsets = [0, 128], sizes = [2, 128], strides = [1, 1]} : vector<2x384xf32> to vector<2x128xf32>
    %51 = vector.extract_strided_slice %41 {offsets = [0, 128], sizes = [2, 128], strides = [1, 1]} : vector<2x384xf32> to vector<2x128xf32>
    %52 = arith.addf %50, %51 : vector<2x128xf32>
    %53 = arith.negf %52 : vector<2x128xf32>
    %54 = math.exp %53 : vector<2x128xf32>
    %cst_40 = arith.constant 1.000000e+00 : f32
    %55 = vector.broadcast %cst_40 : f32 to vector<2x128xf32>
    %56 = arith.addf %55, %54 : vector<2x128xf32>
    %57 = arith.divf %55, %56 : vector<2x128xf32>
    %58 = vector.extract_strided_slice %38 {offsets = [0, 256], sizes = [2, 128], strides = [1, 1]} : vector<2x384xf32> to vector<2x128xf32>
    %59 = vector.extract_strided_slice %41 {offsets = [0, 256], sizes = [2, 128], strides = [1, 1]} : vector<2x384xf32> to vector<2x128xf32>
    %60 = arith.mulf %49, %59 : vector<2x128xf32>
    %61 = arith.addf %58, %60 : vector<2x128xf32>
    %62 = math.tanh %61 : vector<2x128xf32>
    %cst_41 = arith.constant 1.000000e+00 : f32
    %63 = vector.broadcast %cst_41 : f32 to vector<2x128xf32>
    %64 = arith.subf %63, %57 : vector<2x128xf32>
    %65 = arith.mulf %64, %62 : vector<2x128xf32>
    %66 = arith.mulf %57, %35 : vector<2x128xf32>
    %67 = arith.addf %65, %66 : vector<2x128xf32>
    %68 = vector.extract_strided_slice %26 {offsets = [0, 7, 0], sizes = [2, 1, 384], strides = [1, 1, 1]} : vector<2x8x384xf32> to vector<2x1x384xf32>
    %69 = vector.shape_cast %68 : vector<2x1x384xf32> to vector<2x384xf32>
    %cst_42 = arith.constant dense<0.000000e+00> : vector<2x384xf32>
    %70 = tpu.matmul %36, %30, %cst_42 {dimension_numbers = #tpu.dot_dimension_numbers<[1], [0], [0], [1], [0, 0, 1, 1], [], []>} : vector<2x128xf32>, vector<128x384xf32>, vector<2x384xf32> -> vector<2x384xf32>
    %71 = vector.broadcast %34 : vector<1x384xf32> to vector<2x384xf32>
    %72 = arith.addf %70, %71 : vector<2x384xf32>
    %73 = vector.extract_strided_slice %69 {offsets = [0, 0], sizes = [2, 128], strides = [1, 1]} : vector<2x384xf32> to vector<2x128xf32>
    %74 = vector.extract_strided_slice %72 {offsets = [0, 0], sizes = [2, 128], strides = [1, 1]} : vector<2x384xf32> to vector<2x128xf32>
    %75 = arith.addf %73, %74 : vector<2x128xf32>
    %76 = arith.negf %75 : vector<2x128xf32>
    %77 = math.exp %76 : vector<2x128xf32>
    %cst_43 = arith.constant 1.000000e+00 : f32
    %78 = vector.broadcast %cst_43 : f32 to vector<2x128xf32>
    %79 = arith.addf %78, %77 : vector<2x128xf32>
    %80 = arith.divf %78, %79 : vector<2x128xf32>
    %81 = vector.extract_strided_slice %69 {offsets = [0, 128], sizes = [2, 128], strides = [1, 1]} : vector<2x384xf32> to vector<2x128xf32>
    %82 = vector.extract_strided_slice %72 {offsets = [0, 128], sizes = [2, 128], strides = [1, 1]} : vector<2x384xf32> to vector<2x128xf32>
    %83 = arith.addf %81, %82 : vector<2x128xf32>
    %84 = arith.negf %83 : vector<2x128xf32>
    %85 = math.exp %84 : vector<2x128xf32>
    %cst_44 = arith.constant 1.000000e+00 : f32
    %86 = vector.broadcast %cst_44 : f32 to vector<2x128xf32>
    %87 = arith.addf %86, %85 : vector<2x128xf32>
    %88 = arith.divf %86, %87 : vector<2x128xf32>
    %89 = vector.extract_strided_slice %69 {offsets = [0, 256], sizes = [2, 128], strides = [1, 1]} : vector<2x384xf32> to vector<2x128xf32>
    %90 = vector.extract_strided_slice %72 {offsets = [0, 256], sizes = [2, 128], strides = [1, 1]} : vector<2x384xf32> to vector<2x128xf32>
    %91 = arith.mulf %80, %90 : vector<2x128xf32>
    %92 = arith.addf %89, %91 : vector<2x128xf32>
    %93 = math.tanh %92 : vector<2x128xf32>
    %cst_45 = arith.constant 1.000000e+00 : f32
    %94 = vector.broadcast %cst_45 : f32 to vector<2x128xf32>
    %95 = arith.subf %94, %88 : vector<2x128xf32>
    %96 = arith.mulf %95, %93 : vector<2x128xf32>
    %97 = arith.mulf %88, %36 : vector<2x128xf32>
    %98 = arith.addf %96, %97 : vector<2x128xf32>
    %99 = vector.extract_strided_slice %4 {offsets = [0, 0, 0], sizes = [2, 1, 128], strides = [1, 1, 1]} : vector<2x8x128xi1> to vector<2x1x128xi1>
    %100 = vector.shape_cast %99 : vector<2x1x128xi1> to vector<2x128xi1>
    %101 = arith.select %100, %67, %35 : vector<2x128xi1>, vector<2x128xf32>
    %102 = vector.extract_strided_slice %4 {offsets = [0, 7, 0], sizes = [2, 1, 128], strides = [1, 1, 1]} : vector<2x8x128xi1> to vector<2x1x128xi1>
    %103 = vector.shape_cast %102 : vector<2x1x128xi1> to vector<2x128xi1>
    %104 = arith.select %103, %98, %36 : vector<2x128xi1>, vector<2x128xf32>
    %c0_46 = arith.constant 0 : index
    %c0_47 = arith.constant 0 : index
    %c0_48 = arith.constant 0 : index
    %105 = vector.load %arg8[%c0_46, %c0_47, %c0_48] : memref<2x8x256xf32, #tpu.memory_space<vmem>>, vector<2x1x128xf32>
    %106 = vector.shape_cast %105 : vector<2x1x128xf32> to vector<2x128xf32>
    %107 = vector.shape_cast %101 : vector<2x128xf32> to vector<2x1x128xf32>
    tpu.vector_store %arg8[%c0_46, %c0_47, %c0_48], %107 {strides = array<i32>} : memref<2x8x256xf32, #tpu.memory_space<vmem>>, vector<2x1x128xf32>,
    %c0_49 = arith.constant 0 : index
    %c7 = arith.constant 7 : index
    %c128 = arith.constant 128 : index
    %108 = vector.load %arg8[%c0_49, %c7, %c128] : memref<2x8x256xf32, #tpu.memory_space<vmem>>, vector<2x1x128xf32>
    %109 = vector.shape_cast %108 : vector<2x1x128xf32> to vector<2x128xf32>
    %110 = vector.shape_cast %104 : vector<2x128xf32> to vector<2x1x128xf32>
    tpu.vector_store %arg8[%c0_49, %c7, %c128], %110 {strides = array<i32>} : memref<2x8x256xf32, #tpu.memory_space<vmem>>, vector<2x1x128xf32>,
    %111 = vector.extract_strided_slice %18 {offsets = [0, 1, 0], sizes = [2, 1, 384], strides = [1, 1, 1]} : vector<2x8x384xf32> to vector<2x1x384xf32>
    %112 = vector.shape_cast %111 : vector<2x1x384xf32> to vector<2x384xf32>
    %cst_50 = arith.constant dense<0.000000e+00> : vector<2x384xf32>
    %113 = tpu.matmul %101, %28, %cst_50 {dimension_numbers = #tpu.dot_dimension_numbers<[1], [0], [0], [1], [0, 0, 1, 1], [], []>} : vector<2x128xf32>, vector<128x384xf32>, vector<2x384xf32> -> vector<2x384xf32>
    %114 = vector.broadcast %32 : vector<1x384xf32> to vector<2x384xf32>
    %115 = arith.addf %113, %114 : vector<2x384xf32>
    %116 = vector.extract_strided_slice %112 {offsets = [0, 0], sizes = [2, 128], strides = [1, 1]} : vector<2x384xf32> to vector<2x128xf32>
    %117 = vector.extract_strided_slice %115 {offsets = [0, 0], sizes = [2, 128], strides = [1, 1]} : vector<2x384xf32> to vector<2x128xf32>
    %118 = arith.addf %116, %117 : vector<2x128xf32>
    %119 = arith.negf %118 : vector<2x128xf32>
    %120 = math.exp %119 : vector<2x128xf32>
    %cst_51 = arith.constant 1.000000e+00 : f32
    %121 = vector.broadcast %cst_51 : f32 to vector<2x128xf32>
    %122 = arith.addf %121, %120 : vector<2x128xf32>
    %123 = arith.divf %121, %122 : vector<2x128xf32>
    %124 = vector.extract_strided_slice %112 {offsets = [0, 128], sizes = [2, 128], strides = [1, 1]} : vector<2x384xf32> to vector<2x128xf32>
    %125 = vector.extract_strided_slice %115 {offsets = [0, 128], sizes = [2, 128], strides = [1, 1]} : vector<2x384xf32> to vector<2x128xf32>
    %126 = arith.addf %124, %125 : vector<2x128xf32>
    %127 = arith.negf %126 : vector<2x128xf32>
    %128 = math.exp %127 : vector<2x128xf32>
    %cst_52 = arith.constant 1.000000e+00 : f32
    %129 = vector.broadcast %cst_52 : f32 to vector<2x128xf32>
    %130 = arith.addf %129, %128 : vector<2x128xf32>
    %131 = arith.divf %129, %130 : vector<2x128xf32>
    %132 = vector.extract_strided_slice %112 {offsets = [0, 256], sizes = [2, 128], strides = [1, 1]} : vector<2x384xf32> to vector<2x128xf32>
    %133 = vector.extract_strided_slice %115 {offsets = [0, 256], sizes = [2, 128], strides = [1, 1]} : vector<2x384xf32> to vector<2x128xf32>
    %134 = arith.mulf %123, %133 : vector<2x128xf32>
    %135 = arith.addf %132, %134 : vector<2x128xf32>
    %136 = math.tanh %135 : vector<2x128xf32>
    %cst_53 = arith.constant 1.000000e+00 : f32
    %137 = vector.broadcast %cst_53 : f32 to vector<2x128xf32>
    %138 = arith.subf %137, %131 : vector<2x128xf32>
    %139 = arith.mulf %138, %136 : vector<2x128xf32>
    %140 = arith.mulf %131, %101 : vector<2x128xf32>
    %141 = arith.addf %139, %140 : vector<2x128xf32>
    %142 = vector.extract_strided_slice %26 {offsets = [0, 6, 0], sizes = [2, 1, 384], strides = [1, 1, 1]} : vector<2x8x384xf32> to vector<2x1x384xf32>
    %143 = vector.shape_cast %142 : vector<2x1x384xf32> to vector<2x384xf32>
    %cst_54 = arith.constant dense<0.000000e+00> : vector<2x384xf32>
    %144 = tpu.matmul %104, %30, %cst_54 {dimension_numbers = #tpu.dot_dimension_numbers<[1], [0], [0], [1], [0, 0, 1, 1], [], []>} : vector<2x128xf32>, vector<128x384xf32>, vector<2x384xf32> -> vector<2x384xf32>
    %145 = vector.broadcast %34 : vector<1x384xf32> to vector<2x384xf32>
    %146 = arith.addf %144, %145 : vector<2x384xf32>
    %147 = vector.extract_strided_slice %143 {offsets = [0, 0], sizes = [2, 128], strides = [1, 1]} : vector<2x384xf32> to vector<2x128xf32>
    %148 = vector.extract_strided_slice %146 {offsets = [0, 0], sizes = [2, 128], strides = [1, 1]} : vector<2x384xf32> to vector<2x128xf32>
    %149 = arith.addf %147, %148 : vector<2x128xf32>
    %150 = arith.negf %149 : vector<2x128xf32>
    %151 = math.exp %150 : vector<2x128xf32>
    %cst_55 = arith.constant 1.000000e+00 : f32
    %152 = vector.broadcast %cst_55 : f32 to vector<2x128xf32>
    %153 = arith.addf %152, %151 : vector<2x128xf32>
    %154 = arith.divf %152, %153 : vector<2x128xf32>
    %155 = vector.extract_strided_slice %143 {offsets = [0, 128], sizes = [2, 128], strides = [1, 1]} : vector<2x384xf32> to vector<2x128xf32>
    %156 = vector.extract_strided_slice %146 {offsets = [0, 128], sizes = [2, 128], strides = [1, 1]} : vector<2x384xf32> to vector<2x128xf32>
    %157 = arith.addf %155, %156 : vector<2x128xf32>
    %158 = arith.negf %157 : vector<2x128xf32>
    %159 = math.exp %158 : vector<2x128xf32>
    %cst_56 = arith.constant 1.000000e+00 : f32
    %160 = vector.broadcast %cst_56 : f32 to vector<2x128xf32>
    %161 = arith.addf %160, %159 : vector<2x128xf32>
    %162 = arith.divf %160, %161 : vector<2x128xf32>
    %163 = vector.extract_strided_slice %143 {offsets = [0, 256], sizes = [2, 128], strides = [1, 1]} : vector<2x384xf32> to vector<2x128xf32>
    %164 = vector.extract_strided_slice %146 {offsets = [0, 256], sizes = [2, 128], strides = [1, 1]} : vector<2x384xf32> to vector<2x128xf32>
    %165 = arith.mulf %154, %164 : vector<2x128xf32>
    %166 = arith.addf %163, %165 : vector<2x128xf32>
    %167 = math.tanh %166 : vector<2x128xf32>
    %cst_57 = arith.constant 1.000000e+00 : f32
    %168 = vector.broadcast %cst_57 : f32 to vector<2x128xf32>
    %169 = arith.subf %168, %162 : vector<2x128xf32>
    %170 = arith.mulf %169, %167 : vector<2x128xf32>
    %171 = arith.mulf %162, %104 : vector<2x128xf32>
    %172 = arith.addf %170, %171 : vector<2x128xf32>
    %173 = vector.extract_strided_slice %4 {offsets = [0, 1, 0], sizes = [2, 1, 128], strides = [1, 1, 1]} : vector<2x8x128xi1> to vector<2x1x128xi1>
    %174 = vector.shape_cast %173 : vector<2x1x128xi1> to vector<2x128xi1>
    %175 = arith.select %174, %141, %101 : vector<2x128xi1>, vector<2x128xf32>
    %176 = vector.extract_strided_slice %4 {offsets = [0, 6, 0], sizes = [2, 1, 128], strides = [1, 1, 1]} : vector<2x8x128xi1> to vector<2x1x128xi1>
    %177 = vector.shape_cast %176 : vector<2x1x128xi1> to vector<2x128xi1>
    %178 = arith.select %177, %172, %104 : vector<2x128xi1>, vector<2x128xf32>
    %c0_58 = arith.constant 0 : index
    %c1_59 = arith.constant 1 : index
    %c0_60 = arith.constant 0 : index
    %179 = vector.load %arg8[%c0_58, %c1_59, %c0_60] : memref<2x8x256xf32, #tpu.memory_space<vmem>>, vector<2x1x128xf32>
    %180 = vector.shape_cast %179 : vector<2x1x128xf32> to vector<2x128xf32>
    %181 = vector.shape_cast %175 : vector<2x128xf32> to vector<2x1x128xf32>
    tpu.vector_store %arg8[%c0_58, %c1_59, %c0_60], %181 {strides = array<i32>} : memref<2x8x256xf32, #tpu.memory_space<vmem>>, vector<2x1x128xf32>,
    %c0_61 = arith.constant 0 : index
    %c6 = arith.constant 6 : index
    %c128_62 = arith.constant 128 : index
    %182 = vector.load %arg8[%c0_61, %c6, %c128_62] : memref<2x8x256xf32, #tpu.memory_space<vmem>>, vector<2x1x128xf32>
    %183 = vector.shape_cast %182 : vector<2x1x128xf32> to vector<2x128xf32>
    %184 = vector.shape_cast %178 : vector<2x128xf32> to vector<2x1x128xf32>
    tpu.vector_store %arg8[%c0_61, %c6, %c128_62], %184 {strides = array<i32>} : memref<2x8x256xf32, #tpu.memory_space<vmem>>, vector<2x1x128xf32>,
    %185 = vector.extract_strided_slice %18 {offsets = [0, 2, 0], sizes = [2, 1, 384], strides = [1, 1, 1]} : vector<2x8x384xf32> to vector<2x1x384xf32>
    %186 = vector.shape_cast %185 : vector<2x1x384xf32> to vector<2x384xf32>
    %cst_63 = arith.constant dense<0.000000e+00> : vector<2x384xf32>
    %187 = tpu.matmul %175, %28, %cst_63 {dimension_numbers = #tpu.dot_dimension_numbers<[1], [0], [0], [1], [0, 0, 1, 1], [], []>} : vector<2x128xf32>, vector<128x384xf32>, vector<2x384xf32> -> vector<2x384xf32>
    %188 = vector.broadcast %32 : vector<1x384xf32> to vector<2x384xf32>
    %189 = arith.addf %187, %188 : vector<2x384xf32>
    %190 = vector.extract_strided_slice %186 {offsets = [0, 0], sizes = [2, 128], strides = [1, 1]} : vector<2x384xf32> to vector<2x128xf32>
    %191 = vector.extract_strided_slice %189 {offsets = [0, 0], sizes = [2, 128], strides = [1, 1]} : vector<2x384xf32> to vector<2x128xf32>
    %192 = arith.addf %190, %191 : vector<2x128xf32>
    %193 = arith.negf %192 : vector<2x128xf32>
    %194 = math.exp %193 : vector<2x128xf32>
    %cst_64 = arith.constant 1.000000e+00 : f32
    %195 = vector.broadcast %cst_64 : f32 to vector<2x128xf32>
    %196 = arith.addf %195, %194 : vector<2x128xf32>
    %197 = arith.divf %195, %196 : vector<2x128xf32>
    %198 = vector.extract_strided_slice %186 {offsets = [0, 128], sizes = [2, 128], strides = [1, 1]} : vector<2x384xf32> to vector<2x128xf32>
    %199 = vector.extract_strided_slice %189 {offsets = [0, 128], sizes = [2, 128], strides = [1, 1]} : vector<2x384xf32> to vector<2x128xf32>
    %200 = arith.addf %198, %199 : vector<2x128xf32>
    %201 = arith.negf %200 : vector<2x128xf32>
    %202 = math.exp %201 : vector<2x128xf32>
    %cst_65 = arith.constant 1.000000e+00 : f32
    %203 = vector.broadcast %cst_65 : f32 to vector<2x128xf32>
    %204 = arith.addf %203, %202 : vector<2x128xf32>
    %205 = arith.divf %203, %204 : vector<2x128xf32>
    %206 = vector.extract_strided_slice %186 {offsets = [0, 256], sizes = [2, 128], strides = [1, 1]} : vector<2x384xf32> to vector<2x128xf32>
    %207 = vector.extract_strided_slice %189 {offsets = [0, 256], sizes = [2, 128], strides = [1, 1]} : vector<2x384xf32> to vector<2x128xf32>
    %208 = arith.mulf %197, %207 : vector<2x128xf32>
    %209 = arith.addf %206, %208 : vector<2x128xf32>
    %210 = math.tanh %209 : vector<2x128xf32>
    %cst_66 = arith.constant 1.000000e+00 : f32
    %211 = vector.broadcast %cst_66 : f32 to vector<2x128xf32>
    %212 = arith.subf %211, %205 : vector<2x128xf32>
    %213 = arith.mulf %212, %210 : vector<2x128xf32>
    %214 = arith.mulf %205, %175 : vector<2x128xf32>
    %215 = arith.addf %213, %214 : vector<2x128xf32>
    %216 = vector.extract_strided_slice %26 {offsets = [0, 5, 0], sizes = [2, 1, 384], strides = [1, 1, 1]} : vector<2x8x384xf32> to vector<2x1x384xf32>
    %217 = vector.shape_cast %216 : vector<2x1x384xf32> to vector<2x384xf32>
    %cst_67 = arith.constant dense<0.000000e+00> : vector<2x384xf32>
    %218 = tpu.matmul %178, %30, %cst_67 {dimension_numbers = #tpu.dot_dimension_numbers<[1], [0], [0], [1], [0, 0, 1, 1], [], []>} : vector<2x128xf32>, vector<128x384xf32>, vector<2x384xf32> -> vector<2x384xf32>
    %219 = vector.broadcast %34 : vector<1x384xf32> to vector<2x384xf32>
    %220 = arith.addf %218, %219 : vector<2x384xf32>
    %221 = vector.extract_strided_slice %217 {offsets = [0, 0], sizes = [2, 128], strides = [1, 1]} : vector<2x384xf32> to vector<2x128xf32>
    %222 = vector.extract_strided_slice %220 {offsets = [0, 0], sizes = [2, 128], strides = [1, 1]} : vector<2x384xf32> to vector<2x128xf32>
    %223 = arith.addf %221, %222 : vector<2x128xf32>
    %224 = arith.negf %223 : vector<2x128xf32>
    %225 = math.exp %224 : vector<2x128xf32>
    %cst_68 = arith.constant 1.000000e+00 : f32
    %226 = vector.broadcast %cst_68 : f32 to vector<2x128xf32>
    %227 = arith.addf %226, %225 : vector<2x128xf32>
    %228 = arith.divf %226, %227 : vector<2x128xf32>
    %229 = vector.extract_strided_slice %217 {offsets = [0, 128], sizes = [2, 128], strides = [1, 1]} : vector<2x384xf32> to vector<2x128xf32>
    %230 = vector.extract_strided_slice %220 {offsets = [0, 128], sizes = [2, 128], strides = [1, 1]} : vector<2x384xf32> to vector<2x128xf32>
    %231 = arith.addf %229, %230 : vector<2x128xf32>
    %232 = arith.negf %231 : vector<2x128xf32>
    %233 = math.exp %232 : vector<2x128xf32>
    %cst_69 = arith.constant 1.000000e+00 : f32
    %234 = vector.broadcast %cst_69 : f32 to vector<2x128xf32>
    %235 = arith.addf %234, %233 : vector<2x128xf32>
    %236 = arith.divf %234, %235 : vector<2x128xf32>
    %237 = vector.extract_strided_slice %217 {offsets = [0, 256], sizes = [2, 128], strides = [1, 1]} : vector<2x384xf32> to vector<2x128xf32>
    %238 = vector.extract_strided_slice %220 {offsets = [0, 256], sizes = [2, 128], strides = [1, 1]} : vector<2x384xf32> to vector<2x128xf32>
    %239 = arith.mulf %228, %238 : vector<2x128xf32>
    %240 = arith.addf %237, %239 : vector<2x128xf32>
    %241 = math.tanh %240 : vector<2x128xf32>
    %cst_70 = arith.constant 1.000000e+00 : f32
    %242 = vector.broadcast %cst_70 : f32 to vector<2x128xf32>
    %243 = arith.subf %242, %236 : vector<2x128xf32>
    %244 = arith.mulf %243, %241 : vector<2x128xf32>
    %245 = arith.mulf %236, %178 : vector<2x128xf32>
    %246 = arith.addf %244, %245 : vector<2x128xf32>
    %247 = vector.extract_strided_slice %4 {offsets = [0, 2, 0], sizes = [2, 1, 128], strides = [1, 1, 1]} : vector<2x8x128xi1> to vector<2x1x128xi1>
    %248 = vector.shape_cast %247 : vector<2x1x128xi1> to vector<2x128xi1>
    %249 = arith.select %248, %215, %175 : vector<2x128xi1>, vector<2x128xf32>
    %250 = vector.extract_strided_slice %4 {offsets = [0, 5, 0], sizes = [2, 1, 128], strides = [1, 1, 1]} : vector<2x8x128xi1> to vector<2x1x128xi1>
    %251 = vector.shape_cast %250 : vector<2x1x128xi1> to vector<2x128xi1>
    %252 = arith.select %251, %246, %178 : vector<2x128xi1>, vector<2x128xf32>
    %c0_71 = arith.constant 0 : index
    %c2 = arith.constant 2 : index
    %c0_72 = arith.constant 0 : index
    %253 = vector.load %arg8[%c0_71, %c2, %c0_72] : memref<2x8x256xf32, #tpu.memory_space<vmem>>, vector<2x1x128xf32>
    %254 = vector.shape_cast %253 : vector<2x1x128xf32> to vector<2x128xf32>
    %255 = vector.shape_cast %249 : vector<2x128xf32> to vector<2x1x128xf32>
    tpu.vector_store %arg8[%c0_71, %c2, %c0_72], %255 {strides = array<i32>} : memref<2x8x256xf32, #tpu.memory_space<vmem>>, vector<2x1x128xf32>,
    %c0_73 = arith.constant 0 : index
    %c5 = arith.constant 5 : index
    %c128_74 = arith.constant 128 : index
    %256 = vector.load %arg8[%c0_73, %c5, %c128_74] : memref<2x8x256xf32, #tpu.memory_space<vmem>>, vector<2x1x128xf32>
    %257 = vector.shape_cast %256 : vector<2x1x128xf32> to vector<2x128xf32>
    %258 = vector.shape_cast %252 : vector<2x128xf32> to vector<2x1x128xf32>
    tpu.vector_store %arg8[%c0_73, %c5, %c128_74], %258 {strides = array<i32>} : memref<2x8x256xf32, #tpu.memory_space<vmem>>, vector<2x1x128xf32>,
    %259 = vector.extract_strided_slice %18 {offsets = [0, 3, 0], sizes = [2, 1, 384], strides = [1, 1, 1]} : vector<2x8x384xf32> to vector<2x1x384xf32>
    %260 = vector.shape_cast %259 : vector<2x1x384xf32> to vector<2x384xf32>
    %cst_75 = arith.constant dense<0.000000e+00> : vector<2x384xf32>
    %261 = tpu.matmul %249, %28, %cst_75 {dimension_numbers = #tpu.dot_dimension_numbers<[1], [0], [0], [1], [0, 0, 1, 1], [], []>} : vector<2x128xf32>, vector<128x384xf32>, vector<2x384xf32> -> vector<2x384xf32>
    %262 = vector.broadcast %32 : vector<1x384xf32> to vector<2x384xf32>
    %263 = arith.addf %261, %262 : vector<2x384xf32>
    %264 = vector.extract_strided_slice %260 {offsets = [0, 0], sizes = [2, 128], strides = [1, 1]} : vector<2x384xf32> to vector<2x128xf32>
    %265 = vector.extract_strided_slice %263 {offsets = [0, 0], sizes = [2, 128], strides = [1, 1]} : vector<2x384xf32> to vector<2x128xf32>
    %266 = arith.addf %264, %265 : vector<2x128xf32>
    %267 = arith.negf %266 : vector<2x128xf32>
    %268 = math.exp %267 : vector<2x128xf32>
    %cst_76 = arith.constant 1.000000e+00 : f32
    %269 = vector.broadcast %cst_76 : f32 to vector<2x128xf32>
    %270 = arith.addf %269, %268 : vector<2x128xf32>
    %271 = arith.divf %269, %270 : vector<2x128xf32>
    %272 = vector.extract_strided_slice %260 {offsets = [0, 128], sizes = [2, 128], strides = [1, 1]} : vector<2x384xf32> to vector<2x128xf32>
    %273 = vector.extract_strided_slice %263 {offsets = [0, 128], sizes = [2, 128], strides = [1, 1]} : vector<2x384xf32> to vector<2x128xf32>
    %274 = arith.addf %272, %273 : vector<2x128xf32>
    %275 = arith.negf %274 : vector<2x128xf32>
    %276 = math.exp %275 : vector<2x128xf32>
    %cst_77 = arith.constant 1.000000e+00 : f32
    %277 = vector.broadcast %cst_77 : f32 to vector<2x128xf32>
    %278 = arith.addf %277, %276 : vector<2x128xf32>
    %279 = arith.divf %277, %278 : vector<2x128xf32>
    %280 = vector.extract_strided_slice %260 {offsets = [0, 256], sizes = [2, 128], strides = [1, 1]} : vector<2x384xf32> to vector<2x128xf32>
    %281 = vector.extract_strided_slice %263 {offsets = [0, 256], sizes = [2, 128], strides = [1, 1]} : vector<2x384xf32> to vector<2x128xf32>
    %282 = arith.mulf %271, %281 : vector<2x128xf32>
    %283 = arith.addf %280, %282 : vector<2x128xf32>
    %284 = math.tanh %283 : vector<2x128xf32>
    %cst_78 = arith.constant 1.000000e+00 : f32
    %285 = vector.broadcast %cst_78 : f32 to vector<2x128xf32>
    %286 = arith.subf %285, %279 : vector<2x128xf32>
    %287 = arith.mulf %286, %284 : vector<2x128xf32>
    %288 = arith.mulf %279, %249 : vector<2x128xf32>
    %289 = arith.addf %287, %288 : vector<2x128xf32>
    %290 = vector.extract_strided_slice %26 {offsets = [0, 4, 0], sizes = [2, 1, 384], strides = [1, 1, 1]} : vector<2x8x384xf32> to vector<2x1x384xf32>
    %291 = vector.shape_cast %290 : vector<2x1x384xf32> to vector<2x384xf32>
    %cst_79 = arith.constant dense<0.000000e+00> : vector<2x384xf32>
    %292 = tpu.matmul %252, %30, %cst_79 {dimension_numbers = #tpu.dot_dimension_numbers<[1], [0], [0], [1], [0, 0, 1, 1], [], []>} : vector<2x128xf32>, vector<128x384xf32>, vector<2x384xf32> -> vector<2x384xf32>
    %293 = vector.broadcast %34 : vector<1x384xf32> to vector<2x384xf32>
    %294 = arith.addf %292, %293 : vector<2x384xf32>
    %295 = vector.extract_strided_slice %291 {offsets = [0, 0], sizes = [2, 128], strides = [1, 1]} : vector<2x384xf32> to vector<2x128xf32>
    %296 = vector.extract_strided_slice %294 {offsets = [0, 0], sizes = [2, 128], strides = [1, 1]} : vector<2x384xf32> to vector<2x128xf32>
    %297 = arith.addf %295, %296 : vector<2x128xf32>
    %298 = arith.negf %297 : vector<2x128xf32>
    %299 = math.exp %298 : vector<2x128xf32>
    %cst_80 = arith.constant 1.000000e+00 : f32
    %300 = vector.broadcast %cst_80 : f32 to vector<2x128xf32>
    %301 = arith.addf %300, %299 : vector<2x128xf32>
    %302 = arith.divf %300, %301 : vector<2x128xf32>
    %303 = vector.extract_strided_slice %291 {offsets = [0, 128], sizes = [2, 128], strides = [1, 1]} : vector<2x384xf32> to vector<2x128xf32>
    %304 = vector.extract_strided_slice %294 {offsets = [0, 128], sizes = [2, 128], strides = [1, 1]} : vector<2x384xf32> to vector<2x128xf32>
    %305 = arith.addf %303, %304 : vector<2x128xf32>
    %306 = arith.negf %305 : vector<2x128xf32>
    %307 = math.exp %306 : vector<2x128xf32>
    %cst_81 = arith.constant 1.000000e+00 : f32
    %308 = vector.broadcast %cst_81 : f32 to vector<2x128xf32>
    %309 = arith.addf %308, %307 : vector<2x128xf32>
    %310 = arith.divf %308, %309 : vector<2x128xf32>
    %311 = vector.extract_strided_slice %291 {offsets = [0, 256], sizes = [2, 128], strides = [1, 1]} : vector<2x384xf32> to vector<2x128xf32>
    %312 = vector.extract_strided_slice %294 {offsets = [0, 256], sizes = [2, 128], strides = [1, 1]} : vector<2x384xf32> to vector<2x128xf32>
    %313 = arith.mulf %302, %312 : vector<2x128xf32>
    %314 = arith.addf %311, %313 : vector<2x128xf32>
    %315 = math.tanh %314 : vector<2x128xf32>
    %cst_82 = arith.constant 1.000000e+00 : f32
    %316 = vector.broadcast %cst_82 : f32 to vector<2x128xf32>
    %317 = arith.subf %316, %310 : vector<2x128xf32>
    %318 = arith.mulf %317, %315 : vector<2x128xf32>
    %319 = arith.mulf %310, %252 : vector<2x128xf32>
    %320 = arith.addf %318, %319 : vector<2x128xf32>
    %321 = vector.extract_strided_slice %4 {offsets = [0, 3, 0], sizes = [2, 1, 128], strides = [1, 1, 1]} : vector<2x8x128xi1> to vector<2x1x128xi1>
    %322 = vector.shape_cast %321 : vector<2x1x128xi1> to vector<2x128xi1>
    %323 = arith.select %322, %289, %249 : vector<2x128xi1>, vector<2x128xf32>
    %324 = vector.extract_strided_slice %4 {offsets = [0, 4, 0], sizes = [2, 1, 128], strides = [1, 1, 1]} : vector<2x8x128xi1> to vector<2x1x128xi1>
    %325 = vector.shape_cast %324 : vector<2x1x128xi1> to vector<2x128xi1>
    %326 = arith.select %325, %320, %252 : vector<2x128xi1>, vector<2x128xf32>
    %c0_83 = arith.constant 0 : index
    %c3 = arith.constant 3 : index
    %c0_84 = arith.constant 0 : index
    %327 = vector.load %arg8[%c0_83, %c3, %c0_84] : memref<2x8x256xf32, #tpu.memory_space<vmem>>, vector<2x1x128xf32>
    %328 = vector.shape_cast %327 : vector<2x1x128xf32> to vector<2x128xf32>
    %329 = vector.shape_cast %323 : vector<2x128xf32> to vector<2x1x128xf32>
    tpu.vector_store %arg8[%c0_83, %c3, %c0_84], %329 {strides = array<i32>} : memref<2x8x256xf32, #tpu.memory_space<vmem>>, vector<2x1x128xf32>,
    %c0_85 = arith.constant 0 : index
    %c4 = arith.constant 4 : index
    %c128_86 = arith.constant 128 : index
    %330 = vector.load %arg8[%c0_85, %c4, %c128_86] : memref<2x8x256xf32, #tpu.memory_space<vmem>>, vector<2x1x128xf32>
    %331 = vector.shape_cast %330 : vector<2x1x128xf32> to vector<2x128xf32>
    %332 = vector.shape_cast %326 : vector<2x128xf32> to vector<2x1x128xf32>
    tpu.vector_store %arg8[%c0_85, %c4, %c128_86], %332 {strides = array<i32>} : memref<2x8x256xf32, #tpu.memory_space<vmem>>, vector<2x1x128xf32>,
    %333 = vector.extract_strided_slice %18 {offsets = [0, 4, 0], sizes = [2, 1, 384], strides = [1, 1, 1]} : vector<2x8x384xf32> to vector<2x1x384xf32>
    %334 = vector.shape_cast %333 : vector<2x1x384xf32> to vector<2x384xf32>
    %cst_87 = arith.constant dense<0.000000e+00> : vector<2x384xf32>
    %335 = tpu.matmul %323, %28, %cst_87 {dimension_numbers = #tpu.dot_dimension_numbers<[1], [0], [0], [1], [0, 0, 1, 1], [], []>} : vector<2x128xf32>, vector<128x384xf32>, vector<2x384xf32> -> vector<2x384xf32>
    %336 = vector.broadcast %32 : vector<1x384xf32> to vector<2x384xf32>
    %337 = arith.addf %335, %336 : vector<2x384xf32>
    %338 = vector.extract_strided_slice %334 {offsets = [0, 0], sizes = [2, 128], strides = [1, 1]} : vector<2x384xf32> to vector<2x128xf32>
    %339 = vector.extract_strided_slice %337 {offsets = [0, 0], sizes = [2, 128], strides = [1, 1]} : vector<2x384xf32> to vector<2x128xf32>
    %340 = arith.addf %338, %339 : vector<2x128xf32>
    %341 = arith.negf %340 : vector<2x128xf32>
    %342 = math.exp %341 : vector<2x128xf32>
    %cst_88 = arith.constant 1.000000e+00 : f32
    %343 = vector.broadcast %cst_88 : f32 to vector<2x128xf32>
    %344 = arith.addf %343, %342 : vector<2x128xf32>
    %345 = arith.divf %343, %344 : vector<2x128xf32>
    %346 = vector.extract_strided_slice %334 {offsets = [0, 128], sizes = [2, 128], strides = [1, 1]} : vector<2x384xf32> to vector<2x128xf32>
    %347 = vector.extract_strided_slice %337 {offsets = [0, 128], sizes = [2, 128], strides = [1, 1]} : vector<2x384xf32> to vector<2x128xf32>
    %348 = arith.addf %346, %347 : vector<2x128xf32>
    %349 = arith.negf %348 : vector<2x128xf32>
    %350 = math.exp %349 : vector<2x128xf32>
    %cst_89 = arith.constant 1.000000e+00 : f32
    %351 = vector.broadcast %cst_89 : f32 to vector<2x128xf32>
    %352 = arith.addf %351, %350 : vector<2x128xf32>
    %353 = arith.divf %351, %352 : vector<2x128xf32>
    %354 = vector.extract_strided_slice %334 {offsets = [0, 256], sizes = [2, 128], strides = [1, 1]} : vector<2x384xf32> to vector<2x128xf32>
    %355 = vector.extract_strided_slice %337 {offsets = [0, 256], sizes = [2, 128], strides = [1, 1]} : vector<2x384xf32> to vector<2x128xf32>
    %356 = arith.mulf %345, %355 : vector<2x128xf32>
    %357 = arith.addf %354, %356 : vector<2x128xf32>
    %358 = math.tanh %357 : vector<2x128xf32>
    %cst_90 = arith.constant 1.000000e+00 : f32
    %359 = vector.broadcast %cst_90 : f32 to vector<2x128xf32>
    %360 = arith.subf %359, %353 : vector<2x128xf32>
    %361 = arith.mulf %360, %358 : vector<2x128xf32>
    %362 = arith.mulf %353, %323 : vector<2x128xf32>
    %363 = arith.addf %361, %362 : vector<2x128xf32>
    %364 = vector.extract_strided_slice %26 {offsets = [0, 3, 0], sizes = [2, 1, 384], strides = [1, 1, 1]} : vector<2x8x384xf32> to vector<2x1x384xf32>
    %365 = vector.shape_cast %364 : vector<2x1x384xf32> to vector<2x384xf32>
    %cst_91 = arith.constant dense<0.000000e+00> : vector<2x384xf32>
    %366 = tpu.matmul %326, %30, %cst_91 {dimension_numbers = #tpu.dot_dimension_numbers<[1], [0], [0], [1], [0, 0, 1, 1], [], []>} : vector<2x128xf32>, vector<128x384xf32>, vector<2x384xf32> -> vector<2x384xf32>
    %367 = vector.broadcast %34 : vector<1x384xf32> to vector<2x384xf32>
    %368 = arith.addf %366, %367 : vector<2x384xf32>
    %369 = vector.extract_strided_slice %365 {offsets = [0, 0], sizes = [2, 128], strides = [1, 1]} : vector<2x384xf32> to vector<2x128xf32>
    %370 = vector.extract_strided_slice %368 {offsets = [0, 0], sizes = [2, 128], strides = [1, 1]} : vector<2x384xf32> to vector<2x128xf32>
    %371 = arith.addf %369, %370 : vector<2x128xf32>
    %372 = arith.negf %371 : vector<2x128xf32>
    %373 = math.exp %372 : vector<2x128xf32>
    %cst_92 = arith.constant 1.000000e+00 : f32
    %374 = vector.broadcast %cst_92 : f32 to vector<2x128xf32>
    %375 = arith.addf %374, %373 : vector<2x128xf32>
    %376 = arith.divf %374, %375 : vector<2x128xf32>
    %377 = vector.extract_strided_slice %365 {offsets = [0, 128], sizes = [2, 128], strides = [1, 1]} : vector<2x384xf32> to vector<2x128xf32>
    %378 = vector.extract_strided_slice %368 {offsets = [0, 128], sizes = [2, 128], strides = [1, 1]} : vector<2x384xf32> to vector<2x128xf32>
    %379 = arith.addf %377, %378 : vector<2x128xf32>
    %380 = arith.negf %379 : vector<2x128xf32>
    %381 = math.exp %380 : vector<2x128xf32>
    %cst_93 = arith.constant 1.000000e+00 : f32
    %382 = vector.broadcast %cst_93 : f32 to vector<2x128xf32>
    %383 = arith.addf %382, %381 : vector<2x128xf32>
    %384 = arith.divf %382, %383 : vector<2x128xf32>
    %385 = vector.extract_strided_slice %365 {offsets = [0, 256], sizes = [2, 128], strides = [1, 1]} : vector<2x384xf32> to vector<2x128xf32>
    %386 = vector.extract_strided_slice %368 {offsets = [0, 256], sizes = [2, 128], strides = [1, 1]} : vector<2x384xf32> to vector<2x128xf32>
    %387 = arith.mulf %376, %386 : vector<2x128xf32>
    %388 = arith.addf %385, %387 : vector<2x128xf32>
    %389 = math.tanh %388 : vector<2x128xf32>
    %cst_94 = arith.constant 1.000000e+00 : f32
    %390 = vector.broadcast %cst_94 : f32 to vector<2x128xf32>
    %391 = arith.subf %390, %384 : vector<2x128xf32>
    %392 = arith.mulf %391, %389 : vector<2x128xf32>
    %393 = arith.mulf %384, %326 : vector<2x128xf32>
    %394 = arith.addf %392, %393 : vector<2x128xf32>
    %395 = vector.extract_strided_slice %4 {offsets = [0, 4, 0], sizes = [2, 1, 128], strides = [1, 1, 1]} : vector<2x8x128xi1> to vector<2x1x128xi1>
    %396 = vector.shape_cast %395 : vector<2x1x128xi1> to vector<2x128xi1>
    %397 = arith.select %396, %363, %323 : vector<2x128xi1>, vector<2x128xf32>
    %398 = vector.extract_strided_slice %4 {offsets = [0, 3, 0], sizes = [2, 1, 128], strides = [1, 1, 1]} : vector<2x8x128xi1> to vector<2x1x128xi1>
    %399 = vector.shape_cast %398 : vector<2x1x128xi1> to vector<2x128xi1>
    %400 = arith.select %399, %394, %326 : vector<2x128xi1>, vector<2x128xf32>
    %c0_95 = arith.constant 0 : index
    %c4_96 = arith.constant 4 : index
    %c0_97 = arith.constant 0 : index
    %401 = vector.load %arg8[%c0_95, %c4_96, %c0_97] : memref<2x8x256xf32, #tpu.memory_space<vmem>>, vector<2x1x128xf32>
    %402 = vector.shape_cast %401 : vector<2x1x128xf32> to vector<2x128xf32>
    %403 = vector.shape_cast %397 : vector<2x128xf32> to vector<2x1x128xf32>
    tpu.vector_store %arg8[%c0_95, %c4_96, %c0_97], %403 {strides = array<i32>} : memref<2x8x256xf32, #tpu.memory_space<vmem>>, vector<2x1x128xf32>,
    %c0_98 = arith.constant 0 : index
    %c3_99 = arith.constant 3 : index
    %c128_100 = arith.constant 128 : index
    %404 = vector.load %arg8[%c0_98, %c3_99, %c128_100] : memref<2x8x256xf32, #tpu.memory_space<vmem>>, vector<2x1x128xf32>
    %405 = vector.shape_cast %404 : vector<2x1x128xf32> to vector<2x128xf32>
    %406 = vector.shape_cast %400 : vector<2x128xf32> to vector<2x1x128xf32>
    tpu.vector_store %arg8[%c0_98, %c3_99, %c128_100], %406 {strides = array<i32>} : memref<2x8x256xf32, #tpu.memory_space<vmem>>, vector<2x1x128xf32>,
    %407 = vector.extract_strided_slice %18 {offsets = [0, 5, 0], sizes = [2, 1, 384], strides = [1, 1, 1]} : vector<2x8x384xf32> to vector<2x1x384xf32>
    %408 = vector.shape_cast %407 : vector<2x1x384xf32> to vector<2x384xf32>
    %cst_101 = arith.constant dense<0.000000e+00> : vector<2x384xf32>
    %409 = tpu.matmul %397, %28, %cst_101 {dimension_numbers = #tpu.dot_dimension_numbers<[1], [0], [0], [1], [0, 0, 1, 1], [], []>} : vector<2x128xf32>, vector<128x384xf32>, vector<2x384xf32> -> vector<2x384xf32>
    %410 = vector.broadcast %32 : vector<1x384xf32> to vector<2x384xf32>
    %411 = arith.addf %409, %410 : vector<2x384xf32>
    %412 = vector.extract_strided_slice %408 {offsets = [0, 0], sizes = [2, 128], strides = [1, 1]} : vector<2x384xf32> to vector<2x128xf32>
    %413 = vector.extract_strided_slice %411 {offsets = [0, 0], sizes = [2, 128], strides = [1, 1]} : vector<2x384xf32> to vector<2x128xf32>
    %414 = arith.addf %412, %413 : vector<2x128xf32>
    %415 = arith.negf %414 : vector<2x128xf32>
    %416 = math.exp %415 : vector<2x128xf32>
    %cst_102 = arith.constant 1.000000e+00 : f32
    %417 = vector.broadcast %cst_102 : f32 to vector<2x128xf32>
    %418 = arith.addf %417, %416 : vector<2x128xf32>
    %419 = arith.divf %417, %418 : vector<2x128xf32>
    %420 = vector.extract_strided_slice %408 {offsets = [0, 128], sizes = [2, 128], strides = [1, 1]} : vector<2x384xf32> to vector<2x128xf32>
    %421 = vector.extract_strided_slice %411 {offsets = [0, 128], sizes = [2, 128], strides = [1, 1]} : vector<2x384xf32> to vector<2x128xf32>
    %422 = arith.addf %420, %421 : vector<2x128xf32>
    %423 = arith.negf %422 : vector<2x128xf32>
    %424 = math.exp %423 : vector<2x128xf32>
    %cst_103 = arith.constant 1.000000e+00 : f32
    %425 = vector.broadcast %cst_103 : f32 to vector<2x128xf32>
    %426 = arith.addf %425, %424 : vector<2x128xf32>
    %427 = arith.divf %425, %426 : vector<2x128xf32>
    %428 = vector.extract_strided_slice %408 {offsets = [0, 256], sizes = [2, 128], strides = [1, 1]} : vector<2x384xf32> to vector<2x128xf32>
    %429 = vector.extract_strided_slice %411 {offsets = [0, 256], sizes = [2, 128], strides = [1, 1]} : vector<2x384xf32> to vector<2x128xf32>
    %430 = arith.mulf %419, %429 : vector<2x128xf32>
    %431 = arith.addf %428, %430 : vector<2x128xf32>
    %432 = math.tanh %431 : vector<2x128xf32>
    %cst_104 = arith.constant 1.000000e+00 : f32
    %433 = vector.broadcast %cst_104 : f32 to vector<2x128xf32>
    %434 = arith.subf %433, %427 : vector<2x128xf32>
    %435 = arith.mulf %434, %432 : vector<2x128xf32>
    %436 = arith.mulf %427, %397 : vector<2x128xf32>
    %437 = arith.addf %435, %436 : vector<2x128xf32>
    %438 = vector.extract_strided_slice %26 {offsets = [0, 2, 0], sizes = [2, 1, 384], strides = [1, 1, 1]} : vector<2x8x384xf32> to vector<2x1x384xf32>
    %439 = vector.shape_cast %438 : vector<2x1x384xf32> to vector<2x384xf32>
    %cst_105 = arith.constant dense<0.000000e+00> : vector<2x384xf32>
    %440 = tpu.matmul %400, %30, %cst_105 {dimension_numbers = #tpu.dot_dimension_numbers<[1], [0], [0], [1], [0, 0, 1, 1], [], []>} : vector<2x128xf32>, vector<128x384xf32>, vector<2x384xf32> -> vector<2x384xf32>
    %441 = vector.broadcast %34 : vector<1x384xf32> to vector<2x384xf32>
    %442 = arith.addf %440, %441 : vector<2x384xf32>
    %443 = vector.extract_strided_slice %439 {offsets = [0, 0], sizes = [2, 128], strides = [1, 1]} : vector<2x384xf32> to vector<2x128xf32>
    %444 = vector.extract_strided_slice %442 {offsets = [0, 0], sizes = [2, 128], strides = [1, 1]} : vector<2x384xf32> to vector<2x128xf32>
    %445 = arith.addf %443, %444 : vector<2x128xf32>
    %446 = arith.negf %445 : vector<2x128xf32>
    %447 = math.exp %446 : vector<2x128xf32>
    %cst_106 = arith.constant 1.000000e+00 : f32
    %448 = vector.broadcast %cst_106 : f32 to vector<2x128xf32>
    %449 = arith.addf %448, %447 : vector<2x128xf32>
    %450 = arith.divf %448, %449 : vector<2x128xf32>
    %451 = vector.extract_strided_slice %439 {offsets = [0, 128], sizes = [2, 128], strides = [1, 1]} : vector<2x384xf32> to vector<2x128xf32>
    %452 = vector.extract_strided_slice %442 {offsets = [0, 128], sizes = [2, 128], strides = [1, 1]} : vector<2x384xf32> to vector<2x128xf32>
    %453 = arith.addf %451, %452 : vector<2x128xf32>
    %454 = arith.negf %453 : vector<2x128xf32>
    %455 = math.exp %454 : vector<2x128xf32>
    %cst_107 = arith.constant 1.000000e+00 : f32
    %456 = vector.broadcast %cst_107 : f32 to vector<2x128xf32>
    %457 = arith.addf %456, %455 : vector<2x128xf32>
    %458 = arith.divf %456, %457 : vector<2x128xf32>
    %459 = vector.extract_strided_slice %439 {offsets = [0, 256], sizes = [2, 128], strides = [1, 1]} : vector<2x384xf32> to vector<2x128xf32>
    %460 = vector.extract_strided_slice %442 {offsets = [0, 256], sizes = [2, 128], strides = [1, 1]} : vector<2x384xf32> to vector<2x128xf32>
    %461 = arith.mulf %450, %460 : vector<2x128xf32>
    %462 = arith.addf %459, %461 : vector<2x128xf32>
    %463 = math.tanh %462 : vector<2x128xf32>
    %cst_108 = arith.constant 1.000000e+00 : f32
    %464 = vector.broadcast %cst_108 : f32 to vector<2x128xf32>
    %465 = arith.subf %464, %458 : vector<2x128xf32>
    %466 = arith.mulf %465, %463 : vector<2x128xf32>
    %467 = arith.mulf %458, %400 : vector<2x128xf32>
    %468 = arith.addf %466, %467 : vector<2x128xf32>
    %469 = vector.extract_strided_slice %4 {offsets = [0, 5, 0], sizes = [2, 1, 128], strides = [1, 1, 1]} : vector<2x8x128xi1> to vector<2x1x128xi1>
    %470 = vector.shape_cast %469 : vector<2x1x128xi1> to vector<2x128xi1>
    %471 = arith.select %470, %437, %397 : vector<2x128xi1>, vector<2x128xf32>
    %472 = vector.extract_strided_slice %4 {offsets = [0, 2, 0], sizes = [2, 1, 128], strides = [1, 1, 1]} : vector<2x8x128xi1> to vector<2x1x128xi1>
    %473 = vector.shape_cast %472 : vector<2x1x128xi1> to vector<2x128xi1>
    %474 = arith.select %473, %468, %400 : vector<2x128xi1>, vector<2x128xf32>
    %c0_109 = arith.constant 0 : index
    %c5_110 = arith.constant 5 : index
    %c0_111 = arith.constant 0 : index
    %475 = vector.load %arg8[%c0_109, %c5_110, %c0_111] : memref<2x8x256xf32, #tpu.memory_space<vmem>>, vector<2x1x128xf32>
    %476 = vector.shape_cast %475 : vector<2x1x128xf32> to vector<2x128xf32>
    %477 = vector.shape_cast %471 : vector<2x128xf32> to vector<2x1x128xf32>
    tpu.vector_store %arg8[%c0_109, %c5_110, %c0_111], %477 {strides = array<i32>} : memref<2x8x256xf32, #tpu.memory_space<vmem>>, vector<2x1x128xf32>,
    %c0_112 = arith.constant 0 : index
    %c2_113 = arith.constant 2 : index
    %c128_114 = arith.constant 128 : index
    %478 = vector.load %arg8[%c0_112, %c2_113, %c128_114] : memref<2x8x256xf32, #tpu.memory_space<vmem>>, vector<2x1x128xf32>
    %479 = vector.shape_cast %478 : vector<2x1x128xf32> to vector<2x128xf32>
    %480 = vector.shape_cast %474 : vector<2x128xf32> to vector<2x1x128xf32>
    tpu.vector_store %arg8[%c0_112, %c2_113, %c128_114], %480 {strides = array<i32>} : memref<2x8x256xf32, #tpu.memory_space<vmem>>, vector<2x1x128xf32>,
    %481 = vector.extract_strided_slice %18 {offsets = [0, 6, 0], sizes = [2, 1, 384], strides = [1, 1, 1]} : vector<2x8x384xf32> to vector<2x1x384xf32>
    %482 = vector.shape_cast %481 : vector<2x1x384xf32> to vector<2x384xf32>
    %cst_115 = arith.constant dense<0.000000e+00> : vector<2x384xf32>
    %483 = tpu.matmul %471, %28, %cst_115 {dimension_numbers = #tpu.dot_dimension_numbers<[1], [0], [0], [1], [0, 0, 1, 1], [], []>} : vector<2x128xf32>, vector<128x384xf32>, vector<2x384xf32> -> vector<2x384xf32>
    %484 = vector.broadcast %32 : vector<1x384xf32> to vector<2x384xf32>
    %485 = arith.addf %483, %484 : vector<2x384xf32>
    %486 = vector.extract_strided_slice %482 {offsets = [0, 0], sizes = [2, 128], strides = [1, 1]} : vector<2x384xf32> to vector<2x128xf32>
    %487 = vector.extract_strided_slice %485 {offsets = [0, 0], sizes = [2, 128], strides = [1, 1]} : vector<2x384xf32> to vector<2x128xf32>
    %488 = arith.addf %486, %487 : vector<2x128xf32>
    %489 = arith.negf %488 : vector<2x128xf32>
    %490 = math.exp %489 : vector<2x128xf32>
    %cst_116 = arith.constant 1.000000e+00 : f32
    %491 = vector.broadcast %cst_116 : f32 to vector<2x128xf32>
    %492 = arith.addf %491, %490 : vector<2x128xf32>
    %493 = arith.divf %491, %492 : vector<2x128xf32>
    %494 = vector.extract_strided_slice %482 {offsets = [0, 128], sizes = [2, 128], strides = [1, 1]} : vector<2x384xf32> to vector<2x128xf32>
    %495 = vector.extract_strided_slice %485 {offsets = [0, 128], sizes = [2, 128], strides = [1, 1]} : vector<2x384xf32> to vector<2x128xf32>
    %496 = arith.addf %494, %495 : vector<2x128xf32>
    %497 = arith.negf %496 : vector<2x128xf32>
    %498 = math.exp %497 : vector<2x128xf32>
    %cst_117 = arith.constant 1.000000e+00 : f32
    %499 = vector.broadcast %cst_117 : f32 to vector<2x128xf32>
    %500 = arith.addf %499, %498 : vector<2x128xf32>
    %501 = arith.divf %499, %500 : vector<2x128xf32>
    %502 = vector.extract_strided_slice %482 {offsets = [0, 256], sizes = [2, 128], strides = [1, 1]} : vector<2x384xf32> to vector<2x128xf32>
    %503 = vector.extract_strided_slice %485 {offsets = [0, 256], sizes = [2, 128], strides = [1, 1]} : vector<2x384xf32> to vector<2x128xf32>
    %504 = arith.mulf %493, %503 : vector<2x128xf32>
    %505 = arith.addf %502, %504 : vector<2x128xf32>
    %506 = math.tanh %505 : vector<2x128xf32>
    %cst_118 = arith.constant 1.000000e+00 : f32
    %507 = vector.broadcast %cst_118 : f32 to vector<2x128xf32>
    %508 = arith.subf %507, %501 : vector<2x128xf32>
    %509 = arith.mulf %508, %506 : vector<2x128xf32>
    %510 = arith.mulf %501, %471 : vector<2x128xf32>
    %511 = arith.addf %509, %510 : vector<2x128xf32>
    %512 = vector.extract_strided_slice %26 {offsets = [0, 1, 0], sizes = [2, 1, 384], strides = [1, 1, 1]} : vector<2x8x384xf32> to vector<2x1x384xf32>
    %513 = vector.shape_cast %512 : vector<2x1x384xf32> to vector<2x384xf32>
    %cst_119 = arith.constant dense<0.000000e+00> : vector<2x384xf32>
    %514 = tpu.matmul %474, %30, %cst_119 {dimension_numbers = #tpu.dot_dimension_numbers<[1], [0], [0], [1], [0, 0, 1, 1], [], []>} : vector<2x128xf32>, vector<128x384xf32>, vector<2x384xf32> -> vector<2x384xf32>
    %515 = vector.broadcast %34 : vector<1x384xf32> to vector<2x384xf32>
    %516 = arith.addf %514, %515 : vector<2x384xf32>
    %517 = vector.extract_strided_slice %513 {offsets = [0, 0], sizes = [2, 128], strides = [1, 1]} : vector<2x384xf32> to vector<2x128xf32>
    %518 = vector.extract_strided_slice %516 {offsets = [0, 0], sizes = [2, 128], strides = [1, 1]} : vector<2x384xf32> to vector<2x128xf32>
    %519 = arith.addf %517, %518 : vector<2x128xf32>
    %520 = arith.negf %519 : vector<2x128xf32>
    %521 = math.exp %520 : vector<2x128xf32>
    %cst_120 = arith.constant 1.000000e+00 : f32
    %522 = vector.broadcast %cst_120 : f32 to vector<2x128xf32>
    %523 = arith.addf %522, %521 : vector<2x128xf32>
    %524 = arith.divf %522, %523 : vector<2x128xf32>
    %525 = vector.extract_strided_slice %513 {offsets = [0, 128], sizes = [2, 128], strides = [1, 1]} : vector<2x384xf32> to vector<2x128xf32>
    %526 = vector.extract_strided_slice %516 {offsets = [0, 128], sizes = [2, 128], strides = [1, 1]} : vector<2x384xf32> to vector<2x128xf32>
    %527 = arith.addf %525, %526 : vector<2x128xf32>
    %528 = arith.negf %527 : vector<2x128xf32>
    %529 = math.exp %528 : vector<2x128xf32>
    %cst_121 = arith.constant 1.000000e+00 : f32
    %530 = vector.broadcast %cst_121 : f32 to vector<2x128xf32>
    %531 = arith.addf %530, %529 : vector<2x128xf32>
    %532 = arith.divf %530, %531 : vector<2x128xf32>
    %533 = vector.extract_strided_slice %513 {offsets = [0, 256], sizes = [2, 128], strides = [1, 1]} : vector<2x384xf32> to vector<2x128xf32>
    %534 = vector.extract_strided_slice %516 {offsets = [0, 256], sizes = [2, 128], strides = [1, 1]} : vector<2x384xf32> to vector<2x128xf32>
    %535 = arith.mulf %524, %534 : vector<2x128xf32>
    %536 = arith.addf %533, %535 : vector<2x128xf32>
    %537 = math.tanh %536 : vector<2x128xf32>
    %cst_122 = arith.constant 1.000000e+00 : f32
    %538 = vector.broadcast %cst_122 : f32 to vector<2x128xf32>
    %539 = arith.subf %538, %532 : vector<2x128xf32>
    %540 = arith.mulf %539, %537 : vector<2x128xf32>
    %541 = arith.mulf %532, %474 : vector<2x128xf32>
    %542 = arith.addf %540, %541 : vector<2x128xf32>
    %543 = vector.extract_strided_slice %4 {offsets = [0, 6, 0], sizes = [2, 1, 128], strides = [1, 1, 1]} : vector<2x8x128xi1> to vector<2x1x128xi1>
    %544 = vector.shape_cast %543 : vector<2x1x128xi1> to vector<2x128xi1>
    %545 = arith.select %544, %511, %471 : vector<2x128xi1>, vector<2x128xf32>
    %546 = vector.extract_strided_slice %4 {offsets = [0, 1, 0], sizes = [2, 1, 128], strides = [1, 1, 1]} : vector<2x8x128xi1> to vector<2x1x128xi1>
    %547 = vector.shape_cast %546 : vector<2x1x128xi1> to vector<2x128xi1>
    %548 = arith.select %547, %542, %474 : vector<2x128xi1>, vector<2x128xf32>
    %c0_123 = arith.constant 0 : index
    %c6_124 = arith.constant 6 : index
    %c0_125 = arith.constant 0 : index
    %549 = vector.load %arg8[%c0_123, %c6_124, %c0_125] : memref<2x8x256xf32, #tpu.memory_space<vmem>>, vector<2x1x128xf32>
    %550 = vector.shape_cast %549 : vector<2x1x128xf32> to vector<2x128xf32>
    %551 = vector.shape_cast %545 : vector<2x128xf32> to vector<2x1x128xf32>
    tpu.vector_store %arg8[%c0_123, %c6_124, %c0_125], %551 {strides = array<i32>} : memref<2x8x256xf32, #tpu.memory_space<vmem>>, vector<2x1x128xf32>,
    %c0_126 = arith.constant 0 : index
    %c1_127 = arith.constant 1 : index
    %c128_128 = arith.constant 128 : index
    %552 = vector.load %arg8[%c0_126, %c1_127, %c128_128] : memref<2x8x256xf32, #tpu.memory_space<vmem>>, vector<2x1x128xf32>
    %553 = vector.shape_cast %552 : vector<2x1x128xf32> to vector<2x128xf32>
    %554 = vector.shape_cast %548 : vector<2x128xf32> to vector<2x1x128xf32>
    tpu.vector_store %arg8[%c0_126, %c1_127, %c128_128], %554 {strides = array<i32>} : memref<2x8x256xf32, #tpu.memory_space<vmem>>, vector<2x1x128xf32>,
    %555 = vector.extract_strided_slice %18 {offsets = [0, 7, 0], sizes = [2, 1, 384], strides = [1, 1, 1]} : vector<2x8x384xf32> to vector<2x1x384xf32>
    %556 = vector.shape_cast %555 : vector<2x1x384xf32> to vector<2x384xf32>
    %cst_129 = arith.constant dense<0.000000e+00> : vector<2x384xf32>
    %557 = tpu.matmul %545, %28, %cst_129 {dimension_numbers = #tpu.dot_dimension_numbers<[1], [0], [0], [1], [0, 0, 1, 1], [], []>} : vector<2x128xf32>, vector<128x384xf32>, vector<2x384xf32> -> vector<2x384xf32>
    %558 = vector.broadcast %32 : vector<1x384xf32> to vector<2x384xf32>
    %559 = arith.addf %557, %558 : vector<2x384xf32>
    %560 = vector.extract_strided_slice %556 {offsets = [0, 0], sizes = [2, 128], strides = [1, 1]} : vector<2x384xf32> to vector<2x128xf32>
    %561 = vector.extract_strided_slice %559 {offsets = [0, 0], sizes = [2, 128], strides = [1, 1]} : vector<2x384xf32> to vector<2x128xf32>
    %562 = arith.addf %560, %561 : vector<2x128xf32>
    %563 = arith.negf %562 : vector<2x128xf32>
    %564 = math.exp %563 : vector<2x128xf32>
    %cst_130 = arith.constant 1.000000e+00 : f32
    %565 = vector.broadcast %cst_130 : f32 to vector<2x128xf32>
    %566 = arith.addf %565, %564 : vector<2x128xf32>
    %567 = arith.divf %565, %566 : vector<2x128xf32>
    %568 = vector.extract_strided_slice %556 {offsets = [0, 128], sizes = [2, 128], strides = [1, 1]} : vector<2x384xf32> to vector<2x128xf32>
    %569 = vector.extract_strided_slice %559 {offsets = [0, 128], sizes = [2, 128], strides = [1, 1]} : vector<2x384xf32> to vector<2x128xf32>
    %570 = arith.addf %568, %569 : vector<2x128xf32>
    %571 = arith.negf %570 : vector<2x128xf32>
    %572 = math.exp %571 : vector<2x128xf32>
    %cst_131 = arith.constant 1.000000e+00 : f32
    %573 = vector.broadcast %cst_131 : f32 to vector<2x128xf32>
    %574 = arith.addf %573, %572 : vector<2x128xf32>
    %575 = arith.divf %573, %574 : vector<2x128xf32>
    %576 = vector.extract_strided_slice %556 {offsets = [0, 256], sizes = [2, 128], strides = [1, 1]} : vector<2x384xf32> to vector<2x128xf32>
    %577 = vector.extract_strided_slice %559 {offsets = [0, 256], sizes = [2, 128], strides = [1, 1]} : vector<2x384xf32> to vector<2x128xf32>
    %578 = arith.mulf %567, %577 : vector<2x128xf32>
    %579 = arith.addf %576, %578 : vector<2x128xf32>
    %580 = math.tanh %579 : vector<2x128xf32>
    %cst_132 = arith.constant 1.000000e+00 : f32
    %581 = vector.broadcast %cst_132 : f32 to vector<2x128xf32>
    %582 = arith.subf %581, %575 : vector<2x128xf32>
    %583 = arith.mulf %582, %580 : vector<2x128xf32>
    %584 = arith.mulf %575, %545 : vector<2x128xf32>
    %585 = arith.addf %583, %584 : vector<2x128xf32>
    %586 = vector.extract_strided_slice %26 {offsets = [0, 0, 0], sizes = [2, 1, 384], strides = [1, 1, 1]} : vector<2x8x384xf32> to vector<2x1x384xf32>
    %587 = vector.shape_cast %586 : vector<2x1x384xf32> to vector<2x384xf32>
    %cst_133 = arith.constant dense<0.000000e+00> : vector<2x384xf32>
    %588 = tpu.matmul %548, %30, %cst_133 {dimension_numbers = #tpu.dot_dimension_numbers<[1], [0], [0], [1], [0, 0, 1, 1], [], []>} : vector<2x128xf32>, vector<128x384xf32>, vector<2x384xf32> -> vector<2x384xf32>
    %589 = vector.broadcast %34 : vector<1x384xf32> to vector<2x384xf32>
    %590 = arith.addf %588, %589 : vector<2x384xf32>
    %591 = vector.extract_strided_slice %587 {offsets = [0, 0], sizes = [2, 128], strides = [1, 1]} : vector<2x384xf32> to vector<2x128xf32>
    %592 = vector.extract_strided_slice %590 {offsets = [0, 0], sizes = [2, 128], strides = [1, 1]} : vector<2x384xf32> to vector<2x128xf32>
    %593 = arith.addf %591, %592 : vector<2x128xf32>
    %594 = arith.negf %593 : vector<2x128xf32>
    %595 = math.exp %594 : vector<2x128xf32>
    %cst_134 = arith.constant 1.000000e+00 : f32
    %596 = vector.broadcast %cst_134 : f32 to vector<2x128xf32>
    %597 = arith.addf %596, %595 : vector<2x128xf32>
    %598 = arith.divf %596, %597 : vector<2x128xf32>
    %599 = vector.extract_strided_slice %587 {offsets = [0, 128], sizes = [2, 128], strides = [1, 1]} : vector<2x384xf32> to vector<2x128xf32>
    %600 = vector.extract_strided_slice %590 {offsets = [0, 128], sizes = [2, 128], strides = [1, 1]} : vector<2x384xf32> to vector<2x128xf32>
    %601 = arith.addf %599, %600 : vector<2x128xf32>
    %602 = arith.negf %601 : vector<2x128xf32>
    %603 = math.exp %602 : vector<2x128xf32>
    %cst_135 = arith.constant 1.000000e+00 : f32
    %604 = vector.broadcast %cst_135 : f32 to vector<2x128xf32>
    %605 = arith.addf %604, %603 : vector<2x128xf32>
    %606 = arith.divf %604, %605 : vector<2x128xf32>
    %607 = vector.extract_strided_slice %587 {offsets = [0, 256], sizes = [2, 128], strides = [1, 1]} : vector<2x384xf32> to vector<2x128xf32>
    %608 = vector.extract_strided_slice %590 {offsets = [0, 256], sizes = [2, 128], strides = [1, 1]} : vector<2x384xf32> to vector<2x128xf32>
    %609 = arith.mulf %598, %608 : vector<2x128xf32>
    %610 = arith.addf %607, %609 : vector<2x128xf32>
    %611 = math.tanh %610 : vector<2x128xf32>
    %cst_136 = arith.constant 1.000000e+00 : f32
    %612 = vector.broadcast %cst_136 : f32 to vector<2x128xf32>
    %613 = arith.subf %612, %606 : vector<2x128xf32>
    %614 = arith.mulf %613, %611 : vector<2x128xf32>
    %615 = arith.mulf %606, %548 : vector<2x128xf32>
    %616 = arith.addf %614, %615 : vector<2x128xf32>
    %617 = vector.extract_strided_slice %4 {offsets = [0, 7, 0], sizes = [2, 1, 128], strides = [1, 1, 1]} : vector<2x8x128xi1> to vector<2x1x128xi1>
    %618 = vector.shape_cast %617 : vector<2x1x128xi1> to vector<2x128xi1>
    %619 = arith.select %618, %585, %545 : vector<2x128xi1>, vector<2x128xf32>
    %620 = vector.extract_strided_slice %4 {offsets = [0, 0, 0], sizes = [2, 1, 128], strides = [1, 1, 1]} : vector<2x8x128xi1> to vector<2x1x128xi1>
    %621 = vector.shape_cast %620 : vector<2x1x128xi1> to vector<2x128xi1>
    %622 = arith.select %621, %616, %548 : vector<2x128xi1>, vector<2x128xf32>
    %c0_137 = arith.constant 0 : index
    %c7_138 = arith.constant 7 : index
    %c0_139 = arith.constant 0 : index
    %623 = vector.load %arg8[%c0_137, %c7_138, %c0_139] : memref<2x8x256xf32, #tpu.memory_space<vmem>>, vector<2x1x128xf32>
    %624 = vector.shape_cast %623 : vector<2x1x128xf32> to vector<2x128xf32>
    %625 = vector.shape_cast %619 : vector<2x128xf32> to vector<2x1x128xf32>
    tpu.vector_store %arg8[%c0_137, %c7_138, %c0_139], %625 {strides = array<i32>} : memref<2x8x256xf32, #tpu.memory_space<vmem>>, vector<2x1x128xf32>,
    %c0_140 = arith.constant 0 : index
    %c0_141 = arith.constant 0 : index
    %c128_142 = arith.constant 128 : index
    %626 = vector.load %arg8[%c0_140, %c0_141, %c128_142] : memref<2x8x256xf32, #tpu.memory_space<vmem>>, vector<2x1x128xf32>
    %627 = vector.shape_cast %626 : vector<2x1x128xf32> to vector<2x128xf32>
    %628 = vector.shape_cast %622 : vector<2x128xf32> to vector<2x1x128xf32>
    tpu.vector_store %arg8[%c0_140, %c0_141, %c128_142], %628 {strides = array<i32>} : memref<2x8x256xf32, #tpu.memory_space<vmem>>, vector<2x1x128xf32>,
    %c0_143 = arith.constant 0 : index
    %c0_144 = arith.constant 0 : index
    %c0_145 = arith.constant 0 : index
    %629 = vector.load %arg8[%c0_143, %c0_144, %c0_145] : memref<2x8x256xf32, #tpu.memory_space<vmem>>, vector<2x8x256xf32>
    %630 = vector.shape_cast %629 : vector<2x8x256xf32> to vector<16x256xf32>
    %c1_146 = arith.constant 1 : index
    %c0_147 = arith.constant 0 : index
    %c0_148 = arith.constant 0 : index
    %c0_149 = arith.constant 0 : index
    %631 = vector.load %arg3[%c1_146, %c0_147, %c0_148, %c0_149] : memref<2x2x256x384xf32, #tpu.memory_space<vmem>>, vector<1x1x256x384xf32>
    %632 = vector.shape_cast %631 : vector<1x1x256x384xf32> to vector<256x384xf32>
    %cst_150 = arith.constant dense<0.000000e+00> : vector<16x384xf32>
    %633 = tpu.matmul %630, %632, %cst_150 {dimension_numbers = #tpu.dot_dimension_numbers<[1], [0], [0], [1], [0, 0, 1, 1], [], []>} : vector<16x256xf32>, vector<256x384xf32>, vector<16x384xf32> -> vector<16x384xf32>
    %c1_151 = arith.constant 1 : index
    %c0_152 = arith.constant 0 : index
    %c0_153 = arith.constant 0 : index
    %c0_154 = arith.constant 0 : index
    %634 = vector.load %arg5[%c1_151, %c0_152, %c0_153, %c0_154] : memref<2x2x1x384xf32, #tpu.memory_space<vmem>>, vector<1x1x1x384xf32>
    %635 = vector.shape_cast %634 : vector<1x1x1x384xf32> to vector<1x384xf32>
    %636 = vector.broadcast %635 : vector<1x384xf32> to vector<16x384xf32>
    %637 = arith.addf %633, %636 : vector<16x384xf32>
    %638 = vector.shape_cast %637 : vector<16x384xf32> to vector<2x8x384xf32>
    %c1_155 = arith.constant 1 : index
    %c1_156 = arith.constant 1 : index
    %c0_157 = arith.constant 0 : index
    %c0_158 = arith.constant 0 : index
    %639 = vector.load %arg3[%c1_155, %c1_156, %c0_157, %c0_158] : memref<2x2x256x384xf32, #tpu.memory_space<vmem>>, vector<1x1x256x384xf32>
    %640 = vector.shape_cast %639 : vector<1x1x256x384xf32> to vector<256x384xf32>
    %cst_159 = arith.constant dense<0.000000e+00> : vector<16x384xf32>
    %641 = tpu.matmul %630, %640, %cst_159 {dimension_numbers = #tpu.dot_dimension_numbers<[1], [0], [0], [1], [0, 0, 1, 1], [], []>} : vector<16x256xf32>, vector<256x384xf32>, vector<16x384xf32> -> vector<16x384xf32>
    %c1_160 = arith.constant 1 : index
    %c1_161 = arith.constant 1 : index
    %c0_162 = arith.constant 0 : index
    %c0_163 = arith.constant 0 : index
    %642 = vector.load %arg5[%c1_160, %c1_161, %c0_162, %c0_163] : memref<2x2x1x384xf32, #tpu.memory_space<vmem>>, vector<1x1x1x384xf32>
    %643 = vector.shape_cast %642 : vector<1x1x1x384xf32> to vector<1x384xf32>
    %644 = vector.broadcast %643 : vector<1x384xf32> to vector<16x384xf32>
    %645 = arith.addf %641, %644 : vector<16x384xf32>
    %646 = vector.shape_cast %645 : vector<16x384xf32> to vector<2x8x384xf32>
    %c1_164 = arith.constant 1 : index
    %c0_165 = arith.constant 0 : index
    %c0_166 = arith.constant 0 : index
    %c0_167 = arith.constant 0 : index
    %647 = vector.load %arg4[%c1_164, %c0_165, %c0_166, %c0_167] : memref<2x2x128x384xf32, #tpu.memory_space<vmem>>, vector<1x1x128x384xf32>
    %648 = vector.shape_cast %647 : vector<1x1x128x384xf32> to vector<128x384xf32>
    %c1_168 = arith.constant 1 : index
    %c1_169 = arith.constant 1 : index
    %c0_170 = arith.constant 0 : index
    %c0_171 = arith.constant 0 : index
    %649 = vector.load %arg4[%c1_168, %c1_169, %c0_170, %c0_171] : memref<2x2x128x384xf32, #tpu.memory_space<vmem>>, vector<1x1x128x384xf32>
    %650 = vector.shape_cast %649 : vector<1x1x128x384xf32> to vector<128x384xf32>
    %c1_172 = arith.constant 1 : index
    %c0_173 = arith.constant 0 : index
    %c0_174 = arith.constant 0 : index
    %c0_175 = arith.constant 0 : index
    %651 = vector.load %arg6[%c1_172, %c0_173, %c0_174, %c0_175] : memref<2x2x1x384xf32, #tpu.memory_space<vmem>>, vector<1x1x1x384xf32>
    %652 = vector.shape_cast %651 : vector<1x1x1x384xf32> to vector<1x384xf32>
    %c1_176 = arith.constant 1 : index
    %c1_177 = arith.constant 1 : index
    %c0_178 = arith.constant 0 : index
    %c0_179 = arith.constant 0 : index
    %653 = vector.load %arg6[%c1_176, %c1_177, %c0_178, %c0_179] : memref<2x2x1x384xf32, #tpu.memory_space<vmem>>, vector<1x1x1x384xf32>
    %654 = vector.shape_cast %653 : vector<1x1x1x384xf32> to vector<1x384xf32>
    %cst_180 = arith.constant 0.000000e+00 : f32
    %655 = vector.broadcast %cst_180 : f32 to vector<2x128xf32>
    %cst_181 = arith.constant 0.000000e+00 : f32
    %656 = vector.broadcast %cst_181 : f32 to vector<2x128xf32>
    %657 = vector.extract_strided_slice %638 {offsets = [0, 0, 0], sizes = [2, 1, 384], strides = [1, 1, 1]} : vector<2x8x384xf32> to vector<2x1x384xf32>
    %658 = vector.shape_cast %657 : vector<2x1x384xf32> to vector<2x384xf32>
    %cst_182 = arith.constant dense<0.000000e+00> : vector<2x384xf32>
    %659 = tpu.matmul %655, %648, %cst_182 {dimension_numbers = #tpu.dot_dimension_numbers<[1], [0], [0], [1], [0, 0, 1, 1], [], []>} : vector<2x128xf32>, vector<128x384xf32>, vector<2x384xf32> -> vector<2x384xf32>
    %660 = vector.broadcast %652 : vector<1x384xf32> to vector<2x384xf32>
    %661 = arith.addf %659, %660 : vector<2x384xf32>
    %662 = vector.extract_strided_slice %658 {offsets = [0, 0], sizes = [2, 128], strides = [1, 1]} : vector<2x384xf32> to vector<2x128xf32>
    %663 = vector.extract_strided_slice %661 {offsets = [0, 0], sizes = [2, 128], strides = [1, 1]} : vector<2x384xf32> to vector<2x128xf32>
    %664 = arith.addf %662, %663 : vector<2x128xf32>
    %665 = arith.negf %664 : vector<2x128xf32>
    %666 = math.exp %665 : vector<2x128xf32>
    %cst_183 = arith.constant 1.000000e+00 : f32
    %667 = vector.broadcast %cst_183 : f32 to vector<2x128xf32>
    %668 = arith.addf %667, %666 : vector<2x128xf32>
    %669 = arith.divf %667, %668 : vector<2x128xf32>
    %670 = vector.extract_strided_slice %658 {offsets = [0, 128], sizes = [2, 128], strides = [1, 1]} : vector<2x384xf32> to vector<2x128xf32>
    %671 = vector.extract_strided_slice %661 {offsets = [0, 128], sizes = [2, 128], strides = [1, 1]} : vector<2x384xf32> to vector<2x128xf32>
    %672 = arith.addf %670, %671 : vector<2x128xf32>
    %673 = arith.negf %672 : vector<2x128xf32>
    %674 = math.exp %673 : vector<2x128xf32>
    %cst_184 = arith.constant 1.000000e+00 : f32
    %675 = vector.broadcast %cst_184 : f32 to vector<2x128xf32>
    %676 = arith.addf %675, %674 : vector<2x128xf32>
    %677 = arith.divf %675, %676 : vector<2x128xf32>
    %678 = vector.extract_strided_slice %658 {offsets = [0, 256], sizes = [2, 128], strides = [1, 1]} : vector<2x384xf32> to vector<2x128xf32>
    %679 = vector.extract_strided_slice %661 {offsets = [0, 256], sizes = [2, 128], strides = [1, 1]} : vector<2x384xf32> to vector<2x128xf32>
    %680 = arith.mulf %669, %679 : vector<2x128xf32>
    %681 = arith.addf %678, %680 : vector<2x128xf32>
    %682 = math.tanh %681 : vector<2x128xf32>
    %cst_185 = arith.constant 1.000000e+00 : f32
    %683 = vector.broadcast %cst_185 : f32 to vector<2x128xf32>
    %684 = arith.subf %683, %677 : vector<2x128xf32>
    %685 = arith.mulf %684, %682 : vector<2x128xf32>
    %686 = arith.mulf %677, %655 : vector<2x128xf32>
    %687 = arith.addf %685, %686 : vector<2x128xf32>
    %688 = vector.extract_strided_slice %646 {offsets = [0, 7, 0], sizes = [2, 1, 384], strides = [1, 1, 1]} : vector<2x8x384xf32> to vector<2x1x384xf32>
    %689 = vector.shape_cast %688 : vector<2x1x384xf32> to vector<2x384xf32>
    %cst_186 = arith.constant dense<0.000000e+00> : vector<2x384xf32>
    %690 = tpu.matmul %656, %650, %cst_186 {dimension_numbers = #tpu.dot_dimension_numbers<[1], [0], [0], [1], [0, 0, 1, 1], [], []>} : vector<2x128xf32>, vector<128x384xf32>, vector<2x384xf32> -> vector<2x384xf32>
    %691 = vector.broadcast %654 : vector<1x384xf32> to vector<2x384xf32>
    %692 = arith.addf %690, %691 : vector<2x384xf32>
    %693 = vector.extract_strided_slice %689 {offsets = [0, 0], sizes = [2, 128], strides = [1, 1]} : vector<2x384xf32> to vector<2x128xf32>
    %694 = vector.extract_strided_slice %692 {offsets = [0, 0], sizes = [2, 128], strides = [1, 1]} : vector<2x384xf32> to vector<2x128xf32>
    %695 = arith.addf %693, %694 : vector<2x128xf32>
    %696 = arith.negf %695 : vector<2x128xf32>
    %697 = math.exp %696 : vector<2x128xf32>
    %cst_187 = arith.constant 1.000000e+00 : f32
    %698 = vector.broadcast %cst_187 : f32 to vector<2x128xf32>
    %699 = arith.addf %698, %697 : vector<2x128xf32>
    %700 = arith.divf %698, %699 : vector<2x128xf32>
    %701 = vector.extract_strided_slice %689 {offsets = [0, 128], sizes = [2, 128], strides = [1, 1]} : vector<2x384xf32> to vector<2x128xf32>
    %702 = vector.extract_strided_slice %692 {offsets = [0, 128], sizes = [2, 128], strides = [1, 1]} : vector<2x384xf32> to vector<2x128xf32>
    %703 = arith.addf %701, %702 : vector<2x128xf32>
    %704 = arith.negf %703 : vector<2x128xf32>
    %705 = math.exp %704 : vector<2x128xf32>
    %cst_188 = arith.constant 1.000000e+00 : f32
    %706 = vector.broadcast %cst_188 : f32 to vector<2x128xf32>
    %707 = arith.addf %706, %705 : vector<2x128xf32>
    %708 = arith.divf %706, %707 : vector<2x128xf32>
    %709 = vector.extract_strided_slice %689 {offsets = [0, 256], sizes = [2, 128], strides = [1, 1]} : vector<2x384xf32> to vector<2x128xf32>
    %710 = vector.extract_strided_slice %692 {offsets = [0, 256], sizes = [2, 128], strides = [1, 1]} : vector<2x384xf32> to vector<2x128xf32>
    %711 = arith.mulf %700, %710 : vector<2x128xf32>
    %712 = arith.addf %709, %711 : vector<2x128xf32>
    %713 = math.tanh %712 : vector<2x128xf32>
    %cst_189 = arith.constant 1.000000e+00 : f32
    %714 = vector.broadcast %cst_189 : f32 to vector<2x128xf32>
    %715 = arith.subf %714, %708 : vector<2x128xf32>
    %716 = arith.mulf %715, %713 : vector<2x128xf32>
    %717 = arith.mulf %708, %656 : vector<2x128xf32>
    %718 = arith.addf %716, %717 : vector<2x128xf32>
    %719 = vector.extract_strided_slice %4 {offsets = [0, 0, 0], sizes = [2, 1, 128], strides = [1, 1, 1]} : vector<2x8x128xi1> to vector<2x1x128xi1>
    %720 = vector.shape_cast %719 : vector<2x1x128xi1> to vector<2x128xi1>
    %721 = arith.select %720, %687, %655 : vector<2x128xi1>, vector<2x128xf32>
    %722 = vector.extract_strided_slice %4 {offsets = [0, 7, 0], sizes = [2, 1, 128], strides = [1, 1, 1]} : vector<2x8x128xi1> to vector<2x1x128xi1>
    %723 = vector.shape_cast %722 : vector<2x1x128xi1> to vector<2x128xi1>
    %724 = arith.select %723, %718, %656 : vector<2x128xi1>, vector<2x128xf32>
    %c0_190 = arith.constant 0 : index
    %c0_191 = arith.constant 0 : index
    %c0_192 = arith.constant 0 : index
    %725 = vector.load %arg9[%c0_190, %c0_191, %c0_192] : memref<2x8x256xf32, #tpu.memory_space<vmem>>, vector<2x1x128xf32>
    %726 = vector.shape_cast %725 : vector<2x1x128xf32> to vector<2x128xf32>
    %727 = vector.shape_cast %721 : vector<2x128xf32> to vector<2x1x128xf32>
    tpu.vector_store %arg9[%c0_190, %c0_191, %c0_192], %727 {strides = array<i32>} : memref<2x8x256xf32, #tpu.memory_space<vmem>>, vector<2x1x128xf32>,
    %c0_193 = arith.constant 0 : index
    %c7_194 = arith.constant 7 : index
    %c128_195 = arith.constant 128 : index
    %728 = vector.load %arg9[%c0_193, %c7_194, %c128_195] : memref<2x8x256xf32, #tpu.memory_space<vmem>>, vector<2x1x128xf32>
    %729 = vector.shape_cast %728 : vector<2x1x128xf32> to vector<2x128xf32>
    %730 = vector.shape_cast %724 : vector<2x128xf32> to vector<2x1x128xf32>
    tpu.vector_store %arg9[%c0_193, %c7_194, %c128_195], %730 {strides = array<i32>} : memref<2x8x256xf32, #tpu.memory_space<vmem>>, vector<2x1x128xf32>,
    %731 = vector.extract_strided_slice %638 {offsets = [0, 1, 0], sizes = [2, 1, 384], strides = [1, 1, 1]} : vector<2x8x384xf32> to vector<2x1x384xf32>
    %732 = vector.shape_cast %731 : vector<2x1x384xf32> to vector<2x384xf32>
    %cst_196 = arith.constant dense<0.000000e+00> : vector<2x384xf32>
    %733 = tpu.matmul %721, %648, %cst_196 {dimension_numbers = #tpu.dot_dimension_numbers<[1], [0], [0], [1], [0, 0, 1, 1], [], []>} : vector<2x128xf32>, vector<128x384xf32>, vector<2x384xf32> -> vector<2x384xf32>
    %734 = vector.broadcast %652 : vector<1x384xf32> to vector<2x384xf32>
    %735 = arith.addf %733, %734 : vector<2x384xf32>
    %736 = vector.extract_strided_slice %732 {offsets = [0, 0], sizes = [2, 128], strides = [1, 1]} : vector<2x384xf32> to vector<2x128xf32>
    %737 = vector.extract_strided_slice %735 {offsets = [0, 0], sizes = [2, 128], strides = [1, 1]} : vector<2x384xf32> to vector<2x128xf32>
    %738 = arith.addf %736, %737 : vector<2x128xf32>
    %739 = arith.negf %738 : vector<2x128xf32>
    %740 = math.exp %739 : vector<2x128xf32>
    %cst_197 = arith.constant 1.000000e+00 : f32
    %741 = vector.broadcast %cst_197 : f32 to vector<2x128xf32>
    %742 = arith.addf %741, %740 : vector<2x128xf32>
    %743 = arith.divf %741, %742 : vector<2x128xf32>
    %744 = vector.extract_strided_slice %732 {offsets = [0, 128], sizes = [2, 128], strides = [1, 1]} : vector<2x384xf32> to vector<2x128xf32>
    %745 = vector.extract_strided_slice %735 {offsets = [0, 128], sizes = [2, 128], strides = [1, 1]} : vector<2x384xf32> to vector<2x128xf32>
    %746 = arith.addf %744, %745 : vector<2x128xf32>
    %747 = arith.negf %746 : vector<2x128xf32>
    %748 = math.exp %747 : vector<2x128xf32>
    %cst_198 = arith.constant 1.000000e+00 : f32
    %749 = vector.broadcast %cst_198 : f32 to vector<2x128xf32>
    %750 = arith.addf %749, %748 : vector<2x128xf32>
    %751 = arith.divf %749, %750 : vector<2x128xf32>
    %752 = vector.extract_strided_slice %732 {offsets = [0, 256], sizes = [2, 128], strides = [1, 1]} : vector<2x384xf32> to vector<2x128xf32>
    %753 = vector.extract_strided_slice %735 {offsets = [0, 256], sizes = [2, 128], strides = [1, 1]} : vector<2x384xf32> to vector<2x128xf32>
    %754 = arith.mulf %743, %753 : vector<2x128xf32>
    %755 = arith.addf %752, %754 : vector<2x128xf32>
    %756 = math.tanh %755 : vector<2x128xf32>
    %cst_199 = arith.constant 1.000000e+00 : f32
    %757 = vector.broadcast %cst_199 : f32 to vector<2x128xf32>
    %758 = arith.subf %757, %751 : vector<2x128xf32>
    %759 = arith.mulf %758, %756 : vector<2x128xf32>
    %760 = arith.mulf %751, %721 : vector<2x128xf32>
    %761 = arith.addf %759, %760 : vector<2x128xf32>
    %762 = vector.extract_strided_slice %646 {offsets = [0, 6, 0], sizes = [2, 1, 384], strides = [1, 1, 1]} : vector<2x8x384xf32> to vector<2x1x384xf32>
    %763 = vector.shape_cast %762 : vector<2x1x384xf32> to vector<2x384xf32>
    %cst_200 = arith.constant dense<0.000000e+00> : vector<2x384xf32>
    %764 = tpu.matmul %724, %650, %cst_200 {dimension_numbers = #tpu.dot_dimension_numbers<[1], [0], [0], [1], [0, 0, 1, 1], [], []>} : vector<2x128xf32>, vector<128x384xf32>, vector<2x384xf32> -> vector<2x384xf32>
    %765 = vector.broadcast %654 : vector<1x384xf32> to vector<2x384xf32>
    %766 = arith.addf %764, %765 : vector<2x384xf32>
    %767 = vector.extract_strided_slice %763 {offsets = [0, 0], sizes = [2, 128], strides = [1, 1]} : vector<2x384xf32> to vector<2x128xf32>
    %768 = vector.extract_strided_slice %766 {offsets = [0, 0], sizes = [2, 128], strides = [1, 1]} : vector<2x384xf32> to vector<2x128xf32>
    %769 = arith.addf %767, %768 : vector<2x128xf32>
    %770 = arith.negf %769 : vector<2x128xf32>
    %771 = math.exp %770 : vector<2x128xf32>
    %cst_201 = arith.constant 1.000000e+00 : f32
    %772 = vector.broadcast %cst_201 : f32 to vector<2x128xf32>
    %773 = arith.addf %772, %771 : vector<2x128xf32>
    %774 = arith.divf %772, %773 : vector<2x128xf32>
    %775 = vector.extract_strided_slice %763 {offsets = [0, 128], sizes = [2, 128], strides = [1, 1]} : vector<2x384xf32> to vector<2x128xf32>
    %776 = vector.extract_strided_slice %766 {offsets = [0, 128], sizes = [2, 128], strides = [1, 1]} : vector<2x384xf32> to vector<2x128xf32>
    %777 = arith.addf %775, %776 : vector<2x128xf32>
    %778 = arith.negf %777 : vector<2x128xf32>
    %779 = math.exp %778 : vector<2x128xf32>
    %cst_202 = arith.constant 1.000000e+00 : f32
    %780 = vector.broadcast %cst_202 : f32 to vector<2x128xf32>
    %781 = arith.addf %780, %779 : vector<2x128xf32>
    %782 = arith.divf %780, %781 : vector<2x128xf32>
    %783 = vector.extract_strided_slice %763 {offsets = [0, 256], sizes = [2, 128], strides = [1, 1]} : vector<2x384xf32> to vector<2x128xf32>
    %784 = vector.extract_strided_slice %766 {offsets = [0, 256], sizes = [2, 128], strides = [1, 1]} : vector<2x384xf32> to vector<2x128xf32>
    %785 = arith.mulf %774, %784 : vector<2x128xf32>
    %786 = arith.addf %783, %785 : vector<2x128xf32>
    %787 = math.tanh %786 : vector<2x128xf32>
    %cst_203 = arith.constant 1.000000e+00 : f32
    %788 = vector.broadcast %cst_203 : f32 to vector<2x128xf32>
    %789 = arith.subf %788, %782 : vector<2x128xf32>
    %790 = arith.mulf %789, %787 : vector<2x128xf32>
    %791 = arith.mulf %782, %724 : vector<2x128xf32>
    %792 = arith.addf %790, %791 : vector<2x128xf32>
    %793 = vector.extract_strided_slice %4 {offsets = [0, 1, 0], sizes = [2, 1, 128], strides = [1, 1, 1]} : vector<2x8x128xi1> to vector<2x1x128xi1>
    %794 = vector.shape_cast %793 : vector<2x1x128xi1> to vector<2x128xi1>
    %795 = arith.select %794, %761, %721 : vector<2x128xi1>, vector<2x128xf32>
    %796 = vector.extract_strided_slice %4 {offsets = [0, 6, 0], sizes = [2, 1, 128], strides = [1, 1, 1]} : vector<2x8x128xi1> to vector<2x1x128xi1>
    %797 = vector.shape_cast %796 : vector<2x1x128xi1> to vector<2x128xi1>
    %798 = arith.select %797, %792, %724 : vector<2x128xi1>, vector<2x128xf32>
    %c0_204 = arith.constant 0 : index
    %c1_205 = arith.constant 1 : index
    %c0_206 = arith.constant 0 : index
    %799 = vector.load %arg9[%c0_204, %c1_205, %c0_206] : memref<2x8x256xf32, #tpu.memory_space<vmem>>, vector<2x1x128xf32>
    %800 = vector.shape_cast %799 : vector<2x1x128xf32> to vector<2x128xf32>
    %801 = vector.shape_cast %795 : vector<2x128xf32> to vector<2x1x128xf32>
    tpu.vector_store %arg9[%c0_204, %c1_205, %c0_206], %801 {strides = array<i32>} : memref<2x8x256xf32, #tpu.memory_space<vmem>>, vector<2x1x128xf32>,
    %c0_207 = arith.constant 0 : index
    %c6_208 = arith.constant 6 : index
    %c128_209 = arith.constant 128 : index
    %802 = vector.load %arg9[%c0_207, %c6_208, %c128_209] : memref<2x8x256xf32, #tpu.memory_space<vmem>>, vector<2x1x128xf32>
    %803 = vector.shape_cast %802 : vector<2x1x128xf32> to vector<2x128xf32>
    %804 = vector.shape_cast %798 : vector<2x128xf32> to vector<2x1x128xf32>
    tpu.vector_store %arg9[%c0_207, %c6_208, %c128_209], %804 {strides = array<i32>} : memref<2x8x256xf32, #tpu.memory_space<vmem>>, vector<2x1x128xf32>,
    %805 = vector.extract_strided_slice %638 {offsets = [0, 2, 0], sizes = [2, 1, 384], strides = [1, 1, 1]} : vector<2x8x384xf32> to vector<2x1x384xf32>
    %806 = vector.shape_cast %805 : vector<2x1x384xf32> to vector<2x384xf32>
    %cst_210 = arith.constant dense<0.000000e+00> : vector<2x384xf32>
    %807 = tpu.matmul %795, %648, %cst_210 {dimension_numbers = #tpu.dot_dimension_numbers<[1], [0], [0], [1], [0, 0, 1, 1], [], []>} : vector<2x128xf32>, vector<128x384xf32>, vector<2x384xf32> -> vector<2x384xf32>
    %808 = vector.broadcast %652 : vector<1x384xf32> to vector<2x384xf32>
    %809 = arith.addf %807, %808 : vector<2x384xf32>
    %810 = vector.extract_strided_slice %806 {offsets = [0, 0], sizes = [2, 128], strides = [1, 1]} : vector<2x384xf32> to vector<2x128xf32>
    %811 = vector.extract_strided_slice %809 {offsets = [0, 0], sizes = [2, 128], strides = [1, 1]} : vector<2x384xf32> to vector<2x128xf32>
    %812 = arith.addf %810, %811 : vector<2x128xf32>
    %813 = arith.negf %812 : vector<2x128xf32>
    %814 = math.exp %813 : vector<2x128xf32>
    %cst_211 = arith.constant 1.000000e+00 : f32
    %815 = vector.broadcast %cst_211 : f32 to vector<2x128xf32>
    %816 = arith.addf %815, %814 : vector<2x128xf32>
    %817 = arith.divf %815, %816 : vector<2x128xf32>
    %818 = vector.extract_strided_slice %806 {offsets = [0, 128], sizes = [2, 128], strides = [1, 1]} : vector<2x384xf32> to vector<2x128xf32>
    %819 = vector.extract_strided_slice %809 {offsets = [0, 128], sizes = [2, 128], strides = [1, 1]} : vector<2x384xf32> to vector<2x128xf32>
    %820 = arith.addf %818, %819 : vector<2x128xf32>
    %821 = arith.negf %820 : vector<2x128xf32>
    %822 = math.exp %821 : vector<2x128xf32>
    %cst_212 = arith.constant 1.000000e+00 : f32
    %823 = vector.broadcast %cst_212 : f32 to vector<2x128xf32>
    %824 = arith.addf %823, %822 : vector<2x128xf32>
    %825 = arith.divf %823, %824 : vector<2x128xf32>
    %826 = vector.extract_strided_slice %806 {offsets = [0, 256], sizes = [2, 128], strides = [1, 1]} : vector<2x384xf32> to vector<2x128xf32>
    %827 = vector.extract_strided_slice %809 {offsets = [0, 256], sizes = [2, 128], strides = [1, 1]} : vector<2x384xf32> to vector<2x128xf32>
    %828 = arith.mulf %817, %827 : vector<2x128xf32>
    %829 = arith.addf %826, %828 : vector<2x128xf32>
    %830 = math.tanh %829 : vector<2x128xf32>
    %cst_213 = arith.constant 1.000000e+00 : f32
    %831 = vector.broadcast %cst_213 : f32 to vector<2x128xf32>
    %832 = arith.subf %831, %825 : vector<2x128xf32>
    %833 = arith.mulf %832, %830 : vector<2x128xf32>
    %834 = arith.mulf %825, %795 : vector<2x128xf32>
    %835 = arith.addf %833, %834 : vector<2x128xf32>
    %836 = vector.extract_strided_slice %646 {offsets = [0, 5, 0], sizes = [2, 1, 384], strides = [1, 1, 1]} : vector<2x8x384xf32> to vector<2x1x384xf32>
    %837 = vector.shape_cast %836 : vector<2x1x384xf32> to vector<2x384xf32>
    %cst_214 = arith.constant dense<0.000000e+00> : vector<2x384xf32>
    %838 = tpu.matmul %798, %650, %cst_214 {dimension_numbers = #tpu.dot_dimension_numbers<[1], [0], [0], [1], [0, 0, 1, 1], [], []>} : vector<2x128xf32>, vector<128x384xf32>, vector<2x384xf32> -> vector<2x384xf32>
    %839 = vector.broadcast %654 : vector<1x384xf32> to vector<2x384xf32>
    %840 = arith.addf %838, %839 : vector<2x384xf32>
    %841 = vector.extract_strided_slice %837 {offsets = [0, 0], sizes = [2, 128], strides = [1, 1]} : vector<2x384xf32> to vector<2x128xf32>
    %842 = vector.extract_strided_slice %840 {offsets = [0, 0], sizes = [2, 128], strides = [1, 1]} : vector<2x384xf32> to vector<2x128xf32>
    %843 = arith.addf %841, %842 : vector<2x128xf32>
    %844 = arith.negf %843 : vector<2x128xf32>
    %845 = math.exp %844 : vector<2x128xf32>
    %cst_215 = arith.constant 1.000000e+00 : f32
    %846 = vector.broadcast %cst_215 : f32 to vector<2x128xf32>
    %847 = arith.addf %846, %845 : vector<2x128xf32>
    %848 = arith.divf %846, %847 : vector<2x128xf32>
    %849 = vector.extract_strided_slice %837 {offsets = [0, 128], sizes = [2, 128], strides = [1, 1]} : vector<2x384xf32> to vector<2x128xf32>
    %850 = vector.extract_strided_slice %840 {offsets = [0, 128], sizes = [2, 128], strides = [1, 1]} : vector<2x384xf32> to vector<2x128xf32>
    %851 = arith.addf %849, %850 : vector<2x128xf32>
    %852 = arith.negf %851 : vector<2x128xf32>
    %853 = math.exp %852 : vector<2x128xf32>
    %cst_216 = arith.constant 1.000000e+00 : f32
    %854 = vector.broadcast %cst_216 : f32 to vector<2x128xf32>
    %855 = arith.addf %854, %853 : vector<2x128xf32>
    %856 = arith.divf %854, %855 : vector<2x128xf32>
    %857 = vector.extract_strided_slice %837 {offsets = [0, 256], sizes = [2, 128], strides = [1, 1]} : vector<2x384xf32> to vector<2x128xf32>
    %858 = vector.extract_strided_slice %840 {offsets = [0, 256], sizes = [2, 128], strides = [1, 1]} : vector<2x384xf32> to vector<2x128xf32>
    %859 = arith.mulf %848, %858 : vector<2x128xf32>
    %860 = arith.addf %857, %859 : vector<2x128xf32>
    %861 = math.tanh %860 : vector<2x128xf32>
    %cst_217 = arith.constant 1.000000e+00 : f32
    %862 = vector.broadcast %cst_217 : f32 to vector<2x128xf32>
    %863 = arith.subf %862, %856 : vector<2x128xf32>
    %864 = arith.mulf %863, %861 : vector<2x128xf32>
    %865 = arith.mulf %856, %798 : vector<2x128xf32>
    %866 = arith.addf %864, %865 : vector<2x128xf32>
    %867 = vector.extract_strided_slice %4 {offsets = [0, 2, 0], sizes = [2, 1, 128], strides = [1, 1, 1]} : vector<2x8x128xi1> to vector<2x1x128xi1>
    %868 = vector.shape_cast %867 : vector<2x1x128xi1> to vector<2x128xi1>
    %869 = arith.select %868, %835, %795 : vector<2x128xi1>, vector<2x128xf32>
    %870 = vector.extract_strided_slice %4 {offsets = [0, 5, 0], sizes = [2, 1, 128], strides = [1, 1, 1]} : vector<2x8x128xi1> to vector<2x1x128xi1>
    %871 = vector.shape_cast %870 : vector<2x1x128xi1> to vector<2x128xi1>
    %872 = arith.select %871, %866, %798 : vector<2x128xi1>, vector<2x128xf32>
    %c0_218 = arith.constant 0 : index
    %c2_219 = arith.constant 2 : index
    %c0_220 = arith.constant 0 : index
    %873 = vector.load %arg9[%c0_218, %c2_219, %c0_220] : memref<2x8x256xf32, #tpu.memory_space<vmem>>, vector<2x1x128xf32>
    %874 = vector.shape_cast %873 : vector<2x1x128xf32> to vector<2x128xf32>
    %875 = vector.shape_cast %869 : vector<2x128xf32> to vector<2x1x128xf32>
    tpu.vector_store %arg9[%c0_218, %c2_219, %c0_220], %875 {strides = array<i32>} : memref<2x8x256xf32, #tpu.memory_space<vmem>>, vector<2x1x128xf32>,
    %c0_221 = arith.constant 0 : index
    %c5_222 = arith.constant 5 : index
    %c128_223 = arith.constant 128 : index
    %876 = vector.load %arg9[%c0_221, %c5_222, %c128_223] : memref<2x8x256xf32, #tpu.memory_space<vmem>>, vector<2x1x128xf32>
    %877 = vector.shape_cast %876 : vector<2x1x128xf32> to vector<2x128xf32>
    %878 = vector.shape_cast %872 : vector<2x128xf32> to vector<2x1x128xf32>
    tpu.vector_store %arg9[%c0_221, %c5_222, %c128_223], %878 {strides = array<i32>} : memref<2x8x256xf32, #tpu.memory_space<vmem>>, vector<2x1x128xf32>,
    %879 = vector.extract_strided_slice %638 {offsets = [0, 3, 0], sizes = [2, 1, 384], strides = [1, 1, 1]} : vector<2x8x384xf32> to vector<2x1x384xf32>
    %880 = vector.shape_cast %879 : vector<2x1x384xf32> to vector<2x384xf32>
    %cst_224 = arith.constant dense<0.000000e+00> : vector<2x384xf32>
    %881 = tpu.matmul %869, %648, %cst_224 {dimension_numbers = #tpu.dot_dimension_numbers<[1], [0], [0], [1], [0, 0, 1, 1], [], []>} : vector<2x128xf32>, vector<128x384xf32>, vector<2x384xf32> -> vector<2x384xf32>
    %882 = vector.broadcast %652 : vector<1x384xf32> to vector<2x384xf32>
    %883 = arith.addf %881, %882 : vector<2x384xf32>
    %884 = vector.extract_strided_slice %880 {offsets = [0, 0], sizes = [2, 128], strides = [1, 1]} : vector<2x384xf32> to vector<2x128xf32>
    %885 = vector.extract_strided_slice %883 {offsets = [0, 0], sizes = [2, 128], strides = [1, 1]} : vector<2x384xf32> to vector<2x128xf32>
    %886 = arith.addf %884, %885 : vector<2x128xf32>
    %887 = arith.negf %886 : vector<2x128xf32>
    %888 = math.exp %887 : vector<2x128xf32>
    %cst_225 = arith.constant 1.000000e+00 : f32
    %889 = vector.broadcast %cst_225 : f32 to vector<2x128xf32>
    %890 = arith.addf %889, %888 : vector<2x128xf32>
    %891 = arith.divf %889, %890 : vector<2x128xf32>
    %892 = vector.extract_strided_slice %880 {offsets = [0, 128], sizes = [2, 128], strides = [1, 1]} : vector<2x384xf32> to vector<2x128xf32>
    %893 = vector.extract_strided_slice %883 {offsets = [0, 128], sizes = [2, 128], strides = [1, 1]} : vector<2x384xf32> to vector<2x128xf32>
    %894 = arith.addf %892, %893 : vector<2x128xf32>
    %895 = arith.negf %894 : vector<2x128xf32>
    %896 = math.exp %895 : vector<2x128xf32>
    %cst_226 = arith.constant 1.000000e+00 : f32
    %897 = vector.broadcast %cst_226 : f32 to vector<2x128xf32>
    %898 = arith.addf %897, %896 : vector<2x128xf32>
    %899 = arith.divf %897, %898 : vector<2x128xf32>
    %900 = vector.extract_strided_slice %880 {offsets = [0, 256], sizes = [2, 128], strides = [1, 1]} : vector<2x384xf32> to vector<2x128xf32>
    %901 = vector.extract_strided_slice %883 {offsets = [0, 256], sizes = [2, 128], strides = [1, 1]} : vector<2x384xf32> to vector<2x128xf32>
    %902 = arith.mulf %891, %901 : vector<2x128xf32>
    %903 = arith.addf %900, %902 : vector<2x128xf32>
    %904 = math.tanh %903 : vector<2x128xf32>
    %cst_227 = arith.constant 1.000000e+00 : f32
    %905 = vector.broadcast %cst_227 : f32 to vector<2x128xf32>
    %906 = arith.subf %905, %899 : vector<2x128xf32>
    %907 = arith.mulf %906, %904 : vector<2x128xf32>
    %908 = arith.mulf %899, %869 : vector<2x128xf32>
    %909 = arith.addf %907, %908 : vector<2x128xf32>
    %910 = vector.extract_strided_slice %646 {offsets = [0, 4, 0], sizes = [2, 1, 384], strides = [1, 1, 1]} : vector<2x8x384xf32> to vector<2x1x384xf32>
    %911 = vector.shape_cast %910 : vector<2x1x384xf32> to vector<2x384xf32>
    %cst_228 = arith.constant dense<0.000000e+00> : vector<2x384xf32>
    %912 = tpu.matmul %872, %650, %cst_228 {dimension_numbers = #tpu.dot_dimension_numbers<[1], [0], [0], [1], [0, 0, 1, 1], [], []>} : vector<2x128xf32>, vector<128x384xf32>, vector<2x384xf32> -> vector<2x384xf32>
    %913 = vector.broadcast %654 : vector<1x384xf32> to vector<2x384xf32>
    %914 = arith.addf %912, %913 : vector<2x384xf32>
    %915 = vector.extract_strided_slice %911 {offsets = [0, 0], sizes = [2, 128], strides = [1, 1]} : vector<2x384xf32> to vector<2x128xf32>
    %916 = vector.extract_strided_slice %914 {offsets = [0, 0], sizes = [2, 128], strides = [1, 1]} : vector<2x384xf32> to vector<2x128xf32>
    %917 = arith.addf %915, %916 : vector<2x128xf32>
    %918 = arith.negf %917 : vector<2x128xf32>
    %919 = math.exp %918 : vector<2x128xf32>
    %cst_229 = arith.constant 1.000000e+00 : f32
    %920 = vector.broadcast %cst_229 : f32 to vector<2x128xf32>
    %921 = arith.addf %920, %919 : vector<2x128xf32>
    %922 = arith.divf %920, %921 : vector<2x128xf32>
    %923 = vector.extract_strided_slice %911 {offsets = [0, 128], sizes = [2, 128], strides = [1, 1]} : vector<2x384xf32> to vector<2x128xf32>
    %924 = vector.extract_strided_slice %914 {offsets = [0, 128], sizes = [2, 128], strides = [1, 1]} : vector<2x384xf32> to vector<2x128xf32>
    %925 = arith.addf %923, %924 : vector<2x128xf32>
    %926 = arith.negf %925 : vector<2x128xf32>
    %927 = math.exp %926 : vector<2x128xf32>
    %cst_230 = arith.constant 1.000000e+00 : f32
    %928 = vector.broadcast %cst_230 : f32 to vector<2x128xf32>
    %929 = arith.addf %928, %927 : vector<2x128xf32>
    %930 = arith.divf %928, %929 : vector<2x128xf32>
    %931 = vector.extract_strided_slice %911 {offsets = [0, 256], sizes = [2, 128], strides = [1, 1]} : vector<2x384xf32> to vector<2x128xf32>
    %932 = vector.extract_strided_slice %914 {offsets = [0, 256], sizes = [2, 128], strides = [1, 1]} : vector<2x384xf32> to vector<2x128xf32>
    %933 = arith.mulf %922, %932 : vector<2x128xf32>
    %934 = arith.addf %931, %933 : vector<2x128xf32>
    %935 = math.tanh %934 : vector<2x128xf32>
    %cst_231 = arith.constant 1.000000e+00 : f32
    %936 = vector.broadcast %cst_231 : f32 to vector<2x128xf32>
    %937 = arith.subf %936, %930 : vector<2x128xf32>
    %938 = arith.mulf %937, %935 : vector<2x128xf32>
    %939 = arith.mulf %930, %872 : vector<2x128xf32>
    %940 = arith.addf %938, %939 : vector<2x128xf32>
    %941 = vector.extract_strided_slice %4 {offsets = [0, 3, 0], sizes = [2, 1, 128], strides = [1, 1, 1]} : vector<2x8x128xi1> to vector<2x1x128xi1>
    %942 = vector.shape_cast %941 : vector<2x1x128xi1> to vector<2x128xi1>
    %943 = arith.select %942, %909, %869 : vector<2x128xi1>, vector<2x128xf32>
    %944 = vector.extract_strided_slice %4 {offsets = [0, 4, 0], sizes = [2, 1, 128], strides = [1, 1, 1]} : vector<2x8x128xi1> to vector<2x1x128xi1>
    %945 = vector.shape_cast %944 : vector<2x1x128xi1> to vector<2x128xi1>
    %946 = arith.select %945, %940, %872 : vector<2x128xi1>, vector<2x128xf32>
    %c0_232 = arith.constant 0 : index
    %c3_233 = arith.constant 3 : index
    %c0_234 = arith.constant 0 : index
    %947 = vector.load %arg9[%c0_232, %c3_233, %c0_234] : memref<2x8x256xf32, #tpu.memory_space<vmem>>, vector<2x1x128xf32>
    %948 = vector.shape_cast %947 : vector<2x1x128xf32> to vector<2x128xf32>
    %949 = vector.shape_cast %943 : vector<2x128xf32> to vector<2x1x128xf32>
    tpu.vector_store %arg9[%c0_232, %c3_233, %c0_234], %949 {strides = array<i32>} : memref<2x8x256xf32, #tpu.memory_space<vmem>>, vector<2x1x128xf32>,
    %c0_235 = arith.constant 0 : index
    %c4_236 = arith.constant 4 : index
    %c128_237 = arith.constant 128 : index
    %950 = vector.load %arg9[%c0_235, %c4_236, %c128_237] : memref<2x8x256xf32, #tpu.memory_space<vmem>>, vector<2x1x128xf32>
    %951 = vector.shape_cast %950 : vector<2x1x128xf32> to vector<2x128xf32>
    %952 = vector.shape_cast %946 : vector<2x128xf32> to vector<2x1x128xf32>
    tpu.vector_store %arg9[%c0_235, %c4_236, %c128_237], %952 {strides = array<i32>} : memref<2x8x256xf32, #tpu.memory_space<vmem>>, vector<2x1x128xf32>,
    %953 = vector.extract_strided_slice %638 {offsets = [0, 4, 0], sizes = [2, 1, 384], strides = [1, 1, 1]} : vector<2x8x384xf32> to vector<2x1x384xf32>
    %954 = vector.shape_cast %953 : vector<2x1x384xf32> to vector<2x384xf32>
    %cst_238 = arith.constant dense<0.000000e+00> : vector<2x384xf32>
    %955 = tpu.matmul %943, %648, %cst_238 {dimension_numbers = #tpu.dot_dimension_numbers<[1], [0], [0], [1], [0, 0, 1, 1], [], []>} : vector<2x128xf32>, vector<128x384xf32>, vector<2x384xf32> -> vector<2x384xf32>
    %956 = vector.broadcast %652 : vector<1x384xf32> to vector<2x384xf32>
    %957 = arith.addf %955, %956 : vector<2x384xf32>
    %958 = vector.extract_strided_slice %954 {offsets = [0, 0], sizes = [2, 128], strides = [1, 1]} : vector<2x384xf32> to vector<2x128xf32>
    %959 = vector.extract_strided_slice %957 {offsets = [0, 0], sizes = [2, 128], strides = [1, 1]} : vector<2x384xf32> to vector<2x128xf32>
    %960 = arith.addf %958, %959 : vector<2x128xf32>
    %961 = arith.negf %960 : vector<2x128xf32>
    %962 = math.exp %961 : vector<2x128xf32>
    %cst_239 = arith.constant 1.000000e+00 : f32
    %963 = vector.broadcast %cst_239 : f32 to vector<2x128xf32>
    %964 = arith.addf %963, %962 : vector<2x128xf32>
    %965 = arith.divf %963, %964 : vector<2x128xf32>
    %966 = vector.extract_strided_slice %954 {offsets = [0, 128], sizes = [2, 128], strides = [1, 1]} : vector<2x384xf32> to vector<2x128xf32>
    %967 = vector.extract_strided_slice %957 {offsets = [0, 128], sizes = [2, 128], strides = [1, 1]} : vector<2x384xf32> to vector<2x128xf32>
    %968 = arith.addf %966, %967 : vector<2x128xf32>
    %969 = arith.negf %968 : vector<2x128xf32>
    %970 = math.exp %969 : vector<2x128xf32>
    %cst_240 = arith.constant 1.000000e+00 : f32
    %971 = vector.broadcast %cst_240 : f32 to vector<2x128xf32>
    %972 = arith.addf %971, %970 : vector<2x128xf32>
    %973 = arith.divf %971, %972 : vector<2x128xf32>
    %974 = vector.extract_strided_slice %954 {offsets = [0, 256], sizes = [2, 128], strides = [1, 1]} : vector<2x384xf32> to vector<2x128xf32>
    %975 = vector.extract_strided_slice %957 {offsets = [0, 256], sizes = [2, 128], strides = [1, 1]} : vector<2x384xf32> to vector<2x128xf32>
    %976 = arith.mulf %965, %975 : vector<2x128xf32>
    %977 = arith.addf %974, %976 : vector<2x128xf32>
    %978 = math.tanh %977 : vector<2x128xf32>
    %cst_241 = arith.constant 1.000000e+00 : f32
    %979 = vector.broadcast %cst_241 : f32 to vector<2x128xf32>
    %980 = arith.subf %979, %973 : vector<2x128xf32>
    %981 = arith.mulf %980, %978 : vector<2x128xf32>
    %982 = arith.mulf %973, %943 : vector<2x128xf32>
    %983 = arith.addf %981, %982 : vector<2x128xf32>
    %984 = vector.extract_strided_slice %646 {offsets = [0, 3, 0], sizes = [2, 1, 384], strides = [1, 1, 1]} : vector<2x8x384xf32> to vector<2x1x384xf32>
    %985 = vector.shape_cast %984 : vector<2x1x384xf32> to vector<2x384xf32>
    %cst_242 = arith.constant dense<0.000000e+00> : vector<2x384xf32>
    %986 = tpu.matmul %946, %650, %cst_242 {dimension_numbers = #tpu.dot_dimension_numbers<[1], [0], [0], [1], [0, 0, 1, 1], [], []>} : vector<2x128xf32>, vector<128x384xf32>, vector<2x384xf32> -> vector<2x384xf32>
    %987 = vector.broadcast %654 : vector<1x384xf32> to vector<2x384xf32>
    %988 = arith.addf %986, %987 : vector<2x384xf32>
    %989 = vector.extract_strided_slice %985 {offsets = [0, 0], sizes = [2, 128], strides = [1, 1]} : vector<2x384xf32> to vector<2x128xf32>
    %990 = vector.extract_strided_slice %988 {offsets = [0, 0], sizes = [2, 128], strides = [1, 1]} : vector<2x384xf32> to vector<2x128xf32>
    %991 = arith.addf %989, %990 : vector<2x128xf32>
    %992 = arith.negf %991 : vector<2x128xf32>
    %993 = math.exp %992 : vector<2x128xf32>
    %cst_243 = arith.constant 1.000000e+00 : f32
    %994 = vector.broadcast %cst_243 : f32 to vector<2x128xf32>
    %995 = arith.addf %994, %993 : vector<2x128xf32>
    %996 = arith.divf %994, %995 : vector<2x128xf32>
    %997 = vector.extract_strided_slice %985 {offsets = [0, 128], sizes = [2, 128], strides = [1, 1]} : vector<2x384xf32> to vector<2x128xf32>
    %998 = vector.extract_strided_slice %988 {offsets = [0, 128], sizes = [2, 128], strides = [1, 1]} : vector<2x384xf32> to vector<2x128xf32>
    %999 = arith.addf %997, %998 : vector<2x128xf32>
    %1000 = arith.negf %999 : vector<2x128xf32>
    %1001 = math.exp %1000 : vector<2x128xf32>
    %cst_244 = arith.constant 1.000000e+00 : f32
    %1002 = vector.broadcast %cst_244 : f32 to vector<2x128xf32>
    %1003 = arith.addf %1002, %1001 : vector<2x128xf32>
    %1004 = arith.divf %1002, %1003 : vector<2x128xf32>
    %1005 = vector.extract_strided_slice %985 {offsets = [0, 256], sizes = [2, 128], strides = [1, 1]} : vector<2x384xf32> to vector<2x128xf32>
    %1006 = vector.extract_strided_slice %988 {offsets = [0, 256], sizes = [2, 128], strides = [1, 1]} : vector<2x384xf32> to vector<2x128xf32>
    %1007 = arith.mulf %996, %1006 : vector<2x128xf32>
    %1008 = arith.addf %1005, %1007 : vector<2x128xf32>
    %1009 = math.tanh %1008 : vector<2x128xf32>
    %cst_245 = arith.constant 1.000000e+00 : f32
    %1010 = vector.broadcast %cst_245 : f32 to vector<2x128xf32>
    %1011 = arith.subf %1010, %1004 : vector<2x128xf32>
    %1012 = arith.mulf %1011, %1009 : vector<2x128xf32>
    %1013 = arith.mulf %1004, %946 : vector<2x128xf32>
    %1014 = arith.addf %1012, %1013 : vector<2x128xf32>
    %1015 = vector.extract_strided_slice %4 {offsets = [0, 4, 0], sizes = [2, 1, 128], strides = [1, 1, 1]} : vector<2x8x128xi1> to vector<2x1x128xi1>
    %1016 = vector.shape_cast %1015 : vector<2x1x128xi1> to vector<2x128xi1>
    %1017 = arith.select %1016, %983, %943 : vector<2x128xi1>, vector<2x128xf32>
    %1018 = vector.extract_strided_slice %4 {offsets = [0, 3, 0], sizes = [2, 1, 128], strides = [1, 1, 1]} : vector<2x8x128xi1> to vector<2x1x128xi1>
    %1019 = vector.shape_cast %1018 : vector<2x1x128xi1> to vector<2x128xi1>
    %1020 = arith.select %1019, %1014, %946 : vector<2x128xi1>, vector<2x128xf32>
    %c0_246 = arith.constant 0 : index
    %c4_247 = arith.constant 4 : index
    %c0_248 = arith.constant 0 : index
    %1021 = vector.load %arg9[%c0_246, %c4_247, %c0_248] : memref<2x8x256xf32, #tpu.memory_space<vmem>>, vector<2x1x128xf32>
    %1022 = vector.shape_cast %1021 : vector<2x1x128xf32> to vector<2x128xf32>
    %1023 = vector.shape_cast %1017 : vector<2x128xf32> to vector<2x1x128xf32>
    tpu.vector_store %arg9[%c0_246, %c4_247, %c0_248], %1023 {strides = array<i32>} : memref<2x8x256xf32, #tpu.memory_space<vmem>>, vector<2x1x128xf32>,
    %c0_249 = arith.constant 0 : index
    %c3_250 = arith.constant 3 : index
    %c128_251 = arith.constant 128 : index
    %1024 = vector.load %arg9[%c0_249, %c3_250, %c128_251] : memref<2x8x256xf32, #tpu.memory_space<vmem>>, vector<2x1x128xf32>
    %1025 = vector.shape_cast %1024 : vector<2x1x128xf32> to vector<2x128xf32>
    %1026 = vector.shape_cast %1020 : vector<2x128xf32> to vector<2x1x128xf32>
    tpu.vector_store %arg9[%c0_249, %c3_250, %c128_251], %1026 {strides = array<i32>} : memref<2x8x256xf32, #tpu.memory_space<vmem>>, vector<2x1x128xf32>,
    %1027 = vector.extract_strided_slice %638 {offsets = [0, 5, 0], sizes = [2, 1, 384], strides = [1, 1, 1]} : vector<2x8x384xf32> to vector<2x1x384xf32>
    %1028 = vector.shape_cast %1027 : vector<2x1x384xf32> to vector<2x384xf32>
    %cst_252 = arith.constant dense<0.000000e+00> : vector<2x384xf32>
    %1029 = tpu.matmul %1017, %648, %cst_252 {dimension_numbers = #tpu.dot_dimension_numbers<[1], [0], [0], [1], [0, 0, 1, 1], [], []>} : vector<2x128xf32>, vector<128x384xf32>, vector<2x384xf32> -> vector<2x384xf32>
    %1030 = vector.broadcast %652 : vector<1x384xf32> to vector<2x384xf32>
    %1031 = arith.addf %1029, %1030 : vector<2x384xf32>
    %1032 = vector.extract_strided_slice %1028 {offsets = [0, 0], sizes = [2, 128], strides = [1, 1]} : vector<2x384xf32> to vector<2x128xf32>
    %1033 = vector.extract_strided_slice %1031 {offsets = [0, 0], sizes = [2, 128], strides = [1, 1]} : vector<2x384xf32> to vector<2x128xf32>
    %1034 = arith.addf %1032, %1033 : vector<2x128xf32>
    %1035 = arith.negf %1034 : vector<2x128xf32>
    %1036 = math.exp %1035 : vector<2x128xf32>
    %cst_253 = arith.constant 1.000000e+00 : f32
    %1037 = vector.broadcast %cst_253 : f32 to vector<2x128xf32>
    %1038 = arith.addf %1037, %1036 : vector<2x128xf32>
    %1039 = arith.divf %1037, %1038 : vector<2x128xf32>
    %1040 = vector.extract_strided_slice %1028 {offsets = [0, 128], sizes = [2, 128], strides = [1, 1]} : vector<2x384xf32> to vector<2x128xf32>
    %1041 = vector.extract_strided_slice %1031 {offsets = [0, 128], sizes = [2, 128], strides = [1, 1]} : vector<2x384xf32> to vector<2x128xf32>
    %1042 = arith.addf %1040, %1041 : vector<2x128xf32>
    %1043 = arith.negf %1042 : vector<2x128xf32>
    %1044 = math.exp %1043 : vector<2x128xf32>
    %cst_254 = arith.constant 1.000000e+00 : f32
    %1045 = vector.broadcast %cst_254 : f32 to vector<2x128xf32>
    %1046 = arith.addf %1045, %1044 : vector<2x128xf32>
    %1047 = arith.divf %1045, %1046 : vector<2x128xf32>
    %1048 = vector.extract_strided_slice %1028 {offsets = [0, 256], sizes = [2, 128], strides = [1, 1]} : vector<2x384xf32> to vector<2x128xf32>
    %1049 = vector.extract_strided_slice %1031 {offsets = [0, 256], sizes = [2, 128], strides = [1, 1]} : vector<2x384xf32> to vector<2x128xf32>
    %1050 = arith.mulf %1039, %1049 : vector<2x128xf32>
    %1051 = arith.addf %1048, %1050 : vector<2x128xf32>
    %1052 = math.tanh %1051 : vector<2x128xf32>
    %cst_255 = arith.constant 1.000000e+00 : f32
    %1053 = vector.broadcast %cst_255 : f32 to vector<2x128xf32>
    %1054 = arith.subf %1053, %1047 : vector<2x128xf32>
    %1055 = arith.mulf %1054, %1052 : vector<2x128xf32>
    %1056 = arith.mulf %1047, %1017 : vector<2x128xf32>
    %1057 = arith.addf %1055, %1056 : vector<2x128xf32>
    %1058 = vector.extract_strided_slice %646 {offsets = [0, 2, 0], sizes = [2, 1, 384], strides = [1, 1, 1]} : vector<2x8x384xf32> to vector<2x1x384xf32>
    %1059 = vector.shape_cast %1058 : vector<2x1x384xf32> to vector<2x384xf32>
    %cst_256 = arith.constant dense<0.000000e+00> : vector<2x384xf32>
    %1060 = tpu.matmul %1020, %650, %cst_256 {dimension_numbers = #tpu.dot_dimension_numbers<[1], [0], [0], [1], [0, 0, 1, 1], [], []>} : vector<2x128xf32>, vector<128x384xf32>, vector<2x384xf32> -> vector<2x384xf32>
    %1061 = vector.broadcast %654 : vector<1x384xf32> to vector<2x384xf32>
    %1062 = arith.addf %1060, %1061 : vector<2x384xf32>
    %1063 = vector.extract_strided_slice %1059 {offsets = [0, 0], sizes = [2, 128], strides = [1, 1]} : vector<2x384xf32> to vector<2x128xf32>
    %1064 = vector.extract_strided_slice %1062 {offsets = [0, 0], sizes = [2, 128], strides = [1, 1]} : vector<2x384xf32> to vector<2x128xf32>
    %1065 = arith.addf %1063, %1064 : vector<2x128xf32>
    %1066 = arith.negf %1065 : vector<2x128xf32>
    %1067 = math.exp %1066 : vector<2x128xf32>
    %cst_257 = arith.constant 1.000000e+00 : f32
    %1068 = vector.broadcast %cst_257 : f32 to vector<2x128xf32>
    %1069 = arith.addf %1068, %1067 : vector<2x128xf32>
    %1070 = arith.divf %1068, %1069 : vector<2x128xf32>
    %1071 = vector.extract_strided_slice %1059 {offsets = [0, 128], sizes = [2, 128], strides = [1, 1]} : vector<2x384xf32> to vector<2x128xf32>
    %1072 = vector.extract_strided_slice %1062 {offsets = [0, 128], sizes = [2, 128], strides = [1, 1]} : vector<2x384xf32> to vector<2x128xf32>
    %1073 = arith.addf %1071, %1072 : vector<2x128xf32>
    %1074 = arith.negf %1073 : vector<2x128xf32>
    %1075 = math.exp %1074 : vector<2x128xf32>
    %cst_258 = arith.constant 1.000000e+00 : f32
    %1076 = vector.broadcast %cst_258 : f32 to vector<2x128xf32>
    %1077 = arith.addf %1076, %1075 : vector<2x128xf32>
    %1078 = arith.divf %1076, %1077 : vector<2x128xf32>
    %1079 = vector.extract_strided_slice %1059 {offsets = [0, 256], sizes = [2, 128], strides = [1, 1]} : vector<2x384xf32> to vector<2x128xf32>
    %1080 = vector.extract_strided_slice %1062 {offsets = [0, 256], sizes = [2, 128], strides = [1, 1]} : vector<2x384xf32> to vector<2x128xf32>
    %1081 = arith.mulf %1070, %1080 : vector<2x128xf32>
    %1082 = arith.addf %1079, %1081 : vector<2x128xf32>
    %1083 = math.tanh %1082 : vector<2x128xf32>
    %cst_259 = arith.constant 1.000000e+00 : f32
    %1084 = vector.broadcast %cst_259 : f32 to vector<2x128xf32>
    %1085 = arith.subf %1084, %1078 : vector<2x128xf32>
    %1086 = arith.mulf %1085, %1083 : vector<2x128xf32>
    %1087 = arith.mulf %1078, %1020 : vector<2x128xf32>
    %1088 = arith.addf %1086, %1087 : vector<2x128xf32>
    %1089 = vector.extract_strided_slice %4 {offsets = [0, 5, 0], sizes = [2, 1, 128], strides = [1, 1, 1]} : vector<2x8x128xi1> to vector<2x1x128xi1>
    %1090 = vector.shape_cast %1089 : vector<2x1x128xi1> to vector<2x128xi1>
    %1091 = arith.select %1090, %1057, %1017 : vector<2x128xi1>, vector<2x128xf32>
    %1092 = vector.extract_strided_slice %4 {offsets = [0, 2, 0], sizes = [2, 1, 128], strides = [1, 1, 1]} : vector<2x8x128xi1> to vector<2x1x128xi1>
    %1093 = vector.shape_cast %1092 : vector<2x1x128xi1> to vector<2x128xi1>
    %1094 = arith.select %1093, %1088, %1020 : vector<2x128xi1>, vector<2x128xf32>
    %c0_260 = arith.constant 0 : index
    %c5_261 = arith.constant 5 : index
    %c0_262 = arith.constant 0 : index
    %1095 = vector.load %arg9[%c0_260, %c5_261, %c0_262] : memref<2x8x256xf32, #tpu.memory_space<vmem>>, vector<2x1x128xf32>
    %1096 = vector.shape_cast %1095 : vector<2x1x128xf32> to vector<2x128xf32>
    %1097 = vector.shape_cast %1091 : vector<2x128xf32> to vector<2x1x128xf32>
    tpu.vector_store %arg9[%c0_260, %c5_261, %c0_262], %1097 {strides = array<i32>} : memref<2x8x256xf32, #tpu.memory_space<vmem>>, vector<2x1x128xf32>,
    %c0_263 = arith.constant 0 : index
    %c2_264 = arith.constant 2 : index
    %c128_265 = arith.constant 128 : index
    %1098 = vector.load %arg9[%c0_263, %c2_264, %c128_265] : memref<2x8x256xf32, #tpu.memory_space<vmem>>, vector<2x1x128xf32>
    %1099 = vector.shape_cast %1098 : vector<2x1x128xf32> to vector<2x128xf32>
    %1100 = vector.shape_cast %1094 : vector<2x128xf32> to vector<2x1x128xf32>
    tpu.vector_store %arg9[%c0_263, %c2_264, %c128_265], %1100 {strides = array<i32>} : memref<2x8x256xf32, #tpu.memory_space<vmem>>, vector<2x1x128xf32>,
    %1101 = vector.extract_strided_slice %638 {offsets = [0, 6, 0], sizes = [2, 1, 384], strides = [1, 1, 1]} : vector<2x8x384xf32> to vector<2x1x384xf32>
    %1102 = vector.shape_cast %1101 : vector<2x1x384xf32> to vector<2x384xf32>
    %cst_266 = arith.constant dense<0.000000e+00> : vector<2x384xf32>
    %1103 = tpu.matmul %1091, %648, %cst_266 {dimension_numbers = #tpu.dot_dimension_numbers<[1], [0], [0], [1], [0, 0, 1, 1], [], []>} : vector<2x128xf32>, vector<128x384xf32>, vector<2x384xf32> -> vector<2x384xf32>
    %1104 = vector.broadcast %652 : vector<1x384xf32> to vector<2x384xf32>
    %1105 = arith.addf %1103, %1104 : vector<2x384xf32>
    %1106 = vector.extract_strided_slice %1102 {offsets = [0, 0], sizes = [2, 128], strides = [1, 1]} : vector<2x384xf32> to vector<2x128xf32>
    %1107 = vector.extract_strided_slice %1105 {offsets = [0, 0], sizes = [2, 128], strides = [1, 1]} : vector<2x384xf32> to vector<2x128xf32>
    %1108 = arith.addf %1106, %1107 : vector<2x128xf32>
    %1109 = arith.negf %1108 : vector<2x128xf32>
    %1110 = math.exp %1109 : vector<2x128xf32>
    %cst_267 = arith.constant 1.000000e+00 : f32
    %1111 = vector.broadcast %cst_267 : f32 to vector<2x128xf32>
    %1112 = arith.addf %1111, %1110 : vector<2x128xf32>
    %1113 = arith.divf %1111, %1112 : vector<2x128xf32>
    %1114 = vector.extract_strided_slice %1102 {offsets = [0, 128], sizes = [2, 128], strides = [1, 1]} : vector<2x384xf32> to vector<2x128xf32>
    %1115 = vector.extract_strided_slice %1105 {offsets = [0, 128], sizes = [2, 128], strides = [1, 1]} : vector<2x384xf32> to vector<2x128xf32>
    %1116 = arith.addf %1114, %1115 : vector<2x128xf32>
    %1117 = arith.negf %1116 : vector<2x128xf32>
    %1118 = math.exp %1117 : vector<2x128xf32>
    %cst_268 = arith.constant 1.000000e+00 : f32
    %1119 = vector.broadcast %cst_268 : f32 to vector<2x128xf32>
    %1120 = arith.addf %1119, %1118 : vector<2x128xf32>
    %1121 = arith.divf %1119, %1120 : vector<2x128xf32>
    %1122 = vector.extract_strided_slice %1102 {offsets = [0, 256], sizes = [2, 128], strides = [1, 1]} : vector<2x384xf32> to vector<2x128xf32>
    %1123 = vector.extract_strided_slice %1105 {offsets = [0, 256], sizes = [2, 128], strides = [1, 1]} : vector<2x384xf32> to vector<2x128xf32>
    %1124 = arith.mulf %1113, %1123 : vector<2x128xf32>
    %1125 = arith.addf %1122, %1124 : vector<2x128xf32>
    %1126 = math.tanh %1125 : vector<2x128xf32>
    %cst_269 = arith.constant 1.000000e+00 : f32
    %1127 = vector.broadcast %cst_269 : f32 to vector<2x128xf32>
    %1128 = arith.subf %1127, %1121 : vector<2x128xf32>
    %1129 = arith.mulf %1128, %1126 : vector<2x128xf32>
    %1130 = arith.mulf %1121, %1091 : vector<2x128xf32>
    %1131 = arith.addf %1129, %1130 : vector<2x128xf32>
    %1132 = vector.extract_strided_slice %646 {offsets = [0, 1, 0], sizes = [2, 1, 384], strides = [1, 1, 1]} : vector<2x8x384xf32> to vector<2x1x384xf32>
    %1133 = vector.shape_cast %1132 : vector<2x1x384xf32> to vector<2x384xf32>
    %cst_270 = arith.constant dense<0.000000e+00> : vector<2x384xf32>
    %1134 = tpu.matmul %1094, %650, %cst_270 {dimension_numbers = #tpu.dot_dimension_numbers<[1], [0], [0], [1], [0, 0, 1, 1], [], []>} : vector<2x128xf32>, vector<128x384xf32>, vector<2x384xf32> -> vector<2x384xf32>
    %1135 = vector.broadcast %654 : vector<1x384xf32> to vector<2x384xf32>
    %1136 = arith.addf %1134, %1135 : vector<2x384xf32>
    %1137 = vector.extract_strided_slice %1133 {offsets = [0, 0], sizes = [2, 128], strides = [1, 1]} : vector<2x384xf32> to vector<2x128xf32>
    %1138 = vector.extract_strided_slice %1136 {offsets = [0, 0], sizes = [2, 128], strides = [1, 1]} : vector<2x384xf32> to vector<2x128xf32>
    %1139 = arith.addf %1137, %1138 : vector<2x128xf32>
    %1140 = arith.negf %1139 : vector<2x128xf32>
    %1141 = math.exp %1140 : vector<2x128xf32>
    %cst_271 = arith.constant 1.000000e+00 : f32
    %1142 = vector.broadcast %cst_271 : f32 to vector<2x128xf32>
    %1143 = arith.addf %1142, %1141 : vector<2x128xf32>
    %1144 = arith.divf %1142, %1143 : vector<2x128xf32>
    %1145 = vector.extract_strided_slice %1133 {offsets = [0, 128], sizes = [2, 128], strides = [1, 1]} : vector<2x384xf32> to vector<2x128xf32>
    %1146 = vector.extract_strided_slice %1136 {offsets = [0, 128], sizes = [2, 128], strides = [1, 1]} : vector<2x384xf32> to vector<2x128xf32>
    %1147 = arith.addf %1145, %1146 : vector<2x128xf32>
    %1148 = arith.negf %1147 : vector<2x128xf32>
    %1149 = math.exp %1148 : vector<2x128xf32>
    %cst_272 = arith.constant 1.000000e+00 : f32
    %1150 = vector.broadcast %cst_272 : f32 to vector<2x128xf32>
    %1151 = arith.addf %1150, %1149 : vector<2x128xf32>
    %1152 = arith.divf %1150, %1151 : vector<2x128xf32>
    %1153 = vector.extract_strided_slice %1133 {offsets = [0, 256], sizes = [2, 128], strides = [1, 1]} : vector<2x384xf32> to vector<2x128xf32>
    %1154 = vector.extract_strided_slice %1136 {offsets = [0, 256], sizes = [2, 128], strides = [1, 1]} : vector<2x384xf32> to vector<2x128xf32>
    %1155 = arith.mulf %1144, %1154 : vector<2x128xf32>
    %1156 = arith.addf %1153, %1155 : vector<2x128xf32>
    %1157 = math.tanh %1156 : vector<2x128xf32>
    %cst_273 = arith.constant 1.000000e+00 : f32
    %1158 = vector.broadcast %cst_273 : f32 to vector<2x128xf32>
    %1159 = arith.subf %1158, %1152 : vector<2x128xf32>
    %1160 = arith.mulf %1159, %1157 : vector<2x128xf32>
    %1161 = arith.mulf %1152, %1094 : vector<2x128xf32>
    %1162 = arith.addf %1160, %1161 : vector<2x128xf32>
    %1163 = vector.extract_strided_slice %4 {offsets = [0, 6, 0], sizes = [2, 1, 128], strides = [1, 1, 1]} : vector<2x8x128xi1> to vector<2x1x128xi1>
    %1164 = vector.shape_cast %1163 : vector<2x1x128xi1> to vector<2x128xi1>
    %1165 = arith.select %1164, %1131, %1091 : vector<2x128xi1>, vector<2x128xf32>
    %1166 = vector.extract_strided_slice %4 {offsets = [0, 1, 0], sizes = [2, 1, 128], strides = [1, 1, 1]} : vector<2x8x128xi1> to vector<2x1x128xi1>
    %1167 = vector.shape_cast %1166 : vector<2x1x128xi1> to vector<2x128xi1>
    %1168 = arith.select %1167, %1162, %1094 : vector<2x128xi1>, vector<2x128xf32>
    %c0_274 = arith.constant 0 : index
    %c6_275 = arith.constant 6 : index
    %c0_276 = arith.constant 0 : index
    %1169 = vector.load %arg9[%c0_274, %c6_275, %c0_276] : memref<2x8x256xf32, #tpu.memory_space<vmem>>, vector<2x1x128xf32>
    %1170 = vector.shape_cast %1169 : vector<2x1x128xf32> to vector<2x128xf32>
    %1171 = vector.shape_cast %1165 : vector<2x128xf32> to vector<2x1x128xf32>
    tpu.vector_store %arg9[%c0_274, %c6_275, %c0_276], %1171 {strides = array<i32>} : memref<2x8x256xf32, #tpu.memory_space<vmem>>, vector<2x1x128xf32>,
    %c0_277 = arith.constant 0 : index
    %c1_278 = arith.constant 1 : index
    %c128_279 = arith.constant 128 : index
    %1172 = vector.load %arg9[%c0_277, %c1_278, %c128_279] : memref<2x8x256xf32, #tpu.memory_space<vmem>>, vector<2x1x128xf32>
    %1173 = vector.shape_cast %1172 : vector<2x1x128xf32> to vector<2x128xf32>
    %1174 = vector.shape_cast %1168 : vector<2x128xf32> to vector<2x1x128xf32>
    tpu.vector_store %arg9[%c0_277, %c1_278, %c128_279], %1174 {strides = array<i32>} : memref<2x8x256xf32, #tpu.memory_space<vmem>>, vector<2x1x128xf32>,
    %1175 = vector.extract_strided_slice %638 {offsets = [0, 7, 0], sizes = [2, 1, 384], strides = [1, 1, 1]} : vector<2x8x384xf32> to vector<2x1x384xf32>
    %1176 = vector.shape_cast %1175 : vector<2x1x384xf32> to vector<2x384xf32>
    %cst_280 = arith.constant dense<0.000000e+00> : vector<2x384xf32>
    %1177 = tpu.matmul %1165, %648, %cst_280 {dimension_numbers = #tpu.dot_dimension_numbers<[1], [0], [0], [1], [0, 0, 1, 1], [], []>} : vector<2x128xf32>, vector<128x384xf32>, vector<2x384xf32> -> vector<2x384xf32>
    %1178 = vector.broadcast %652 : vector<1x384xf32> to vector<2x384xf32>
    %1179 = arith.addf %1177, %1178 : vector<2x384xf32>
    %1180 = vector.extract_strided_slice %1176 {offsets = [0, 0], sizes = [2, 128], strides = [1, 1]} : vector<2x384xf32> to vector<2x128xf32>
    %1181 = vector.extract_strided_slice %1179 {offsets = [0, 0], sizes = [2, 128], strides = [1, 1]} : vector<2x384xf32> to vector<2x128xf32>
    %1182 = arith.addf %1180, %1181 : vector<2x128xf32>
    %1183 = arith.negf %1182 : vector<2x128xf32>
    %1184 = math.exp %1183 : vector<2x128xf32>
    %cst_281 = arith.constant 1.000000e+00 : f32
    %1185 = vector.broadcast %cst_281 : f32 to vector<2x128xf32>
    %1186 = arith.addf %1185, %1184 : vector<2x128xf32>
    %1187 = arith.divf %1185, %1186 : vector<2x128xf32>
    %1188 = vector.extract_strided_slice %1176 {offsets = [0, 128], sizes = [2, 128], strides = [1, 1]} : vector<2x384xf32> to vector<2x128xf32>
    %1189 = vector.extract_strided_slice %1179 {offsets = [0, 128], sizes = [2, 128], strides = [1, 1]} : vector<2x384xf32> to vector<2x128xf32>
    %1190 = arith.addf %1188, %1189 : vector<2x128xf32>
    %1191 = arith.negf %1190 : vector<2x128xf32>
    %1192 = math.exp %1191 : vector<2x128xf32>
    %cst_282 = arith.constant 1.000000e+00 : f32
    %1193 = vector.broadcast %cst_282 : f32 to vector<2x128xf32>
    %1194 = arith.addf %1193, %1192 : vector<2x128xf32>
    %1195 = arith.divf %1193, %1194 : vector<2x128xf32>
    %1196 = vector.extract_strided_slice %1176 {offsets = [0, 256], sizes = [2, 128], strides = [1, 1]} : vector<2x384xf32> to vector<2x128xf32>
    %1197 = vector.extract_strided_slice %1179 {offsets = [0, 256], sizes = [2, 128], strides = [1, 1]} : vector<2x384xf32> to vector<2x128xf32>
    %1198 = arith.mulf %1187, %1197 : vector<2x128xf32>
    %1199 = arith.addf %1196, %1198 : vector<2x128xf32>
    %1200 = math.tanh %1199 : vector<2x128xf32>
    %cst_283 = arith.constant 1.000000e+00 : f32
    %1201 = vector.broadcast %cst_283 : f32 to vector<2x128xf32>
    %1202 = arith.subf %1201, %1195 : vector<2x128xf32>
    %1203 = arith.mulf %1202, %1200 : vector<2x128xf32>
    %1204 = arith.mulf %1195, %1165 : vector<2x128xf32>
    %1205 = arith.addf %1203, %1204 : vector<2x128xf32>
    %1206 = vector.extract_strided_slice %646 {offsets = [0, 0, 0], sizes = [2, 1, 384], strides = [1, 1, 1]} : vector<2x8x384xf32> to vector<2x1x384xf32>
    %1207 = vector.shape_cast %1206 : vector<2x1x384xf32> to vector<2x384xf32>
    %cst_284 = arith.constant dense<0.000000e+00> : vector<2x384xf32>
    %1208 = tpu.matmul %1168, %650, %cst_284 {dimension_numbers = #tpu.dot_dimension_numbers<[1], [0], [0], [1], [0, 0, 1, 1], [], []>} : vector<2x128xf32>, vector<128x384xf32>, vector<2x384xf32> -> vector<2x384xf32>
    %1209 = vector.broadcast %654 : vector<1x384xf32> to vector<2x384xf32>
    %1210 = arith.addf %1208, %1209 : vector<2x384xf32>
    %1211 = vector.extract_strided_slice %1207 {offsets = [0, 0], sizes = [2, 128], strides = [1, 1]} : vector<2x384xf32> to vector<2x128xf32>
    %1212 = vector.extract_strided_slice %1210 {offsets = [0, 0], sizes = [2, 128], strides = [1, 1]} : vector<2x384xf32> to vector<2x128xf32>
    %1213 = arith.addf %1211, %1212 : vector<2x128xf32>
    %1214 = arith.negf %1213 : vector<2x128xf32>
    %1215 = math.exp %1214 : vector<2x128xf32>
    %cst_285 = arith.constant 1.000000e+00 : f32
    %1216 = vector.broadcast %cst_285 : f32 to vector<2x128xf32>
    %1217 = arith.addf %1216, %1215 : vector<2x128xf32>
    %1218 = arith.divf %1216, %1217 : vector<2x128xf32>
    %1219 = vector.extract_strided_slice %1207 {offsets = [0, 128], sizes = [2, 128], strides = [1, 1]} : vector<2x384xf32> to vector<2x128xf32>
    %1220 = vector.extract_strided_slice %1210 {offsets = [0, 128], sizes = [2, 128], strides = [1, 1]} : vector<2x384xf32> to vector<2x128xf32>
    %1221 = arith.addf %1219, %1220 : vector<2x128xf32>
    %1222 = arith.negf %1221 : vector<2x128xf32>
    %1223 = math.exp %1222 : vector<2x128xf32>
    %cst_286 = arith.constant 1.000000e+00 : f32
    %1224 = vector.broadcast %cst_286 : f32 to vector<2x128xf32>
    %1225 = arith.addf %1224, %1223 : vector<2x128xf32>
    %1226 = arith.divf %1224, %1225 : vector<2x128xf32>
    %1227 = vector.extract_strided_slice %1207 {offsets = [0, 256], sizes = [2, 128], strides = [1, 1]} : vector<2x384xf32> to vector<2x128xf32>
    %1228 = vector.extract_strided_slice %1210 {offsets = [0, 256], sizes = [2, 128], strides = [1, 1]} : vector<2x384xf32> to vector<2x128xf32>
    %1229 = arith.mulf %1218, %1228 : vector<2x128xf32>
    %1230 = arith.addf %1227, %1229 : vector<2x128xf32>
    %1231 = math.tanh %1230 : vector<2x128xf32>
    %cst_287 = arith.constant 1.000000e+00 : f32
    %1232 = vector.broadcast %cst_287 : f32 to vector<2x128xf32>
    %1233 = arith.subf %1232, %1226 : vector<2x128xf32>
    %1234 = arith.mulf %1233, %1231 : vector<2x128xf32>
    %1235 = arith.mulf %1226, %1168 : vector<2x128xf32>
    %1236 = arith.addf %1234, %1235 : vector<2x128xf32>
    %1237 = vector.extract_strided_slice %4 {offsets = [0, 7, 0], sizes = [2, 1, 128], strides = [1, 1, 1]} : vector<2x8x128xi1> to vector<2x1x128xi1>
    %1238 = vector.shape_cast %1237 : vector<2x1x128xi1> to vector<2x128xi1>
    %1239 = arith.select %1238, %1205, %1165 : vector<2x128xi1>, vector<2x128xf32>
    %1240 = vector.extract_strided_slice %4 {offsets = [0, 0, 0], sizes = [2, 1, 128], strides = [1, 1, 1]} : vector<2x8x128xi1> to vector<2x1x128xi1>
    %1241 = vector.shape_cast %1240 : vector<2x1x128xi1> to vector<2x128xi1>
    %1242 = arith.select %1241, %1236, %1168 : vector<2x128xi1>, vector<2x128xf32>
    %c0_288 = arith.constant 0 : index
    %c7_289 = arith.constant 7 : index
    %c0_290 = arith.constant 0 : index
    %1243 = vector.load %arg9[%c0_288, %c7_289, %c0_290] : memref<2x8x256xf32, #tpu.memory_space<vmem>>, vector<2x1x128xf32>
    %1244 = vector.shape_cast %1243 : vector<2x1x128xf32> to vector<2x128xf32>
    %1245 = vector.shape_cast %1239 : vector<2x128xf32> to vector<2x1x128xf32>
    tpu.vector_store %arg9[%c0_288, %c7_289, %c0_290], %1245 {strides = array<i32>} : memref<2x8x256xf32, #tpu.memory_space<vmem>>, vector<2x1x128xf32>,
    %c0_291 = arith.constant 0 : index
    %c0_292 = arith.constant 0 : index
    %c128_293 = arith.constant 128 : index
    %1246 = vector.load %arg9[%c0_291, %c0_292, %c128_293] : memref<2x8x256xf32, #tpu.memory_space<vmem>>, vector<2x1x128xf32>
    %1247 = vector.shape_cast %1246 : vector<2x1x128xf32> to vector<2x128xf32>
    %1248 = vector.shape_cast %1242 : vector<2x128xf32> to vector<2x1x128xf32>
    tpu.vector_store %arg9[%c0_291, %c0_292, %c128_293], %1248 {strides = array<i32>} : memref<2x8x256xf32, #tpu.memory_space<vmem>>, vector<2x1x128xf32>,
    %c0_294 = arith.constant 0 : index
    %c0_295 = arith.constant 0 : index
    %c0_296 = arith.constant 0 : index
    %1249 = vector.load %arg9[%c0_294, %c0_295, %c0_296] : memref<2x8x256xf32, #tpu.memory_space<vmem>>, vector<2x8x256xf32>
    %cst_297 = arith.constant 0.000000e+00 : f32
    %1250 = vector.shape_cast %8 : vector<2x8x1xi1> to vector<2x8x1xi1>
    %1251 = vector.broadcast %1250 : vector<2x8x1xi1> to vector<2x8x256xi1>
    %1252 = vector.broadcast %cst_297 : f32 to vector<2x8x256xf32>
    %1253 = arith.select %1251, %1249, %1252 : vector<2x8x256xi1>, vector<2x8x256xf32>
    %c0_298 = arith.constant 0 : index
    %c0_299 = arith.constant 0 : index
    %c0_300 = arith.constant 0 : index
    %1254 = vector.load %arg7[%c0_298, %c0_299, %c0_300] : memref<2x8x256xf32, #tpu.memory_space<vmem>>, vector<2x8x256xf32>
    tpu.vector_store %arg7[%c0_298, %c0_299, %c0_300], %1253 {strides = array<i32>} : memref<2x8x256xf32, #tpu.memory_space<vmem>>, vector<2x8x256xf32>,
    return
  }
  func.func @transform_0(%arg0: i32) -> (i32, i32, i32) {
    %c0_i32 = arith.constant 0 : i32
    %c0_i32_0 = arith.constant 0 : i32
    %c0_i32_1 = arith.constant 0 : i32
    %c0_i32_2 = arith.constant 0 : i32
    return %c0_i32, %c0_i32_0, %c0_i32_1 : i32, i32, i32
  }
  func.func @transform_1(%arg0: i32) -> (i32, i32) {
    %c0_i32 = arith.constant 0 : i32
    %c0_i32_0 = arith.constant 0 : i32
    %c0_i32_1 = arith.constant 0 : i32
    return %c0_i32, %c0_i32_0 : i32, i32
  }
  func.func @transform_2(%arg0: i32) -> (i32, i32, i32, i32) {
    %c0_i32 = arith.constant 0 : i32
    %c0_i32_0 = arith.constant 0 : i32
    %c0_i32_1 = arith.constant 0 : i32
    %c0_i32_2 = arith.constant 0 : i32
    %c0_i32_3 = arith.constant 0 : i32
    return %c0_i32, %c0_i32_0, %c0_i32_1, %c0_i32_2 : i32, i32, i32, i32
  }
  func.func @transform_3(%arg0: i32) -> (i32, i32, i32, i32) {
    %c0_i32 = arith.constant 0 : i32
    %c0_i32_0 = arith.constant 0 : i32
    %c0_i32_1 = arith.constant 0 : i32
    %c0_i32_2 = arith.constant 0 : i32
    %c0_i32_3 = arith.constant 0 : i32
    return %c0_i32, %c0_i32_0, %c0_i32_1, %c0_i32_2 : i32, i32, i32, i32
  }
  func.func @transform_4(%arg0: i32) -> (i32, i32, i32, i32) {
    %c0_i32 = arith.constant 0 : i32
    %c0_i32_0 = arith.constant 0 : i32
    %c0_i32_1 = arith.constant 0 : i32
    %c0_i32_2 = arith.constant 0 : i32
    %c0_i32_3 = arith.constant 0 : i32
    return %c0_i32, %c0_i32_0, %c0_i32_1, %c0_i32_2 : i32, i32, i32, i32
  }
  func.func @transform_5(%arg0: i32) -> (i32, i32, i32, i32) {
    %c0_i32 = arith.constant 0 : i32
    %c0_i32_0 = arith.constant 0 : i32
    %c0_i32_1 = arith.constant 0 : i32
    %c0_i32_2 = arith.constant 0 : i32
    %c0_i32_3 = arith.constant 0 : i32
    return %c0_i32, %c0_i32_0, %c0_i32_1, %c0_i32_2 : i32, i32, i32, i32
  }
  func.func @transform_6(%arg0: i32) -> (i32, i32, i32) {
    %c0_i32 = arith.constant 0 : i32
    %c0_i32_0 = arith.constant 0 : i32
    %c0_i32_1 = arith.constant 0 : i32
    %c0_i32_2 = arith.constant 0 : i32
    return %c0_i32, %c0_i32_0, %c0_i32_1 : i32, i32, i32
  }
}

</mosaic_0001>

<llo_original>
// kernel: tpu_custom_call.1
$region0: #{tpu_custom_call.1}
  #allocation0 [shape = 'u32[]', space=smem, size = 0x4, offset = 0x4, fixed_abs, tag = 'smem constant byte address 0x4 - core index']
  #allocation1 [shape = 'u32[144,128]{1,0:T(1,128)}', space=vmem, size = 0x12000, scoped, tag = 'internal scratch']
  #allocation2 [shape = 'f32[2,8,256]{2,1,0:T(8,128)}', space=vmem, size = 0x4000, scoped, tag = 'scratch operand']
  #allocation3 [shape = 'f32[2,8,256]{2,1,0:T(8,128)}', space=vmem, size = 0x4000, scoped, tag = 'scratch operand']
  %s0 = inlined_call_operand.hbm [shape: f32[2,8,16], index: 0, kind: input, shape index: {}]
  %s1 = inlined_call_operand.vmem [shape: s32[2,1], index: 1, kind: input, shape index: {}]
  %s2 = inlined_call_operand.hbm [shape: f32[2,2,256,384], index: 2, kind: input, shape index: {}]
  %s3 = inlined_call_operand.hbm [shape: f32[2,2,128,384], index: 3, kind: input, shape index: {}]
  %s4 = inlined_call_operand.hbm [shape: f32[2,2,1,384], index: 4, kind: input, shape index: {}]
  %s5 = inlined_call_operand.hbm [shape: f32[2,2,1,384], index: 5, kind: input, shape index: {}]
  %s6 = inlined_call_operand.hbm [shape: f32[2,8,256], index: 6, kind: output, shape index: {}]
  %s7 = sld [smem:[#allocation0]]
  $region54: #{tpu_custom_call.1} parent=0
    _
  %s9 = ssub.s32 1, %s7
  %s10 = scalar_select 0, %s9, %s7
  $region1: #{tpu_custom_call.1} parent=0
    #allocation4 [shape = 'u8[8192]{0}', space=vmem, size = 0x2000, scoped, tag = 'input window, operand 0, single buffered']
    #allocation5 [shape = 's32[1]{0}', space=sflag, size = 0x4, scoped, tag = 'scoped memory for tpu_custom_call.1']
    #allocation6 [shape = 's32[1]{0}', space=sflag, size = 0x4, scoped, tag = 'scoped memory for tpu_custom_call.1']
    #allocation7 [shape = 'u8[1572864]{0}', space=vmem, size = 0x180000, scoped, tag = 'input window, operand 2, single buffered']
    #allocation8 [shape = 's32[1]{0}', space=sflag, size = 0x4, scoped, tag = 'scoped memory for tpu_custom_call.1']
    #allocation9 [shape = 'u8[786432]{0}', space=vmem, size = 0xc0000, scoped, tag = 'input window, operand 3, single buffered']
    #allocation10 [shape = 'u8[6144]{0}', space=vmem, size = 0x1800, scoped, tag = 'input window, operand 4, single buffered']
    #allocation11 [shape = 's32[1]{0}', space=sflag, size = 0x4, scoped, tag = 'scoped memory for tpu_custom_call.1']
    #allocation12 [shape = 'u8[6144]{0}', space=vmem, size = 0x1800, scoped, tag = 'input window, operand 5, single buffered']
    #allocation13 [shape = 'u8[16384]{0}', space=vmem, size = 0x4000, scoped, tag = 'output window, operand 0, single buffered']
    %11 = vsyncpa [#allocation5], 0
    %12 = vsyncpa [#allocation8], 0
    %13 = vsyncpa [#allocation11], 0
    %14 = vsyncpa [#allocation6], 0
    // Predicated region
    $region2: #{tpu_custom_call.1} parent=1 // pred_check
      _
    $region3: #{tpu_custom_call.1} parent=1 // pred_check_branch
      %16 = sbr.rel (0) target = $region5
    $region4: #{tpu_custom_call.1} parent=1 // pred_region
      %s18 = ssub.s32 256, 256
      %19 = vsyncadd [#allocation5], %s18
      %s20 = sshll.u32 [#allocation4], 4
      %s21 = int_to_ptr.vmem [resolvable:$true] %s20
      %26 = dma.hbm_to_vmem [thread:$0]  %s0, 256, %s21, [#allocation5], 128, 128, 8
    $region5: #{tpu_custom_call.1} parent=1 // pred_fallthru
      _
    // Predicated region
    $region6: #{tpu_custom_call.1} parent=1 // pred_check
      _
    $region7: #{tpu_custom_call.1} parent=1 // pred_check_branch
      %28 = sbr.rel (0) target = $region9
    $region8: #{tpu_custom_call.1} parent=1 // pred_region
      _
    $region9: #{tpu_custom_call.1} parent=1 // pred_fallthru
      _
    // Predicated region
    $region10: #{tpu_custom_call.1} parent=1 // pred_check
      _
    $region11: #{tpu_custom_call.1} parent=1 // pred_check_branch
      %30 = sbr.rel (0) target = $region13
    $region12: #{tpu_custom_call.1} parent=1 // pred_region
      %s32 = ssub.s32 49152, 49152
      %33 = vsyncadd [#allocation8], %s32
      %s34 = sshll.u32 [#allocation7], 4
      %s35 = int_to_ptr.vmem [resolvable:$true] %s34
      %40 = dma.hbm_to_vmem [thread:$0]  %s2, 49152, %s35, [#allocation8], 384, 384, 24
    $region13: #{tpu_custom_call.1} parent=1 // pred_fallthru
      _
    // Predicated region
    $region14: #{tpu_custom_call.1} parent=1 // pred_check
      _
    $region15: #{tpu_custom_call.1} parent=1 // pred_check_branch
      %42 = sbr.rel (0) target = $region17
    $region16: #{tpu_custom_call.1} parent=1 // pred_region
      %s44 = ssub.s32 24576, 24576
      %45 = vsyncadd [#allocation8], %s44
      %s46 = sshll.u32 [#allocation9], 4
      %s47 = int_to_ptr.vmem [resolvable:$true] %s46
      %52 = dma.hbm_to_vmem [thread:$0]  %s3, 24576, %s47, [#allocation8], 384, 384, 24
    $region17: #{tpu_custom_call.1} parent=1 // pred_fallthru
      _
    // Predicated region
    $region18: #{tpu_custom_call.1} parent=1 // pred_check
      _
    $region19: #{tpu_custom_call.1} parent=1 // pred_check_branch
      %54 = sbr.rel (0) target = $region21
    $region20: #{tpu_custom_call.1} parent=1 // pred_region
      %s56 = ssub.s32 192, 192
      %57 = vsyncadd [#allocation11], %s56
      %s58 = sshll.u32 [#allocation10], 4
      %s59 = int_to_ptr.vmem [resolvable:$true] %s58
      %64 = dma.hbm_to_vmem [thread:$0]  %s4, 192, %s59, [#allocation11], 48, 48, 3
    $region21: #{tpu_custom_call.1} parent=1 // pred_fallthru
      _
    // Predicated region
    $region22: #{tpu_custom_call.1} parent=1 // pred_check
      _
    $region23: #{tpu_custom_call.1} parent=1 // pred_check_branch
      %66 = sbr.rel (0) target = $region25
    $region24: #{tpu_custom_call.1} parent=1 // pred_region
      %s68 = ssub.s32 192, 192
      %69 = vsyncadd [#allocation11], %s68
      %s70 = sshll.u32 [#allocation12], 4
      %s71 = int_to_ptr.vmem [resolvable:$true] %s70
      %76 = dma.hbm_to_vmem [thread:$0]  %s5, 192, %s71, [#allocation11], 48, 48, 3
    $region25: #{tpu_custom_call.1} parent=1 // pred_fallthru
      _
    // Predicated region
    $region26: #{tpu_custom_call.1} parent=1 // pred_check
      _
    $region27: #{tpu_custom_call.1} parent=1 // pred_check_branch
      %78 = sbr.rel (0) target = $region29
    $region28: #{tpu_custom_call.1} parent=1 // pred_region
      %79 = dma.done [#allocation5], 256
    $region29: #{tpu_custom_call.1} parent=1 // pred_fallthru
      _
    // Predicated region
    $region30: #{tpu_custom_call.1} parent=1 // pred_check
      _
    $region31: #{tpu_custom_call.1} parent=1 // pred_check_branch
      %81 = sbr.rel (0) target = $region33
    $region32: #{tpu_custom_call.1} parent=1 // pred_region
      %82 = dma.done [#allocation8], 49152
    $region33: #{tpu_custom_call.1} parent=1 // pred_fallthru
      _
    // Predicated region
    $region34: #{tpu_custom_call.1} parent=1 // pred_check
      _
    $region35: #{tpu_custom_call.1} parent=1 // pred_check_branch
      %84 = sbr.rel (0) target = $region37
    $region36: #{tpu_custom_call.1} parent=1 // pred_region
      %85 = dma.done [#allocation8], 24576
    $region37: #{tpu_custom_call.1} parent=1 // pred_fallthru
      _
    // Predicated region
    $region38: #{tpu_custom_call.1} parent=1 // pred_check
      _
    $region39: #{tpu_custom_call.1} parent=1 // pred_check_branch
      %87 = sbr.rel (0) target = $region41
    $region40: #{tpu_custom_call.1} parent=1 // pred_region
      %88 = dma.done [#allocation11], 192
    $region41: #{tpu_custom_call.1} parent=1 // pred_fallthru
      _
    // Predicated region
    $region42: #{tpu_custom_call.1} parent=1 // pred_check
      _
    $region43: #{tpu_custom_call.1} parent=1 // pred_check_branch
      %90 = sbr.rel (0) target = $region45
    $region44: #{tpu_custom_call.1} parent=1 // pred_region
      %91 = dma.done [#allocation11], 192
    $region45: #{tpu_custom_call.1} parent=1 // pred_fallthru
      _
    %v92 = vld [vmem:[%s1] sm:$0x3]
    %v93 = vlaneseq
    %v94 = vshrl.u32 %v93, 7
    %v96 = vunpack.c.l.s4 1966171168
    %v97 = vunpack.c.0.s8 %v96
    %v98 = vlaneseq
    %v99 = vshrl.u32 %v98, 7
    %v100 = vsub.s32 %v97, %v99
    %v101 = vrot.slane %v92, %v100
    %v102 = vcombine.high %v101, %v101
    %v104 = vunpack.c.l.s4 1966171168
    %v105 = vunpack.c.0.s8 %v104
    %v106 = vlaneseq
    %v107 = vshrl.u32 %v106, 7
    %v108 = vsub.s32 %v105, %v107
    %v109 = vrot.slane %v101, %v108
    %v111 = vunpack.c.l.s4 1966171168
    %v112 = vunpack.c.0.s8 %v111
    %v113 = vlaneseq
    %v114 = vshrl.u32 %v113, 7
    %v115 = vsub.s32 %v112, %v114
    %v116 = vrot.slane %v102, %v115
    %v117 = vlaneseq
    %v118 = vshrl.u32 %v117, 7
    %v119 = vsub.s32 0, %v118
    %v120 = vrot.slane %v109, %v119
    %v121 = vlaneseq
    %v122 = vshrl.u32 %v121, 7
    %v123 = vsub.s32 0, %v122
    %v124 = vrot.slane %v116, %v123
    %125 = vset.pattern.permute.xlu0 0
    %126 = vperm.xlu0 %125, %v120
    %v127 = vpop.permute.xlu0 %126
    %128 = vset.pattern.permute.xlu0 0
    %129 = vperm.xlu0 %128, %v124
    %v130 = vpop.permute.xlu0 %129
    %vm131 = vcmp.lt.s32.totalorder %v94, %v127
    %vm132 = vcmp.lt.s32.totalorder %v94, %v130
    %vm133 = vcmp.lt.s32.totalorder %v94, %v120
    %vm134 = vcmp.lt.s32.totalorder %v94, %v124
    %v135 = vld [vmem:[#allocation4] sm:$0xff]
    %v136 = vld [vmem:[#allocation4 + $0x8] sm:$0xff]
    %v137 = vld [vmem:[#allocation7] sm:$0xff]
    %v138 = vld [vmem:[#allocation7 + $0x8] sm:$0xff]
    %v139 = vld [vmem:[#allocation7 + $0x10] sm:$0xff]
    %v140 = vld [vmem:[#allocation7 + $0x18] sm:$0xff]
    %v141 = vld [vmem:[#allocation7 + $0x20] sm:$0xff]
    %v142 = vld [vmem:[#allocation7 + $0x28] sm:$0xff]
    %v143 = vld [vmem:[#allocation10] sm:$0x7]
    %v145 = vlaneseq
    %v146 = vshrl.u32 %v145, 7
    %v147 = vsub.s32 0, %v146
    %v148 = vrot.slane %v143, %v147
    %v149 = vlaneseq
    %v150 = vshrl.u32 %v149, 7
    %v151 = vsub.s32 1, %v150
    %v152 = vrot.slane %v143, %v151
    %v153 = vlaneseq
    %v154 = vshrl.u32 %v153, 7
    %v155 = vsub.s32 2, %v154
    %v156 = vrot.slane %v143, %v155
    %vm160 = vcmask 130048
    %v162 = vsel %vm160, %v135, 0
    %v165 = vsel %vm160, %v136, 0
    %167 = vmatprep.subr.mxu0 %v138
    %168 = vmatpush1.msra.mxu0 %v137
    %169 = vmatprep.subr.mxu0 %v141
    %170 = vmatpush1.msra.mxu0 %v140
    %171 = vmatprep.subr.mxu0 0.0
    %172 = vmatpush1.msra.mxu0 0.0
    %173 = vmatprep.subr.mxu0 0.0
    %174 = vmatpush1.msra.mxu0 0.0
    %175 = vmatprep.subr.mxu0 0.0
    %176 = vmatpush1.msra.mxu0 0.0
    %177 = vmatprep.subr.mxu0 0.0
    %178 = vmatpush1.msra.mxu0 0.0
    %179 = vmatprep.subr.mxu0 0.0
    %180 = vmatpush1.msra.mxu0 0.0
    %181 = vmatprep.subr.mxu0 0.0
    %182 = vmatpush1.msra.mxu0 0.0
    %183 = vmatprep.subr.mxu0 0.0
    %184 = vmatpush1.msra.mxu0 0.0
    %185 = vmatprep.subr.mxu0 0.0
    %186 = vmatpush1.msra.mxu0 0.0
    %187 = vmatprep.subr.mxu0 0.0
    %188 = vmatpush1.msra.mxu0 0.0
    %189 = vmatprep.subr.mxu0 0.0
    %190 = vmatpush1.msra.mxu0 0.0
    %191 = vmatprep.subr.mxu0 0.0
    %192 = vmatpush1.msra.mxu0 0.0
    %193 = vmatprep.subr.mxu0 0.0
    %194 = vmatpush1.msra.mxu0 0.0
    %195 = vmatprep.subr.mxu0 0.0
    %196 = vmatpush1.msra.mxu0 0.0
    %197 = vmatprep.subr.mxu0 0.0
    %198 = vmatpush1.msra.mxu0 0.0
    %199 = vmatprep.subr.mxu0 0.0
    %200 = vmatpush1.msra.mxu0 0.0
    %201 = vmatprep.subr.mxu0 0.0
    %202 = vmatpush1.msra.mxu0 0.0
    %203 = vmatprep.subr.mxu0 0.0
    %204 = vmatpush1.msra.mxu0 0.0
    %205 = vmatprep.subr.mxu0 0.0
    %206 = vmatpush1.msra.mxu0 0.0
    %207 = vmatprep.subr.mxu0 0.0
    %208 = vmatpush1.msra.mxu0 0.0
    %209 = vmatprep.subr.mxu0 0.0
    %210 = vmatpush1.msra.mxu0 0.0
    %211 = vmatprep.subr.mxu0 0.0
    %212 = vmatpush1.msra.mxu0 0.0
    %213 = vmatprep.subr.mxu0 0.0
    %214 = vmatpush1.msra.mxu0 0.0
    %215 = vmatprep.subr.mxu0 0.0
    %216 = vmatpush1.msra.mxu0 0.0
    %217 = vmatprep.subr.mxu0 0.0
    %218 = vmatpush1.msra.mxu0 0.0
    %219 = vmatprep.subr.mxu0 0.0
    %220 = vmatpush1.msra.mxu0 0.0
    %221 = vmatprep.subr.mxu0 0.0
    %222 = vmatpush1.msra.mxu0 0.0
    %223 = vmatprep.subr.mxu0 0.0
    %224 = vmatpush1.msra.mxu0 0.0
    %225 = vmatprep.subr.mxu0 0.0
    %226 = vmatpush1.msra.mxu0 0.0
    %227 = vmatprep.subr.mxu0 0.0
    %228 = vmatpush1.msra.mxu0 0.0
    %229 = vmatprep.subr.mxu0 0.0
    %230 = vmatpush1.msra.mxu0 0.0
    %231 = vmatprep.mubr.f32.mxu0 0.0
    %232 = vmatmul.mubr.f32.gmra.mrb[0].mxu0 %v162
    %v233 = vpop.f32.mrb[0].mxu0
    %v234 = vadd.f32 %v148, %v233
    %v235 = vpop.f32.mrb[0].mxu0
    %v236 = vadd.f32 %v152, %v235
    %237 = vmatprep.mubr.f32.mxu0 0.0
    %238 = vmatmul.mubr.f32.gmra.mrb[0].mxu0 %v165
    %v239 = vpop.f32.mrb[0].mxu0
    %v240 = vadd.f32 %v148, %v239
    %v241 = vpop.f32.mrb[0].mxu0
    %v242 = vadd.f32 %v152, %v241
    %243 = vdwg.mxu0
    %244 = vmatprep.subr.mxu0 0.0
    %245 = vmatpush1.msra.mxu0 %v139
    %246 = vmatprep.subr.mxu0 0.0
    %247 = vmatpush1.msra.mxu0 %v142
    %248 = vmatprep.subr.mxu0 0.0
    %249 = vmatpush1.msra.mxu0 0.0
    %250 = vmatprep.subr.mxu0 0.0
    %251 = vmatpush1.msra.mxu0 0.0
    %252 = vmatprep.subr.mxu0 0.0
    %253 = vmatpush1.msra.mxu0 0.0
    %254 = vmatprep.subr.mxu0 0.0
    %255 = vmatpush1.msra.mxu0 0.0
    %256 = vmatprep.subr.mxu0 0.0
    %257 = vmatpush1.msra.mxu0 0.0
    %258 = vmatprep.subr.mxu0 0.0
    %259 = vmatpush1.msra.mxu0 0.0
    %260 = vmatprep.subr.mxu0 0.0
    %261 = vmatpush1.msra.mxu0 0.0
    %262 = vmatprep.subr.mxu0 0.0
    %263 = vmatpush1.msra.mxu0 0.0
    %264 = vmatprep.subr.mxu0 0.0
    %265 = vmatpush1.msra.mxu0 0.0
    %266 = vmatprep.subr.mxu0 0.0
    %267 = vmatpush1.msra.mxu0 0.0
    %268 = vmatprep.subr.mxu0 0.0
    %269 = vmatpush1.msra.mxu0 0.0
    %270 = vmatprep.subr.mxu0 0.0
    %271 = vmatpush1.msra.mxu0 0.0
    %272 = vmatprep.subr.mxu0 0.0
    %273 = vmatpush1.msra.mxu0 0.0
    %274 = vmatprep.subr.mxu0 0.0
    %275 = vmatpush1.msra.mxu0 0.0
    %276 = vmatprep.subr.mxu0 0.0
    %277 = vmatpush1.msra.mxu0 0.0
    %278 = vmatprep.subr.mxu0 0.0
    %279 = vmatpush1.msra.mxu0 0.0
    %280 = vmatprep.subr.mxu0 0.0
    %281 = vmatpush1.msra.mxu0 0.0
    %282 = vmatprep.subr.mxu0 0.0
    %283 = vmatpush1.msra.mxu0 0.0
    %284 = vmatprep.subr.mxu0 0.0
    %285 = vmatpush1.msra.mxu0 0.0
    %286 = vmatprep.subr.mxu0 0.0
    %287 = vmatpush1.msra.mxu0 0.0
    %288 = vmatprep.subr.mxu0 0.0
    %289 = vmatpush1.msra.mxu0 0.0
    %290 = vmatprep.subr.mxu0 0.0
    %291 = vmatpush1.msra.mxu0 0.0
    %292 = vmatprep.subr.mxu0 0.0
    %293 = vmatpush1.msra.mxu0 0.0
    %294 = vmatprep.subr.mxu0 0.0
    %295 = vmatpush1.msra.mxu0 0.0
    %296 = vmatprep.subr.mxu0 0.0
    %297 = vmatpush1.msra.mxu0 0.0
    %298 = vmatprep.subr.mxu0 0.0
    %299 = vmatpush1.msra.mxu0 0.0
    %300 = vmatprep.subr.mxu0 0.0
    %301 = vmatpush1.msra.mxu0 0.0
    %302 = vmatprep.subr.mxu0 0.0
    %303 = vmatpush1.msra.mxu0 0.0
    %304 = vmatprep.subr.mxu0 0.0
    %305 = vmatpush1.msra.mxu0 0.0
    %306 = vmatprep.subr.mxu0 0.0
    %307 = vmatpush1.msra.mxu0 0.0
    %308 = vmatprep.mubr.f32.mxu0 0.0
    %309 = vmatmul.mubr.f32.gmra.mrb[0].mxu0 %v162
    %v310 = vpop.f32.mrb[0].mxu0
    %v311 = vadd.f32 %v156, %v310
    %v312 = vpop.f32.mrb[0].mxu0
    %313 = vmatprep.mubr.f32.mxu0 0.0
    %314 = vmatmul.mubr.f32.gmra.mrb[0].mxu0 %v165
    %v315 = vpop.f32.mrb[0].mxu0
    %v316 = vadd.f32 %v156, %v315
    %v317 = vpop.f32.mrb[0].mxu0
    %318 = vdwg.mxu0
    %s319 = scalar_lea.vmem [#allocation7], 768
    %v320 = vld [vmem:[%s319] sm:$0xff]
    %v321 = vld [vmem:[%s319 + $0x8] sm:$0xff]
    %v322 = vld [vmem:[%s319 + $0x10] sm:$0xff]
    %v323 = vld [vmem:[%s319 + $0x18] sm:$0xff]
    %v324 = vld [vmem:[%s319 + $0x20] sm:$0xff]
    %v325 = vld [vmem:[%s319 + $0x28] sm:$0xff]
    %s326 = scalar_lea.vmem [#allocation10], 3
    %v327 = vld [vmem:[%s326] sm:$0x7]
    %v329 = vlaneseq
    %v330 = vshrl.u32 %v329, 7
    %v331 = vsub.s32 0, %v330
    %v332 = vrot.slane %v327, %v331
    %v333 = vlaneseq
    %v334 = vshrl.u32 %v333, 7
    %v335 = vsub.s32 1, %v334
    %v336 = vrot.slane %v327, %v335
    %v337 = vlaneseq
    %v338 = vshrl.u32 %v337, 7
    %v339 = vsub.s32 2, %v338
    %v340 = vrot.slane %v327, %v339
    %344 = vmatprep.subr.mxu0 %v321
    %345 = vmatpush1.msra.mxu0 %v320
    %346 = vmatprep.subr.mxu0 %v324
    %347 = vmatpush1.msra.mxu0 %v323
    %348 = vmatprep.subr.mxu0 0.0
    %349 = vmatpush1.msra.mxu0 0.0
    %350 = vmatprep.subr.mxu0 0.0
    %351 = vmatpush1.msra.mxu0 0.0
    %352 = vmatprep.subr.mxu0 0.0
    %353 = vmatpush1.msra.mxu0 0.0
    %354 = vmatprep.subr.mxu0 0.0
    %355 = vmatpush1.msra.mxu0 0.0
    %356 = vmatprep.subr.mxu0 0.0
    %357 = vmatpush1.msra.mxu0 0.0
    %358 = vmatprep.subr.mxu0 0.0
    %359 = vmatpush1.msra.mxu0 0.0
    %360 = vmatprep.subr.mxu0 0.0
    %361 = vmatpush1.msra.mxu0 0.0
    %362 = vmatprep.subr.mxu0 0.0
    %363 = vmatpush1.msra.mxu0 0.0
    %364 = vmatprep.subr.mxu0 0.0
    %365 = vmatpush1.msra.mxu0 0.0
    %366 = vmatprep.subr.mxu0 0.0
    %367 = vmatpush1.msra.mxu0 0.0
    %368 = vmatprep.subr.mxu0 0.0
    %369 = vmatpush1.msra.mxu0 0.0
    %370 = vmatprep.subr.mxu0 0.0
    %371 = vmatpush1.msra.mxu0 0.0
    %372 = vmatprep.subr.mxu0 0.0
    %373 = vmatpush1.msra.mxu0 0.0
    %374 = vmatprep.subr.mxu0 0.0
    %375 = vmatpush1.msra.mxu0 0.0
    %376 = vmatprep.subr.mxu0 0.0
    %377 = vmatpush1.msra.mxu0 0.0
    %378 = vmatprep.subr.mxu0 0.0
    %379 = vmatpush1.msra.mxu0 0.0
    %380 = vmatprep.subr.mxu0 0.0
    %381 = vmatpush1.msra.mxu0 0.0
    %382 = vmatprep.subr.mxu0 0.0
    %383 = vmatpush1.msra.mxu0 0.0
    %384 = vmatprep.subr.mxu0 0.0
    %385 = vmatpush1.msra.mxu0 0.0
    %386 = vmatprep.subr.mxu0 0.0
    %387 = vmatpush1.msra.mxu0 0.0
    %388 = vmatprep.subr.mxu0 0.0
    %389 = vmatpush1.msra.mxu0 0.0
    %390 = vmatprep.subr.mxu0 0.0
    %391 = vmatpush1.msra.mxu0 0.0
    %392 = vmatprep.subr.mxu0 0.0
    %393 = vmatpush1.msra.mxu0 0.0
    %394 = vmatprep.subr.mxu0 0.0
    %395 = vmatpush1.msra.mxu0 0.0
    %396 = vmatprep.subr.mxu0 0.0
    %397 = vmatpush1.msra.mxu0 0.0
    %398 = vmatprep.subr.mxu0 0.0
    %399 = vmatpush1.msra.mxu0 0.0
    %400 = vmatprep.subr.mxu0 0.0
    %401 = vmatpush1.msra.mxu0 0.0
    %402 = vmatprep.subr.mxu0 0.0
    %403 = vmatpush1.msra.mxu0 0.0
    %404 = vmatprep.subr.mxu0 0.0
    %405 = vmatpush1.msra.mxu0 0.0
    %406 = vmatprep.subr.mxu0 0.0
    %407 = vmatpush1.msra.mxu0 0.0
    %408 = vmatprep.mubr.f32.mxu0 0.0
    %409 = vmatmul.mubr.f32.gmra.mrb[0].mxu0 %v162
    %v410 = vpop.f32.mrb[0].mxu0
    %v411 = vadd.f32 %v332, %v410
    %v412 = vpop.f32.mrb[0].mxu0
    %v413 = vadd.f32 %v336, %v412
    %414 = vmatprep.mubr.f32.mxu0 0.0
    %415 = vmatmul.mubr.f32.gmra.mrb[0].mxu0 %v165
    %v416 = vpop.f32.mrb[0].mxu0
    %v417 = vadd.f32 %v332, %v416
    %v418 = vpop.f32.mrb[0].mxu0
    %v419 = vadd.f32 %v336, %v418
    %420 = vdwg.mxu0
    %421 = vmatprep.subr.mxu0 0.0
    %422 = vmatpush1.msra.mxu0 %v322
    %423 = vmatprep.subr.mxu0 0.0
    %424 = vmatpush1.msra.mxu0 %v325
    %425 = vmatprep.subr.mxu0 0.0
    %426 = vmatpush1.msra.mxu0 0.0
    %427 = vmatprep.subr.mxu0 0.0
    %428 = vmatpush1.msra.mxu0 0.0
    %429 = vmatprep.subr.mxu0 0.0
    %430 = vmatpush1.msra.mxu0 0.0
    %431 = vmatprep.subr.mxu0 0.0
    %432 = vmatpush1.msra.mxu0 0.0
    %433 = vmatprep.subr.mxu0 0.0
    %434 = vmatpush1.msra.mxu0 0.0
    %435 = vmatprep.subr.mxu0 0.0
    %436 = vmatpush1.msra.mxu0 0.0
    %437 = vmatprep.subr.mxu0 0.0
    %438 = vmatpush1.msra.mxu0 0.0
    %439 = vmatprep.subr.mxu0 0.0
    %440 = vmatpush1.msra.mxu0 0.0
    %441 = vmatprep.subr.mxu0 0.0
    %442 = vmatpush1.msra.mxu0 0.0
    %443 = vmatprep.subr.mxu0 0.0
    %444 = vmatpush1.msra.mxu0 0.0
    %445 = vmatprep.subr.mxu0 0.0
    %446 = vmatpush1.msra.mxu0 0.0
    %447 = vmatprep.subr.mxu0 0.0
    %448 = vmatpush1.msra.mxu0 0.0
    %449 = vmatprep.subr.mxu0 0.0
    %450 = vmatpush1.msra.mxu0 0.0
    %451 = vmatprep.subr.mxu0 0.0
    %452 = vmatpush1.msra.mxu0 0.0
    %453 = vmatprep.subr.mxu0 0.0
    %454 = vmatpush1.msra.mxu0 0.0
    %455 = vmatprep.subr.mxu0 0.0
    %456 = vmatpush1.msra.mxu0 0.0
    %457 = vmatprep.subr.mxu0 0.0
    %458 = vmatpush1.msra.mxu0 0.0
    %459 = vmatprep.subr.mxu0 0.0
    %460 = vmatpush1.msra.mxu0 0.0
    %461 = vmatprep.subr.mxu0 0.0
    %462 = vmatpush1.msra.mxu0 0.0
    %463 = vmatprep.subr.mxu0 0.0
    %464 = vmatpush1.msra.mxu0 0.0
    %465 = vmatprep.subr.mxu0 0.0
    %466 = vmatpush1.msra.mxu0 0.0
    %467 = vmatprep.subr.mxu0 0.0
    %468 = vmatpush1.msra.mxu0 0.0
    %469 = vmatprep.subr.mxu0 0.0
    %470 = vmatpush1.msra.mxu0 0.0
    %471 = vmatprep.subr.mxu0 0.0
    %472 = vmatpush1.msra.mxu0 0.0
    %473 = vmatprep.subr.mxu0 0.0
    %474 = vmatpush1.msra.mxu0 0.0
    %475 = vmatprep.subr.mxu0 0.0
    %476 = vmatpush1.msra.mxu0 0.0
    %477 = vmatprep.subr.mxu0 0.0
    %478 = vmatpush1.msra.mxu0 0.0
    %479 = vmatprep.subr.mxu0 0.0
    %480 = vmatpush1.msra.mxu0 0.0
    %481 = vmatprep.subr.mxu0 0.0
    %482 = vmatpush1.msra.mxu0 0.0
    %483 = vmatprep.subr.mxu0 0.0
    %484 = vmatpush1.msra.mxu0 0.0
    %485 = vmatprep.mubr.f32.mxu0 0.0
    %486 = vmatmul.mubr.f32.gmra.mrb[0].mxu0 %v162
    %v487 = vpop.f32.mrb[0].mxu0
    %v488 = vadd.f32 %v340, %v487
    %v489 = vpop.f32.mrb[0].mxu0
    %490 = vmatprep.mubr.f32.mxu0 0.0
    %491 = vmatmul.mubr.f32.gmra.mrb[0].mxu0 %v165
    %v492 = vpop.f32.mrb[0].mxu0
    %v493 = vadd.f32 %v340, %v492
    %v494 = vpop.f32.mrb[0].mxu0
    %495 = vdwg.mxu0
    %v496 = vld [vmem:[#allocation9] sm:$0xff]
    %v497 = vld [vmem:[#allocation9 + $0x8] sm:$0xff]
    %v498 = vld [vmem:[#allocation9 + $0x10] sm:$0xff]
    %v499 = vld [vmem:[#allocation9 + $0x18] sm:$0xff]
    %v500 = vld [vmem:[#allocation9 + $0x20] sm:$0xff]
    %v501 = vld [vmem:[#allocation9 + $0x28] sm:$0xff]
    %v502 = vld [vmem:[#allocation9 + $0x30] sm:$0xff]
    %v503 = vld [vmem:[#allocation9 + $0x38] sm:$0xff]
    %v504 = vld [vmem:[#allocation9 + $0x40] sm:$0xff]
    %v505 = vld [vmem:[#allocation9 + $0x48] sm:$0xff]
    %v506 = vld [vmem:[#allocation9 + $0x50] sm:$0xff]
    %v507 = vld [vmem:[#allocation9 + $0x58] sm:$0xff]
    %v508 = vld [vmem:[#allocation9 + $0x60] sm:$0xff]
    %v509 = vld [vmem:[#allocation9 + $0x68] sm:$0xff]
    %v510 = vld [vmem:[#allocation9 + $0x70] sm:$0xff]
    %v511 = vld [vmem:[#allocation9 + $0x78] sm:$0xff]
    %v512 = vld [vmem:[#allocation9 + $0x80] sm:$0xff]
    %v513 = vld [vmem:[#allocation9 + $0x88] sm:$0xff]
    %v514 = vld [vmem:[#allocation9 + $0x90] sm:$0xff]
    %v515 = vld [vmem:[#allocation9 + $0x98] sm:$0xff]
    %v516 = vld [vmem:[#allocation9 + $0xa0] sm:$0xff]
    %v517 = vld [vmem:[#allocation9 + $0xa8] sm:$0xff]
    %v518 = vld [vmem:[#allocation9 + $0xb0] sm:$0xff]
    %v519 = vld [vmem:[#allocation9 + $0xb8] sm:$0xff]
    %v520 = vld [vmem:[#allocation9 + $0xc0] sm:$0xff]
    %v521 = vld [vmem:[#allocation9 + $0xc8] sm:$0xff]
    %v522 = vld [vmem:[#allocation9 + $0xd0] sm:$0xff]
    %v523 = vld [vmem:[#allocation9 + $0xd8] sm:$0xff]
    %v524 = vld [vmem:[#allocation9 + $0xe0] sm:$0xff]
    %v525 = vld [vmem:[#allocation9 + $0xe8] sm:$0xff]
    %v526 = vld [vmem:[#allocation9 + $0xf0] sm:$0xff]
    %v527 = vld [vmem:[#allocation9 + $0xf8] sm:$0xff]
    %v528 = vld [vmem:[#allocation9 + $0x100] sm:$0xff]
    %v529 = vld [vmem:[#allocation9 + $0x108] sm:$0xff]
    %v530 = vld [vmem:[#allocation9 + $0x110] sm:$0xff]
    %v531 = vld [vmem:[#allocation9 + $0x118] sm:$0xff]
    %v532 = vld [vmem:[#allocation9 + $0x120] sm:$0xff]
    %v533 = vld [vmem:[#allocation9 + $0x128] sm:$0xff]
    %v534 = vld [vmem:[#allocation9 + $0x130] sm:$0xff]
    %v535 = vld [vmem:[#allocation9 + $0x138] sm:$0xff]
    %v536 = vld [vmem:[#allocation9 + $0x140] sm:$0xff]
    %v537 = vld [vmem:[#allocation9 + $0x148] sm:$0xff]
    %v538 = vld [vmem:[#allocation9 + $0x150] sm:$0xff]
    %v539 = vld [vmem:[#allocation9 + $0x158] sm:$0xff]
    %v540 = vld [vmem:[#allocation9 + $0x160] sm:$0xff]
    %v541 = vld [vmem:[#allocation9 + $0x168] sm:$0xff]
    %v542 = vld [vmem:[#allocation9 + $0x170] sm:$0xff]
    %v543 = vld [vmem:[#allocation9 + $0x178] sm:$0xff]
    %s544 = scalar_lea.vmem [#allocation9], 384
    %v545 = vld [vmem:[%s544] sm:$0xff]
    %v546 = vld [vmem:[%s544 + $0x8] sm:$0xff]
    %v547 = vld [vmem:[%s544 + $0x10] sm:$0xff]
    %v548 = vld [vmem:[%s544 + $0x18] sm:$0xff]
    %v549 = vld [vmem:[%s544 + $0x20] sm:$0xff]
    %v550 = vld [vmem:[%s544 + $0x28] sm:$0xff]
    %v551 = vld [vmem:[%s544 + $0x30] sm:$0xff]
    %v552 = vld [vmem:[%s544 + $0x38] sm:$0xff]
    %v553 = vld [vmem:[%s544 + $0x40] sm:$0xff]
    %v554 = vld [vmem:[%s544 + $0x48] sm:$0xff]
    %v555 = vld [vmem:[%s544 + $0x50] sm:$0xff]
    %v556 = vld [vmem:[%s544 + $0x58] sm:$0xff]
    %v557 = vld [vmem:[%s544 + $0x60] sm:$0xff]
    %v558 = vld [vmem:[%s544 + $0x68] sm:$0xff]
    %v559 = vld [vmem:[%s544 + $0x70] sm:$0xff]
    %v560 = vld [vmem:[%s544 + $0x78] sm:$0xff]
    %v561 = vld [vmem:[%s544 + $0x80] sm:$0xff]
    %v562 = vld [vmem:[%s544 + $0x88] sm:$0xff]
    %v563 = vld [vmem:[%s544 + $0x90] sm:$0xff]
    %v564 = vld [vmem:[%s544 + $0x98] sm:$0xff]
    %v565 = vld [vmem:[%s544 + $0xa0] sm:$0xff]
    %v566 = vld [vmem:[%s544 + $0xa8] sm:$0xff]
    %v567 = vld [vmem:[%s544 + $0xb0] sm:$0xff]
    %v568 = vld [vmem:[%s544 + $0xb8] sm:$0xff]
    %v569 = vld [vmem:[%s544 + $0xc0] sm:$0xff]
    %v570 = vld [vmem:[%s544 + $0xc8] sm:$0xff]
    %v571 = vld [vmem:[%s544 + $0xd0] sm:$0xff]
    %v572 = vld [vmem:[%s544 + $0xd8] sm:$0xff]
    %v573 = vld [vmem:[%s544 + $0xe0] sm:$0xff]
    %v574 = vld [vmem:[%s544 + $0xe8] sm:$0xff]
    %v575 = vld [vmem:[%s544 + $0xf0] sm:$0xff]
    %v576 = vld [vmem:[%s544 + $0xf8] sm:$0xff]
    %v577 = vld [vmem:[%s544 + $0x100] sm:$0xff]
    %v578 = vld [vmem:[%s544 + $0x108] sm:$0xff]
    %v579 = vld [vmem:[%s544 + $0x110] sm:$0xff]
    %v580 = vld [vmem:[%s544 + $0x118] sm:$0xff]
    %v581 = vld [vmem:[%s544 + $0x120] sm:$0xff]
    %v582 = vld [vmem:[%s544 + $0x128] sm:$0xff]
    %v583 = vld [vmem:[%s544 + $0x130] sm:$0xff]
    %v584 = vld [vmem:[%s544 + $0x138] sm:$0xff]
    %v585 = vld [vmem:[%s544 + $0x140] sm:$0xff]
    %v586 = vld [vmem:[%s544 + $0x148] sm:$0xff]
    %v587 = vld [vmem:[%s544 + $0x150] sm:$0xff]
    %v588 = vld [vmem:[%s544 + $0x158] sm:$0xff]
    %v589 = vld [vmem:[%s544 + $0x160] sm:$0xff]
    %v590 = vld [vmem:[%s544 + $0x168] sm:$0xff]
    %v591 = vld [vmem:[%s544 + $0x170] sm:$0xff]
    %v592 = vld [vmem:[%s544 + $0x178] sm:$0xff]
    %v593 = vld [vmem:[#allocation12] sm:$0x7]
    %s594 = scalar_lea.vmem [#allocation12], 3
    %v595 = vld [vmem:[%s594] sm:$0x7]
    %v597 = vlaneseq
    %v598 = vshrl.u32 %v597, 7
    %v599 = vsub.s32 0, %v598
    %v600 = vrot.slane %v593, %v599
    %v601 = vlaneseq
    %v602 = vshrl.u32 %v601, 7
    %v603 = vsub.s32 1, %v602
    %v604 = vrot.slane %v593, %v603
    %v605 = vlaneseq
    %v606 = vshrl.u32 %v605, 7
    %v607 = vsub.s32 2, %v606
    %v608 = vrot.slane %v593, %v607
    %612 = vmatprep.subr.mxu0 %v497
    %613 = vmatpush1.msra.mxu0 %v496
    %614 = vmatprep.subr.mxu0 %v500
    %615 = vmatpush1.msra.mxu0 %v499
    %616 = vmatprep.subr.mxu0 %v503
    %617 = vmatpush1.msra.mxu0 %v502
    %618 = vmatprep.subr.mxu0 %v506
    %619 = vmatpush1.msra.mxu0 %v505
    %620 = vmatprep.subr.mxu0 %v509
    %621 = vmatpush1.msra.mxu0 %v508
    %622 = vmatprep.subr.mxu0 %v512
    %623 = vmatpush1.msra.mxu0 %v511
    %624 = vmatprep.subr.mxu0 %v515
    %625 = vmatpush1.msra.mxu0 %v514
    %626 = vmatprep.subr.mxu0 %v518
    %627 = vmatpush1.msra.mxu0 %v517
    %628 = vmatprep.subr.mxu0 %v521
    %629 = vmatpush1.msra.mxu0 %v520
    %630 = vmatprep.subr.mxu0 %v524
    %631 = vmatpush1.msra.mxu0 %v523
    %632 = vmatprep.subr.mxu0 %v527
    %633 = vmatpush1.msra.mxu0 %v526
    %634 = vmatprep.subr.mxu0 %v530
    %635 = vmatpush1.msra.mxu0 %v529
    %636 = vmatprep.subr.mxu0 %v533
    %637 = vmatpush1.msra.mxu0 %v532
    %638 = vmatprep.subr.mxu0 %v536
    %639 = vmatpush1.msra.mxu0 %v535
    %640 = vmatprep.subr.mxu0 %v539
    %641 = vmatpush1.msra.mxu0 %v538
    %642 = vmatprep.subr.mxu0 %v542
    %643 = vmatpush1.msra.mxu0 %v541
    %644 = vmatprep.subr.mxu0 0.0
    %645 = vmatpush1.msra.mxu0 0.0
    %646 = vmatprep.subr.mxu0 0.0
    %647 = vmatpush1.msra.mxu0 0.0
    %648 = vmatprep.subr.mxu0 0.0
    %649 = vmatpush1.msra.mxu0 0.0
    %650 = vmatprep.subr.mxu0 0.0
    %651 = vmatpush1.msra.mxu0 0.0
    %652 = vmatprep.subr.mxu0 0.0
    %653 = vmatpush1.msra.mxu0 0.0
    %654 = vmatprep.subr.mxu0 0.0
    %655 = vmatpush1.msra.mxu0 0.0
    %656 = vmatprep.subr.mxu0 0.0
    %657 = vmatpush1.msra.mxu0 0.0
    %658 = vmatprep.subr.mxu0 0.0
    %659 = vmatpush1.msra.mxu0 0.0
    %660 = vmatprep.subr.mxu0 0.0
    %661 = vmatpush1.msra.mxu0 0.0
    %662 = vmatprep.subr.mxu0 0.0
    %663 = vmatpush1.msra.mxu0 0.0
    %664 = vmatprep.subr.mxu0 0.0
    %665 = vmatpush1.msra.mxu0 0.0
    %666 = vmatprep.subr.mxu0 0.0
    %667 = vmatpush1.msra.mxu0 0.0
    %668 = vmatprep.subr.mxu0 0.0
    %669 = vmatpush1.msra.mxu0 0.0
    %670 = vmatprep.subr.mxu0 0.0
    %671 = vmatpush1.msra.mxu0 0.0
    %672 = vmatprep.subr.mxu0 0.0
    %673 = vmatpush1.msra.mxu0 0.0
    %674 = vmatprep.subr.mxu0 0.0
    %675 = vmatpush1.msra.mxu0 0.0
    %676 = vmatprep.mubr.f32.mxu0 0.0
    %677 = vmatmul.mubr.f32.gmra.mrb[0].mxu0 0.0
    %v678 = vpop.f32.mrb[0].mxu0
    %v679 = vadd.f32 %v600, %v678
    %v680 = vpop.f32.mrb[0].mxu0
    %v681 = vadd.f32 %v604, %v680
    %682 = vdwg.mxu0
    %683 = vmatprep.subr.mxu0 0.0
    %684 = vmatpush1.msra.mxu0 %v498
    %685 = vmatprep.subr.mxu0 0.0
    %686 = vmatpush1.msra.mxu0 %v501
    %687 = vmatprep.subr.mxu0 0.0
    %688 = vmatpush1.msra.mxu0 %v504
    %689 = vmatprep.subr.mxu0 0.0
    %690 = vmatpush1.msra.mxu0 %v507
    %691 = vmatprep.subr.mxu0 0.0
    %692 = vmatpush1.msra.mxu0 %v510
    %693 = vmatprep.subr.mxu0 0.0
    %694 = vmatpush1.msra.mxu0 %v513
    %695 = vmatprep.subr.mxu0 0.0
    %696 = vmatpush1.msra.mxu0 %v516
    %697 = vmatprep.subr.mxu0 0.0
    %698 = vmatpush1.msra.mxu0 %v519
    %699 = vmatprep.subr.mxu0 0.0
    %700 = vmatpush1.msra.mxu0 %v522
    %701 = vmatprep.subr.mxu0 0.0
    %702 = vmatpush1.msra.mxu0 %v525
    %703 = vmatprep.subr.mxu0 0.0
    %704 = vmatpush1.msra.mxu0 %v528
    %705 = vmatprep.subr.mxu0 0.0
    %706 = vmatpush1.msra.mxu0 %v531
    %707 = vmatprep.subr.mxu0 0.0
    %708 = vmatpush1.msra.mxu0 %v534
    %709 = vmatprep.subr.mxu0 0.0
    %710 = vmatpush1.msra.mxu0 %v537
    %711 = vmatprep.subr.mxu0 0.0
    %712 = vmatpush1.msra.mxu0 %v540
    %713 = vmatprep.subr.mxu0 0.0
    %714 = vmatpush1.msra.mxu0 %v543
    %715 = vmatprep.subr.mxu0 0.0
    %716 = vmatpush1.msra.mxu0 0.0
    %717 = vmatprep.subr.mxu0 0.0
    %718 = vmatpush1.msra.mxu0 0.0
    %719 = vmatprep.subr.mxu0 0.0
    %720 = vmatpush1.msra.mxu0 0.0
    %721 = vmatprep.subr.mxu0 0.0
    %722 = vmatpush1.msra.mxu0 0.0
    %723 = vmatprep.subr.mxu0 0.0
    %724 = vmatpush1.msra.mxu0 0.0
    %725 = vmatprep.subr.mxu0 0.0
    %726 = vmatpush1.msra.mxu0 0.0
    %727 = vmatprep.subr.mxu0 0.0
    %728 = vmatpush1.msra.mxu0 0.0
    %729 = vmatprep.subr.mxu0 0.0
    %730 = vmatpush1.msra.mxu0 0.0
    %731 = vmatprep.subr.mxu0 0.0
    %732 = vmatpush1.msra.mxu0 0.0
    %733 = vmatprep.subr.mxu0 0.0
    %734 = vmatpush1.msra.mxu0 0.0
    %735 = vmatprep.subr.mxu0 0.0
    %736 = vmatpush1.msra.mxu0 0.0
    %737 = vmatprep.subr.mxu0 0.0
    %738 = vmatpush1.msra.mxu0 0.0
    %739 = vmatprep.subr.mxu0 0.0
    %740 = vmatpush1.msra.mxu0 0.0
    %741 = vmatprep.subr.mxu0 0.0
    %742 = vmatpush1.msra.mxu0 0.0
    %743 = vmatprep.subr.mxu0 0.0
    %744 = vmatpush1.msra.mxu0 0.0
    %745 = vmatprep.subr.mxu0 0.0
    %746 = vmatpush1.msra.mxu0 0.0
    %747 = vmatprep.mubr.f32.mxu0 0.0
    %748 = vmatmul.mubr.f32.gmra.mrb[0].mxu0 0.0
    %v749 = vpop.f32.mrb[0].mxu0
    %v750 = vadd.f32 %v608, %v749
    %v751 = vpop.f32.mrb[0].mxu0
    %752 = vdwg.mxu0
    %v754 = vrot.slane %v679, 1
    %v757 = vadd.f32 %v234, %v679
    %v758 = vadd.f32 %v240, %v754
    %v759 = vxor.u32 %v757, 2147483648
    %v760 = vxor.u32 %v758, 2147483648
    %v761 = vmul.f32 %v759, 1.442695
    %v762 = vpow.pop %v761
    %v763 = vmul.f32 %v760, 1.442695
    %v764 = vpow.pop %v763
    %v765 = vadd.f32 %v762, 1.0
    %v766 = vadd.f32 %v764, 1.0
    %v767 = vrcp.pop %v765
    %v768 = vmul.f32 1.0, %v767
    %v769 = vrcp.pop %v766
    %v770 = vmul.f32 1.0, %v769
    %v772 = vrot.slane %v681, 1
    %v775 = vadd.f32 %v236, %v681
    %v776 = vadd.f32 %v242, %v772
    %v777 = vxor.u32 %v775, 2147483648
    %v778 = vxor.u32 %v776, 2147483648
    %v779 = vmul.f32 %v777, 1.442695
    %v780 = vpow.pop %v779
    %v781 = vmul.f32 %v778, 1.442695
    %v782 = vpow.pop %v781
    %v783 = vadd.f32 %v780, 1.0
    %v784 = vadd.f32 %v782, 1.0
    %v785 = vrcp.pop %v783
    %v786 = vmul.f32 1.0, %v785
    %v787 = vrcp.pop %v784
    %v788 = vmul.f32 1.0, %v787
    %v790 = vrot.slane %v750, 1
    %v793 = vmul.f32 %v768, %v750
    %v794 = vmul.f32 %v770, %v790
    %v795 = vadd.f32 %v311, %v793
    %v796 = vadd.f32 %v316, %v794
    %v797 = vtanh.pop %v795
    %v798 = vtanh.pop %v796
    %v799 = vsub.f32 1.0, %v786
    %v800 = vsub.f32 1.0, %v788
    %v801 = vmul.f32 %v799, %v797
    %v802 = vmul.f32 %v800, %v798
    %v803 = vmul.f32 %v786, 0.0
    %v804 = vmul.f32 %v788, 0.0
    %v805 = vadd.f32 %v801, %v803
    %v806 = vadd.f32 %v802, %v804
    %v808 = vlaneseq
    %v809 = vshrl.u32 %v808, 7
    %v810 = vsub.s32 0, %v809
    %v811 = vrot.slane %v595, %v810
    %v812 = vlaneseq
    %v813 = vshrl.u32 %v812, 7
    %v814 = vsub.s32 1, %v813
    %v815 = vrot.slane %v595, %v814
    %v816 = vlaneseq
    %v817 = vshrl.u32 %v816, 7
    %v818 = vsub.s32 2, %v817
    %v819 = vrot.slane %v595, %v818
    %823 = vmatprep.subr.mxu0 %v546
    %824 = vmatpush1.msra.mxu0 %v545
    %825 = vmatprep.subr.mxu0 %v549
    %826 = vmatpush1.msra.mxu0 %v548
    %827 = vmatprep.subr.mxu0 %v552
    %828 = vmatpush1.msra.mxu0 %v551
    %829 = vmatprep.subr.mxu0 %v555
    %830 = vmatpush1.msra.mxu0 %v554
    %831 = vmatprep.subr.mxu0 %v558
    %832 = vmatpush1.msra.mxu0 %v557
    %833 = vmatprep.subr.mxu0 %v561
    %834 = vmatpush1.msra.mxu0 %v560
    %835 = vmatprep.subr.mxu0 %v564
    %836 = vmatpush1.msra.mxu0 %v563
    %837 = vmatprep.subr.mxu0 %v567
    %838 = vmatpush1.msra.mxu0 %v566
    %839 = vmatprep.subr.mxu0 %v570
    %840 = vmatpush1.msra.mxu0 %v569
    %841 = vmatprep.subr.mxu0 %v573
    %842 = vmatpush1.msra.mxu0 %v572
    %843 = vmatprep.subr.mxu0 %v576
    %844 = vmatpush1.msra.mxu0 %v575
    %845 = vmatprep.subr.mxu0 %v579
    %846 = vmatpush1.msra.mxu0 %v578
    %847 = vmatprep.subr.mxu0 %v582
    %848 = vmatpush1.msra.mxu0 %v581
    %849 = vmatprep.subr.mxu0 %v585
    %850 = vmatpush1.msra.mxu0 %v584
    %851 = vmatprep.subr.mxu0 %v588
    %852 = vmatpush1.msra.mxu0 %v587
    %853 = vmatprep.subr.mxu0 %v591
    %854 = vmatpush1.msra.mxu0 %v590
    %855 = vmatprep.subr.mxu0 0.0
    %856 = vmatpush1.msra.mxu0 0.0
    %857 = vmatprep.subr.mxu0 0.0
    %858 = vmatpush1.msra.mxu0 0.0
    %859 = vmatprep.subr.mxu0 0.0
    %860 = vmatpush1.msra.mxu0 0.0
    %861 = vmatprep.subr.mxu0 0.0
    %862 = vmatpush1.msra.mxu0 0.0
    %863 = vmatprep.subr.mxu0 0.0
    %864 = vmatpush1.msra.mxu0 0.0
    %865 = vmatprep.subr.mxu0 0.0
    %866 = vmatpush1.msra.mxu0 0.0
    %867 = vmatprep.subr.mxu0 0.0
    %868 = vmatpush1.msra.mxu0 0.0
    %869 = vmatprep.subr.mxu0 0.0
    %870 = vmatpush1.msra.mxu0 0.0
    %871 = vmatprep.subr.mxu0 0.0
    %872 = vmatpush1.msra.mxu0 0.0
    %873 = vmatprep.subr.mxu0 0.0
    %874 = vmatpush1.msra.mxu0 0.0
    %875 = vmatprep.subr.mxu0 0.0
    %876 = vmatpush1.msra.mxu0 0.0
    %877 = vmatprep.subr.mxu0 0.0
    %878 = vmatpush1.msra.mxu0 0.0
    %879 = vmatprep.subr.mxu0 0.0
    %880 = vmatpush1.msra.mxu0 0.0
    %881 = vmatprep.subr.mxu0 0.0
    %882 = vmatpush1.msra.mxu0 0.0
    %883 = vmatprep.subr.mxu0 0.0
    %884 = vmatpush1.msra.mxu0 0.0
    %885 = vmatprep.subr.mxu0 0.0
    %886 = vmatpush1.msra.mxu0 0.0
    %887 = vmatprep.mubr.f32.mxu0 0.0
    %888 = vmatmul.mubr.f32.gmra.mrb[0].mxu0 0.0
    %v889 = vpop.f32.mrb[0].mxu0
    %v890 = vadd.f32 %v811, %v889
    %v891 = vpop.f32.mrb[0].mxu0
    %v892 = vadd.f32 %v815, %v891
    %893 = vdwg.mxu0
    %894 = vmatprep.subr.mxu0 0.0
    %895 = vmatpush1.msra.mxu0 %v547
    %896 = vmatprep.subr.mxu0 0.0
    %897 = vmatpush1.msra.mxu0 %v550
    %898 = vmatprep.subr.mxu0 0.0
    %899 = vmatpush1.msra.mxu0 %v553
    %900 = vmatprep.subr.mxu0 0.0
    %901 = vmatpush1.msra.mxu0 %v556
    %902 = vmatprep.subr.mxu0 0.0
    %903 = vmatpush1.msra.mxu0 %v559
    %904 = vmatprep.subr.mxu0 0.0
    %905 = vmatpush1.msra.mxu0 %v562
    %906 = vmatprep.subr.mxu0 0.0
    %907 = vmatpush1.msra.mxu0 %v565
    %908 = vmatprep.subr.mxu0 0.0
    %909 = vmatpush1.msra.mxu0 %v568
    %910 = vmatprep.subr.mxu0 0.0
    %911 = vmatpush1.msra.mxu0 %v571
    %912 = vmatprep.subr.mxu0 0.0
    %913 = vmatpush1.msra.mxu0 %v574
    %914 = vmatprep.subr.mxu0 0.0
    %915 = vmatpush1.msra.mxu0 %v577
    %916 = vmatprep.subr.mxu0 0.0
    %917 = vmatpush1.msra.mxu0 %v580
    %918 = vmatprep.subr.mxu0 0.0
    %919 = vmatpush1.msra.mxu0 %v583
    %920 = vmatprep.subr.mxu0 0.0
    %921 = vmatpush1.msra.mxu0 %v586
    %922 = vmatprep.subr.mxu0 0.0
    %923 = vmatpush1.msra.mxu0 %v589
    %924 = vmatprep.subr.mxu0 0.0
    %925 = vmatpush1.msra.mxu0 %v592
    %926 = vmatprep.subr.mxu0 0.0
    %927 = vmatpush1.msra.mxu0 0.0
    %928 = vmatprep.subr.mxu0 0.0
    %929 = vmatpush1.msra.mxu0 0.0
    %930 = vmatprep.subr.mxu0 0.0
    %931 = vmatpush1.msra.mxu0 0.0
    %932 = vmatprep.subr.mxu0 0.0
    %933 = vmatpush1.msra.mxu0 0.0
    %934 = vmatprep.subr.mxu0 0.0
    %935 = vmatpush1.msra.mxu0 0.0
    %936 = vmatprep.subr.mxu0 0.0
    %937 = vmatpush1.msra.mxu0 0.0
    %938 = vmatprep.subr.mxu0 0.0
    %939 = vmatpush1.msra.mxu0 0.0
    %940 = vmatprep.subr.mxu0 0.0
    %941 = vmatpush1.msra.mxu0 0.0
    %942 = vmatprep.subr.mxu0 0.0
    %943 = vmatpush1.msra.mxu0 0.0
    %944 = vmatprep.subr.mxu0 0.0
    %945 = vmatpush1.msra.mxu0 0.0
    %946 = vmatprep.subr.mxu0 0.0
    %947 = vmatpush1.msra.mxu0 0.0
    %948 = vmatprep.subr.mxu0 0.0
    %949 = vmatpush1.msra.mxu0 0.0
    %950 = vmatprep.subr.mxu0 0.0
    %951 = vmatpush1.msra.mxu0 0.0
    %952 = vmatprep.subr.mxu0 0.0
    %953 = vmatpush1.msra.mxu0 0.0
    %954 = vmatprep.subr.mxu0 0.0
    %955 = vmatpush1.msra.mxu0 0.0
    %956 = vmatprep.subr.mxu0 0.0
    %957 = vmatpush1.msra.mxu0 0.0
    %958 = vmatprep.mubr.f32.mxu0 0.0
    %959 = vmatmul.mubr.f32.gmra.mrb[0].mxu0 0.0
    %v960 = vpop.f32.mrb[0].mxu0
    %v961 = vadd.f32 %v819, %v960
    %v962 = vpop.f32.mrb[0].mxu0
    %963 = vdwg.mxu0
    %v965 = vrot.slane %v890, 1
    %v966 = vrot.slane %v890, 2
    %v969 = vadd.f32 %v411, %v965
    %v970 = vadd.f32 %v417, %v966
    %v971 = vxor.u32 %v969, 2147483648
    %v972 = vxor.u32 %v970, 2147483648
    %v973 = vmul.f32 %v971, 1.442695
    %v974 = vpow.pop %v973
    %v975 = vmul.f32 %v972, 1.442695
    %v976 = vpow.pop %v975
    %v977 = vadd.f32 %v974, 1.0
    %v978 = vadd.f32 %v976, 1.0
    %v979 = vrcp.pop %v977
    %v980 = vmul.f32 1.0, %v979
    %v981 = vrcp.pop %v978
    %v982 = vmul.f32 1.0, %v981
    %v984 = vrot.slane %v892, 1
    %v985 = vrot.slane %v892, 2
    %v988 = vadd.f32 %v413, %v984
    %v989 = vadd.f32 %v419, %v985
    %v990 = vxor.u32 %v988, 2147483648
    %v991 = vxor.u32 %v989, 2147483648
    %v992 = vmul.f32 %v990, 1.442695
    %v993 = vpow.pop %v992
    %v994 = vmul.f32 %v991, 1.442695
    %v995 = vpow.pop %v994
    %v996 = vadd.f32 %v993, 1.0
    %v997 = vadd.f32 %v995, 1.0
    %v998 = vrcp.pop %v996
    %v999 = vmul.f32 1.0, %v998
    %v1000 = vrcp.pop %v997
    %v1001 = vmul.f32 1.0, %v1000
    %v1003 = vrot.slane %v961, 1
    %v1004 = vrot.slane %v961, 2
    %v1007 = vmul.f32 %v980, %v1003
    %v1008 = vmul.f32 %v982, %v1004
    %v1009 = vadd.f32 %v488, %v1007
    %v1010 = vadd.f32 %v493, %v1008
    %v1011 = vtanh.pop %v1009
    %v1012 = vtanh.pop %v1010
    %v1013 = vsub.f32 1.0, %v999
    %v1014 = vsub.f32 1.0, %v1001
    %v1015 = vmul.f32 %v1013, %v1011
    %v1016 = vmul.f32 %v1014, %v1012
    %v1017 = vmul.f32 %v999, 0.0
    %v1018 = vmul.f32 %v1001, 0.0
    %v1019 = vadd.f32 %v1015, %v1017
    %v1020 = vadd.f32 %v1016, %v1018
    %v1021 = vsel %vm131, %v805, 0.0
    %v1022 = vsel %vm132, %v806, 0.0
    %v1023 = vsel %vm131, %v1019, 0.0
    %v1024 = vsel %vm132, %v1020, 0.0
    %1025 = vst [vmem:[#allocation2] sm:$0x1] %v1021
    %1026 = vst [vmem:[#allocation2 + $0x10] sm:$0x1] %v1022
    %v1029 = vrot.slane %v1023, 7
    %v1030 = vrot.slane %v1024, 7
    %1033 = vst [vmem:[#allocation2 + $0xf] sm:$0x1] %v1029
    %1034 = vst [vmem:[#allocation2 + $0x1f] sm:$0x1] %v1030
    %v1037 = vrot.slane %v1022, 7
    %vm1038 = vcmask 1041409
    %v1039 = vsel %vm1038, %v1037, %v1021
    %1041 = vmatprep.subr.mxu0 %v497
    %1042 = vmatpush1.msra.mxu0 %v496
    %1043 = vmatprep.subr.mxu0 %v500
    %1044 = vmatpush1.msra.mxu0 %v499
    %1045 = vmatprep.subr.mxu0 %v503
    %1046 = vmatpush1.msra.mxu0 %v502
    %1047 = vmatprep.subr.mxu0 %v506
    %1048 = vmatpush1.msra.mxu0 %v505
    %1049 = vmatprep.subr.mxu0 %v509
    %1050 = vmatpush1.msra.mxu0 %v508
    %1051 = vmatprep.subr.mxu0 %v512
    %1052 = vmatpush1.msra.mxu0 %v511
    %1053 = vmatprep.subr.mxu0 %v515
    %1054 = vmatpush1.msra.mxu0 %v514
    %1055 = vmatprep.subr.mxu0 %v518
    %1056 = vmatpush1.msra.mxu0 %v517
    %1057 = vmatprep.subr.mxu0 %v521
    %1058 = vmatpush1.msra.mxu0 %v520
    %1059 = vmatprep.subr.mxu0 %v524
    %1060 = vmatpush1.msra.mxu0 %v523
    %1061 = vmatprep.subr.mxu0 %v527
    %1062 = vmatpush1.msra.mxu0 %v526
    %1063 = vmatprep.subr.mxu0 %v530
    %1064 = vmatpush1.msra.mxu0 %v529
    %1065 = vmatprep.subr.mxu0 %v533
    %1066 = vmatpush1.msra.mxu0 %v532
    %1067 = vmatprep.subr.mxu0 %v536
    %1068 = vmatpush1.msra.mxu0 %v535
    %1069 = vmatprep.subr.mxu0 %v539
    %1070 = vmatpush1.msra.mxu0 %v538
    %1071 = vmatprep.subr.mxu0 %v542
    %1072 = vmatpush1.msra.mxu0 %v541
    %1073 = vmatprep.subr.mxu0 0.0
    %1074 = vmatpush1.msra.mxu0 0.0
    %1075 = vmatprep.subr.mxu0 0.0
    %1076 = vmatpush1.msra.mxu0 0.0
    %1077 = vmatprep.subr.mxu0 0.0
    %1078 = vmatpush1.msra.mxu0 0.0
    %1079 = vmatprep.subr.mxu0 0.0
    %1080 = vmatpush1.msra.mxu0 0.0
    %1081 = vmatprep.subr.mxu0 0.0
    %1082 = vmatpush1.msra.mxu0 0.0
    %1083 = vmatprep.subr.mxu0 0.0
    %1084 = vmatpush1.msra.mxu0 0.0
    %1085 = vmatprep.subr.mxu0 0.0
    %1086 = vmatpush1.msra.mxu0 0.0
    %1087 = vmatprep.subr.mxu0 0.0
    %1088 = vmatpush1.msra.mxu0 0.0
    %1089 = vmatprep.subr.mxu0 0.0
    %1090 = vmatpush1.msra.mxu0 0.0
    %1091 = vmatprep.subr.mxu0 0.0
    %1092 = vmatpush1.msra.mxu0 0.0
    %1093 = vmatprep.subr.mxu0 0.0
    %1094 = vmatpush1.msra.mxu0 0.0
    %1095 = vmatprep.subr.mxu0 0.0
    %1096 = vmatpush1.msra.mxu0 0.0
    %1097 = vmatprep.subr.mxu0 0.0
    %1098 = vmatpush1.msra.mxu0 0.0
    %1099 = vmatprep.subr.mxu0 0.0
    %1100 = vmatpush1.msra.mxu0 0.0
    %1101 = vmatprep.subr.mxu0 0.0
    %1102 = vmatpush1.msra.mxu0 0.0
    %1103 = vmatprep.subr.mxu0 0.0
    %1104 = vmatpush1.msra.mxu0 0.0
    %1105 = vmatprep.mubr.f32.mxu0 0.0
    %1106 = vmatmul.mubr.f32.gmra.mrb[0].mxu0 %v1039
    %v1107 = vpop.f32.mrb[0].mxu0
    %v1108 = vadd.f32 %v600, %v1107
    %v1109 = vpop.f32.mrb[0].mxu0
    %v1110 = vadd.f32 %v604, %v1109
    %1111 = vdwg.mxu0
    %1112 = vmatprep.subr.mxu0 0.0
    %1113 = vmatpush1.msra.mxu0 %v498
    %1114 = vmatprep.subr.mxu0 0.0
    %1115 = vmatpush1.msra.mxu0 %v501
    %1116 = vmatprep.subr.mxu0 0.0
    %1117 = vmatpush1.msra.mxu0 %v504
    %1118 = vmatprep.subr.mxu0 0.0
    %1119 = vmatpush1.msra.mxu0 %v507
    %1120 = vmatprep.subr.mxu0 0.0
    %1121 = vmatpush1.msra.mxu0 %v510
    %1122 = vmatprep.subr.mxu0 0.0
    %1123 = vmatpush1.msra.mxu0 %v513
    %1124 = vmatprep.subr.mxu0 0.0
    %1125 = vmatpush1.msra.mxu0 %v516
    %1126 = vmatprep.subr.mxu0 0.0
    %1127 = vmatpush1.msra.mxu0 %v519
    %1128 = vmatprep.subr.mxu0 0.0
    %1129 = vmatpush1.msra.mxu0 %v522
    %1130 = vmatprep.subr.mxu0 0.0
    %1131 = vmatpush1.msra.mxu0 %v525
    %1132 = vmatprep.subr.mxu0 0.0
    %1133 = vmatpush1.msra.mxu0 %v528
    %1134 = vmatprep.subr.mxu0 0.0
    %1135 = vmatpush1.msra.mxu0 %v531
    %1136 = vmatprep.subr.mxu0 0.0
    %1137 = vmatpush1.msra.mxu0 %v534
    %1138 = vmatprep.subr.mxu0 0.0
    %1139 = vmatpush1.msra.mxu0 %v537
    %1140 = vmatprep.subr.mxu0 0.0
    %1141 = vmatpush1.msra.mxu0 %v540
    %1142 = vmatprep.subr.mxu0 0.0
    %1143 = vmatpush1.msra.mxu0 %v543
    %1144 = vmatprep.subr.mxu0 0.0
    %1145 = vmatpush1.msra.mxu0 0.0
    %1146 = vmatprep.subr.mxu0 0.0
    %1147 = vmatpush1.msra.mxu0 0.0
    %1148 = vmatprep.subr.mxu0 0.0
    %1149 = vmatpush1.msra.mxu0 0.0
    %1150 = vmatprep.subr.mxu0 0.0
    %1151 = vmatpush1.msra.mxu0 0.0
    %1152 = vmatprep.subr.mxu0 0.0
    %1153 = vmatpush1.msra.mxu0 0.0
    %1154 = vmatprep.subr.mxu0 0.0
    %1155 = vmatpush1.msra.mxu0 0.0
    %1156 = vmatprep.subr.mxu0 0.0
    %1157 = vmatpush1.msra.mxu0 0.0
    %1158 = vmatprep.subr.mxu0 0.0
    %1159 = vmatpush1.msra.mxu0 0.0
    %1160 = vmatprep.subr.mxu0 0.0
    %1161 = vmatpush1.msra.mxu0 0.0
    %1162 = vmatprep.subr.mxu0 0.0
    %1163 = vmatpush1.msra.mxu0 0.0
    %1164 = vmatprep.subr.mxu0 0.0
    %1165 = vmatpush1.msra.mxu0 0.0
    %1166 = vmatprep.subr.mxu0 0.0
    %1167 = vmatpush1.msra.mxu0 0.0
    %1168 = vmatprep.subr.mxu0 0.0
    %1169 = vmatpush1.msra.mxu0 0.0
    %1170 = vmatprep.subr.mxu0 0.0
    %1171 = vmatpush1.msra.mxu0 0.0
    %1172 = vmatprep.subr.mxu0 0.0
    %1173 = vmatpush1.msra.mxu0 0.0
    %1174 = vmatprep.subr.mxu0 0.0
    %1175 = vmatpush1.msra.mxu0 0.0
    %1176 = vmatprep.mubr.f32.mxu0 0.0
    %1177 = vmatmul.mubr.f32.gmra.mrb[0].mxu0 %v1039
    %v1178 = vpop.f32.mrb[0].mxu0
    %v1179 = vadd.f32 %v608, %v1178
    %v1180 = vpop.f32.mrb[0].mxu0
    %1181 = vdwg.mxu0
    %v1183 = vrot.slane %v1108, 7
    %v1186 = vadd.f32 %v234, %v1183
    %v1187 = vadd.f32 %v240, %v1108
    %v1188 = vxor.u32 %v1186, 2147483648
    %v1189 = vxor.u32 %v1187, 2147483648
    %v1190 = vmul.f32 %v1188, 1.442695
    %v1191 = vpow.pop %v1190
    %v1192 = vmul.f32 %v1189, 1.442695
    %v1193 = vpow.pop %v1192
    %v1194 = vadd.f32 %v1191, 1.0
    %v1195 = vadd.f32 %v1193, 1.0
    %v1196 = vrcp.pop %v1194
    %v1197 = vmul.f32 1.0, %v1196
    %v1198 = vrcp.pop %v1195
    %v1199 = vmul.f32 1.0, %v1198
    %v1201 = vrot.slane %v1110, 7
    %v1204 = vadd.f32 %v236, %v1201
    %v1205 = vadd.f32 %v242, %v1110
    %v1206 = vxor.u32 %v1204, 2147483648
    %v1207 = vxor.u32 %v1205, 2147483648
    %v1208 = vmul.f32 %v1206, 1.442695
    %v1209 = vpow.pop %v1208
    %v1210 = vmul.f32 %v1207, 1.442695
    %v1211 = vpow.pop %v1210
    %v1212 = vadd.f32 %v1209, 1.0
    %v1213 = vadd.f32 %v1211, 1.0
    %v1214 = vrcp.pop %v1212
    %v1215 = vmul.f32 1.0, %v1214
    %v1216 = vrcp.pop %v1213
    %v1217 = vmul.f32 1.0, %v1216
    %v1219 = vrot.slane %v1179, 7
    %v1222 = vmul.f32 %v1197, %v1219
    %v1223 = vmul.f32 %v1199, %v1179
    %v1224 = vadd.f32 %v311, %v1222
    %v1225 = vadd.f32 %v316, %v1223
    %v1226 = vtanh.pop %v1224
    %v1227 = vtanh.pop %v1225
    %v1228 = vsub.f32 1.0, %v1215
    %v1229 = vsub.f32 1.0, %v1217
    %v1230 = vmul.f32 %v1228, %v1226
    %v1231 = vmul.f32 %v1229, %v1227
    %v1232 = vrot.slane %v1021, 7
    %v1235 = vmul.f32 %v1215, %v1232
    %v1236 = vmul.f32 %v1217, %v1037
    %v1237 = vadd.f32 %v1230, %v1235
    %v1238 = vadd.f32 %v1231, %v1236
    %v1239 = vrot.slane %v1024, 6
    %v1240 = vsel %vm1038, %v1239, %v1029
    %1242 = vmatprep.subr.mxu0 %v546
    %1243 = vmatpush1.msra.mxu0 %v545
    %1244 = vmatprep.subr.mxu0 %v549
    %1245 = vmatpush1.msra.mxu0 %v548
    %1246 = vmatprep.subr.mxu0 %v552
    %1247 = vmatpush1.msra.mxu0 %v551
    %1248 = vmatprep.subr.mxu0 %v555
    %1249 = vmatpush1.msra.mxu0 %v554
    %1250 = vmatprep.subr.mxu0 %v558
    %1251 = vmatpush1.msra.mxu0 %v557
    %1252 = vmatprep.subr.mxu0 %v561
    %1253 = vmatpush1.msra.mxu0 %v560
    %1254 = vmatprep.subr.mxu0 %v564
    %1255 = vmatpush1.msra.mxu0 %v563
    %1256 = vmatprep.subr.mxu0 %v567
    %1257 = vmatpush1.msra.mxu0 %v566
    %1258 = vmatprep.subr.mxu0 %v570
    %1259 = vmatpush1.msra.mxu0 %v569
    %1260 = vmatprep.subr.mxu0 %v573
    %1261 = vmatpush1.msra.mxu0 %v572
    %1262 = vmatprep.subr.mxu0 %v576
    %1263 = vmatpush1.msra.mxu0 %v575
    %1264 = vmatprep.subr.mxu0 %v579
    %1265 = vmatpush1.msra.mxu0 %v578
    %1266 = vmatprep.subr.mxu0 %v582
    %1267 = vmatpush1.msra.mxu0 %v581
    %1268 = vmatprep.subr.mxu0 %v585
    %1269 = vmatpush1.msra.mxu0 %v584
    %1270 = vmatprep.subr.mxu0 %v588
    %1271 = vmatpush1.msra.mxu0 %v587
    %1272 = vmatprep.subr.mxu0 %v591
    %1273 = vmatpush1.msra.mxu0 %v590
    %1274 = vmatprep.subr.mxu0 0.0
    %1275 = vmatpush1.msra.mxu0 0.0
    %1276 = vmatprep.subr.mxu0 0.0
    %1277 = vmatpush1.msra.mxu0 0.0
    %1278 = vmatprep.subr.mxu0 0.0
    %1279 = vmatpush1.msra.mxu0 0.0
    %1280 = vmatprep.subr.mxu0 0.0
    %1281 = vmatpush1.msra.mxu0 0.0
    %1282 = vmatprep.subr.mxu0 0.0
    %1283 = vmatpush1.msra.mxu0 0.0
    %1284 = vmatprep.subr.mxu0 0.0
    %1285 = vmatpush1.msra.mxu0 0.0
    %1286 = vmatprep.subr.mxu0 0.0
    %1287 = vmatpush1.msra.mxu0 0.0
    %1288 = vmatprep.subr.mxu0 0.0
    %1289 = vmatpush1.msra.mxu0 0.0
    %1290 = vmatprep.subr.mxu0 0.0
    %1291 = vmatpush1.msra.mxu0 0.0
    %1292 = vmatprep.subr.mxu0 0.0
    %1293 = vmatpush1.msra.mxu0 0.0
    %1294 = vmatprep.subr.mxu0 0.0
    %1295 = vmatpush1.msra.mxu0 0.0
    %1296 = vmatprep.subr.mxu0 0.0
    %1297 = vmatpush1.msra.mxu0 0.0
    %1298 = vmatprep.subr.mxu0 0.0
    %1299 = vmatpush1.msra.mxu0 0.0
    %1300 = vmatprep.subr.mxu0 0.0
    %1301 = vmatpush1.msra.mxu0 0.0
    %1302 = vmatprep.subr.mxu0 0.0
    %1303 = vmatpush1.msra.mxu0 0.0
    %1304 = vmatprep.subr.mxu0 0.0
    %1305 = vmatpush1.msra.mxu0 0.0
    %1306 = vmatprep.mubr.f32.mxu0 0.0
    %1307 = vmatmul.mubr.f32.gmra.mrb[0].mxu0 %v1240
    %v1308 = vpop.f32.mrb[0].mxu0
    %v1309 = vadd.f32 %v811, %v1308
    %v1310 = vpop.f32.mrb[0].mxu0
    %v1311 = vadd.f32 %v815, %v1310
    %1312 = vdwg.mxu0
    %1313 = vmatprep.subr.mxu0 0.0
    %1314 = vmatpush1.msra.mxu0 %v547
    %1315 = vmatprep.subr.mxu0 0.0
    %1316 = vmatpush1.msra.mxu0 %v550
    %1317 = vmatprep.subr.mxu0 0.0
    %1318 = vmatpush1.msra.mxu0 %v553
    %1319 = vmatprep.subr.mxu0 0.0
    %1320 = vmatpush1.msra.mxu0 %v556
    %1321 = vmatprep.subr.mxu0 0.0
    %1322 = vmatpush1.msra.mxu0 %v559
    %1323 = vmatprep.subr.mxu0 0.0
    %1324 = vmatpush1.msra.mxu0 %v562
    %1325 = vmatprep.subr.mxu0 0.0
    %1326 = vmatpush1.msra.mxu0 %v565
    %1327 = vmatprep.subr.mxu0 0.0
    %1328 = vmatpush1.msra.mxu0 %v568
    %1329 = vmatprep.subr.mxu0 0.0
    %1330 = vmatpush1.msra.mxu0 %v571
    %1331 = vmatprep.subr.mxu0 0.0
    %1332 = vmatpush1.msra.mxu0 %v574
    %1333 = vmatprep.subr.mxu0 0.0
    %1334 = vmatpush1.msra.mxu0 %v577
    %1335 = vmatprep.subr.mxu0 0.0
    %1336 = vmatpush1.msra.mxu0 %v580
    %1337 = vmatprep.subr.mxu0 0.0
    %1338 = vmatpush1.msra.mxu0 %v583
    %1339 = vmatprep.subr.mxu0 0.0
    %1340 = vmatpush1.msra.mxu0 %v586
    %1341 = vmatprep.subr.mxu0 0.0
    %1342 = vmatpush1.msra.mxu0 %v589
    %1343 = vmatprep.subr.mxu0 0.0
    %1344 = vmatpush1.msra.mxu0 %v592
    %1345 = vmatprep.subr.mxu0 0.0
    %1346 = vmatpush1.msra.mxu0 0.0
    %1347 = vmatprep.subr.mxu0 0.0
    %1348 = vmatpush1.msra.mxu0 0.0
    %1349 = vmatprep.subr.mxu0 0.0
    %1350 = vmatpush1.msra.mxu0 0.0
    %1351 = vmatprep.subr.mxu0 0.0
    %1352 = vmatpush1.msra.mxu0 0.0
    %1353 = vmatprep.subr.mxu0 0.0
    %1354 = vmatpush1.msra.mxu0 0.0
    %1355 = vmatprep.subr.mxu0 0.0
    %1356 = vmatpush1.msra.mxu0 0.0
    %1357 = vmatprep.subr.mxu0 0.0
    %1358 = vmatpush1.msra.mxu0 0.0
    %1359 = vmatprep.subr.mxu0 0.0
    %1360 = vmatpush1.msra.mxu0 0.0
    %1361 = vmatprep.subr.mxu0 0.0
    %1362 = vmatpush1.msra.mxu0 0.0
    %1363 = vmatprep.subr.mxu0 0.0
    %1364 = vmatpush1.msra.mxu0 0.0
    %1365 = vmatprep.subr.mxu0 0.0
    %1366 = vmatpush1.msra.mxu0 0.0
    %1367 = vmatprep.subr.mxu0 0.0
    %1368 = vmatpush1.msra.mxu0 0.0
    %1369 = vmatprep.subr.mxu0 0.0
    %1370 = vmatpush1.msra.mxu0 0.0
    %1371 = vmatprep.subr.mxu0 0.0
    %1372 = vmatpush1.msra.mxu0 0.0
    %1373 = vmatprep.subr.mxu0 0.0
    %1374 = vmatpush1.msra.mxu0 0.0
    %1375 = vmatprep.subr.mxu0 0.0
    %1376 = vmatpush1.msra.mxu0 0.0
    %1377 = vmatprep.mubr.f32.mxu0 0.0
    %1378 = vmatmul.mubr.f32.gmra.mrb[0].mxu0 %v1240
    %v1379 = vpop.f32.mrb[0].mxu0
    %v1380 = vadd.f32 %v819, %v1379
    %v1381 = vpop.f32.mrb[0].mxu0
    %1382 = vdwg.mxu0
    %v1384 = vrot.slane %v1309, 2
    %v1385 = vrot.slane %v1309, 3
    %v1388 = vadd.f32 %v411, %v1384
    %v1389 = vadd.f32 %v417, %v1385
    %v1390 = vxor.u32 %v1388, 2147483648
    %v1391 = vxor.u32 %v1389, 2147483648
    %v1392 = vmul.f32 %v1390, 1.442695
    %v1393 = vpow.pop %v1392
    %v1394 = vmul.f32 %v1391, 1.442695
    %v1395 = vpow.pop %v1394
    %v1396 = vadd.f32 %v1393, 1.0
    %v1397 = vadd.f32 %v1395, 1.0
    %v1398 = vrcp.pop %v1396
    %v1399 = vmul.f32 1.0, %v1398
    %v1400 = vrcp.pop %v1397
    %v1401 = vmul.f32 1.0, %v1400
    %v1403 = vrot.slane %v1311, 2
    %v1404 = vrot.slane %v1311, 3
    %v1407 = vadd.f32 %v413, %v1403
    %v1408 = vadd.f32 %v419, %v1404
    %v1409 = vxor.u32 %v1407, 2147483648
    %v1410 = vxor.u32 %v1408, 2147483648
    %v1411 = vmul.f32 %v1409, 1.442695
    %v1412 = vpow.pop %v1411
    %v1413 = vmul.f32 %v1410, 1.442695
    %v1414 = vpow.pop %v1413
    %v1415 = vadd.f32 %v1412, 1.0
    %v1416 = vadd.f32 %v1414, 1.0
    %v1417 = vrcp.pop %v1415
    %v1418 = vmul.f32 1.0, %v1417
    %v1419 = vrcp.pop %v1416
    %v1420 = vmul.f32 1.0, %v1419
    %v1422 = vrot.slane %v1380, 2
    %v1423 = vrot.slane %v1380, 3
    %v1426 = vmul.f32 %v1399, %v1422
    %v1427 = vmul.f32 %v1401, %v1423
    %v1428 = vadd.f32 %v488, %v1426
    %v1429 = vadd.f32 %v493, %v1427
    %v1430 = vtanh.pop %v1428
    %v1431 = vtanh.pop %v1429
    %v1432 = vsub.f32 1.0, %v1418
    %v1433 = vsub.f32 1.0, %v1420
    %v1434 = vmul.f32 %v1432, %v1430
    %v1435 = vmul.f32 %v1433, %v1431
    %v1436 = vrot.slane %v1023, 1
    %v1437 = vrot.slane %v1024, 1
    %v1440 = vmul.f32 %v1418, %v1436
    %v1441 = vmul.f32 %v1420, %v1437
    %v1442 = vadd.f32 %v1434, %v1440
    %v1443 = vadd.f32 %v1435, %v1441
    %v1444 = vsel %vm131, %v1237, %v1232
    %v1445 = vsel %vm132, %v1238, %v1037
    %v1446 = vsel %vm131, %v1442, %v1436
    %v1447 = vsel %vm132, %v1443, %v1437
    %v1450 = vrot.slane %v1444, 1
    %v1451 = vrot.slane %v1445, 1
    %1454 = vst [vmem:[#allocation2 + $0x1] sm:$0x1] %v1450
    %1455 = vst [vmem:[#allocation2 + $0x11] sm:$0x1] %v1451
    %v1458 = vrot.slane %v1446, 6
    %v1459 = vrot.slane %v1447, 6
    %1462 = vst [vmem:[#allocation2 + $0xe] sm:$0x1] %v1458
    %1463 = vst [vmem:[#allocation2 + $0x1e] sm:$0x1] %v1459
    %v1464 = vsel %vm1038, %v1445, %v1450
    %1466 = vmatprep.subr.mxu0 %v497
    %1467 = vmatpush1.msra.mxu0 %v496
    %1468 = vmatprep.subr.mxu0 %v500
    %1469 = vmatpush1.msra.mxu0 %v499
    %1470 = vmatprep.subr.mxu0 %v503
    %1471 = vmatpush1.msra.mxu0 %v502
    %1472 = vmatprep.subr.mxu0 %v506
    %1473 = vmatpush1.msra.mxu0 %v505
    %1474 = vmatprep.subr.mxu0 %v509
    %1475 = vmatpush1.msra.mxu0 %v508
    %1476 = vmatprep.subr.mxu0 %v512
    %1477 = vmatpush1.msra.mxu0 %v511
    %1478 = vmatprep.subr.mxu0 %v515
    %1479 = vmatpush1.msra.mxu0 %v514
    %1480 = vmatprep.subr.mxu0 %v518
    %1481 = vmatpush1.msra.mxu0 %v517
    %1482 = vmatprep.subr.mxu0 %v521
    %1483 = vmatpush1.msra.mxu0 %v520
    %1484 = vmatprep.subr.mxu0 %v524
    %1485 = vmatpush1.msra.mxu0 %v523
    %1486 = vmatprep.subr.mxu0 %v527
    %1487 = vmatpush1.msra.mxu0 %v526
    %1488 = vmatprep.subr.mxu0 %v530
    %1489 = vmatpush1.msra.mxu0 %v529
    %1490 = vmatprep.subr.mxu0 %v533
    %1491 = vmatpush1.msra.mxu0 %v532
    %1492 = vmatprep.subr.mxu0 %v536
    %1493 = vmatpush1.msra.mxu0 %v535
    %1494 = vmatprep.subr.mxu0 %v539
    %1495 = vmatpush1.msra.mxu0 %v538
    %1496 = vmatprep.subr.mxu0 %v542
    %1497 = vmatpush1.msra.mxu0 %v541
    %1498 = vmatprep.subr.mxu0 0.0
    %1499 = vmatpush1.msra.mxu0 0.0
    %1500 = vmatprep.subr.mxu0 0.0
    %1501 = vmatpush1.msra.mxu0 0.0
    %1502 = vmatprep.subr.mxu0 0.0
    %1503 = vmatpush1.msra.mxu0 0.0
    %1504 = vmatprep.subr.mxu0 0.0
    %1505 = vmatpush1.msra.mxu0 0.0
    %1506 = vmatprep.subr.mxu0 0.0
    %1507 = vmatpush1.msra.mxu0 0.0
    %1508 = vmatprep.subr.mxu0 0.0
    %1509 = vmatpush1.msra.mxu0 0.0
    %1510 = vmatprep.subr.mxu0 0.0
    %1511 = vmatpush1.msra.mxu0 0.0
    %1512 = vmatprep.subr.mxu0 0.0
    %1513 = vmatpush1.msra.mxu0 0.0
    %1514 = vmatprep.subr.mxu0 0.0
    %1515 = vmatpush1.msra.mxu0 0.0
    %1516 = vmatprep.subr.mxu0 0.0
    %1517 = vmatpush1.msra.mxu0 0.0
    %1518 = vmatprep.subr.mxu0 0.0
    %1519 = vmatpush1.msra.mxu0 0.0
    %1520 = vmatprep.subr.mxu0 0.0
    %1521 = vmatpush1.msra.mxu0 0.0
    %1522 = vmatprep.subr.mxu0 0.0
    %1523 = vmatpush1.msra.mxu0 0.0
    %1524 = vmatprep.subr.mxu0 0.0
    %1525 = vmatpush1.msra.mxu0 0.0
    %1526 = vmatprep.subr.mxu0 0.0
    %1527 = vmatpush1.msra.mxu0 0.0
    %1528 = vmatprep.subr.mxu0 0.0
    %1529 = vmatpush1.msra.mxu0 0.0
    %1530 = vmatprep.mubr.f32.mxu0 0.0
    %1531 = vmatmul.mubr.f32.gmra.mrb[0].mxu0 %v1464
    %v1532 = vpop.f32.mrb[0].mxu0
    %v1533 = vadd.f32 %v600, %v1532
    %v1534 = vpop.f32.mrb[0].mxu0
    %v1535 = vadd.f32 %v604, %v1534
    %1536 = vdwg.mxu0
    %1537 = vmatprep.subr.mxu0 0.0
    %1538 = vmatpush1.msra.mxu0 %v498
    %1539 = vmatprep.subr.mxu0 0.0
    %1540 = vmatpush1.msra.mxu0 %v501
    %1541 = vmatprep.subr.mxu0 0.0
    %1542 = vmatpush1.msra.mxu0 %v504
    %1543 = vmatprep.subr.mxu0 0.0
    %1544 = vmatpush1.msra.mxu0 %v507
    %1545 = vmatprep.subr.mxu0 0.0
    %1546 = vmatpush1.msra.mxu0 %v510
    %1547 = vmatprep.subr.mxu0 0.0
    %1548 = vmatpush1.msra.mxu0 %v513
    %1549 = vmatprep.subr.mxu0 0.0
    %1550 = vmatpush1.msra.mxu0 %v516
    %1551 = vmatprep.subr.mxu0 0.0
    %1552 = vmatpush1.msra.mxu0 %v519
    %1553 = vmatprep.subr.mxu0 0.0
    %1554 = vmatpush1.msra.mxu0 %v522
    %1555 = vmatprep.subr.mxu0 0.0
    %1556 = vmatpush1.msra.mxu0 %v525
    %1557 = vmatprep.subr.mxu0 0.0
    %1558 = vmatpush1.msra.mxu0 %v528
    %1559 = vmatprep.subr.mxu0 0.0
    %1560 = vmatpush1.msra.mxu0 %v531
    %1561 = vmatprep.subr.mxu0 0.0
    %1562 = vmatpush1.msra.mxu0 %v534
    %1563 = vmatprep.subr.mxu0 0.0
    %1564 = vmatpush1.msra.mxu0 %v537
    %1565 = vmatprep.subr.mxu0 0.0
    %1566 = vmatpush1.msra.mxu0 %v540
    %1567 = vmatprep.subr.mxu0 0.0
    %1568 = vmatpush1.msra.mxu0 %v543
    %1569 = vmatprep.subr.mxu0 0.0
    %1570 = vmatpush1.msra.mxu0 0.0
    %1571 = vmatprep.subr.mxu0 0.0
    %1572 = vmatpush1.msra.mxu0 0.0
    %1573 = vmatprep.subr.mxu0 0.0
    %1574 = vmatpush1.msra.mxu0 0.0
    %1575 = vmatprep.subr.mxu0 0.0
    %1576 = vmatpush1.msra.mxu0 0.0
    %1577 = vmatprep.subr.mxu0 0.0
    %1578 = vmatpush1.msra.mxu0 0.0
    %1579 = vmatprep.subr.mxu0 0.0
    %1580 = vmatpush1.msra.mxu0 0.0
    %1581 = vmatprep.subr.mxu0 0.0
    %1582 = vmatpush1.msra.mxu0 0.0
    %1583 = vmatprep.subr.mxu0 0.0
    %1584 = vmatpush1.msra.mxu0 0.0
    %1585 = vmatprep.subr.mxu0 0.0
    %1586 = vmatpush1.msra.mxu0 0.0
    %1587 = vmatprep.subr.mxu0 0.0
    %1588 = vmatpush1.msra.mxu0 0.0
    %1589 = vmatprep.subr.mxu0 0.0
    %1590 = vmatpush1.msra.mxu0 0.0
    %1591 = vmatprep.subr.mxu0 0.0
    %1592 = vmatpush1.msra.mxu0 0.0
    %1593 = vmatprep.subr.mxu0 0.0
    %1594 = vmatpush1.msra.mxu0 0.0
    %1595 = vmatprep.subr.mxu0 0.0
    %1596 = vmatpush1.msra.mxu0 0.0
    %1597 = vmatprep.subr.mxu0 0.0
    %1598 = vmatpush1.msra.mxu0 0.0
    %1599 = vmatprep.subr.mxu0 0.0
    %1600 = vmatpush1.msra.mxu0 0.0
    %1601 = vmatprep.mubr.f32.mxu0 0.0
    %1602 = vmatmul.mubr.f32.gmra.mrb[0].mxu0 %v1464
    %v1603 = vpop.f32.mrb[0].mxu0
    %v1604 = vadd.f32 %v608, %v1603
    %v1605 = vpop.f32.mrb[0].mxu0
    %1606 = vdwg.mxu0
    %v1608 = vrot.slane %v1533, 6
    %v1609 = vrot.slane %v1533, 7
    %v1612 = vadd.f32 %v234, %v1608
    %v1613 = vadd.f32 %v240, %v1609
    %v1614 = vxor.u32 %v1612, 2147483648
    %v1615 = vxor.u32 %v1613, 2147483648
    %v1616 = vmul.f32 %v1614, 1.442695
    %v1617 = vpow.pop %v1616
    %v1618 = vmul.f32 %v1615, 1.442695
    %v1619 = vpow.pop %v1618
    %v1620 = vadd.f32 %v1617, 1.0
    %v1621 = vadd.f32 %v1619, 1.0
    %v1622 = vrcp.pop %v1620
    %v1623 = vmul.f32 1.0, %v1622
    %v1624 = vrcp.pop %v1621
    %v1625 = vmul.f32 1.0, %v1624
    %v1627 = vrot.slane %v1535, 6
    %v1628 = vrot.slane %v1535, 7
    %v1631 = vadd.f32 %v236, %v1627
    %v1632 = vadd.f32 %v242, %v1628
    %v1633 = vxor.u32 %v1631, 2147483648
    %v1634 = vxor.u32 %v1632, 2147483648
    %v1635 = vmul.f32 %v1633, 1.442695
    %v1636 = vpow.pop %v1635
    %v1637 = vmul.f32 %v1634, 1.442695
    %v1638 = vpow.pop %v1637
    %v1639 = vadd.f32 %v1636, 1.0
    %v1640 = vadd.f32 %v1638, 1.0
    %v1641 = vrcp.pop %v1639
    %v1642 = vmul.f32 1.0, %v1641
    %v1643 = vrcp.pop %v1640
    %v1644 = vmul.f32 1.0, %v1643
    %v1646 = vrot.slane %v1604, 6
    %v1647 = vrot.slane %v1604, 7
    %v1650 = vmul.f32 %v1623, %v1646
    %v1651 = vmul.f32 %v1625, %v1647
    %v1652 = vadd.f32 %v311, %v1650
    %v1653 = vadd.f32 %v316, %v1651
    %v1654 = vtanh.pop %v1652
    %v1655 = vtanh.pop %v1653
    %v1656 = vsub.f32 1.0, %v1642
    %v1657 = vsub.f32 1.0, %v1644
    %v1658 = vmul.f32 %v1656, %v1654
    %v1659 = vmul.f32 %v1657, %v1655
    %v1660 = vrot.slane %v1444, 7
    %v1661 = vrot.slane %v1445, 7
    %v1664 = vmul.f32 %v1642, %v1660
    %v1665 = vmul.f32 %v1644, %v1661
    %v1666 = vadd.f32 %v1658, %v1664
    %v1667 = vadd.f32 %v1659, %v1665
    %v1668 = vrot.slane %v1447, 5
    %v1669 = vsel %vm1038, %v1668, %v1458
    %1671 = vmatprep.subr.mxu0 %v546
    %1672 = vmatpush1.msra.mxu0 %v545
    %1673 = vmatprep.subr.mxu0 %v549
    %1674 = vmatpush1.msra.mxu0 %v548
    %1675 = vmatprep.subr.mxu0 %v552
    %1676 = vmatpush1.msra.mxu0 %v551
    %1677 = vmatprep.subr.mxu0 %v555
    %1678 = vmatpush1.msra.mxu0 %v554
    %1679 = vmatprep.subr.mxu0 %v558
    %1680 = vmatpush1.msra.mxu0 %v557
    %1681 = vmatprep.subr.mxu0 %v561
    %1682 = vmatpush1.msra.mxu0 %v560
    %1683 = vmatprep.subr.mxu0 %v564
    %1684 = vmatpush1.msra.mxu0 %v563
    %1685 = vmatprep.subr.mxu0 %v567
    %1686 = vmatpush1.msra.mxu0 %v566
    %1687 = vmatprep.subr.mxu0 %v570
    %1688 = vmatpush1.msra.mxu0 %v569
    %1689 = vmatprep.subr.mxu0 %v573
    %1690 = vmatpush1.msra.mxu0 %v572
    %1691 = vmatprep.subr.mxu0 %v576
    %1692 = vmatpush1.msra.mxu0 %v575
    %1693 = vmatprep.subr.mxu0 %v579
    %1694 = vmatpush1.msra.mxu0 %v578
    %1695 = vmatprep.subr.mxu0 %v582
    %1696 = vmatpush1.msra.mxu0 %v581
    %1697 = vmatprep.subr.mxu0 %v585
    %1698 = vmatpush1.msra.mxu0 %v584
    %1699 = vmatprep.subr.mxu0 %v588
    %1700 = vmatpush1.msra.mxu0 %v587
    %1701 = vmatprep.subr.mxu0 %v591
    %1702 = vmatpush1.msra.mxu0 %v590
    %1703 = vmatprep.subr.mxu0 0.0
    %1704 = vmatpush1.msra.mxu0 0.0
    %1705 = vmatprep.subr.mxu0 0.0
    %1706 = vmatpush1.msra.mxu0 0.0
    %1707 = vmatprep.subr.mxu0 0.0
    %1708 = vmatpush1.msra.mxu0 0.0
    %1709 = vmatprep.subr.mxu0 0.0
    %1710 = vmatpush1.msra.mxu0 0.0
    %1711 = vmatprep.subr.mxu0 0.0
    %1712 = vmatpush1.msra.mxu0 0.0
    %1713 = vmatprep.subr.mxu0 0.0
    %1714 = vmatpush1.msra.mxu0 0.0
    %1715 = vmatprep.subr.mxu0 0.0
    %1716 = vmatpush1.msra.mxu0 0.0
    %1717 = vmatprep.subr.mxu0 0.0
    %1718 = vmatpush1.msra.mxu0 0.0
    %1719 = vmatprep.subr.mxu0 0.0
    %1720 = vmatpush1.msra.mxu0 0.0
    %1721 = vmatprep.subr.mxu0 0.0
    %1722 = vmatpush1.msra.mxu0 0.0
    %1723 = vmatprep.subr.mxu0 0.0
    %1724 = vmatpush1.msra.mxu0 0.0
    %1725 = vmatprep.subr.mxu0 0.0
    %1726 = vmatpush1.msra.mxu0 0.0
    %1727 = vmatprep.subr.mxu0 0.0
    %1728 = vmatpush1.msra.mxu0 0.0
    %1729 = vmatprep.subr.mxu0 0.0
    %1730 = vmatpush1.msra.mxu0 0.0
    %1731 = vmatprep.subr.mxu0 0.0
    %1732 = vmatpush1.msra.mxu0 0.0
    %1733 = vmatprep.subr.mxu0 0.0
    %1734 = vmatpush1.msra.mxu0 0.0
    %1735 = vmatprep.mubr.f32.mxu0 0.0
    %1736 = vmatmul.mubr.f32.gmra.mrb[0].mxu0 %v1669
    %v1737 = vpop.f32.mrb[0].mxu0
    %v1738 = vadd.f32 %v811, %v1737
    %v1739 = vpop.f32.mrb[0].mxu0
    %v1740 = vadd.f32 %v815, %v1739
    %1741 = vdwg.mxu0
    %1742 = vmatprep.subr.mxu0 0.0
    %1743 = vmatpush1.msra.mxu0 %v547
    %1744 = vmatprep.subr.mxu0 0.0
    %1745 = vmatpush1.msra.mxu0 %v550
    %1746 = vmatprep.subr.mxu0 0.0
    %1747 = vmatpush1.msra.mxu0 %v553
    %1748 = vmatprep.subr.mxu0 0.0
    %1749 = vmatpush1.msra.mxu0 %v556
    %1750 = vmatprep.subr.mxu0 0.0
    %1751 = vmatpush1.msra.mxu0 %v559
    %1752 = vmatprep.subr.mxu0 0.0
    %1753 = vmatpush1.msra.mxu0 %v562
    %1754 = vmatprep.subr.mxu0 0.0
    %1755 = vmatpush1.msra.mxu0 %v565
    %1756 = vmatprep.subr.mxu0 0.0
    %1757 = vmatpush1.msra.mxu0 %v568
    %1758 = vmatprep.subr.mxu0 0.0
    %1759 = vmatpush1.msra.mxu0 %v571
    %1760 = vmatprep.subr.mxu0 0.0
    %1761 = vmatpush1.msra.mxu0 %v574
    %1762 = vmatprep.subr.mxu0 0.0
    %1763 = vmatpush1.msra.mxu0 %v577
    %1764 = vmatprep.subr.mxu0 0.0
    %1765 = vmatpush1.msra.mxu0 %v580
    %1766 = vmatprep.subr.mxu0 0.0
    %1767 = vmatpush1.msra.mxu0 %v583
    %1768 = vmatprep.subr.mxu0 0.0
    %1769 = vmatpush1.msra.mxu0 %v586
    %1770 = vmatprep.subr.mxu0 0.0
    %1771 = vmatpush1.msra.mxu0 %v589
    %1772 = vmatprep.subr.mxu0 0.0
    %1773 = vmatpush1.msra.mxu0 %v592
    %1774 = vmatprep.subr.mxu0 0.0
    %1775 = vmatpush1.msra.mxu0 0.0
    %1776 = vmatprep.subr.mxu0 0.0
    %1777 = vmatpush1.msra.mxu0 0.0
    %1778 = vmatprep.subr.mxu0 0.0
    %1779 = vmatpush1.msra.mxu0 0.0
    %1780 = vmatprep.subr.mxu0 0.0
    %1781 = vmatpush1.msra.mxu0 0.0
    %1782 = vmatprep.subr.mxu0 0.0
    %1783 = vmatpush1.msra.mxu0 0.0
    %1784 = vmatprep.subr.mxu0 0.0
    %1785 = vmatpush1.msra.mxu0 0.0
    %1786 = vmatprep.subr.mxu0 0.0
    %1787 = vmatpush1.msra.mxu0 0.0
    %1788 = vmatprep.subr.mxu0 0.0
    %1789 = vmatpush1.msra.mxu0 0.0
    %1790 = vmatprep.subr.mxu0 0.0
    %1791 = vmatpush1.msra.mxu0 0.0
    %1792 = vmatprep.subr.mxu0 0.0
    %1793 = vmatpush1.msra.mxu0 0.0
    %1794 = vmatprep.subr.mxu0 0.0
    %1795 = vmatpush1.msra.mxu0 0.0
    %1796 = vmatprep.subr.mxu0 0.0
    %1797 = vmatpush1.msra.mxu0 0.0
    %1798 = vmatprep.subr.mxu0 0.0
    %1799 = vmatpush1.msra.mxu0 0.0
    %1800 = vmatprep.subr.mxu0 0.0
    %1801 = vmatpush1.msra.mxu0 0.0
    %1802 = vmatprep.subr.mxu0 0.0
    %1803 = vmatpush1.msra.mxu0 0.0
    %1804 = vmatprep.subr.mxu0 0.0
    %1805 = vmatpush1.msra.mxu0 0.0
    %1806 = vmatprep.mubr.f32.mxu0 0.0
    %1807 = vmatmul.mubr.f32.gmra.mrb[0].mxu0 %v1669
    %v1808 = vpop.f32.mrb[0].mxu0
    %v1809 = vadd.f32 %v819, %v1808
    %v1810 = vpop.f32.mrb[0].mxu0
    %1811 = vdwg.mxu0
    %v1813 = vrot.slane %v1738, 3
    %v1814 = vrot.slane %v1738, 4
    %v1817 = vadd.f32 %v411, %v1813
    %v1818 = vadd.f32 %v417, %v1814
    %v1819 = vxor.u32 %v1817, 2147483648
    %v1820 = vxor.u32 %v1818, 2147483648
    %v1821 = vmul.f32 %v1819, 1.442695
    %v1822 = vpow.pop %v1821
    %v1823 = vmul.f32 %v1820, 1.442695
    %v1824 = vpow.pop %v1823
    %v1825 = vadd.f32 %v1822, 1.0
    %v1826 = vadd.f32 %v1824, 1.0
    %v1827 = vrcp.pop %v1825
    %v1828 = vmul.f32 1.0, %v1827
    %v1829 = vrcp.pop %v1826
    %v1830 = vmul.f32 1.0, %v1829
    %v1832 = vrot.slane %v1740, 3
    %v1833 = vrot.slane %v1740, 4
    %v1836 = vadd.f32 %v413, %v1832
    %v1837 = vadd.f32 %v419, %v1833
    %v1838 = vxor.u32 %v1836, 2147483648
    %v1839 = vxor.u32 %v1837, 2147483648
    %v1840 = vmul.f32 %v1838, 1.442695
    %v1841 = vpow.pop %v1840
    %v1842 = vmul.f32 %v1839, 1.442695
    %v1843 = vpow.pop %v1842
    %v1844 = vadd.f32 %v1841, 1.0
    %v1845 = vadd.f32 %v1843, 1.0
    %v1846 = vrcp.pop %v1844
    %v1847 = vmul.f32 1.0, %v1846
    %v1848 = vrcp.pop %v1845
    %v1849 = vmul.f32 1.0, %v1848
    %v1851 = vrot.slane %v1809, 3
    %v1852 = vrot.slane %v1809, 4
    %v1855 = vmul.f32 %v1828, %v1851
    %v1856 = vmul.f32 %v1830, %v1852
    %v1857 = vadd.f32 %v488, %v1855
    %v1858 = vadd.f32 %v493, %v1856
    %v1859 = vtanh.pop %v1857
    %v1860 = vtanh.pop %v1858
    %v1861 = vsub.f32 1.0, %v1847
    %v1862 = vsub.f32 1.0, %v1849
    %v1863 = vmul.f32 %v1861, %v1859
    %v1864 = vmul.f32 %v1862, %v1860
    %v1865 = vrot.slane %v1446, 1
    %v1866 = vrot.slane %v1447, 1
    %v1869 = vmul.f32 %v1847, %v1865
    %v1870 = vmul.f32 %v1849, %v1866
    %v1871 = vadd.f32 %v1863, %v1869
    %v1872 = vadd.f32 %v1864, %v1870
    %v1873 = vsel %vm131, %v1666, %v1660
    %v1874 = vsel %vm132, %v1667, %v1661
    %v1875 = vsel %vm131, %v1871, %v1865
    %v1876 = vsel %vm132, %v1872, %v1866
    %v1879 = vrot.slane %v1873, 2
    %v1880 = vrot.slane %v1874, 2
    %1883 = vst [vmem:[#allocation2 + $0x2] sm:$0x1] %v1879
    %1884 = vst [vmem:[#allocation2 + $0x12] sm:$0x1] %v1880
    %v1887 = vrot.slane %v1875, 5
    %v1888 = vrot.slane %v1876, 5
    %1891 = vst [vmem:[#allocation2 + $0xd] sm:$0x1] %v1887
    %1892 = vst [vmem:[#allocation2 + $0x1d] sm:$0x1] %v1888
    %v1893 = vrot.slane %v1874, 1
    %v1894 = vsel %vm1038, %v1893, %v1879
    %1896 = vmatprep.subr.mxu0 %v497
    %1897 = vmatpush1.msra.mxu0 %v496
    %1898 = vmatprep.subr.mxu0 %v500
    %1899 = vmatpush1.msra.mxu0 %v499
    %1900 = vmatprep.subr.mxu0 %v503
    %1901 = vmatpush1.msra.mxu0 %v502
    %1902 = vmatprep.subr.mxu0 %v506
    %1903 = vmatpush1.msra.mxu0 %v505
    %1904 = vmatprep.subr.mxu0 %v509
    %1905 = vmatpush1.msra.mxu0 %v508
    %1906 = vmatprep.subr.mxu0 %v512
    %1907 = vmatpush1.msra.mxu0 %v511
    %1908 = vmatprep.subr.mxu0 %v515
    %1909 = vmatpush1.msra.mxu0 %v514
    %1910 = vmatprep.subr.mxu0 %v518
    %1911 = vmatpush1.msra.mxu0 %v517
    %1912 = vmatprep.subr.mxu0 %v521
    %1913 = vmatpush1.msra.mxu0 %v520
    %1914 = vmatprep.subr.mxu0 %v524
    %1915 = vmatpush1.msra.mxu0 %v523
    %1916 = vmatprep.subr.mxu0 %v527
    %1917 = vmatpush1.msra.mxu0 %v526
    %1918 = vmatprep.subr.mxu0 %v530
    %1919 = vmatpush1.msra.mxu0 %v529
    %1920 = vmatprep.subr.mxu0 %v533
    %1921 = vmatpush1.msra.mxu0 %v532
    %1922 = vmatprep.subr.mxu0 %v536
    %1923 = vmatpush1.msra.mxu0 %v535
    %1924 = vmatprep.subr.mxu0 %v539
    %1925 = vmatpush1.msra.mxu0 %v538
    %1926 = vmatprep.subr.mxu0 %v542
    %1927 = vmatpush1.msra.mxu0 %v541
    %1928 = vmatprep.subr.mxu0 0.0
    %1929 = vmatpush1.msra.mxu0 0.0
    %1930 = vmatprep.subr.mxu0 0.0
    %1931 = vmatpush1.msra.mxu0 0.0
    %1932 = vmatprep.subr.mxu0 0.0
    %1933 = vmatpush1.msra.mxu0 0.0
    %1934 = vmatprep.subr.mxu0 0.0
    %1935 = vmatpush1.msra.mxu0 0.0
    %1936 = vmatprep.subr.mxu0 0.0
    %1937 = vmatpush1.msra.mxu0 0.0
    %1938 = vmatprep.subr.mxu0 0.0
    %1939 = vmatpush1.msra.mxu0 0.0
    %1940 = vmatprep.subr.mxu0 0.0
    %1941 = vmatpush1.msra.mxu0 0.0
    %1942 = vmatprep.subr.mxu0 0.0
    %1943 = vmatpush1.msra.mxu0 0.0
    %1944 = vmatprep.subr.mxu0 0.0
    %1945 = vmatpush1.msra.mxu0 0.0
    %1946 = vmatprep.subr.mxu0 0.0
    %1947 = vmatpush1.msra.mxu0 0.0
    %1948 = vmatprep.subr.mxu0 0.0
    %1949 = vmatpush1.msra.mxu0 0.0
    %1950 = vmatprep.subr.mxu0 0.0
    %1951 = vmatpush1.msra.mxu0 0.0
    %1952 = vmatprep.subr.mxu0 0.0
    %1953 = vmatpush1.msra.mxu0 0.0
    %1954 = vmatprep.subr.mxu0 0.0
    %1955 = vmatpush1.msra.mxu0 0.0
    %1956 = vmatprep.subr.mxu0 0.0
    %1957 = vmatpush1.msra.mxu0 0.0
    %1958 = vmatprep.subr.mxu0 0.0
    %1959 = vmatpush1.msra.mxu0 0.0
    %1960 = vmatprep.mubr.f32.mxu0 0.0
    %1961 = vmatmul.mubr.f32.gmra.mrb[0].mxu0 %v1894
    %v1962 = vpop.f32.mrb[0].mxu0
    %v1963 = vadd.f32 %v600, %v1962
    %v1964 = vpop.f32.mrb[0].mxu0
    %v1965 = vadd.f32 %v604, %v1964
    %1966 = vdwg.mxu0
    %1967 = vmatprep.subr.mxu0 0.0
    %1968 = vmatpush1.msra.mxu0 %v498
    %1969 = vmatprep.subr.mxu0 0.0
    %1970 = vmatpush1.msra.mxu0 %v501
    %1971 = vmatprep.subr.mxu0 0.0
    %1972 = vmatpush1.msra.mxu0 %v504
    %1973 = vmatprep.subr.mxu0 0.0
    %1974 = vmatpush1.msra.mxu0 %v507
    %1975 = vmatprep.subr.mxu0 0.0
    %1976 = vmatpush1.msra.mxu0 %v510
    %1977 = vmatprep.subr.mxu0 0.0
    %1978 = vmatpush1.msra.mxu0 %v513
    %1979 = vmatprep.subr.mxu0 0.0
    %1980 = vmatpush1.msra.mxu0 %v516
    %1981 = vmatprep.subr.mxu0 0.0
    %1982 = vmatpush1.msra.mxu0 %v519
    %1983 = vmatprep.subr.mxu0 0.0
    %1984 = vmatpush1.msra.mxu0 %v522
    %1985 = vmatprep.subr.mxu0 0.0
    %1986 = vmatpush1.msra.mxu0 %v525
    %1987 = vmatprep.subr.mxu0 0.0
    %1988 = vmatpush1.msra.mxu0 %v528
    %1989 = vmatprep.subr.mxu0 0.0
    %1990 = vmatpush1.msra.mxu0 %v531
    %1991 = vmatprep.subr.mxu0 0.0
    %1992 = vmatpush1.msra.mxu0 %v534
    %1993 = vmatprep.subr.mxu0 0.0
    %1994 = vmatpush1.msra.mxu0 %v537
    %1995 = vmatprep.subr.mxu0 0.0
    %1996 = vmatpush1.msra.mxu0 %v540
    %1997 = vmatprep.subr.mxu0 0.0
    %1998 = vmatpush1.msra.mxu0 %v543
    %1999 = vmatprep.subr.mxu0 0.0
    %2000 = vmatpush1.msra.mxu0 0.0
    %2001 = vmatprep.subr.mxu0 0.0
    %2002 = vmatpush1.msra.mxu0 0.0
    %2003 = vmatprep.subr.mxu0 0.0
    %2004 = vmatpush1.msra.mxu0 0.0
    %2005 = vmatprep.subr.mxu0 0.0
    %2006 = vmatpush1.msra.mxu0 0.0
    %2007 = vmatprep.subr.mxu0 0.0
    %2008 = vmatpush1.msra.mxu0 0.0
    %2009 = vmatprep.subr.mxu0 0.0
    %2010 = vmatpush1.msra.mxu0 0.0
    %2011 = vmatprep.subr.mxu0 0.0
    %2012 = vmatpush1.msra.mxu0 0.0
    %2013 = vmatprep.subr.mxu0 0.0
    %2014 = vmatpush1.msra.mxu0 0.0
    %2015 = vmatprep.subr.mxu0 0.0
    %2016 = vmatpush1.msra.mxu0 0.0
    %2017 = vmatprep.subr.mxu0 0.0
    %2018 = vmatpush1.msra.mxu0 0.0
    %2019 = vmatprep.subr.mxu0 0.0
    %2020 = vmatpush1.msra.mxu0 0.0
    %2021 = vmatprep.subr.mxu0 0.0
    %2022 = vmatpush1.msra.mxu0 0.0
    %2023 = vmatprep.subr.mxu0 0.0
    %2024 = vmatpush1.msra.mxu0 0.0
    %2025 = vmatprep.subr.mxu0 0.0
    %2026 = vmatpush1.msra.mxu0 0.0
    %2027 = vmatprep.subr.mxu0 0.0
    %2028 = vmatpush1.msra.mxu0 0.0
    %2029 = vmatprep.subr.mxu0 0.0
    %2030 = vmatpush1.msra.mxu0 0.0
    %2031 = vmatprep.mubr.f32.mxu0 0.0
    %2032 = vmatmul.mubr.f32.gmra.mrb[0].mxu0 %v1894
    %v2033 = vpop.f32.mrb[0].mxu0
    %v2034 = vadd.f32 %v608, %v2033
    %v2035 = vpop.f32.mrb[0].mxu0
    %2036 = vdwg.mxu0
    %v2038 = vrot.slane %v1963, 5
    %v2039 = vrot.slane %v1963, 6
    %v2042 = vadd.f32 %v234, %v2038
    %v2043 = vadd.f32 %v240, %v2039
    %v2044 = vxor.u32 %v2042, 2147483648
    %v2045 = vxor.u32 %v2043, 2147483648
    %v2046 = vmul.f32 %v2044, 1.442695
    %v2047 = vpow.pop %v2046
    %v2048 = vmul.f32 %v2045, 1.442695
    %v2049 = vpow.pop %v2048
    %v2050 = vadd.f32 %v2047, 1.0
    %v2051 = vadd.f32 %v2049, 1.0
    %v2052 = vrcp.pop %v2050
    %v2053 = vmul.f32 1.0, %v2052
    %v2054 = vrcp.pop %v2051
    %v2055 = vmul.f32 1.0, %v2054
    %v2057 = vrot.slane %v1965, 5
    %v2058 = vrot.slane %v1965, 6
    %v2061 = vadd.f32 %v236, %v2057
    %v2062 = vadd.f32 %v242, %v2058
    %v2063 = vxor.u32 %v2061, 2147483648
    %v2064 = vxor.u32 %v2062, 2147483648
    %v2065 = vmul.f32 %v2063, 1.442695
    %v2066 = vpow.pop %v2065
    %v2067 = vmul.f32 %v2064, 1.442695
    %v2068 = vpow.pop %v2067
    %v2069 = vadd.f32 %v2066, 1.0
    %v2070 = vadd.f32 %v2068, 1.0
    %v2071 = vrcp.pop %v2069
    %v2072 = vmul.f32 1.0, %v2071
    %v2073 = vrcp.pop %v2070
    %v2074 = vmul.f32 1.0, %v2073
    %v2076 = vrot.slane %v2034, 5
    %v2077 = vrot.slane %v2034, 6
    %v2080 = vmul.f32 %v2053, %v2076
    %v2081 = vmul.f32 %v2055, %v2077
    %v2082 = vadd.f32 %v311, %v2080
    %v2083 = vadd.f32 %v316, %v2081
    %v2084 = vtanh.pop %v2082
    %v2085 = vtanh.pop %v2083
    %v2086 = vsub.f32 1.0, %v2072
    %v2087 = vsub.f32 1.0, %v2074
    %v2088 = vmul.f32 %v2086, %v2084
    %v2089 = vmul.f32 %v2087, %v2085
    %v2090 = vrot.slane %v1873, 7
    %v2091 = vrot.slane %v1874, 7
    %v2094 = vmul.f32 %v2072, %v2090
    %v2095 = vmul.f32 %v2074, %v2091
    %v2096 = vadd.f32 %v2088, %v2094
    %v2097 = vadd.f32 %v2089, %v2095
    %v2098 = vrot.slane %v1876, 4
    %v2099 = vsel %vm1038, %v2098, %v1887
    %2101 = vmatprep.subr.mxu0 %v546
    %2102 = vmatpush1.msra.mxu0 %v545
    %2103 = vmatprep.subr.mxu0 %v549
    %2104 = vmatpush1.msra.mxu0 %v548
    %2105 = vmatprep.subr.mxu0 %v552
    %2106 = vmatpush1.msra.mxu0 %v551
    %2107 = vmatprep.subr.mxu0 %v555
    %2108 = vmatpush1.msra.mxu0 %v554
    %2109 = vmatprep.subr.mxu0 %v558
    %2110 = vmatpush1.msra.mxu0 %v557
    %2111 = vmatprep.subr.mxu0 %v561
    %2112 = vmatpush1.msra.mxu0 %v560
    %2113 = vmatprep.subr.mxu0 %v564
    %2114 = vmatpush1.msra.mxu0 %v563
    %2115 = vmatprep.subr.mxu0 %v567
    %2116 = vmatpush1.msra.mxu0 %v566
    %2117 = vmatprep.subr.mxu0 %v570
    %2118 = vmatpush1.msra.mxu0 %v569
    %2119 = vmatprep.subr.mxu0 %v573
    %2120 = vmatpush1.msra.mxu0 %v572
    %2121 = vmatprep.subr.mxu0 %v576
    %2122 = vmatpush1.msra.mxu0 %v575
    %2123 = vmatprep.subr.mxu0 %v579
    %2124 = vmatpush1.msra.mxu0 %v578
    %2125 = vmatprep.subr.mxu0 %v582
    %2126 = vmatpush1.msra.mxu0 %v581
    %2127 = vmatprep.subr.mxu0 %v585
    %2128 = vmatpush1.msra.mxu0 %v584
    %2129 = vmatprep.subr.mxu0 %v588
    %2130 = vmatpush1.msra.mxu0 %v587
    %2131 = vmatprep.subr.mxu0 %v591
    %2132 = vmatpush1.msra.mxu0 %v590
    %2133 = vmatprep.subr.mxu0 0.0
    %2134 = vmatpush1.msra.mxu0 0.0
    %2135 = vmatprep.subr.mxu0 0.0
    %2136 = vmatpush1.msra.mxu0 0.0
    %2137 = vmatprep.subr.mxu0 0.0
    %2138 = vmatpush1.msra.mxu0 0.0
    %2139 = vmatprep.subr.mxu0 0.0
    %2140 = vmatpush1.msra.mxu0 0.0
    %2141 = vmatprep.subr.mxu0 0.0
    %2142 = vmatpush1.msra.mxu0 0.0
    %2143 = vmatprep.subr.mxu0 0.0
    %2144 = vmatpush1.msra.mxu0 0.0
    %2145 = vmatprep.subr.mxu0 0.0
    %2146 = vmatpush1.msra.mxu0 0.0
    %2147 = vmatprep.subr.mxu0 0.0
    %2148 = vmatpush1.msra.mxu0 0.0
    %2149 = vmatprep.subr.mxu0 0.0
    %2150 = vmatpush1.msra.mxu0 0.0
    %2151 = vmatprep.subr.mxu0 0.0
    %2152 = vmatpush1.msra.mxu0 0.0
    %2153 = vmatprep.subr.mxu0 0.0
    %2154 = vmatpush1.msra.mxu0 0.0
    %2155 = vmatprep.subr.mxu0 0.0
    %2156 = vmatpush1.msra.mxu0 0.0
    %2157 = vmatprep.subr.mxu0 0.0
    %2158 = vmatpush1.msra.mxu0 0.0
    %2159 = vmatprep.subr.mxu0 0.0
    %2160 = vmatpush1.msra.mxu0 0.0
    %2161 = vmatprep.subr.mxu0 0.0
    %2162 = vmatpush1.msra.mxu0 0.0
    %2163 = vmatprep.subr.mxu0 0.0
    %2164 = vmatpush1.msra.mxu0 0.0
    %2165 = vmatprep.mubr.f32.mxu0 0.0
    %2166 = vmatmul.mubr.f32.gmra.mrb[0].mxu0 %v2099
    %v2167 = vpop.f32.mrb[0].mxu0
    %v2168 = vadd.f32 %v811, %v2167
    %v2169 = vpop.f32.mrb[0].mxu0
    %v2170 = vadd.f32 %v815, %v2169
    %2171 = vdwg.mxu0
    %2172 = vmatprep.subr.mxu0 0.0
    %2173 = vmatpush1.msra.mxu0 %v547
    %2174 = vmatprep.subr.mxu0 0.0
    %2175 = vmatpush1.msra.mxu0 %v550
    %2176 = vmatprep.subr.mxu0 0.0
    %2177 = vmatpush1.msra.mxu0 %v553
    %2178 = vmatprep.subr.mxu0 0.0
    %2179 = vmatpush1.msra.mxu0 %v556
    %2180 = vmatprep.subr.mxu0 0.0
    %2181 = vmatpush1.msra.mxu0 %v559
    %2182 = vmatprep.subr.mxu0 0.0
    %2183 = vmatpush1.msra.mxu0 %v562
    %2184 = vmatprep.subr.mxu0 0.0
    %2185 = vmatpush1.msra.mxu0 %v565
    %2186 = vmatprep.subr.mxu0 0.0
    %2187 = vmatpush1.msra.mxu0 %v568
    %2188 = vmatprep.subr.mxu0 0.0
    %2189 = vmatpush1.msra.mxu0 %v571
    %2190 = vmatprep.subr.mxu0 0.0
    %2191 = vmatpush1.msra.mxu0 %v574
    %2192 = vmatprep.subr.mxu0 0.0
    %2193 = vmatpush1.msra.mxu0 %v577
    %2194 = vmatprep.subr.mxu0 0.0
    %2195 = vmatpush1.msra.mxu0 %v580
    %2196 = vmatprep.subr.mxu0 0.0
    %2197 = vmatpush1.msra.mxu0 %v583
    %2198 = vmatprep.subr.mxu0 0.0
    %2199 = vmatpush1.msra.mxu0 %v586
    %2200 = vmatprep.subr.mxu0 0.0
    %2201 = vmatpush1.msra.mxu0 %v589
    %2202 = vmatprep.subr.mxu0 0.0
    %2203 = vmatpush1.msra.mxu0 %v592
    %2204 = vmatprep.subr.mxu0 0.0
    %2205 = vmatpush1.msra.mxu0 0.0
    %2206 = vmatprep.subr.mxu0 0.0
    %2207 = vmatpush1.msra.mxu0 0.0
    %2208 = vmatprep.subr.mxu0 0.0
    %2209 = vmatpush1.msra.mxu0 0.0
    %2210 = vmatprep.subr.mxu0 0.0
    %2211 = vmatpush1.msra.mxu0 0.0
    %2212 = vmatprep.subr.mxu0 0.0
    %2213 = vmatpush1.msra.mxu0 0.0
    %2214 = vmatprep.subr.mxu0 0.0
    %2215 = vmatpush1.msra.mxu0 0.0
    %2216 = vmatprep.subr.mxu0 0.0
    %2217 = vmatpush1.msra.mxu0 0.0
    %2218 = vmatprep.subr.mxu0 0.0
    %2219 = vmatpush1.msra.mxu0 0.0
    %2220 = vmatprep.subr.mxu0 0.0
    %2221 = vmatpush1.msra.mxu0 0.0
    %2222 = vmatprep.subr.mxu0 0.0
    %2223 = vmatpush1.msra.mxu0 0.0
    %2224 = vmatprep.subr.mxu0 0.0
    %2225 = vmatpush1.msra.mxu0 0.0
    %2226 = vmatprep.subr.mxu0 0.0
    %2227 = vmatpush1.msra.mxu0 0.0
    %2228 = vmatprep.subr.mxu0 0.0
    %2229 = vmatpush1.msra.mxu0 0.0
    %2230 = vmatprep.subr.mxu0 0.0
    %2231 = vmatpush1.msra.mxu0 0.0
    %2232 = vmatprep.subr.mxu0 0.0
    %2233 = vmatpush1.msra.mxu0 0.0
    %2234 = vmatprep.subr.mxu0 0.0
    %2235 = vmatpush1.msra.mxu0 0.0
    %2236 = vmatprep.mubr.f32.mxu0 0.0
    %2237 = vmatmul.mubr.f32.gmra.mrb[0].mxu0 %v2099
    %v2238 = vpop.f32.mrb[0].mxu0
    %v2239 = vadd.f32 %v819, %v2238
    %v2240 = vpop.f32.mrb[0].mxu0
    %2241 = vdwg.mxu0
    %v2243 = vrot.slane %v2168, 4
    %v2244 = vrot.slane %v2168, 5
    %v2247 = vadd.f32 %v411, %v2243
    %v2248 = vadd.f32 %v417, %v2244
    %v2249 = vxor.u32 %v2247, 2147483648
    %v2250 = vxor.u32 %v2248, 2147483648
    %v2251 = vmul.f32 %v2249, 1.442695
    %v2252 = vpow.pop %v2251
    %v2253 = vmul.f32 %v2250, 1.442695
    %v2254 = vpow.pop %v2253
    %v2255 = vadd.f32 %v2252, 1.0
    %v2256 = vadd.f32 %v2254, 1.0
    %v2257 = vrcp.pop %v2255
    %v2258 = vmul.f32 1.0, %v2257
    %v2259 = vrcp.pop %v2256
    %v2260 = vmul.f32 1.0, %v2259
    %v2262 = vrot.slane %v2170, 4
    %v2263 = vrot.slane %v2170, 5
    %v2266 = vadd.f32 %v413, %v2262
    %v2267 = vadd.f32 %v419, %v2263
    %v2268 = vxor.u32 %v2266, 2147483648
    %v2269 = vxor.u32 %v2267, 2147483648
    %v2270 = vmul.f32 %v2268, 1.442695
    %v2271 = vpow.pop %v2270
    %v2272 = vmul.f32 %v2269, 1.442695
    %v2273 = vpow.pop %v2272
    %v2274 = vadd.f32 %v2271, 1.0
    %v2275 = vadd.f32 %v2273, 1.0
    %v2276 = vrcp.pop %v2274
    %v2277 = vmul.f32 1.0, %v2276
    %v2278 = vrcp.pop %v2275
    %v2279 = vmul.f32 1.0, %v2278
    %v2281 = vrot.slane %v2239, 4
    %v2282 = vrot.slane %v2239, 5
    %v2285 = vmul.f32 %v2258, %v2281
    %v2286 = vmul.f32 %v2260, %v2282
    %v2287 = vadd.f32 %v488, %v2285
    %v2288 = vadd.f32 %v493, %v2286
    %v2289 = vtanh.pop %v2287
    %v2290 = vtanh.pop %v2288
    %v2291 = vsub.f32 1.0, %v2277
    %v2292 = vsub.f32 1.0, %v2279
    %v2293 = vmul.f32 %v2291, %v2289
    %v2294 = vmul.f32 %v2292, %v2290
    %v2295 = vrot.slane %v1875, 1
    %v2296 = vrot.slane %v1876, 1
    %v2299 = vmul.f32 %v2277, %v2295
    %v2300 = vmul.f32 %v2279, %v2296
    %v2301 = vadd.f32 %v2293, %v2299
    %v2302 = vadd.f32 %v2294, %v2300
    %v2303 = vsel %vm131, %v2096, %v2090
    %v2304 = vsel %vm132, %v2097, %v2091
    %v2305 = vsel %vm131, %v2301, %v2295
    %v2306 = vsel %vm132, %v2302, %v2296
    %v2309 = vrot.slane %v2303, 3
    %v2310 = vrot.slane %v2304, 3
    %2313 = vst [vmem:[#allocation2 + $0x3] sm:$0x1] %v2309
    %2314 = vst [vmem:[#allocation2 + $0x13] sm:$0x1] %v2310
    %v2317 = vrot.slane %v2305, 4
    %v2318 = vrot.slane %v2306, 4
    %2321 = vst [vmem:[#allocation2 + $0xc] sm:$0x1] %v2317
    %2322 = vst [vmem:[#allocation2 + $0x1c] sm:$0x1] %v2318
    %v2323 = vrot.slane %v2304, 2
    %v2324 = vsel %vm1038, %v2323, %v2309
    %2326 = vmatprep.subr.mxu0 %v497
    %2327 = vmatpush1.msra.mxu0 %v496
    %2328 = vmatprep.subr.mxu0 %v500
    %2329 = vmatpush1.msra.mxu0 %v499
    %2330 = vmatprep.subr.mxu0 %v503
    %2331 = vmatpush1.msra.mxu0 %v502
    %2332 = vmatprep.subr.mxu0 %v506
    %2333 = vmatpush1.msra.mxu0 %v505
    %2334 = vmatprep.subr.mxu0 %v509
    %2335 = vmatpush1.msra.mxu0 %v508
    %2336 = vmatprep.subr.mxu0 %v512
    %2337 = vmatpush1.msra.mxu0 %v511
    %2338 = vmatprep.subr.mxu0 %v515
    %2339 = vmatpush1.msra.mxu0 %v514
    %2340 = vmatprep.subr.mxu0 %v518
    %2341 = vmatpush1.msra.mxu0 %v517
    %2342 = vmatprep.subr.mxu0 %v521
    %2343 = vmatpush1.msra.mxu0 %v520
    %2344 = vmatprep.subr.mxu0 %v524
    %2345 = vmatpush1.msra.mxu0 %v523
    %2346 = vmatprep.subr.mxu0 %v527
    %2347 = vmatpush1.msra.mxu0 %v526
    %2348 = vmatprep.subr.mxu0 %v530
    %2349 = vmatpush1.msra.mxu0 %v529
    %2350 = vmatprep.subr.mxu0 %v533
    %2351 = vmatpush1.msra.mxu0 %v532
    %2352 = vmatprep.subr.mxu0 %v536
    %2353 = vmatpush1.msra.mxu0 %v535
    %2354 = vmatprep.subr.mxu0 %v539
    %2355 = vmatpush1.msra.mxu0 %v538
    %2356 = vmatprep.subr.mxu0 %v542
    %2357 = vmatpush1.msra.mxu0 %v541
    %2358 = vmatprep.subr.mxu0 0.0
    %2359 = vmatpush1.msra.mxu0 0.0
    %2360 = vmatprep.subr.mxu0 0.0
    %2361 = vmatpush1.msra.mxu0 0.0
    %2362 = vmatprep.subr.mxu0 0.0
    %2363 = vmatpush1.msra.mxu0 0.0
    %2364 = vmatprep.subr.mxu0 0.0
    %2365 = vmatpush1.msra.mxu0 0.0
    %2366 = vmatprep.subr.mxu0 0.0
    %2367 = vmatpush1.msra.mxu0 0.0
    %2368 = vmatprep.subr.mxu0 0.0
    %2369 = vmatpush1.msra.mxu0 0.0
    %2370 = vmatprep.subr.mxu0 0.0
    %2371 = vmatpush1.msra.mxu0 0.0
    %2372 = vmatprep.subr.mxu0 0.0
    %2373 = vmatpush1.msra.mxu0 0.0
    %2374 = vmatprep.subr.mxu0 0.0
    %2375 = vmatpush1.msra.mxu0 0.0
    %2376 = vmatprep.subr.mxu0 0.0
    %2377 = vmatpush1.msra.mxu0 0.0
    %2378 = vmatprep.subr.mxu0 0.0
    %2379 = vmatpush1.msra.mxu0 0.0
    %2380 = vmatprep.subr.mxu0 0.0
    %2381 = vmatpush1.msra.mxu0 0.0
    %2382 = vmatprep.subr.mxu0 0.0
    %2383 = vmatpush1.msra.mxu0 0.0
    %2384 = vmatprep.subr.mxu0 0.0
    %2385 = vmatpush1.msra.mxu0 0.0
    %2386 = vmatprep.subr.mxu0 0.0
    %2387 = vmatpush1.msra.mxu0 0.0
    %2388 = vmatprep.subr.mxu0 0.0
    %2389 = vmatpush1.msra.mxu0 0.0
    %2390 = vmatprep.mubr.f32.mxu0 0.0
    %2391 = vmatmul.mubr.f32.gmra.mrb[0].mxu0 %v2324
    %v2392 = vpop.f32.mrb[0].mxu0
    %v2393 = vadd.f32 %v600, %v2392
    %v2394 = vpop.f32.mrb[0].mxu0
    %v2395 = vadd.f32 %v604, %v2394
    %2396 = vdwg.mxu0
    %2397 = vmatprep.subr.mxu0 0.0
    %2398 = vmatpush1.msra.mxu0 %v498
    %2399 = vmatprep.subr.mxu0 0.0
    %2400 = vmatpush1.msra.mxu0 %v501
    %2401 = vmatprep.subr.mxu0 0.0
    %2402 = vmatpush1.msra.mxu0 %v504
    %2403 = vmatprep.subr.mxu0 0.0
    %2404 = vmatpush1.msra.mxu0 %v507
    %2405 = vmatprep.subr.mxu0 0.0
    %2406 = vmatpush1.msra.mxu0 %v510
    %2407 = vmatprep.subr.mxu0 0.0
    %2408 = vmatpush1.msra.mxu0 %v513
    %2409 = vmatprep.subr.mxu0 0.0
    %2410 = vmatpush1.msra.mxu0 %v516
    %2411 = vmatprep.subr.mxu0 0.0
    %2412 = vmatpush1.msra.mxu0 %v519
    %2413 = vmatprep.subr.mxu0 0.0
    %2414 = vmatpush1.msra.mxu0 %v522
    %2415 = vmatprep.subr.mxu0 0.0
    %2416 = vmatpush1.msra.mxu0 %v525
    %2417 = vmatprep.subr.mxu0 0.0
    %2418 = vmatpush1.msra.mxu0 %v528
    %2419 = vmatprep.subr.mxu0 0.0
    %2420 = vmatpush1.msra.mxu0 %v531
    %2421 = vmatprep.subr.mxu0 0.0
    %2422 = vmatpush1.msra.mxu0 %v534
    %2423 = vmatprep.subr.mxu0 0.0
    %2424 = vmatpush1.msra.mxu0 %v537
    %2425 = vmatprep.subr.mxu0 0.0
    %2426 = vmatpush1.msra.mxu0 %v540
    %2427 = vmatprep.subr.mxu0 0.0
    %2428 = vmatpush1.msra.mxu0 %v543
    %2429 = vmatprep.subr.mxu0 0.0
    %2430 = vmatpush1.msra.mxu0 0.0
    %2431 = vmatprep.subr.mxu0 0.0
    %2432 = vmatpush1.msra.mxu0 0.0
    %2433 = vmatprep.subr.mxu0 0.0
    %2434 = vmatpush1.msra.mxu0 0.0
    %2435 = vmatprep.subr.mxu0 0.0
    %2436 = vmatpush1.msra.mxu0 0.0
    %2437 = vmatprep.subr.mxu0 0.0
    %2438 = vmatpush1.msra.mxu0 0.0
    %2439 = vmatprep.subr.mxu0 0.0
    %2440 = vmatpush1.msra.mxu0 0.0
    %2441 = vmatprep.subr.mxu0 0.0
    %2442 = vmatpush1.msra.mxu0 0.0
    %2443 = vmatprep.subr.mxu0 0.0
    %2444 = vmatpush1.msra.mxu0 0.0
    %2445 = vmatprep.subr.mxu0 0.0
    %2446 = vmatpush1.msra.mxu0 0.0
    %2447 = vmatprep.subr.mxu0 0.0
    %2448 = vmatpush1.msra.mxu0 0.0
    %2449 = vmatprep.subr.mxu0 0.0
    %2450 = vmatpush1.msra.mxu0 0.0
    %2451 = vmatprep.subr.mxu0 0.0
    %2452 = vmatpush1.msra.mxu0 0.0
    %2453 = vmatprep.subr.mxu0 0.0
    %2454 = vmatpush1.msra.mxu0 0.0
    %2455 = vmatprep.subr.mxu0 0.0
    %2456 = vmatpush1.msra.mxu0 0.0
    %2457 = vmatprep.subr.mxu0 0.0
    %2458 = vmatpush1.msra.mxu0 0.0
    %2459 = vmatprep.subr.mxu0 0.0
    %2460 = vmatpush1.msra.mxu0 0.0
    %2461 = vmatprep.mubr.f32.mxu0 0.0
    %2462 = vmatmul.mubr.f32.gmra.mrb[0].mxu0 %v2324
    %v2463 = vpop.f32.mrb[0].mxu0
    %v2464 = vadd.f32 %v608, %v2463
    %v2465 = vpop.f32.mrb[0].mxu0
    %2466 = vdwg.mxu0
    %v2468 = vrot.slane %v2393, 4
    %v2469 = vrot.slane %v2393, 5
    %v2472 = vadd.f32 %v234, %v2468
    %v2473 = vadd.f32 %v240, %v2469
    %v2474 = vxor.u32 %v2472, 2147483648
    %v2475 = vxor.u32 %v2473, 2147483648
    %v2476 = vmul.f32 %v2474, 1.442695
    %v2477 = vpow.pop %v2476
    %v2478 = vmul.f32 %v2475, 1.442695
    %v2479 = vpow.pop %v2478
    %v2480 = vadd.f32 %v2477, 1.0
    %v2481 = vadd.f32 %v2479, 1.0
    %v2482 = vrcp.pop %v2480
    %v2483 = vmul.f32 1.0, %v2482
    %v2484 = vrcp.pop %v2481
    %v2485 = vmul.f32 1.0, %v2484
    %v2487 = vrot.slane %v2395, 4
    %v2488 = vrot.slane %v2395, 5
    %v2491 = vadd.f32 %v236, %v2487
    %v2492 = vadd.f32 %v242, %v2488
    %v2493 = vxor.u32 %v2491, 2147483648
    %v2494 = vxor.u32 %v2492, 2147483648
    %v2495 = vmul.f32 %v2493, 1.442695
    %v2496 = vpow.pop %v2495
    %v2497 = vmul.f32 %v2494, 1.442695
    %v2498 = vpow.pop %v2497
    %v2499 = vadd.f32 %v2496, 1.0
    %v2500 = vadd.f32 %v2498, 1.0
    %v2501 = vrcp.pop %v2499
    %v2502 = vmul.f32 1.0, %v2501
    %v2503 = vrcp.pop %v2500
    %v2504 = vmul.f32 1.0, %v2503
    %v2506 = vrot.slane %v2464, 4
    %v2507 = vrot.slane %v2464, 5
    %v2510 = vmul.f32 %v2483, %v2506
    %v2511 = vmul.f32 %v2485, %v2507
    %v2512 = vadd.f32 %v311, %v2510
    %v2513 = vadd.f32 %v316, %v2511
    %v2514 = vtanh.pop %v2512
    %v2515 = vtanh.pop %v2513
    %v2516 = vsub.f32 1.0, %v2502
    %v2517 = vsub.f32 1.0, %v2504
    %v2518 = vmul.f32 %v2516, %v2514
    %v2519 = vmul.f32 %v2517, %v2515
    %v2520 = vrot.slane %v2303, 7
    %v2521 = vrot.slane %v2304, 7
    %v2524 = vmul.f32 %v2502, %v2520
    %v2525 = vmul.f32 %v2504, %v2521
    %v2526 = vadd.f32 %v2518, %v2524
    %v2527 = vadd.f32 %v2519, %v2525
    %v2528 = vrot.slane %v2306, 3
    %v2529 = vsel %vm1038, %v2528, %v2317
    %2531 = vmatprep.subr.mxu0 %v546
    %2532 = vmatpush1.msra.mxu0 %v545
    %2533 = vmatprep.subr.mxu0 %v549
    %2534 = vmatpush1.msra.mxu0 %v548
    %2535 = vmatprep.subr.mxu0 %v552
    %2536 = vmatpush1.msra.mxu0 %v551
    %2537 = vmatprep.subr.mxu0 %v555
    %2538 = vmatpush1.msra.mxu0 %v554
    %2539 = vmatprep.subr.mxu0 %v558
    %2540 = vmatpush1.msra.mxu0 %v557
    %2541 = vmatprep.subr.mxu0 %v561
    %2542 = vmatpush1.msra.mxu0 %v560
    %2543 = vmatprep.subr.mxu0 %v564
    %2544 = vmatpush1.msra.mxu0 %v563
    %2545 = vmatprep.subr.mxu0 %v567
    %2546 = vmatpush1.msra.mxu0 %v566
    %2547 = vmatprep.subr.mxu0 %v570
    %2548 = vmatpush1.msra.mxu0 %v569
    %2549 = vmatprep.subr.mxu0 %v573
    %2550 = vmatpush1.msra.mxu0 %v572
    %2551 = vmatprep.subr.mxu0 %v576
    %2552 = vmatpush1.msra.mxu0 %v575
    %2553 = vmatprep.subr.mxu0 %v579
    %2554 = vmatpush1.msra.mxu0 %v578
    %2555 = vmatprep.subr.mxu0 %v582
    %2556 = vmatpush1.msra.mxu0 %v581
    %2557 = vmatprep.subr.mxu0 %v585
    %2558 = vmatpush1.msra.mxu0 %v584
    %2559 = vmatprep.subr.mxu0 %v588
    %2560 = vmatpush1.msra.mxu0 %v587
    %2561 = vmatprep.subr.mxu0 %v591
    %2562 = vmatpush1.msra.mxu0 %v590
    %2563 = vmatprep.subr.mxu0 0.0
    %2564 = vmatpush1.msra.mxu0 0.0
    %2565 = vmatprep.subr.mxu0 0.0
    %2566 = vmatpush1.msra.mxu0 0.0
    %2567 = vmatprep.subr.mxu0 0.0
    %2568 = vmatpush1.msra.mxu0 0.0
    %2569 = vmatprep.subr.mxu0 0.0
    %2570 = vmatpush1.msra.mxu0 0.0
    %2571 = vmatprep.subr.mxu0 0.0
    %2572 = vmatpush1.msra.mxu0 0.0
    %2573 = vmatprep.subr.mxu0 0.0
    %2574 = vmatpush1.msra.mxu0 0.0
    %2575 = vmatprep.subr.mxu0 0.0
    %2576 = vmatpush1.msra.mxu0 0.0
    %2577 = vmatprep.subr.mxu0 0.0
    %2578 = vmatpush1.msra.mxu0 0.0
    %2579 = vmatprep.subr.mxu0 0.0
    %2580 = vmatpush1.msra.mxu0 0.0
    %2581 = vmatprep.subr.mxu0 0.0
    %2582 = vmatpush1.msra.mxu0 0.0
    %2583 = vmatprep.subr.mxu0 0.0
    %2584 = vmatpush1.msra.mxu0 0.0
    %2585 = vmatprep.subr.mxu0 0.0
    %2586 = vmatpush1.msra.mxu0 0.0
    %2587 = vmatprep.subr.mxu0 0.0
    %2588 = vmatpush1.msra.mxu0 0.0
    %2589 = vmatprep.subr.mxu0 0.0
    %2590 = vmatpush1.msra.mxu0 0.0
    %2591 = vmatprep.subr.mxu0 0.0
    %2592 = vmatpush1.msra.mxu0 0.0
    %2593 = vmatprep.subr.mxu0 0.0
    %2594 = vmatpush1.msra.mxu0 0.0
    %2595 = vmatprep.mubr.f32.mxu0 0.0
    %2596 = vmatmul.mubr.f32.gmra.mrb[0].mxu0 %v2529
    %v2597 = vpop.f32.mrb[0].mxu0
    %v2598 = vadd.f32 %v811, %v2597
    %v2599 = vpop.f32.mrb[0].mxu0
    %v2600 = vadd.f32 %v815, %v2599
    %2601 = vdwg.mxu0
    %2602 = vmatprep.subr.mxu0 0.0
    %2603 = vmatpush1.msra.mxu0 %v547
    %2604 = vmatprep.subr.mxu0 0.0
    %2605 = vmatpush1.msra.mxu0 %v550
    %2606 = vmatprep.subr.mxu0 0.0
    %2607 = vmatpush1.msra.mxu0 %v553
    %2608 = vmatprep.subr.mxu0 0.0
    %2609 = vmatpush1.msra.mxu0 %v556
    %2610 = vmatprep.subr.mxu0 0.0
    %2611 = vmatpush1.msra.mxu0 %v559
    %2612 = vmatprep.subr.mxu0 0.0
    %2613 = vmatpush1.msra.mxu0 %v562
    %2614 = vmatprep.subr.mxu0 0.0
    %2615 = vmatpush1.msra.mxu0 %v565
    %2616 = vmatprep.subr.mxu0 0.0
    %2617 = vmatpush1.msra.mxu0 %v568
    %2618 = vmatprep.subr.mxu0 0.0
    %2619 = vmatpush1.msra.mxu0 %v571
    %2620 = vmatprep.subr.mxu0 0.0
    %2621 = vmatpush1.msra.mxu0 %v574
    %2622 = vmatprep.subr.mxu0 0.0
    %2623 = vmatpush1.msra.mxu0 %v577
    %2624 = vmatprep.subr.mxu0 0.0
    %2625 = vmatpush1.msra.mxu0 %v580
    %2626 = vmatprep.subr.mxu0 0.0
    %2627 = vmatpush1.msra.mxu0 %v583
    %2628 = vmatprep.subr.mxu0 0.0
    %2629 = vmatpush1.msra.mxu0 %v586
    %2630 = vmatprep.subr.mxu0 0.0
    %2631 = vmatpush1.msra.mxu0 %v589
    %2632 = vmatprep.subr.mxu0 0.0
    %2633 = vmatpush1.msra.mxu0 %v592
    %2634 = vmatprep.subr.mxu0 0.0
    %2635 = vmatpush1.msra.mxu0 0.0
    %2636 = vmatprep.subr.mxu0 0.0
    %2637 = vmatpush1.msra.mxu0 0.0
    %2638 = vmatprep.subr.mxu0 0.0
    %2639 = vmatpush1.msra.mxu0 0.0
    %2640 = vmatprep.subr.mxu0 0.0
    %2641 = vmatpush1.msra.mxu0 0.0
    %2642 = vmatprep.subr.mxu0 0.0
    %2643 = vmatpush1.msra.mxu0 0.0
    %2644 = vmatprep.subr.mxu0 0.0
    %2645 = vmatpush1.msra.mxu0 0.0
    %2646 = vmatprep.subr.mxu0 0.0
    %2647 = vmatpush1.msra.mxu0 0.0
    %2648 = vmatprep.subr.mxu0 0.0
    %2649 = vmatpush1.msra.mxu0 0.0
    %2650 = vmatprep.subr.mxu0 0.0
    %2651 = vmatpush1.msra.mxu0 0.0
    %2652 = vmatprep.subr.mxu0 0.0
    %2653 = vmatpush1.msra.mxu0 0.0
    %2654 = vmatprep.subr.mxu0 0.0
    %2655 = vmatpush1.msra.mxu0 0.0
    %2656 = vmatprep.subr.mxu0 0.0
    %2657 = vmatpush1.msra.mxu0 0.0
    %2658 = vmatprep.subr.mxu0 0.0
    %2659 = vmatpush1.msra.mxu0 0.0
    %2660 = vmatprep.subr.mxu0 0.0
    %2661 = vmatpush1.msra.mxu0 0.0
    %2662 = vmatprep.subr.mxu0 0.0
    %2663 = vmatpush1.msra.mxu0 0.0
    %2664 = vmatprep.subr.mxu0 0.0
    %2665 = vmatpush1.msra.mxu0 0.0
    %2666 = vmatprep.mubr.f32.mxu0 0.0
    %2667 = vmatmul.mubr.f32.gmra.mrb[0].mxu0 %v2529
    %v2668 = vpop.f32.mrb[0].mxu0
    %v2669 = vadd.f32 %v819, %v2668
    %v2670 = vpop.f32.mrb[0].mxu0
    %2671 = vdwg.mxu0
    %v2673 = vrot.slane %v2598, 5
    %v2674 = vrot.slane %v2598, 6
    %v2677 = vadd.f32 %v411, %v2673
    %v2678 = vadd.f32 %v417, %v2674
    %v2679 = vxor.u32 %v2677, 2147483648
    %v2680 = vxor.u32 %v2678, 2147483648
    %v2681 = vmul.f32 %v2679, 1.442695
    %v2682 = vpow.pop %v2681
    %v2683 = vmul.f32 %v2680, 1.442695
    %v2684 = vpow.pop %v2683
    %v2685 = vadd.f32 %v2682, 1.0
    %v2686 = vadd.f32 %v2684, 1.0
    %v2687 = vrcp.pop %v2685
    %v2688 = vmul.f32 1.0, %v2687
    %v2689 = vrcp.pop %v2686
    %v2690 = vmul.f32 1.0, %v2689
    %v2692 = vrot.slane %v2600, 5
    %v2693 = vrot.slane %v2600, 6
    %v2696 = vadd.f32 %v413, %v2692
    %v2697 = vadd.f32 %v419, %v2693
    %v2698 = vxor.u32 %v2696, 2147483648
    %v2699 = vxor.u32 %v2697, 2147483648
    %v2700 = vmul.f32 %v2698, 1.442695
    %v2701 = vpow.pop %v2700
    %v2702 = vmul.f32 %v2699, 1.442695
    %v2703 = vpow.pop %v2702
    %v2704 = vadd.f32 %v2701, 1.0
    %v2705 = vadd.f32 %v2703, 1.0
    %v2706 = vrcp.pop %v2704
    %v2707 = vmul.f32 1.0, %v2706
    %v2708 = vrcp.pop %v2705
    %v2709 = vmul.f32 1.0, %v2708
    %v2711 = vrot.slane %v2669, 5
    %v2712 = vrot.slane %v2669, 6
    %v2715 = vmul.f32 %v2688, %v2711
    %v2716 = vmul.f32 %v2690, %v2712
    %v2717 = vadd.f32 %v488, %v2715
    %v2718 = vadd.f32 %v493, %v2716
    %v2719 = vtanh.pop %v2717
    %v2720 = vtanh.pop %v2718
    %v2721 = vsub.f32 1.0, %v2707
    %v2722 = vsub.f32 1.0, %v2709
    %v2723 = vmul.f32 %v2721, %v2719
    %v2724 = vmul.f32 %v2722, %v2720
    %v2725 = vrot.slane %v2305, 1
    %v2726 = vrot.slane %v2306, 1
    %v2729 = vmul.f32 %v2707, %v2725
    %v2730 = vmul.f32 %v2709, %v2726
    %v2731 = vadd.f32 %v2723, %v2729
    %v2732 = vadd.f32 %v2724, %v2730
    %v2733 = vsel %vm131, %v2526, %v2520
    %v2734 = vsel %vm132, %v2527, %v2521
    %v2735 = vsel %vm131, %v2731, %v2725
    %v2736 = vsel %vm132, %v2732, %v2726
    %v2739 = vrot.slane %v2733, 4
    %v2740 = vrot.slane %v2734, 4
    %2743 = vst [vmem:[#allocation2 + $0x4] sm:$0x1] %v2739
    %2744 = vst [vmem:[#allocation2 + $0x14] sm:$0x1] %v2740
    %v2747 = vrot.slane %v2735, 3
    %v2748 = vrot.slane %v2736, 3
    %2751 = vst [vmem:[#allocation2 + $0xb] sm:$0x1] %v2747
    %2752 = vst [vmem:[#allocation2 + $0x1b] sm:$0x1] %v2748
    %v2753 = vrot.slane %v2734, 3
    %v2754 = vsel %vm1038, %v2753, %v2739
    %2756 = vmatprep.subr.mxu0 %v497
    %2757 = vmatpush1.msra.mxu0 %v496
    %2758 = vmatprep.subr.mxu0 %v500
    %2759 = vmatpush1.msra.mxu0 %v499
    %2760 = vmatprep.subr.mxu0 %v503
    %2761 = vmatpush1.msra.mxu0 %v502
    %2762 = vmatprep.subr.mxu0 %v506
    %2763 = vmatpush1.msra.mxu0 %v505
    %2764 = vmatprep.subr.mxu0 %v509
    %2765 = vmatpush1.msra.mxu0 %v508
    %2766 = vmatprep.subr.mxu0 %v512
    %2767 = vmatpush1.msra.mxu0 %v511
    %2768 = vmatprep.subr.mxu0 %v515
    %2769 = vmatpush1.msra.mxu0 %v514
    %2770 = vmatprep.subr.mxu0 %v518
    %2771 = vmatpush1.msra.mxu0 %v517
    %2772 = vmatprep.subr.mxu0 %v521
    %2773 = vmatpush1.msra.mxu0 %v520
    %2774 = vmatprep.subr.mxu0 %v524
    %2775 = vmatpush1.msra.mxu0 %v523
    %2776 = vmatprep.subr.mxu0 %v527
    %2777 = vmatpush1.msra.mxu0 %v526
    %2778 = vmatprep.subr.mxu0 %v530
    %2779 = vmatpush1.msra.mxu0 %v529
    %2780 = vmatprep.subr.mxu0 %v533
    %2781 = vmatpush1.msra.mxu0 %v532
    %2782 = vmatprep.subr.mxu0 %v536
    %2783 = vmatpush1.msra.mxu0 %v535
    %2784 = vmatprep.subr.mxu0 %v539
    %2785 = vmatpush1.msra.mxu0 %v538
    %2786 = vmatprep.subr.mxu0 %v542
    %2787 = vmatpush1.msra.mxu0 %v541
    %2788 = vmatprep.subr.mxu0 0.0
    %2789 = vmatpush1.msra.mxu0 0.0
    %2790 = vmatprep.subr.mxu0 0.0
    %2791 = vmatpush1.msra.mxu0 0.0
    %2792 = vmatprep.subr.mxu0 0.0
    %2793 = vmatpush1.msra.mxu0 0.0
    %2794 = vmatprep.subr.mxu0 0.0
    %2795 = vmatpush1.msra.mxu0 0.0
    %2796 = vmatprep.subr.mxu0 0.0
    %2797 = vmatpush1.msra.mxu0 0.0
    %2798 = vmatprep.subr.mxu0 0.0
    %2799 = vmatpush1.msra.mxu0 0.0
    %2800 = vmatprep.subr.mxu0 0.0
    %2801 = vmatpush1.msra.mxu0 0.0
    %2802 = vmatprep.subr.mxu0 0.0
    %2803 = vmatpush1.msra.mxu0 0.0
    %2804 = vmatprep.subr.mxu0 0.0
    %2805 = vmatpush1.msra.mxu0 0.0
    %2806 = vmatprep.subr.mxu0 0.0
    %2807 = vmatpush1.msra.mxu0 0.0
    %2808 = vmatprep.subr.mxu0 0.0
    %2809 = vmatpush1.msra.mxu0 0.0
    %2810 = vmatprep.subr.mxu0 0.0
    %2811 = vmatpush1.msra.mxu0 0.0
    %2812 = vmatprep.subr.mxu0 0.0
    %2813 = vmatpush1.msra.mxu0 0.0
    %2814 = vmatprep.subr.mxu0 0.0
    %2815 = vmatpush1.msra.mxu0 0.0
    %2816 = vmatprep.subr.mxu0 0.0
    %2817 = vmatpush1.msra.mxu0 0.0
    %2818 = vmatprep.subr.mxu0 0.0
    %2819 = vmatpush1.msra.mxu0 0.0
    %2820 = vmatprep.mubr.f32.mxu0 0.0
    %2821 = vmatmul.mubr.f32.gmra.mrb[0].mxu0 %v2754
    %v2822 = vpop.f32.mrb[0].mxu0
    %v2823 = vadd.f32 %v600, %v2822
    %v2824 = vpop.f32.mrb[0].mxu0
    %v2825 = vadd.f32 %v604, %v2824
    %2826 = vdwg.mxu0
    %2827 = vmatprep.subr.mxu0 0.0
    %2828 = vmatpush1.msra.mxu0 %v498
    %2829 = vmatprep.subr.mxu0 0.0
    %2830 = vmatpush1.msra.mxu0 %v501
    %2831 = vmatprep.subr.mxu0 0.0
    %2832 = vmatpush1.msra.mxu0 %v504
    %2833 = vmatprep.subr.mxu0 0.0
    %2834 = vmatpush1.msra.mxu0 %v507
    %2835 = vmatprep.subr.mxu0 0.0
    %2836 = vmatpush1.msra.mxu0 %v510
    %2837 = vmatprep.subr.mxu0 0.0
    %2838 = vmatpush1.msra.mxu0 %v513
    %2839 = vmatprep.subr.mxu0 0.0
    %2840 = vmatpush1.msra.mxu0 %v516
    %2841 = vmatprep.subr.mxu0 0.0
    %2842 = vmatpush1.msra.mxu0 %v519
    %2843 = vmatprep.subr.mxu0 0.0
    %2844 = vmatpush1.msra.mxu0 %v522
    %2845 = vmatprep.subr.mxu0 0.0
    %2846 = vmatpush1.msra.mxu0 %v525
    %2847 = vmatprep.subr.mxu0 0.0
    %2848 = vmatpush1.msra.mxu0 %v528
    %2849 = vmatprep.subr.mxu0 0.0
    %2850 = vmatpush1.msra.mxu0 %v531
    %2851 = vmatprep.subr.mxu0 0.0
    %2852 = vmatpush1.msra.mxu0 %v534
    %2853 = vmatprep.subr.mxu0 0.0
    %2854 = vmatpush1.msra.mxu0 %v537
    %2855 = vmatprep.subr.mxu0 0.0
    %2856 = vmatpush1.msra.mxu0 %v540
    %2857 = vmatprep.subr.mxu0 0.0
    %2858 = vmatpush1.msra.mxu0 %v543
    %2859 = vmatprep.subr.mxu0 0.0
    %2860 = vmatpush1.msra.mxu0 0.0
    %2861 = vmatprep.subr.mxu0 0.0
    %2862 = vmatpush1.msra.mxu0 0.0
    %2863 = vmatprep.subr.mxu0 0.0
    %2864 = vmatpush1.msra.mxu0 0.0
    %2865 = vmatprep.subr.mxu0 0.0
    %2866 = vmatpush1.msra.mxu0 0.0
    %2867 = vmatprep.subr.mxu0 0.0
    %2868 = vmatpush1.msra.mxu0 0.0
    %2869 = vmatprep.subr.mxu0 0.0
    %2870 = vmatpush1.msra.mxu0 0.0
    %2871 = vmatprep.subr.mxu0 0.0
    %2872 = vmatpush1.msra.mxu0 0.0
    %2873 = vmatprep.subr.mxu0 0.0
    %2874 = vmatpush1.msra.mxu0 0.0
    %2875 = vmatprep.subr.mxu0 0.0
    %2876 = vmatpush1.msra.mxu0 0.0
    %2877 = vmatprep.subr.mxu0 0.0
    %2878 = vmatpush1.msra.mxu0 0.0
    %2879 = vmatprep.subr.mxu0 0.0
    %2880 = vmatpush1.msra.mxu0 0.0
    %2881 = vmatprep.subr.mxu0 0.0
    %2882 = vmatpush1.msra.mxu0 0.0
    %2883 = vmatprep.subr.mxu0 0.0
    %2884 = vmatpush1.msra.mxu0 0.0
    %2885 = vmatprep.subr.mxu0 0.0
    %2886 = vmatpush1.msra.mxu0 0.0
    %2887 = vmatprep.subr.mxu0 0.0
    %2888 = vmatpush1.msra.mxu0 0.0
    %2889 = vmatprep.subr.mxu0 0.0
    %2890 = vmatpush1.msra.mxu0 0.0
    %2891 = vmatprep.mubr.f32.mxu0 0.0
    %2892 = vmatmul.mubr.f32.gmra.mrb[0].mxu0 %v2754
    %v2893 = vpop.f32.mrb[0].mxu0
    %v2894 = vadd.f32 %v608, %v2893
    %v2895 = vpop.f32.mrb[0].mxu0
    %2896 = vdwg.mxu0
    %v2898 = vrot.slane %v2823, 3
    %v2899 = vrot.slane %v2823, 4
    %v2902 = vadd.f32 %v234, %v2898
    %v2903 = vadd.f32 %v240, %v2899
    %v2904 = vxor.u32 %v2902, 2147483648
    %v2905 = vxor.u32 %v2903, 2147483648
    %v2906 = vmul.f32 %v2904, 1.442695
    %v2907 = vpow.pop %v2906
    %v2908 = vmul.f32 %v2905, 1.442695
    %v2909 = vpow.pop %v2908
    %v2910 = vadd.f32 %v2907, 1.0
    %v2911 = vadd.f32 %v2909, 1.0
    %v2912 = vrcp.pop %v2910
    %v2913 = vmul.f32 1.0, %v2912
    %v2914 = vrcp.pop %v2911
    %v2915 = vmul.f32 1.0, %v2914
    %v2917 = vrot.slane %v2825, 3
    %v2918 = vrot.slane %v2825, 4
    %v2921 = vadd.f32 %v236, %v2917
    %v2922 = vadd.f32 %v242, %v2918
    %v2923 = vxor.u32 %v2921, 2147483648
    %v2924 = vxor.u32 %v2922, 2147483648
    %v2925 = vmul.f32 %v2923, 1.442695
    %v2926 = vpow.pop %v2925
    %v2927 = vmul.f32 %v2924, 1.442695
    %v2928 = vpow.pop %v2927
    %v2929 = vadd.f32 %v2926, 1.0
    %v2930 = vadd.f32 %v2928, 1.0
    %v2931 = vrcp.pop %v2929
    %v2932 = vmul.f32 1.0, %v2931
    %v2933 = vrcp.pop %v2930
    %v2934 = vmul.f32 1.0, %v2933
    %v2936 = vrot.slane %v2894, 3
    %v2937 = vrot.slane %v2894, 4
    %v2940 = vmul.f32 %v2913, %v2936
    %v2941 = vmul.f32 %v2915, %v2937
    %v2942 = vadd.f32 %v311, %v2940
    %v2943 = vadd.f32 %v316, %v2941
    %v2944 = vtanh.pop %v2942
    %v2945 = vtanh.pop %v2943
    %v2946 = vsub.f32 1.0, %v2932
    %v2947 = vsub.f32 1.0, %v2934
    %v2948 = vmul.f32 %v2946, %v2944
    %v2949 = vmul.f32 %v2947, %v2945
    %v2950 = vrot.slane %v2733, 7
    %v2951 = vrot.slane %v2734, 7
    %v2954 = vmul.f32 %v2932, %v2950
    %v2955 = vmul.f32 %v2934, %v2951
    %v2956 = vadd.f32 %v2948, %v2954
    %v2957 = vadd.f32 %v2949, %v2955
    %v2958 = vrot.slane %v2736, 2
    %v2959 = vsel %vm1038, %v2958, %v2747
    %2961 = vmatprep.subr.mxu0 %v546
    %2962 = vmatpush1.msra.mxu0 %v545
    %2963 = vmatprep.subr.mxu0 %v549
    %2964 = vmatpush1.msra.mxu0 %v548
    %2965 = vmatprep.subr.mxu0 %v552
    %2966 = vmatpush1.msra.mxu0 %v551
    %2967 = vmatprep.subr.mxu0 %v555
    %2968 = vmatpush1.msra.mxu0 %v554
    %2969 = vmatprep.subr.mxu0 %v558
    %2970 = vmatpush1.msra.mxu0 %v557
    %2971 = vmatprep.subr.mxu0 %v561
    %2972 = vmatpush1.msra.mxu0 %v560
    %2973 = vmatprep.subr.mxu0 %v564
    %2974 = vmatpush1.msra.mxu0 %v563
    %2975 = vmatprep.subr.mxu0 %v567
    %2976 = vmatpush1.msra.mxu0 %v566
    %2977 = vmatprep.subr.mxu0 %v570
    %2978 = vmatpush1.msra.mxu0 %v569
    %2979 = vmatprep.subr.mxu0 %v573
    %2980 = vmatpush1.msra.mxu0 %v572
    %2981 = vmatprep.subr.mxu0 %v576
    %2982 = vmatpush1.msra.mxu0 %v575
    %2983 = vmatprep.subr.mxu0 %v579
    %2984 = vmatpush1.msra.mxu0 %v578
    %2985 = vmatprep.subr.mxu0 %v582
    %2986 = vmatpush1.msra.mxu0 %v581
    %2987 = vmatprep.subr.mxu0 %v585
    %2988 = vmatpush1.msra.mxu0 %v584
    %2989 = vmatprep.subr.mxu0 %v588
    %2990 = vmatpush1.msra.mxu0 %v587
    %2991 = vmatprep.subr.mxu0 %v591
    %2992 = vmatpush1.msra.mxu0 %v590
    %2993 = vmatprep.subr.mxu0 0.0
    %2994 = vmatpush1.msra.mxu0 0.0
    %2995 = vmatprep.subr.mxu0 0.0
    %2996 = vmatpush1.msra.mxu0 0.0
    %2997 = vmatprep.subr.mxu0 0.0
    %2998 = vmatpush1.msra.mxu0 0.0
    %2999 = vmatprep.subr.mxu0 0.0
    %3000 = vmatpush1.msra.mxu0 0.0
    %3001 = vmatprep.subr.mxu0 0.0
    %3002 = vmatpush1.msra.mxu0 0.0
    %3003 = vmatprep.subr.mxu0 0.0
    %3004 = vmatpush1.msra.mxu0 0.0
    %3005 = vmatprep.subr.mxu0 0.0
    %3006 = vmatpush1.msra.mxu0 0.0
    %3007 = vmatprep.subr.mxu0 0.0
    %3008 = vmatpush1.msra.mxu0 0.0
    %3009 = vmatprep.subr.mxu0 0.0
    %3010 = vmatpush1.msra.mxu0 0.0
    %3011 = vmatprep.subr.mxu0 0.0
    %3012 = vmatpush1.msra.mxu0 0.0
    %3013 = vmatprep.subr.mxu0 0.0
    %3014 = vmatpush1.msra.mxu0 0.0
    %3015 = vmatprep.subr.mxu0 0.0
    %3016 = vmatpush1.msra.mxu0 0.0
    %3017 = vmatprep.subr.mxu0 0.0
    %3018 = vmatpush1.msra.mxu0 0.0
    %3019 = vmatprep.subr.mxu0 0.0
    %3020 = vmatpush1.msra.mxu0 0.0
    %3021 = vmatprep.subr.mxu0 0.0
    %3022 = vmatpush1.msra.mxu0 0.0
    %3023 = vmatprep.subr.mxu0 0.0
    %3024 = vmatpush1.msra.mxu0 0.0
    %3025 = vmatprep.mubr.f32.mxu0 0.0
    %3026 = vmatmul.mubr.f32.gmra.mrb[0].mxu0 %v2959
    %v3027 = vpop.f32.mrb[0].mxu0
    %v3028 = vadd.f32 %v811, %v3027
    %v3029 = vpop.f32.mrb[0].mxu0
    %v3030 = vadd.f32 %v815, %v3029
    %3031 = vdwg.mxu0
    %3032 = vmatprep.subr.mxu0 0.0
    %3033 = vmatpush1.msra.mxu0 %v547
    %3034 = vmatprep.subr.mxu0 0.0
    %3035 = vmatpush1.msra.mxu0 %v550
    %3036 = vmatprep.subr.mxu0 0.0
    %3037 = vmatpush1.msra.mxu0 %v553
    %3038 = vmatprep.subr.mxu0 0.0
    %3039 = vmatpush1.msra.mxu0 %v556
    %3040 = vmatprep.subr.mxu0 0.0
    %3041 = vmatpush1.msra.mxu0 %v559
    %3042 = vmatprep.subr.mxu0 0.0
    %3043 = vmatpush1.msra.mxu0 %v562
    %3044 = vmatprep.subr.mxu0 0.0
    %3045 = vmatpush1.msra.mxu0 %v565
    %3046 = vmatprep.subr.mxu0 0.0
    %3047 = vmatpush1.msra.mxu0 %v568
    %3048 = vmatprep.subr.mxu0 0.0
    %3049 = vmatpush1.msra.mxu0 %v571
    %3050 = vmatprep.subr.mxu0 0.0
    %3051 = vmatpush1.msra.mxu0 %v574
    %3052 = vmatprep.subr.mxu0 0.0
    %3053 = vmatpush1.msra.mxu0 %v577
    %3054 = vmatprep.subr.mxu0 0.0
    %3055 = vmatpush1.msra.mxu0 %v580
    %3056 = vmatprep.subr.mxu0 0.0
    %3057 = vmatpush1.msra.mxu0 %v583
    %3058 = vmatprep.subr.mxu0 0.0
    %3059 = vmatpush1.msra.mxu0 %v586
    %3060 = vmatprep.subr.mxu0 0.0
    %3061 = vmatpush1.msra.mxu0 %v589
    %3062 = vmatprep.subr.mxu0 0.0
    %3063 = vmatpush1.msra.mxu0 %v592
    %3064 = vmatprep.subr.mxu0 0.0
    %3065 = vmatpush1.msra.mxu0 0.0
    %3066 = vmatprep.subr.mxu0 0.0
    %3067 = vmatpush1.msra.mxu0 0.0
    %3068 = vmatprep.subr.mxu0 0.0
    %3069 = vmatpush1.msra.mxu0 0.0
    %3070 = vmatprep.subr.mxu0 0.0
    %3071 = vmatpush1.msra.mxu0 0.0
    %3072 = vmatprep.subr.mxu0 0.0
    %3073 = vmatpush1.msra.mxu0 0.0
    %3074 = vmatprep.subr.mxu0 0.0
    %3075 = vmatpush1.msra.mxu0 0.0
    %3076 = vmatprep.subr.mxu0 0.0
    %3077 = vmatpush1.msra.mxu0 0.0
    %3078 = vmatprep.subr.mxu0 0.0
    %3079 = vmatpush1.msra.mxu0 0.0
    %3080 = vmatprep.subr.mxu0 0.0
    %3081 = vmatpush1.msra.mxu0 0.0
    %3082 = vmatprep.subr.mxu0 0.0
    %3083 = vmatpush1.msra.mxu0 0.0
    %3084 = vmatprep.subr.mxu0 0.0
    %3085 = vmatpush1.msra.mxu0 0.0
    %3086 = vmatprep.subr.mxu0 0.0
    %3087 = vmatpush1.msra.mxu0 0.0
    %3088 = vmatprep.subr.mxu0 0.0
    %3089 = vmatpush1.msra.mxu0 0.0
    %3090 = vmatprep.subr.mxu0 0.0
    %3091 = vmatpush1.msra.mxu0 0.0
    %3092 = vmatprep.subr.mxu0 0.0
    %3093 = vmatpush1.msra.mxu0 0.0
    %3094 = vmatprep.subr.mxu0 0.0
    %3095 = vmatpush1.msra.mxu0 0.0
    %3096 = vmatprep.mubr.f32.mxu0 0.0
    %3097 = vmatmul.mubr.f32.gmra.mrb[0].mxu0 %v2959
    %v3098 = vpop.f32.mrb[0].mxu0
    %v3099 = vadd.f32 %v819, %v3098
    %v3100 = vpop.f32.mrb[0].mxu0
    %3101 = vdwg.mxu0
    %v3103 = vrot.slane %v3028, 6
    %v3104 = vrot.slane %v3028, 7
    %v3107 = vadd.f32 %v411, %v3103
    %v3108 = vadd.f32 %v417, %v3104
    %v3109 = vxor.u32 %v3107, 2147483648
    %v3110 = vxor.u32 %v3108, 2147483648
    %v3111 = vmul.f32 %v3109, 1.442695
    %v3112 = vpow.pop %v3111
    %v3113 = vmul.f32 %v3110, 1.442695
    %v3114 = vpow.pop %v3113
    %v3115 = vadd.f32 %v3112, 1.0
    %v3116 = vadd.f32 %v3114, 1.0
    %v3117 = vrcp.pop %v3115
    %v3118 = vmul.f32 1.0, %v3117
    %v3119 = vrcp.pop %v3116
    %v3120 = vmul.f32 1.0, %v3119
    %v3122 = vrot.slane %v3030, 6
    %v3123 = vrot.slane %v3030, 7
    %v3126 = vadd.f32 %v413, %v3122
    %v3127 = vadd.f32 %v419, %v3123
    %v3128 = vxor.u32 %v3126, 2147483648
    %v3129 = vxor.u32 %v3127, 2147483648
    %v3130 = vmul.f32 %v3128, 1.442695
    %v3131 = vpow.pop %v3130
    %v3132 = vmul.f32 %v3129, 1.442695
    %v3133 = vpow.pop %v3132
    %v3134 = vadd.f32 %v3131, 1.0
    %v3135 = vadd.f32 %v3133, 1.0
    %v3136 = vrcp.pop %v3134
    %v3137 = vmul.f32 1.0, %v3136
    %v3138 = vrcp.pop %v3135
    %v3139 = vmul.f32 1.0, %v3138
    %v3141 = vrot.slane %v3099, 6
    %v3142 = vrot.slane %v3099, 7
    %v3145 = vmul.f32 %v3118, %v3141
    %v3146 = vmul.f32 %v3120, %v3142
    %v3147 = vadd.f32 %v488, %v3145
    %v3148 = vadd.f32 %v493, %v3146
    %v3149 = vtanh.pop %v3147
    %v3150 = vtanh.pop %v3148
    %v3151 = vsub.f32 1.0, %v3137
    %v3152 = vsub.f32 1.0, %v3139
    %v3153 = vmul.f32 %v3151, %v3149
    %v3154 = vmul.f32 %v3152, %v3150
    %v3155 = vrot.slane %v2735, 1
    %v3156 = vrot.slane %v2736, 1
    %v3159 = vmul.f32 %v3137, %v3155
    %v3160 = vmul.f32 %v3139, %v3156
    %v3161 = vadd.f32 %v3153, %v3159
    %v3162 = vadd.f32 %v3154, %v3160
    %v3163 = vsel %vm131, %v2956, %v2950
    %v3164 = vsel %vm132, %v2957, %v2951
    %v3165 = vsel %vm131, %v3161, %v3155
    %v3166 = vsel %vm132, %v3162, %v3156
    %v3169 = vrot.slane %v3163, 5
    %v3170 = vrot.slane %v3164, 5
    %3173 = vst [vmem:[#allocation2 + $0x5] sm:$0x1] %v3169
    %3174 = vst [vmem:[#allocation2 + $0x15] sm:$0x1] %v3170
    %v3177 = vrot.slane %v3165, 2
    %v3178 = vrot.slane %v3166, 2
    %3181 = vst [vmem:[#allocation2 + $0xa] sm:$0x1] %v3177
    %3182 = vst [vmem:[#allocation2 + $0x1a] sm:$0x1] %v3178
    %v3183 = vrot.slane %v3164, 4
    %v3184 = vsel %vm1038, %v3183, %v3169
    %3186 = vmatprep.subr.mxu0 %v497
    %3187 = vmatpush1.msra.mxu0 %v496
    %3188 = vmatprep.subr.mxu0 %v500
    %3189 = vmatpush1.msra.mxu0 %v499
    %3190 = vmatprep.subr.mxu0 %v503
    %3191 = vmatpush1.msra.mxu0 %v502
    %3192 = vmatprep.subr.mxu0 %v506
    %3193 = vmatpush1.msra.mxu0 %v505
    %3194 = vmatprep.subr.mxu0 %v509
    %3195 = vmatpush1.msra.mxu0 %v508
    %3196 = vmatprep.subr.mxu0 %v512
    %3197 = vmatpush1.msra.mxu0 %v511
    %3198 = vmatprep.subr.mxu0 %v515
    %3199 = vmatpush1.msra.mxu0 %v514
    %3200 = vmatprep.subr.mxu0 %v518
    %3201 = vmatpush1.msra.mxu0 %v517
    %3202 = vmatprep.subr.mxu0 %v521
    %3203 = vmatpush1.msra.mxu0 %v520
    %3204 = vmatprep.subr.mxu0 %v524
    %3205 = vmatpush1.msra.mxu0 %v523
    %3206 = vmatprep.subr.mxu0 %v527
    %3207 = vmatpush1.msra.mxu0 %v526
    %3208 = vmatprep.subr.mxu0 %v530
    %3209 = vmatpush1.msra.mxu0 %v529
    %3210 = vmatprep.subr.mxu0 %v533
    %3211 = vmatpush1.msra.mxu0 %v532
    %3212 = vmatprep.subr.mxu0 %v536
    %3213 = vmatpush1.msra.mxu0 %v535
    %3214 = vmatprep.subr.mxu0 %v539
    %3215 = vmatpush1.msra.mxu0 %v538
    %3216 = vmatprep.subr.mxu0 %v542
    %3217 = vmatpush1.msra.mxu0 %v541
    %3218 = vmatprep.subr.mxu0 0.0
    %3219 = vmatpush1.msra.mxu0 0.0
    %3220 = vmatprep.subr.mxu0 0.0
    %3221 = vmatpush1.msra.mxu0 0.0
    %3222 = vmatprep.subr.mxu0 0.0
    %3223 = vmatpush1.msra.mxu0 0.0
    %3224 = vmatprep.subr.mxu0 0.0
    %3225 = vmatpush1.msra.mxu0 0.0
    %3226 = vmatprep.subr.mxu0 0.0
    %3227 = vmatpush1.msra.mxu0 0.0
    %3228 = vmatprep.subr.mxu0 0.0
    %3229 = vmatpush1.msra.mxu0 0.0
    %3230 = vmatprep.subr.mxu0 0.0
    %3231 = vmatpush1.msra.mxu0 0.0
    %3232 = vmatprep.subr.mxu0 0.0
    %3233 = vmatpush1.msra.mxu0 0.0
    %3234 = vmatprep.subr.mxu0 0.0
    %3235 = vmatpush1.msra.mxu0 0.0
    %3236 = vmatprep.subr.mxu0 0.0
    %3237 = vmatpush1.msra.mxu0 0.0
    %3238 = vmatprep.subr.mxu0 0.0
    %3239 = vmatpush1.msra.mxu0 0.0
    %3240 = vmatprep.subr.mxu0 0.0
    %3241 = vmatpush1.msra.mxu0 0.0
    %3242 = vmatprep.subr.mxu0 0.0
    %3243 = vmatpush1.msra.mxu0 0.0
    %3244 = vmatprep.subr.mxu0 0.0
    %3245 = vmatpush1.msra.mxu0 0.0
    %3246 = vmatprep.subr.mxu0 0.0
    %3247 = vmatpush1.msra.mxu0 0.0
    %3248 = vmatprep.subr.mxu0 0.0
    %3249 = vmatpush1.msra.mxu0 0.0
    %3250 = vmatprep.mubr.f32.mxu0 0.0
    %3251 = vmatmul.mubr.f32.gmra.mrb[0].mxu0 %v3184
    %v3252 = vpop.f32.mrb[0].mxu0
    %v3253 = vadd.f32 %v600, %v3252
    %v3254 = vpop.f32.mrb[0].mxu0
    %v3255 = vadd.f32 %v604, %v3254
    %3256 = vdwg.mxu0
    %3257 = vmatprep.subr.mxu0 0.0
    %3258 = vmatpush1.msra.mxu0 %v498
    %3259 = vmatprep.subr.mxu0 0.0
    %3260 = vmatpush1.msra.mxu0 %v501
    %3261 = vmatprep.subr.mxu0 0.0
    %3262 = vmatpush1.msra.mxu0 %v504
    %3263 = vmatprep.subr.mxu0 0.0
    %3264 = vmatpush1.msra.mxu0 %v507
    %3265 = vmatprep.subr.mxu0 0.0
    %3266 = vmatpush1.msra.mxu0 %v510
    %3267 = vmatprep.subr.mxu0 0.0
    %3268 = vmatpush1.msra.mxu0 %v513
    %3269 = vmatprep.subr.mxu0 0.0
    %3270 = vmatpush1.msra.mxu0 %v516
    %3271 = vmatprep.subr.mxu0 0.0
    %3272 = vmatpush1.msra.mxu0 %v519
    %3273 = vmatprep.subr.mxu0 0.0
    %3274 = vmatpush1.msra.mxu0 %v522
    %3275 = vmatprep.subr.mxu0 0.0
    %3276 = vmatpush1.msra.mxu0 %v525
    %3277 = vmatprep.subr.mxu0 0.0
    %3278 = vmatpush1.msra.mxu0 %v528
    %3279 = vmatprep.subr.mxu0 0.0
    %3280 = vmatpush1.msra.mxu0 %v531
    %3281 = vmatprep.subr.mxu0 0.0
    %3282 = vmatpush1.msra.mxu0 %v534
    %3283 = vmatprep.subr.mxu0 0.0
    %3284 = vmatpush1.msra.mxu0 %v537
    %3285 = vmatprep.subr.mxu0 0.0
    %3286 = vmatpush1.msra.mxu0 %v540
    %3287 = vmatprep.subr.mxu0 0.0
    %3288 = vmatpush1.msra.mxu0 %v543
    %3289 = vmatprep.subr.mxu0 0.0
    %3290 = vmatpush1.msra.mxu0 0.0
    %3291 = vmatprep.subr.mxu0 0.0
    %3292 = vmatpush1.msra.mxu0 0.0
    %3293 = vmatprep.subr.mxu0 0.0
    %3294 = vmatpush1.msra.mxu0 0.0
    %3295 = vmatprep.subr.mxu0 0.0
    %3296 = vmatpush1.msra.mxu0 0.0
    %3297 = vmatprep.subr.mxu0 0.0
    %3298 = vmatpush1.msra.mxu0 0.0
    %3299 = vmatprep.subr.mxu0 0.0
    %3300 = vmatpush1.msra.mxu0 0.0
    %3301 = vmatprep.subr.mxu0 0.0
    %3302 = vmatpush1.msra.mxu0 0.0
    %3303 = vmatprep.subr.mxu0 0.0
    %3304 = vmatpush1.msra.mxu0 0.0
    %3305 = vmatprep.subr.mxu0 0.0
    %3306 = vmatpush1.msra.mxu0 0.0
    %3307 = vmatprep.subr.mxu0 0.0
    %3308 = vmatpush1.msra.mxu0 0.0
    %3309 = vmatprep.subr.mxu0 0.0
    %3310 = vmatpush1.msra.mxu0 0.0
    %3311 = vmatprep.subr.mxu0 0.0
    %3312 = vmatpush1.msra.mxu0 0.0
    %3313 = vmatprep.subr.mxu0 0.0
    %3314 = vmatpush1.msra.mxu0 0.0
    %3315 = vmatprep.subr.mxu0 0.0
    %3316 = vmatpush1.msra.mxu0 0.0
    %3317 = vmatprep.subr.mxu0 0.0
    %3318 = vmatpush1.msra.mxu0 0.0
    %3319 = vmatprep.subr.mxu0 0.0
    %3320 = vmatpush1.msra.mxu0 0.0
    %3321 = vmatprep.mubr.f32.mxu0 0.0
    %3322 = vmatmul.mubr.f32.gmra.mrb[0].mxu0 %v3184
    %v3323 = vpop.f32.mrb[0].mxu0
    %v3324 = vadd.f32 %v608, %v3323
    %v3325 = vpop.f32.mrb[0].mxu0
    %3326 = vdwg.mxu0
    %v3328 = vrot.slane %v3253, 2
    %v3329 = vrot.slane %v3253, 3
    %v3332 = vadd.f32 %v234, %v3328
    %v3333 = vadd.f32 %v240, %v3329
    %v3334 = vxor.u32 %v3332, 2147483648
    %v3335 = vxor.u32 %v3333, 2147483648
    %v3336 = vmul.f32 %v3334, 1.442695
    %v3337 = vpow.pop %v3336
    %v3338 = vmul.f32 %v3335, 1.442695
    %v3339 = vpow.pop %v3338
    %v3340 = vadd.f32 %v3337, 1.0
    %v3341 = vadd.f32 %v3339, 1.0
    %v3342 = vrcp.pop %v3340
    %v3343 = vmul.f32 1.0, %v3342
    %v3344 = vrcp.pop %v3341
    %v3345 = vmul.f32 1.0, %v3344
    %v3347 = vrot.slane %v3255, 2
    %v3348 = vrot.slane %v3255, 3
    %v3351 = vadd.f32 %v236, %v3347
    %v3352 = vadd.f32 %v242, %v3348
    %v3353 = vxor.u32 %v3351, 2147483648
    %v3354 = vxor.u32 %v3352, 2147483648
    %v3355 = vmul.f32 %v3353, 1.442695
    %v3356 = vpow.pop %v3355
    %v3357 = vmul.f32 %v3354, 1.442695
    %v3358 = vpow.pop %v3357
    %v3359 = vadd.f32 %v3356, 1.0
    %v3360 = vadd.f32 %v3358, 1.0
    %v3361 = vrcp.pop %v3359
    %v3362 = vmul.f32 1.0, %v3361
    %v3363 = vrcp.pop %v3360
    %v3364 = vmul.f32 1.0, %v3363
    %v3366 = vrot.slane %v3324, 2
    %v3367 = vrot.slane %v3324, 3
    %v3370 = vmul.f32 %v3343, %v3366
    %v3371 = vmul.f32 %v3345, %v3367
    %v3372 = vadd.f32 %v311, %v3370
    %v3373 = vadd.f32 %v316, %v3371
    %v3374 = vtanh.pop %v3372
    %v3375 = vtanh.pop %v3373
    %v3376 = vsub.f32 1.0, %v3362
    %v3377 = vsub.f32 1.0, %v3364
    %v3378 = vmul.f32 %v3376, %v3374
    %v3379 = vmul.f32 %v3377, %v3375
    %v3380 = vrot.slane %v3163, 7
    %v3381 = vrot.slane %v3164, 7
    %v3384 = vmul.f32 %v3362, %v3380
    %v3385 = vmul.f32 %v3364, %v3381
    %v3386 = vadd.f32 %v3378, %v3384
    %v3387 = vadd.f32 %v3379, %v3385
    %v3388 = vrot.slane %v3166, 1
    %v3389 = vsel %vm1038, %v3388, %v3177
    %3391 = vmatprep.subr.mxu0 %v546
    %3392 = vmatpush1.msra.mxu0 %v545
    %3393 = vmatprep.subr.mxu0 %v549
    %3394 = vmatpush1.msra.mxu0 %v548
    %3395 = vmatprep.subr.mxu0 %v552
    %3396 = vmatpush1.msra.mxu0 %v551
    %3397 = vmatprep.subr.mxu0 %v555
    %3398 = vmatpush1.msra.mxu0 %v554
    %3399 = vmatprep.subr.mxu0 %v558
    %3400 = vmatpush1.msra.mxu0 %v557
    %3401 = vmatprep.subr.mxu0 %v561
    %3402 = vmatpush1.msra.mxu0 %v560
    %3403 = vmatprep.subr.mxu0 %v564
    %3404 = vmatpush1.msra.mxu0 %v563
    %3405 = vmatprep.subr.mxu0 %v567
    %3406 = vmatpush1.msra.mxu0 %v566
    %3407 = vmatprep.subr.mxu0 %v570
    %3408 = vmatpush1.msra.mxu0 %v569
    %3409 = vmatprep.subr.mxu0 %v573
    %3410 = vmatpush1.msra.mxu0 %v572
    %3411 = vmatprep.subr.mxu0 %v576
    %3412 = vmatpush1.msra.mxu0 %v575
    %3413 = vmatprep.subr.mxu0 %v579
    %3414 = vmatpush1.msra.mxu0 %v578
    %3415 = vmatprep.subr.mxu0 %v582
    %3416 = vmatpush1.msra.mxu0 %v581
    %3417 = vmatprep.subr.mxu0 %v585
    %3418 = vmatpush1.msra.mxu0 %v584
    %3419 = vmatprep.subr.mxu0 %v588
    %3420 = vmatpush1.msra.mxu0 %v587
    %3421 = vmatprep.subr.mxu0 %v591
    %3422 = vmatpush1.msra.mxu0 %v590
    %3423 = vmatprep.subr.mxu0 0.0
    %3424 = vmatpush1.msra.mxu0 0.0
    %3425 = vmatprep.subr.mxu0 0.0
    %3426 = vmatpush1.msra.mxu0 0.0
    %3427 = vmatprep.subr.mxu0 0.0
    %3428 = vmatpush1.msra.mxu0 0.0
    %3429 = vmatprep.subr.mxu0 0.0
    %3430 = vmatpush1.msra.mxu0 0.0
    %3431 = vmatprep.subr.mxu0 0.0
    %3432 = vmatpush1.msra.mxu0 0.0
    %3433 = vmatprep.subr.mxu0 0.0
    %3434 = vmatpush1.msra.mxu0 0.0
    %3435 = vmatprep.subr.mxu0 0.0
    %3436 = vmatpush1.msra.mxu0 0.0
    %3437 = vmatprep.subr.mxu0 0.0
    %3438 = vmatpush1.msra.mxu0 0.0
    %3439 = vmatprep.subr.mxu0 0.0
    %3440 = vmatpush1.msra.mxu0 0.0
    %3441 = vmatprep.subr.mxu0 0.0
    %3442 = vmatpush1.msra.mxu0 0.0
    %3443 = vmatprep.subr.mxu0 0.0
    %3444 = vmatpush1.msra.mxu0 0.0
    %3445 = vmatprep.subr.mxu0 0.0
    %3446 = vmatpush1.msra.mxu0 0.0
    %3447 = vmatprep.subr.mxu0 0.0
    %3448 = vmatpush1.msra.mxu0 0.0
    %3449 = vmatprep.subr.mxu0 0.0
    %3450 = vmatpush1.msra.mxu0 0.0
    %3451 = vmatprep.subr.mxu0 0.0
    %3452 = vmatpush1.msra.mxu0 0.0
    %3453 = vmatprep.subr.mxu0 0.0
    %3454 = vmatpush1.msra.mxu0 0.0
    %3455 = vmatprep.mubr.f32.mxu0 0.0
    %3456 = vmatmul.mubr.f32.gmra.mrb[0].mxu0 %v3389
    %v3457 = vpop.f32.mrb[0].mxu0
    %v3458 = vadd.f32 %v811, %v3457
    %v3459 = vpop.f32.mrb[0].mxu0
    %v3460 = vadd.f32 %v815, %v3459
    %3461 = vdwg.mxu0
    %3462 = vmatprep.subr.mxu0 0.0
    %3463 = vmatpush1.msra.mxu0 %v547
    %3464 = vmatprep.subr.mxu0 0.0
    %3465 = vmatpush1.msra.mxu0 %v550
    %3466 = vmatprep.subr.mxu0 0.0
    %3467 = vmatpush1.msra.mxu0 %v553
    %3468 = vmatprep.subr.mxu0 0.0
    %3469 = vmatpush1.msra.mxu0 %v556
    %3470 = vmatprep.subr.mxu0 0.0
    %3471 = vmatpush1.msra.mxu0 %v559
    %3472 = vmatprep.subr.mxu0 0.0
    %3473 = vmatpush1.msra.mxu0 %v562
    %3474 = vmatprep.subr.mxu0 0.0
    %3475 = vmatpush1.msra.mxu0 %v565
    %3476 = vmatprep.subr.mxu0 0.0
    %3477 = vmatpush1.msra.mxu0 %v568
    %3478 = vmatprep.subr.mxu0 0.0
    %3479 = vmatpush1.msra.mxu0 %v571
    %3480 = vmatprep.subr.mxu0 0.0
    %3481 = vmatpush1.msra.mxu0 %v574
    %3482 = vmatprep.subr.mxu0 0.0
    %3483 = vmatpush1.msra.mxu0 %v577
    %3484 = vmatprep.subr.mxu0 0.0
    %3485 = vmatpush1.msra.mxu0 %v580
    %3486 = vmatprep.subr.mxu0 0.0
    %3487 = vmatpush1.msra.mxu0 %v583
    %3488 = vmatprep.subr.mxu0 0.0
    %3489 = vmatpush1.msra.mxu0 %v586
    %3490 = vmatprep.subr.mxu0 0.0
    %3491 = vmatpush1.msra.mxu0 %v589
    %3492 = vmatprep.subr.mxu0 0.0
    %3493 = vmatpush1.msra.mxu0 %v592
    %3494 = vmatprep.subr.mxu0 0.0
    %3495 = vmatpush1.msra.mxu0 0.0
    %3496 = vmatprep.subr.mxu0 0.0
    %3497 = vmatpush1.msra.mxu0 0.0
    %3498 = vmatprep.subr.mxu0 0.0
    %3499 = vmatpush1.msra.mxu0 0.0
    %3500 = vmatprep.subr.mxu0 0.0
    %3501 = vmatpush1.msra.mxu0 0.0
    %3502 = vmatprep.subr.mxu0 0.0
    %3503 = vmatpush1.msra.mxu0 0.0
    %3504 = vmatprep.subr.mxu0 0.0
    %3505 = vmatpush1.msra.mxu0 0.0
    %3506 = vmatprep.subr.mxu0 0.0
    %3507 = vmatpush1.msra.mxu0 0.0
    %3508 = vmatprep.subr.mxu0 0.0
    %3509 = vmatpush1.msra.mxu0 0.0
    %3510 = vmatprep.subr.mxu0 0.0
    %3511 = vmatpush1.msra.mxu0 0.0
    %3512 = vmatprep.subr.mxu0 0.0
    %3513 = vmatpush1.msra.mxu0 0.0
    %3514 = vmatprep.subr.mxu0 0.0
    %3515 = vmatpush1.msra.mxu0 0.0
    %3516 = vmatprep.subr.mxu0 0.0
    %3517 = vmatpush1.msra.mxu0 0.0
    %3518 = vmatprep.subr.mxu0 0.0
    %3519 = vmatpush1.msra.mxu0 0.0
    %3520 = vmatprep.subr.mxu0 0.0
    %3521 = vmatpush1.msra.mxu0 0.0
    %3522 = vmatprep.subr.mxu0 0.0
    %3523 = vmatpush1.msra.mxu0 0.0
    %3524 = vmatprep.subr.mxu0 0.0
    %3525 = vmatpush1.msra.mxu0 0.0
    %3526 = vmatprep.mubr.f32.mxu0 0.0
    %3527 = vmatmul.mubr.f32.gmra.mrb[0].mxu0 %v3389
    %v3528 = vpop.f32.mrb[0].mxu0
    %v3529 = vadd.f32 %v819, %v3528
    %v3530 = vpop.f32.mrb[0].mxu0
    %3531 = vdwg.mxu0
    %v3533 = vrot.slane %v3458, 7
    %v3536 = vadd.f32 %v411, %v3533
    %v3537 = vadd.f32 %v417, %v3458
    %v3538 = vxor.u32 %v3536, 2147483648
    %v3539 = vxor.u32 %v3537, 2147483648
    %v3540 = vmul.f32 %v3538, 1.442695
    %v3541 = vpow.pop %v3540
    %v3542 = vmul.f32 %v3539, 1.442695
    %v3543 = vpow.pop %v3542
    %v3544 = vadd.f32 %v3541, 1.0
    %v3545 = vadd.f32 %v3543, 1.0
    %v3546 = vrcp.pop %v3544
    %v3547 = vmul.f32 1.0, %v3546
    %v3548 = vrcp.pop %v3545
    %v3549 = vmul.f32 1.0, %v3548
    %v3551 = vrot.slane %v3460, 7
    %v3554 = vadd.f32 %v413, %v3551
    %v3555 = vadd.f32 %v419, %v3460
    %v3556 = vxor.u32 %v3554, 2147483648
    %v3557 = vxor.u32 %v3555, 2147483648
    %v3558 = vmul.f32 %v3556, 1.442695
    %v3559 = vpow.pop %v3558
    %v3560 = vmul.f32 %v3557, 1.442695
    %v3561 = vpow.pop %v3560
    %v3562 = vadd.f32 %v3559, 1.0
    %v3563 = vadd.f32 %v3561, 1.0
    %v3564 = vrcp.pop %v3562
    %v3565 = vmul.f32 1.0, %v3564
    %v3566 = vrcp.pop %v3563
    %v3567 = vmul.f32 1.0, %v3566
    %v3569 = vrot.slane %v3529, 7
    %v3572 = vmul.f32 %v3547, %v3569
    %v3573 = vmul.f32 %v3549, %v3529
    %v3574 = vadd.f32 %v488, %v3572
    %v3575 = vadd.f32 %v493, %v3573
    %v3576 = vtanh.pop %v3574
    %v3577 = vtanh.pop %v3575
    %v3578 = vsub.f32 1.0, %v3565
    %v3579 = vsub.f32 1.0, %v3567
    %v3580 = vmul.f32 %v3578, %v3576
    %v3581 = vmul.f32 %v3579, %v3577
    %v3582 = vrot.slane %v3165, 1
    %v3585 = vmul.f32 %v3565, %v3582
    %v3586 = vmul.f32 %v3567, %v3388
    %v3587 = vadd.f32 %v3580, %v3585
    %v3588 = vadd.f32 %v3581, %v3586
    %v3589 = vsel %vm131, %v3386, %v3380
    %v3590 = vsel %vm132, %v3387, %v3381
    %v3591 = vsel %vm131, %v3587, %v3582
    %v3592 = vsel %vm132, %v3588, %v3388
    %v3595 = vrot.slane %v3589, 6
    %v3596 = vrot.slane %v3590, 6
    %3599 = vst [vmem:[#allocation2 + $0x6] sm:$0x1] %v3595
    %3600 = vst [vmem:[#allocation2 + $0x16] sm:$0x1] %v3596
    %v3603 = vrot.slane %v3591, 1
    %v3604 = vrot.slane %v3592, 1
    %3607 = vst [vmem:[#allocation2 + $0x9] sm:$0x1] %v3603
    %3608 = vst [vmem:[#allocation2 + $0x19] sm:$0x1] %v3604
    %v3609 = vrot.slane %v3590, 5
    %v3610 = vsel %vm1038, %v3609, %v3595
    %3612 = vmatprep.subr.mxu0 %v497
    %3613 = vmatpush1.msra.mxu0 %v496
    %3614 = vmatprep.subr.mxu0 %v500
    %3615 = vmatpush1.msra.mxu0 %v499
    %3616 = vmatprep.subr.mxu0 %v503
    %3617 = vmatpush1.msra.mxu0 %v502
    %3618 = vmatprep.subr.mxu0 %v506
    %3619 = vmatpush1.msra.mxu0 %v505
    %3620 = vmatprep.subr.mxu0 %v509
    %3621 = vmatpush1.msra.mxu0 %v508
    %3622 = vmatprep.subr.mxu0 %v512
    %3623 = vmatpush1.msra.mxu0 %v511
    %3624 = vmatprep.subr.mxu0 %v515
    %3625 = vmatpush1.msra.mxu0 %v514
    %3626 = vmatprep.subr.mxu0 %v518
    %3627 = vmatpush1.msra.mxu0 %v517
    %3628 = vmatprep.subr.mxu0 %v521
    %3629 = vmatpush1.msra.mxu0 %v520
    %3630 = vmatprep.subr.mxu0 %v524
    %3631 = vmatpush1.msra.mxu0 %v523
    %3632 = vmatprep.subr.mxu0 %v527
    %3633 = vmatpush1.msra.mxu0 %v526
    %3634 = vmatprep.subr.mxu0 %v530
    %3635 = vmatpush1.msra.mxu0 %v529
    %3636 = vmatprep.subr.mxu0 %v533
    %3637 = vmatpush1.msra.mxu0 %v532
    %3638 = vmatprep.subr.mxu0 %v536
    %3639 = vmatpush1.msra.mxu0 %v535
    %3640 = vmatprep.subr.mxu0 %v539
    %3641 = vmatpush1.msra.mxu0 %v538
    %3642 = vmatprep.subr.mxu0 %v542
    %3643 = vmatpush1.msra.mxu0 %v541
    %3644 = vmatprep.subr.mxu0 0.0
    %3645 = vmatpush1.msra.mxu0 0.0
    %3646 = vmatprep.subr.mxu0 0.0
    %3647 = vmatpush1.msra.mxu0 0.0
    %3648 = vmatprep.subr.mxu0 0.0
    %3649 = vmatpush1.msra.mxu0 0.0
    %3650 = vmatprep.subr.mxu0 0.0
    %3651 = vmatpush1.msra.mxu0 0.0
    %3652 = vmatprep.subr.mxu0 0.0
    %3653 = vmatpush1.msra.mxu0 0.0
    %3654 = vmatprep.subr.mxu0 0.0
    %3655 = vmatpush1.msra.mxu0 0.0
    %3656 = vmatprep.subr.mxu0 0.0
    %3657 = vmatpush1.msra.mxu0 0.0
    %3658 = vmatprep.subr.mxu0 0.0
    %3659 = vmatpush1.msra.mxu0 0.0
    %3660 = vmatprep.subr.mxu0 0.0
    %3661 = vmatpush1.msra.mxu0 0.0
    %3662 = vmatprep.subr.mxu0 0.0
    %3663 = vmatpush1.msra.mxu0 0.0
    %3664 = vmatprep.subr.mxu0 0.0
    %3665 = vmatpush1.msra.mxu0 0.0
    %3666 = vmatprep.subr.mxu0 0.0
    %3667 = vmatpush1.msra.mxu0 0.0
    %3668 = vmatprep.subr.mxu0 0.0
    %3669 = vmatpush1.msra.mxu0 0.0
    %3670 = vmatprep.subr.mxu0 0.0
    %3671 = vmatpush1.msra.mxu0 0.0
    %3672 = vmatprep.subr.mxu0 0.0
    %3673 = vmatpush1.msra.mxu0 0.0
    %3674 = vmatprep.subr.mxu0 0.0
    %3675 = vmatpush1.msra.mxu0 0.0
    %3676 = vmatprep.mubr.f32.mxu0 0.0
    %3677 = vmatmul.mubr.f32.gmra.mrb[0].mxu0 %v3610
    %v3678 = vpop.f32.mrb[0].mxu0
    %v3679 = vadd.f32 %v600, %v3678
    %v3680 = vpop.f32.mrb[0].mxu0
    %v3681 = vadd.f32 %v604, %v3680
    %3682 = vdwg.mxu0
    %3683 = vmatprep.subr.mxu0 0.0
    %3684 = vmatpush1.msra.mxu0 %v498
    %3685 = vmatprep.subr.mxu0 0.0
    %3686 = vmatpush1.msra.mxu0 %v501
    %3687 = vmatprep.subr.mxu0 0.0
    %3688 = vmatpush1.msra.mxu0 %v504
    %3689 = vmatprep.subr.mxu0 0.0
    %3690 = vmatpush1.msra.mxu0 %v507
    %3691 = vmatprep.subr.mxu0 0.0
    %3692 = vmatpush1.msra.mxu0 %v510
    %3693 = vmatprep.subr.mxu0 0.0
    %3694 = vmatpush1.msra.mxu0 %v513
    %3695 = vmatprep.subr.mxu0 0.0
    %3696 = vmatpush1.msra.mxu0 %v516
    %3697 = vmatprep.subr.mxu0 0.0
    %3698 = vmatpush1.msra.mxu0 %v519
    %3699 = vmatprep.subr.mxu0 0.0
    %3700 = vmatpush1.msra.mxu0 %v522
    %3701 = vmatprep.subr.mxu0 0.0
    %3702 = vmatpush1.msra.mxu0 %v525
    %3703 = vmatprep.subr.mxu0 0.0
    %3704 = vmatpush1.msra.mxu0 %v528
    %3705 = vmatprep.subr.mxu0 0.0
    %3706 = vmatpush1.msra.mxu0 %v531
    %3707 = vmatprep.subr.mxu0 0.0
    %3708 = vmatpush1.msra.mxu0 %v534
    %3709 = vmatprep.subr.mxu0 0.0
    %3710 = vmatpush1.msra.mxu0 %v537
    %3711 = vmatprep.subr.mxu0 0.0
    %3712 = vmatpush1.msra.mxu0 %v540
    %3713 = vmatprep.subr.mxu0 0.0
    %3714 = vmatpush1.msra.mxu0 %v543
    %3715 = vmatprep.subr.mxu0 0.0
    %3716 = vmatpush1.msra.mxu0 0.0
    %3717 = vmatprep.subr.mxu0 0.0
    %3718 = vmatpush1.msra.mxu0 0.0
    %3719 = vmatprep.subr.mxu0 0.0
    %3720 = vmatpush1.msra.mxu0 0.0
    %3721 = vmatprep.subr.mxu0 0.0
    %3722 = vmatpush1.msra.mxu0 0.0
    %3723 = vmatprep.subr.mxu0 0.0
    %3724 = vmatpush1.msra.mxu0 0.0
    %3725 = vmatprep.subr.mxu0 0.0
    %3726 = vmatpush1.msra.mxu0 0.0
    %3727 = vmatprep.subr.mxu0 0.0
    %3728 = vmatpush1.msra.mxu0 0.0
    %3729 = vmatprep.subr.mxu0 0.0
    %3730 = vmatpush1.msra.mxu0 0.0
    %3731 = vmatprep.subr.mxu0 0.0
    %3732 = vmatpush1.msra.mxu0 0.0
    %3733 = vmatprep.subr.mxu0 0.0
    %3734 = vmatpush1.msra.mxu0 0.0
    %3735 = vmatprep.subr.mxu0 0.0
    %3736 = vmatpush1.msra.mxu0 0.0
    %3737 = vmatprep.subr.mxu0 0.0
    %3738 = vmatpush1.msra.mxu0 0.0
    %3739 = vmatprep.subr.mxu0 0.0
    %3740 = vmatpush1.msra.mxu0 0.0
    %3741 = vmatprep.subr.mxu0 0.0
    %3742 = vmatpush1.msra.mxu0 0.0
    %3743 = vmatprep.subr.mxu0 0.0
    %3744 = vmatpush1.msra.mxu0 0.0
    %3745 = vmatprep.subr.mxu0 0.0
    %3746 = vmatpush1.msra.mxu0 0.0
    %3747 = vmatprep.mubr.f32.mxu0 0.0
    %3748 = vmatmul.mubr.f32.gmra.mrb[0].mxu0 %v3610
    %v3749 = vpop.f32.mrb[0].mxu0
    %v3750 = vadd.f32 %v608, %v3749
    %v3751 = vpop.f32.mrb[0].mxu0
    %3752 = vdwg.mxu0
    %v3754 = vrot.slane %v3679, 1
    %v3755 = vrot.slane %v3679, 2
    %v3758 = vadd.f32 %v234, %v3754
    %v3759 = vadd.f32 %v240, %v3755
    %v3760 = vxor.u32 %v3758, 2147483648
    %v3761 = vxor.u32 %v3759, 2147483648
    %v3762 = vmul.f32 %v3760, 1.442695
    %v3763 = vpow.pop %v3762
    %v3764 = vmul.f32 %v3761, 1.442695
    %v3765 = vpow.pop %v3764
    %v3766 = vadd.f32 %v3763, 1.0
    %v3767 = vadd.f32 %v3765, 1.0
    %v3768 = vrcp.pop %v3766
    %v3769 = vmul.f32 1.0, %v3768
    %v3770 = vrcp.pop %v3767
    %v3771 = vmul.f32 1.0, %v3770
    %v3773 = vrot.slane %v3681, 1
    %v3774 = vrot.slane %v3681, 2
    %v3777 = vadd.f32 %v236, %v3773
    %v3778 = vadd.f32 %v242, %v3774
    %v3779 = vxor.u32 %v3777, 2147483648
    %v3780 = vxor.u32 %v3778, 2147483648
    %v3781 = vmul.f32 %v3779, 1.442695
    %v3782 = vpow.pop %v3781
    %v3783 = vmul.f32 %v3780, 1.442695
    %v3784 = vpow.pop %v3783
    %v3785 = vadd.f32 %v3782, 1.0
    %v3786 = vadd.f32 %v3784, 1.0
    %v3787 = vrcp.pop %v3785
    %v3788 = vmul.f32 1.0, %v3787
    %v3789 = vrcp.pop %v3786
    %v3790 = vmul.f32 1.0, %v3789
    %v3792 = vrot.slane %v3750, 1
    %v3793 = vrot.slane %v3750, 2
    %v3796 = vmul.f32 %v3769, %v3792
    %v3797 = vmul.f32 %v3771, %v3793
    %v3798 = vadd.f32 %v311, %v3796
    %v3799 = vadd.f32 %v316, %v3797
    %v3800 = vtanh.pop %v3798
    %v3801 = vtanh.pop %v3799
    %v3802 = vsub.f32 1.0, %v3788
    %v3803 = vsub.f32 1.0, %v3790
    %v3804 = vmul.f32 %v3802, %v3800
    %v3805 = vmul.f32 %v3803, %v3801
    %v3806 = vrot.slane %v3589, 7
    %v3807 = vrot.slane %v3590, 7
    %v3810 = vmul.f32 %v3788, %v3806
    %v3811 = vmul.f32 %v3790, %v3807
    %v3812 = vadd.f32 %v3804, %v3810
    %v3813 = vadd.f32 %v3805, %v3811
    %v3814 = vsel %vm1038, %v3592, %v3603
    %3816 = vmatprep.subr.mxu0 %v546
    %3817 = vmatpush1.msra.mxu0 %v545
    %3818 = vmatprep.subr.mxu0 %v549
    %3819 = vmatpush1.msra.mxu0 %v548
    %3820 = vmatprep.subr.mxu0 %v552
    %3821 = vmatpush1.msra.mxu0 %v551
    %3822 = vmatprep.subr.mxu0 %v555
    %3823 = vmatpush1.msra.mxu0 %v554
    %3824 = vmatprep.subr.mxu0 %v558
    %3825 = vmatpush1.msra.mxu0 %v557
    %3826 = vmatprep.subr.mxu0 %v561
    %3827 = vmatpush1.msra.mxu0 %v560
    %3828 = vmatprep.subr.mxu0 %v564
    %3829 = vmatpush1.msra.mxu0 %v563
    %3830 = vmatprep.subr.mxu0 %v567
    %3831 = vmatpush1.msra.mxu0 %v566
    %3832 = vmatprep.subr.mxu0 %v570
    %3833 = vmatpush1.msra.mxu0 %v569
    %3834 = vmatprep.subr.mxu0 %v573
    %3835 = vmatpush1.msra.mxu0 %v572
    %3836 = vmatprep.subr.mxu0 %v576
    %3837 = vmatpush1.msra.mxu0 %v575
    %3838 = vmatprep.subr.mxu0 %v579
    %3839 = vmatpush1.msra.mxu0 %v578
    %3840 = vmatprep.subr.mxu0 %v582
    %3841 = vmatpush1.msra.mxu0 %v581
    %3842 = vmatprep.subr.mxu0 %v585
    %3843 = vmatpush1.msra.mxu0 %v584
    %3844 = vmatprep.subr.mxu0 %v588
    %3845 = vmatpush1.msra.mxu0 %v587
    %3846 = vmatprep.subr.mxu0 %v591
    %3847 = vmatpush1.msra.mxu0 %v590
    %3848 = vmatprep.subr.mxu0 0.0
    %3849 = vmatpush1.msra.mxu0 0.0
    %3850 = vmatprep.subr.mxu0 0.0
    %3851 = vmatpush1.msra.mxu0 0.0
    %3852 = vmatprep.subr.mxu0 0.0
    %3853 = vmatpush1.msra.mxu0 0.0
    %3854 = vmatprep.subr.mxu0 0.0
    %3855 = vmatpush1.msra.mxu0 0.0
    %3856 = vmatprep.subr.mxu0 0.0
    %3857 = vmatpush1.msra.mxu0 0.0
    %3858 = vmatprep.subr.mxu0 0.0
    %3859 = vmatpush1.msra.mxu0 0.0
    %3860 = vmatprep.subr.mxu0 0.0
    %3861 = vmatpush1.msra.mxu0 0.0
    %3862 = vmatprep.subr.mxu0 0.0
    %3863 = vmatpush1.msra.mxu0 0.0
    %3864 = vmatprep.subr.mxu0 0.0
    %3865 = vmatpush1.msra.mxu0 0.0
    %3866 = vmatprep.subr.mxu0 0.0
    %3867 = vmatpush1.msra.mxu0 0.0
    %3868 = vmatprep.subr.mxu0 0.0
    %3869 = vmatpush1.msra.mxu0 0.0
    %3870 = vmatprep.subr.mxu0 0.0
    %3871 = vmatpush1.msra.mxu0 0.0
    %3872 = vmatprep.subr.mxu0 0.0
    %3873 = vmatpush1.msra.mxu0 0.0
    %3874 = vmatprep.subr.mxu0 0.0
    %3875 = vmatpush1.msra.mxu0 0.0
    %3876 = vmatprep.subr.mxu0 0.0
    %3877 = vmatpush1.msra.mxu0 0.0
    %3878 = vmatprep.subr.mxu0 0.0
    %3879 = vmatpush1.msra.mxu0 0.0
    %3880 = vmatprep.mubr.f32.mxu0 0.0
    %3881 = vmatmul.mubr.f32.gmra.mrb[0].mxu0 %v3814
    %v3882 = vpop.f32.mrb[0].mxu0
    %v3883 = vadd.f32 %v811, %v3882
    %v3884 = vpop.f32.mrb[0].mxu0
    %v3885 = vadd.f32 %v815, %v3884
    %3886 = vdwg.mxu0
    %3887 = vmatprep.subr.mxu0 0.0
    %3888 = vmatpush1.msra.mxu0 %v547
    %3889 = vmatprep.subr.mxu0 0.0
    %3890 = vmatpush1.msra.mxu0 %v550
    %3891 = vmatprep.subr.mxu0 0.0
    %3892 = vmatpush1.msra.mxu0 %v553
    %3893 = vmatprep.subr.mxu0 0.0
    %3894 = vmatpush1.msra.mxu0 %v556
    %3895 = vmatprep.subr.mxu0 0.0
    %3896 = vmatpush1.msra.mxu0 %v559
    %3897 = vmatprep.subr.mxu0 0.0
    %3898 = vmatpush1.msra.mxu0 %v562
    %3899 = vmatprep.subr.mxu0 0.0
    %3900 = vmatpush1.msra.mxu0 %v565
    %3901 = vmatprep.subr.mxu0 0.0
    %3902 = vmatpush1.msra.mxu0 %v568
    %3903 = vmatprep.subr.mxu0 0.0
    %3904 = vmatpush1.msra.mxu0 %v571
    %3905 = vmatprep.subr.mxu0 0.0
    %3906 = vmatpush1.msra.mxu0 %v574
    %3907 = vmatprep.subr.mxu0 0.0
    %3908 = vmatpush1.msra.mxu0 %v577
    %3909 = vmatprep.subr.mxu0 0.0
    %3910 = vmatpush1.msra.mxu0 %v580
    %3911 = vmatprep.subr.mxu0 0.0
    %3912 = vmatpush1.msra.mxu0 %v583
    %3913 = vmatprep.subr.mxu0 0.0
    %3914 = vmatpush1.msra.mxu0 %v586
    %3915 = vmatprep.subr.mxu0 0.0
    %3916 = vmatpush1.msra.mxu0 %v589
    %3917 = vmatprep.subr.mxu0 0.0
    %3918 = vmatpush1.msra.mxu0 %v592
    %3919 = vmatprep.subr.mxu0 0.0
    %3920 = vmatpush1.msra.mxu0 0.0
    %3921 = vmatprep.subr.mxu0 0.0
    %3922 = vmatpush1.msra.mxu0 0.0
    %3923 = vmatprep.subr.mxu0 0.0
    %3924 = vmatpush1.msra.mxu0 0.0
    %3925 = vmatprep.subr.mxu0 0.0
    %3926 = vmatpush1.msra.mxu0 0.0
    %3927 = vmatprep.subr.mxu0 0.0
    %3928 = vmatpush1.msra.mxu0 0.0
    %3929 = vmatprep.subr.mxu0 0.0
    %3930 = vmatpush1.msra.mxu0 0.0
    %3931 = vmatprep.subr.mxu0 0.0
    %3932 = vmatpush1.msra.mxu0 0.0
    %3933 = vmatprep.subr.mxu0 0.0
    %3934 = vmatpush1.msra.mxu0 0.0
    %3935 = vmatprep.subr.mxu0 0.0
    %3936 = vmatpush1.msra.mxu0 0.0
    %3937 = vmatprep.subr.mxu0 0.0
    %3938 = vmatpush1.msra.mxu0 0.0
    %3939 = vmatprep.subr.mxu0 0.0
    %3940 = vmatpush1.msra.mxu0 0.0
    %3941 = vmatprep.subr.mxu0 0.0
    %3942 = vmatpush1.msra.mxu0 0.0
    %3943 = vmatprep.subr.mxu0 0.0
    %3944 = vmatpush1.msra.mxu0 0.0
    %3945 = vmatprep.subr.mxu0 0.0
    %3946 = vmatpush1.msra.mxu0 0.0
    %3947 = vmatprep.subr.mxu0 0.0
    %3948 = vmatpush1.msra.mxu0 0.0
    %3949 = vmatprep.subr.mxu0 0.0
    %3950 = vmatpush1.msra.mxu0 0.0
    %3951 = vmatprep.mubr.f32.mxu0 0.0
    %3952 = vmatmul.mubr.f32.gmra.mrb[0].mxu0 %v3814
    %v3953 = vpop.f32.mrb[0].mxu0
    %v3954 = vadd.f32 %v819, %v3953
    %v3955 = vpop.f32.mrb[0].mxu0
    %3956 = vdwg.mxu0
    %v3958 = vrot.slane %v3883, 1
    %v3961 = vadd.f32 %v411, %v3883
    %v3962 = vadd.f32 %v417, %v3958
    %v3963 = vxor.u32 %v3961, 2147483648
    %v3964 = vxor.u32 %v3962, 2147483648
    %v3965 = vmul.f32 %v3963, 1.442695
    %v3966 = vpow.pop %v3965
    %v3967 = vmul.f32 %v3964, 1.442695
    %v3968 = vpow.pop %v3967
    %v3969 = vadd.f32 %v3966, 1.0
    %v3970 = vadd.f32 %v3968, 1.0
    %v3971 = vrcp.pop %v3969
    %v3972 = vmul.f32 1.0, %v3971
    %v3973 = vrcp.pop %v3970
    %v3974 = vmul.f32 1.0, %v3973
    %v3976 = vrot.slane %v3885, 1
    %v3979 = vadd.f32 %v413, %v3885
    %v3980 = vadd.f32 %v419, %v3976
    %v3981 = vxor.u32 %v3979, 2147483648
    %v3982 = vxor.u32 %v3980, 2147483648
    %v3983 = vmul.f32 %v3981, 1.442695
    %v3984 = vpow.pop %v3983
    %v3985 = vmul.f32 %v3982, 1.442695
    %v3986 = vpow.pop %v3985
    %v3987 = vadd.f32 %v3984, 1.0
    %v3988 = vadd.f32 %v3986, 1.0
    %v3989 = vrcp.pop %v3987
    %v3990 = vmul.f32 1.0, %v3989
    %v3991 = vrcp.pop %v3988
    %v3992 = vmul.f32 1.0, %v3991
    %v3994 = vrot.slane %v3954, 1
    %v3997 = vmul.f32 %v3972, %v3954
    %v3998 = vmul.f32 %v3974, %v3994
    %v3999 = vadd.f32 %v488, %v3997
    %v4000 = vadd.f32 %v493, %v3998
    %v4001 = vtanh.pop %v3999
    %v4002 = vtanh.pop %v4000
    %v4003 = vsub.f32 1.0, %v3990
    %v4004 = vsub.f32 1.0, %v3992
    %v4005 = vmul.f32 %v4003, %v4001
    %v4006 = vmul.f32 %v4004, %v4002
    %v4007 = vmul.f32 %v3990, %v3603
    %v4008 = vmul.f32 %v3992, %v3604
    %v4009 = vadd.f32 %v4005, %v4007
    %v4010 = vadd.f32 %v4006, %v4008
    %v4011 = vsel %vm131, %v3812, %v3806
    %v4012 = vsel %vm132, %v3813, %v3807
    %v4013 = vsel %vm131, %v4009, %v3603
    %v4014 = vsel %vm132, %v4010, %v3604
    %v4017 = vrot.slane %v4011, 7
    %v4018 = vrot.slane %v4012, 7
    %4021 = vst [vmem:[#allocation2 + $0x7] sm:$0x1] %v4017
    %4022 = vst [vmem:[#allocation2 + $0x17] sm:$0x1] %v4018
    %4023 = vst [vmem:[#allocation2 + $0x8] sm:$0x1] %v4013
    %4024 = vst [vmem:[#allocation2 + $0x18] sm:$0x1] %v4014
    %v4025 = vld [vmem:[#allocation2] sm:$0xff]
    %v4026 = vld [vmem:[#allocation2 + $0x8] sm:$0xff]
    %v4027 = vld [vmem:[#allocation2 + $0x10] sm:$0xff]
    %v4028 = vld [vmem:[#allocation2 + $0x18] sm:$0xff]
    %s4029 = scalar_lea.vmem [#allocation7], 1536
    %v4030 = vld [vmem:[%s4029] sm:$0xff]
    %v4031 = vld [vmem:[%s4029 + $0x8] sm:$0xff]
    %v4032 = vld [vmem:[%s4029 + $0x10] sm:$0xff]
    %v4033 = vld [vmem:[%s4029 + $0x18] sm:$0xff]
    %v4034 = vld [vmem:[%s4029 + $0x20] sm:$0xff]
    %v4035 = vld [vmem:[%s4029 + $0x28] sm:$0xff]
    %v4036 = vld [vmem:[%s4029 + $0x30] sm:$0xff]
    %v4037 = vld [vmem:[%s4029 + $0x38] sm:$0xff]
    %v4038 = vld [vmem:[%s4029 + $0x40] sm:$0xff]
    %v4039 = vld [vmem:[%s4029 + $0x48] sm:$0xff]
    %v4040 = vld [vmem:[%s4029 + $0x50] sm:$0xff]
    %v4041 = vld [vmem:[%s4029 + $0x58] sm:$0xff]
    %v4042 = vld [vmem:[%s4029 + $0x60] sm:$0xff]
    %v4043 = vld [vmem:[%s4029 + $0x68] sm:$0xff]
    %v4044 = vld [vmem:[%s4029 + $0x70] sm:$0xff]
    %v4045 = vld [vmem:[%s4029 + $0x78] sm:$0xff]
    %v4046 = vld [vmem:[%s4029 + $0x80] sm:$0xff]
    %v4047 = vld [vmem:[%s4029 + $0x88] sm:$0xff]
    %v4048 = vld [vmem:[%s4029 + $0x90] sm:$0xff]
    %v4049 = vld [vmem:[%s4029 + $0x98] sm:$0xff]
    %v4050 = vld [vmem:[%s4029 + $0xa0] sm:$0xff]
    %v4051 = vld [vmem:[%s4029 + $0xa8] sm:$0xff]
    %v4052 = vld [vmem:[%s4029 + $0xb0] sm:$0xff]
    %v4053 = vld [vmem:[%s4029 + $0xb8] sm:$0xff]
    %v4054 = vld [vmem:[%s4029 + $0xc0] sm:$0xff]
    %v4055 = vld [vmem:[%s4029 + $0xc8] sm:$0xff]
    %v4056 = vld [vmem:[%s4029 + $0xd0] sm:$0xff]
    %v4057 = vld [vmem:[%s4029 + $0xd8] sm:$0xff]
    %v4058 = vld [vmem:[%s4029 + $0xe0] sm:$0xff]
    %v4059 = vld [vmem:[%s4029 + $0xe8] sm:$0xff]
    %v4060 = vld [vmem:[%s4029 + $0xf0] sm:$0xff]
    %v4061 = vld [vmem:[%s4029 + $0xf8] sm:$0xff]
    %v4062 = vld [vmem:[%s4029 + $0x100] sm:$0xff]
    %v4063 = vld [vmem:[%s4029 + $0x108] sm:$0xff]
    %v4064 = vld [vmem:[%s4029 + $0x110] sm:$0xff]
    %v4065 = vld [vmem:[%s4029 + $0x118] sm:$0xff]
    %v4066 = vld [vmem:[%s4029 + $0x120] sm:$0xff]
    %v4067 = vld [vmem:[%s4029 + $0x128] sm:$0xff]
    %v4068 = vld [vmem:[%s4029 + $0x130] sm:$0xff]
    %v4069 = vld [vmem:[%s4029 + $0x138] sm:$0xff]
    %v4070 = vld [vmem:[%s4029 + $0x140] sm:$0xff]
    %v4071 = vld [vmem:[%s4029 + $0x148] sm:$0xff]
    %v4072 = vld [vmem:[%s4029 + $0x150] sm:$0xff]
    %v4073 = vld [vmem:[%s4029 + $0x158] sm:$0xff]
    %v4074 = vld [vmem:[%s4029 + $0x160] sm:$0xff]
    %v4075 = vld [vmem:[%s4029 + $0x168] sm:$0xff]
    %v4076 = vld [vmem:[%s4029 + $0x170] sm:$0xff]
    %v4077 = vld [vmem:[%s4029 + $0x178] sm:$0xff]
    %v4078 = vld [vmem:[%s4029 + $0x180] sm:$0xff]
    %v4079 = vld [vmem:[%s4029 + $0x188] sm:$0xff]
    %v4080 = vld [vmem:[%s4029 + $0x190] sm:$0xff]
    %v4081 = vld [vmem:[%s4029 + $0x198] sm:$0xff]
    %v4082 = vld [vmem:[%s4029 + $0x1a0] sm:$0xff]
    %v4083 = vld [vmem:[%s4029 + $0x1a8] sm:$0xff]
    %v4084 = vld [vmem:[%s4029 + $0x1b0] sm:$0xff]
    %v4085 = vld [vmem:[%s4029 + $0x1b8] sm:$0xff]
    %v4086 = vld [vmem:[%s4029 + $0x1c0] sm:$0xff]
    %v4087 = vld [vmem:[%s4029 + $0x1c8] sm:$0xff]
    %v4088 = vld [vmem:[%s4029 + $0x1d0] sm:$0xff]
    %v4089 = vld [vmem:[%s4029 + $0x1d8] sm:$0xff]
    %v4090 = vld [vmem:[%s4029 + $0x1e0] sm:$0xff]
    %v4091 = vld [vmem:[%s4029 + $0x1e8] sm:$0xff]
    %v4092 = vld [vmem:[%s4029 + $0x1f0] sm:$0xff]
    %v4093 = vld [vmem:[%s4029 + $0x1f8] sm:$0xff]
    %v4094 = vld [vmem:[%s4029 + $0x200] sm:$0xff]
    %v4095 = vld [vmem:[%s4029 + $0x208] sm:$0xff]
    %v4096 = vld [vmem:[%s4029 + $0x210] sm:$0xff]
    %v4097 = vld [vmem:[%s4029 + $0x218] sm:$0xff]
    %v4098 = vld [vmem:[%s4029 + $0x220] sm:$0xff]
    %v4099 = vld [vmem:[%s4029 + $0x228] sm:$0xff]
    %v4100 = vld [vmem:[%s4029 + $0x230] sm:$0xff]
    %v4101 = vld [vmem:[%s4029 + $0x238] sm:$0xff]
    %v4102 = vld [vmem:[%s4029 + $0x240] sm:$0xff]
    %v4103 = vld [vmem:[%s4029 + $0x248] sm:$0xff]
    %v4104 = vld [vmem:[%s4029 + $0x250] sm:$0xff]
    %v4105 = vld [vmem:[%s4029 + $0x258] sm:$0xff]
    %v4106 = vld [vmem:[%s4029 + $0x260] sm:$0xff]
    %v4107 = vld [vmem:[%s4029 + $0x268] sm:$0xff]
    %v4108 = vld [vmem:[%s4029 + $0x270] sm:$0xff]
    %v4109 = vld [vmem:[%s4029 + $0x278] sm:$0xff]
    %v4110 = vld [vmem:[%s4029 + $0x280] sm:$0xff]
    %v4111 = vld [vmem:[%s4029 + $0x288] sm:$0xff]
    %v4112 = vld [vmem:[%s4029 + $0x290] sm:$0xff]
    %v4113 = vld [vmem:[%s4029 + $0x298] sm:$0xff]
    %v4114 = vld [vmem:[%s4029 + $0x2a0] sm:$0xff]
    %v4115 = vld [vmem:[%s4029 + $0x2a8] sm:$0xff]
    %v4116 = vld [vmem:[%s4029 + $0x2b0] sm:$0xff]
    %v4117 = vld [vmem:[%s4029 + $0x2b8] sm:$0xff]
    %v4118 = vld [vmem:[%s4029 + $0x2c0] sm:$0xff]
    %v4119 = vld [vmem:[%s4029 + $0x2c8] sm:$0xff]
    %v4120 = vld [vmem:[%s4029 + $0x2d0] sm:$0xff]
    %v4121 = vld [vmem:[%s4029 + $0x2d8] sm:$0xff]
    %v4122 = vld [vmem:[%s4029 + $0x2e0] sm:$0xff]
    %v4123 = vld [vmem:[%s4029 + $0x2e8] sm:$0xff]
    %v4124 = vld [vmem:[%s4029 + $0x2f0] sm:$0xff]
    %v4125 = vld [vmem:[%s4029 + $0x2f8] sm:$0xff]
    %s4126 = scalar_lea.vmem [#allocation10], 6
    %v4127 = vld [vmem:[%s4126] sm:$0x7]
    %v4129 = vlaneseq
    %v4130 = vshrl.u32 %v4129, 7
    %v4131 = vsub.s32 0, %v4130
    %v4132 = vrot.slane %v4127, %v4131
    %v4133 = vlaneseq
    %v4134 = vshrl.u32 %v4133, 7
    %v4135 = vsub.s32 1, %v4134
    %v4136 = vrot.slane %v4127, %v4135
    %v4137 = vlaneseq
    %v4138 = vshrl.u32 %v4137, 7
    %v4139 = vsub.s32 2, %v4138
    %v4140 = vrot.slane %v4127, %v4139
    %4144 = vmatprep.subr.mxu0 %v4031
    %4145 = vmatpush1.msra.mxu0 %v4030
    %4146 = vmatprep.subr.mxu0 %v4034
    %4147 = vmatpush1.msra.mxu0 %v4033
    %4148 = vmatprep.subr.mxu0 %v4037
    %4149 = vmatpush1.msra.mxu0 %v4036
    %4150 = vmatprep.subr.mxu0 %v4040
    %4151 = vmatpush1.msra.mxu0 %v4039
    %4152 = vmatprep.subr.mxu0 %v4043
    %4153 = vmatpush1.msra.mxu0 %v4042
    %4154 = vmatprep.subr.mxu0 %v4046
    %4155 = vmatpush1.msra.mxu0 %v4045
    %4156 = vmatprep.subr.mxu0 %v4049
    %4157 = vmatpush1.msra.mxu0 %v4048
    %4158 = vmatprep.subr.mxu0 %v4052
    %4159 = vmatpush1.msra.mxu0 %v4051
    %4160 = vmatprep.subr.mxu0 %v4055
    %4161 = vmatpush1.msra.mxu0 %v4054
    %4162 = vmatprep.subr.mxu0 %v4058
    %4163 = vmatpush1.msra.mxu0 %v4057
    %4164 = vmatprep.subr.mxu0 %v4061
    %4165 = vmatpush1.msra.mxu0 %v4060
    %4166 = vmatprep.subr.mxu0 %v4064
    %4167 = vmatpush1.msra.mxu0 %v4063
    %4168 = vmatprep.subr.mxu0 %v4067
    %4169 = vmatpush1.msra.mxu0 %v4066
    %4170 = vmatprep.subr.mxu0 %v4070
    %4171 = vmatpush1.msra.mxu0 %v4069
    %4172 = vmatprep.subr.mxu0 %v4073
    %4173 = vmatpush1.msra.mxu0 %v4072
    %4174 = vmatprep.subr.mxu0 %v4076
    %4175 = vmatpush1.msra.mxu0 %v4075
    %4176 = vmatprep.subr.mxu0 %v4079
    %4177 = vmatpush1.msra.mxu0 %v4078
    %4178 = vmatprep.subr.mxu0 %v4082
    %4179 = vmatpush1.msra.mxu0 %v4081
    %4180 = vmatprep.subr.mxu0 %v4085
    %4181 = vmatpush1.msra.mxu0 %v4084
    %4182 = vmatprep.subr.mxu0 %v4088
    %4183 = vmatpush1.msra.mxu0 %v4087
    %4184 = vmatprep.subr.mxu0 %v4091
    %4185 = vmatpush1.msra.mxu0 %v4090
    %4186 = vmatprep.subr.mxu0 %v4094
    %4187 = vmatpush1.msra.mxu0 %v4093
    %4188 = vmatprep.subr.mxu0 %v4097
    %4189 = vmatpush1.msra.mxu0 %v4096
    %4190 = vmatprep.subr.mxu0 %v4100
    %4191 = vmatpush1.msra.mxu0 %v4099
    %4192 = vmatprep.subr.mxu0 %v4103
    %4193 = vmatpush1.msra.mxu0 %v4102
    %4194 = vmatprep.subr.mxu0 %v4106
    %4195 = vmatpush1.msra.mxu0 %v4105
    %4196 = vmatprep.subr.mxu0 %v4109
    %4197 = vmatpush1.msra.mxu0 %v4108
    %4198 = vmatprep.subr.mxu0 %v4112
    %4199 = vmatpush1.msra.mxu0 %v4111
    %4200 = vmatprep.subr.mxu0 %v4115
    %4201 = vmatpush1.msra.mxu0 %v4114
    %4202 = vmatprep.subr.mxu0 %v4118
    %4203 = vmatpush1.msra.mxu0 %v4117
    %4204 = vmatprep.subr.mxu0 %v4121
    %4205 = vmatpush1.msra.mxu0 %v4120
    %4206 = vmatprep.subr.mxu0 %v4124
    %4207 = vmatpush1.msra.mxu0 %v4123
    %4208 = vmatprep.mubr.f32.mxu0 %v4026
    %4209 = vmatmul.mubr.f32.gmra.mrb[0].mxu0 %v4025
    %v4210 = vpop.f32.mrb[0].mxu0
    %v4211 = vadd.f32 %v4132, %v4210
    %v4212 = vpop.f32.mrb[0].mxu0
    %v4213 = vadd.f32 %v4136, %v4212
    %4214 = vmatprep.mubr.f32.mxu0 %v4028
    %4215 = vmatmul.mubr.f32.gmra.mrb[0].mxu0 %v4027
    %v4216 = vpop.f32.mrb[0].mxu0
    %v4217 = vadd.f32 %v4132, %v4216
    %v4218 = vpop.f32.mrb[0].mxu0
    %v4219 = vadd.f32 %v4136, %v4218
    %4220 = vdwg.mxu0
    %4221 = vmatprep.subr.mxu0 0.0
    %4222 = vmatpush1.msra.mxu0 %v4032
    %4223 = vmatprep.subr.mxu0 0.0
    %4224 = vmatpush1.msra.mxu0 %v4035
    %4225 = vmatprep.subr.mxu0 0.0
    %4226 = vmatpush1.msra.mxu0 %v4038
    %4227 = vmatprep.subr.mxu0 0.0
    %4228 = vmatpush1.msra.mxu0 %v4041
    %4229 = vmatprep.subr.mxu0 0.0
    %4230 = vmatpush1.msra.mxu0 %v4044
    %4231 = vmatprep.subr.mxu0 0.0
    %4232 = vmatpush1.msra.mxu0 %v4047
    %4233 = vmatprep.subr.mxu0 0.0
    %4234 = vmatpush1.msra.mxu0 %v4050
    %4235 = vmatprep.subr.mxu0 0.0
    %4236 = vmatpush1.msra.mxu0 %v4053
    %4237 = vmatprep.subr.mxu0 0.0
    %4238 = vmatpush1.msra.mxu0 %v4056
    %4239 = vmatprep.subr.mxu0 0.0
    %4240 = vmatpush1.msra.mxu0 %v4059
    %4241 = vmatprep.subr.mxu0 0.0
    %4242 = vmatpush1.msra.mxu0 %v4062
    %4243 = vmatprep.subr.mxu0 0.0
    %4244 = vmatpush1.msra.mxu0 %v4065
    %4245 = vmatprep.subr.mxu0 0.0
    %4246 = vmatpush1.msra.mxu0 %v4068
    %4247 = vmatprep.subr.mxu0 0.0
    %4248 = vmatpush1.msra.mxu0 %v4071
    %4249 = vmatprep.subr.mxu0 0.0
    %4250 = vmatpush1.msra.mxu0 %v4074
    %4251 = vmatprep.subr.mxu0 0.0
    %4252 = vmatpush1.msra.mxu0 %v4077
    %4253 = vmatprep.subr.mxu0 0.0
    %4254 = vmatpush1.msra.mxu0 %v4080
    %4255 = vmatprep.subr.mxu0 0.0
    %4256 = vmatpush1.msra.mxu0 %v4083
    %4257 = vmatprep.subr.mxu0 0.0
    %4258 = vmatpush1.msra.mxu0 %v4086
    %4259 = vmatprep.subr.mxu0 0.0
    %4260 = vmatpush1.msra.mxu0 %v4089
    %4261 = vmatprep.subr.mxu0 0.0
    %4262 = vmatpush1.msra.mxu0 %v4092
    %4263 = vmatprep.subr.mxu0 0.0
    %4264 = vmatpush1.msra.mxu0 %v4095
    %4265 = vmatprep.subr.mxu0 0.0
    %4266 = vmatpush1.msra.mxu0 %v4098
    %4267 = vmatprep.subr.mxu0 0.0
    %4268 = vmatpush1.msra.mxu0 %v4101
    %4269 = vmatprep.subr.mxu0 0.0
    %4270 = vmatpush1.msra.mxu0 %v4104
    %4271 = vmatprep.subr.mxu0 0.0
    %4272 = vmatpush1.msra.mxu0 %v4107
    %4273 = vmatprep.subr.mxu0 0.0
    %4274 = vmatpush1.msra.mxu0 %v4110
    %4275 = vmatprep.subr.mxu0 0.0
    %4276 = vmatpush1.msra.mxu0 %v4113
    %4277 = vmatprep.subr.mxu0 0.0
    %4278 = vmatpush1.msra.mxu0 %v4116
    %4279 = vmatprep.subr.mxu0 0.0
    %4280 = vmatpush1.msra.mxu0 %v4119
    %4281 = vmatprep.subr.mxu0 0.0
    %4282 = vmatpush1.msra.mxu0 %v4122
    %4283 = vmatprep.subr.mxu0 0.0
    %4284 = vmatpush1.msra.mxu0 %v4125
    %4285 = vmatprep.mubr.f32.mxu0 %v4026
    %4286 = vmatmul.mubr.f32.gmra.mrb[0].mxu0 %v4025
    %v4287 = vpop.f32.mrb[0].mxu0
    %v4288 = vadd.f32 %v4140, %v4287
    %v4289 = vpop.f32.mrb[0].mxu0
    %4290 = vmatprep.mubr.f32.mxu0 %v4028
    %4291 = vmatmul.mubr.f32.gmra.mrb[0].mxu0 %v4027
    %v4292 = vpop.f32.mrb[0].mxu0
    %v4293 = vadd.f32 %v4140, %v4292
    %v4294 = vpop.f32.mrb[0].mxu0
    %4295 = vdwg.mxu0
    %s4296 = scalar_lea.vmem [#allocation7], 2304
    %v4297 = vld [vmem:[%s4296] sm:$0xff]
    %v4298 = vld [vmem:[%s4296 + $0x8] sm:$0xff]
    %v4299 = vld [vmem:[%s4296 + $0x10] sm:$0xff]
    %v4300 = vld [vmem:[%s4296 + $0x18] sm:$0xff]
    %v4301 = vld [vmem:[%s4296 + $0x20] sm:$0xff]
    %v4302 = vld [vmem:[%s4296 + $0x28] sm:$0xff]
    %v4303 = vld [vmem:[%s4296 + $0x30] sm:$0xff]
    %v4304 = vld [vmem:[%s4296 + $0x38] sm:$0xff]
    %v4305 = vld [vmem:[%s4296 + $0x40] sm:$0xff]
    %v4306 = vld [vmem:[%s4296 + $0x48] sm:$0xff]
    %v4307 = vld [vmem:[%s4296 + $0x50] sm:$0xff]
    %v4308 = vld [vmem:[%s4296 + $0x58] sm:$0xff]
    %v4309 = vld [vmem:[%s4296 + $0x60] sm:$0xff]
    %v4310 = vld [vmem:[%s4296 + $0x68] sm:$0xff]
    %v4311 = vld [vmem:[%s4296 + $0x70] sm:$0xff]
    %v4312 = vld [vmem:[%s4296 + $0x78] sm:$0xff]
    %v4313 = vld [vmem:[%s4296 + $0x80] sm:$0xff]
    %v4314 = vld [vmem:[%s4296 + $0x88] sm:$0xff]
    %v4315 = vld [vmem:[%s4296 + $0x90] sm:$0xff]
    %v4316 = vld [vmem:[%s4296 + $0x98] sm:$0xff]
    %v4317 = vld [vmem:[%s4296 + $0xa0] sm:$0xff]
    %v4318 = vld [vmem:[%s4296 + $0xa8] sm:$0xff]
    %v4319 = vld [vmem:[%s4296 + $0xb0] sm:$0xff]
    %v4320 = vld [vmem:[%s4296 + $0xb8] sm:$0xff]
    %v4321 = vld [vmem:[%s4296 + $0xc0] sm:$0xff]
    %v4322 = vld [vmem:[%s4296 + $0xc8] sm:$0xff]
    %v4323 = vld [vmem:[%s4296 + $0xd0] sm:$0xff]
    %v4324 = vld [vmem:[%s4296 + $0xd8] sm:$0xff]
    %v4325 = vld [vmem:[%s4296 + $0xe0] sm:$0xff]
    %v4326 = vld [vmem:[%s4296 + $0xe8] sm:$0xff]
    %v4327 = vld [vmem:[%s4296 + $0xf0] sm:$0xff]
    %v4328 = vld [vmem:[%s4296 + $0xf8] sm:$0xff]
    %v4329 = vld [vmem:[%s4296 + $0x100] sm:$0xff]
    %v4330 = vld [vmem:[%s4296 + $0x108] sm:$0xff]
    %v4331 = vld [vmem:[%s4296 + $0x110] sm:$0xff]
    %v4332 = vld [vmem:[%s4296 + $0x118] sm:$0xff]
    %v4333 = vld [vmem:[%s4296 + $0x120] sm:$0xff]
    %v4334 = vld [vmem:[%s4296 + $0x128] sm:$0xff]
    %v4335 = vld [vmem:[%s4296 + $0x130] sm:$0xff]
    %v4336 = vld [vmem:[%s4296 + $0x138] sm:$0xff]
    %v4337 = vld [vmem:[%s4296 + $0x140] sm:$0xff]
    %v4338 = vld [vmem:[%s4296 + $0x148] sm:$0xff]
    %v4339 = vld [vmem:[%s4296 + $0x150] sm:$0xff]
    %v4340 = vld [vmem:[%s4296 + $0x158] sm:$0xff]
    %v4341 = vld [vmem:[%s4296 + $0x160] sm:$0xff]
    %v4342 = vld [vmem:[%s4296 + $0x168] sm:$0xff]
    %v4343 = vld [vmem:[%s4296 + $0x170] sm:$0xff]
    %v4344 = vld [vmem:[%s4296 + $0x178] sm:$0xff]
    %v4345 = vld [vmem:[%s4296 + $0x180] sm:$0xff]
    %v4346 = vld [vmem:[%s4296 + $0x188] sm:$0xff]
    %v4347 = vld [vmem:[%s4296 + $0x190] sm:$0xff]
    %v4348 = vld [vmem:[%s4296 + $0x198] sm:$0xff]
    %v4349 = vld [vmem:[%s4296 + $0x1a0] sm:$0xff]
    %v4350 = vld [vmem:[%s4296 + $0x1a8] sm:$0xff]
    %v4351 = vld [vmem:[%s4296 + $0x1b0] sm:$0xff]
    %v4352 = vld [vmem:[%s4296 + $0x1b8] sm:$0xff]
    %v4353 = vld [vmem:[%s4296 + $0x1c0] sm:$0xff]
    %v4354 = vld [vmem:[%s4296 + $0x1c8] sm:$0xff]
    %v4355 = vld [vmem:[%s4296 + $0x1d0] sm:$0xff]
    %v4356 = vld [vmem:[%s4296 + $0x1d8] sm:$0xff]
    %v4357 = vld [vmem:[%s4296 + $0x1e0] sm:$0xff]
    %v4358 = vld [vmem:[%s4296 + $0x1e8] sm:$0xff]
    %v4359 = vld [vmem:[%s4296 + $0x1f0] sm:$0xff]
    %v4360 = vld [vmem:[%s4296 + $0x1f8] sm:$0xff]
    %v4361 = vld [vmem:[%s4296 + $0x200] sm:$0xff]
    %v4362 = vld [vmem:[%s4296 + $0x208] sm:$0xff]
    %v4363 = vld [vmem:[%s4296 + $0x210] sm:$0xff]
    %v4364 = vld [vmem:[%s4296 + $0x218] sm:$0xff]
    %v4365 = vld [vmem:[%s4296 + $0x220] sm:$0xff]
    %v4366 = vld [vmem:[%s4296 + $0x228] sm:$0xff]
    %v4367 = vld [vmem:[%s4296 + $0x230] sm:$0xff]
    %v4368 = vld [vmem:[%s4296 + $0x238] sm:$0xff]
    %v4369 = vld [vmem:[%s4296 + $0x240] sm:$0xff]
    %v4370 = vld [vmem:[%s4296 + $0x248] sm:$0xff]
    %v4371 = vld [vmem:[%s4296 + $0x250] sm:$0xff]
    %v4372 = vld [vmem:[%s4296 + $0x258] sm:$0xff]
    %v4373 = vld [vmem:[%s4296 + $0x260] sm:$0xff]
    %v4374 = vld [vmem:[%s4296 + $0x268] sm:$0xff]
    %v4375 = vld [vmem:[%s4296 + $0x270] sm:$0xff]
    %v4376 = vld [vmem:[%s4296 + $0x278] sm:$0xff]
    %v4377 = vld [vmem:[%s4296 + $0x280] sm:$0xff]
    %v4378 = vld [vmem:[%s4296 + $0x288] sm:$0xff]
    %v4379 = vld [vmem:[%s4296 + $0x290] sm:$0xff]
    %v4380 = vld [vmem:[%s4296 + $0x298] sm:$0xff]
    %v4381 = vld [vmem:[%s4296 + $0x2a0] sm:$0xff]
    %v4382 = vld [vmem:[%s4296 + $0x2a8] sm:$0xff]
    %v4383 = vld [vmem:[%s4296 + $0x2b0] sm:$0xff]
    %v4384 = vld [vmem:[%s4296 + $0x2b8] sm:$0xff]
    %v4385 = vld [vmem:[%s4296 + $0x2c0] sm:$0xff]
    %v4386 = vld [vmem:[%s4296 + $0x2c8] sm:$0xff]
    %v4387 = vld [vmem:[%s4296 + $0x2d0] sm:$0xff]
    %v4388 = vld [vmem:[%s4296 + $0x2d8] sm:$0xff]
    %v4389 = vld [vmem:[%s4296 + $0x2e0] sm:$0xff]
    %v4390 = vld [vmem:[%s4296 + $0x2e8] sm:$0xff]
    %v4391 = vld [vmem:[%s4296 + $0x2f0] sm:$0xff]
    %v4392 = vld [vmem:[%s4296 + $0x2f8] sm:$0xff]
    %s4393 = scalar_lea.vmem [#allocation10], 9
    %v4394 = vld [vmem:[%s4393] sm:$0x7]
    %v4396 = vlaneseq
    %v4397 = vshrl.u32 %v4396, 7
    %v4398 = vsub.s32 0, %v4397
    %v4399 = vrot.slane %v4394, %v4398
    %v4400 = vlaneseq
    %v4401 = vshrl.u32 %v4400, 7
    %v4402 = vsub.s32 1, %v4401
    %v4403 = vrot.slane %v4394, %v4402
    %v4404 = vlaneseq
    %v4405 = vshrl.u32 %v4404, 7
    %v4406 = vsub.s32 2, %v4405
    %v4407 = vrot.slane %v4394, %v4406
    %4411 = vmatprep.subr.mxu0 %v4298
    %4412 = vmatpush1.msra.mxu0 %v4297
    %4413 = vmatprep.subr.mxu0 %v4301
    %4414 = vmatpush1.msra.mxu0 %v4300
    %4415 = vmatprep.subr.mxu0 %v4304
    %4416 = vmatpush1.msra.mxu0 %v4303
    %4417 = vmatprep.subr.mxu0 %v4307
    %4418 = vmatpush1.msra.mxu0 %v4306
    %4419 = vmatprep.subr.mxu0 %v4310
    %4420 = vmatpush1.msra.mxu0 %v4309
    %4421 = vmatprep.subr.mxu0 %v4313
    %4422 = vmatpush1.msra.mxu0 %v4312
    %4423 = vmatprep.subr.mxu0 %v4316
    %4424 = vmatpush1.msra.mxu0 %v4315
    %4425 = vmatprep.subr.mxu0 %v4319
    %4426 = vmatpush1.msra.mxu0 %v4318
    %4427 = vmatprep.subr.mxu0 %v4322
    %4428 = vmatpush1.msra.mxu0 %v4321
    %4429 = vmatprep.subr.mxu0 %v4325
    %4430 = vmatpush1.msra.mxu0 %v4324
    %4431 = vmatprep.subr.mxu0 %v4328
    %4432 = vmatpush1.msra.mxu0 %v4327
    %4433 = vmatprep.subr.mxu0 %v4331
    %4434 = vmatpush1.msra.mxu0 %v4330
    %4435 = vmatprep.subr.mxu0 %v4334
    %4436 = vmatpush1.msra.mxu0 %v4333
    %4437 = vmatprep.subr.mxu0 %v4337
    %4438 = vmatpush1.msra.mxu0 %v4336
    %4439 = vmatprep.subr.mxu0 %v4340
    %4440 = vmatpush1.msra.mxu0 %v4339
    %4441 = vmatprep.subr.mxu0 %v4343
    %4442 = vmatpush1.msra.mxu0 %v4342
    %4443 = vmatprep.subr.mxu0 %v4346
    %4444 = vmatpush1.msra.mxu0 %v4345
    %4445 = vmatprep.subr.mxu0 %v4349
    %4446 = vmatpush1.msra.mxu0 %v4348
    %4447 = vmatprep.subr.mxu0 %v4352
    %4448 = vmatpush1.msra.mxu0 %v4351
    %4449 = vmatprep.subr.mxu0 %v4355
    %4450 = vmatpush1.msra.mxu0 %v4354
    %4451 = vmatprep.subr.mxu0 %v4358
    %4452 = vmatpush1.msra.mxu0 %v4357
    %4453 = vmatprep.subr.mxu0 %v4361
    %4454 = vmatpush1.msra.mxu0 %v4360
    %4455 = vmatprep.subr.mxu0 %v4364
    %4456 = vmatpush1.msra.mxu0 %v4363
    %4457 = vmatprep.subr.mxu0 %v4367
    %4458 = vmatpush1.msra.mxu0 %v4366
    %4459 = vmatprep.subr.mxu0 %v4370
    %4460 = vmatpush1.msra.mxu0 %v4369
    %4461 = vmatprep.subr.mxu0 %v4373
    %4462 = vmatpush1.msra.mxu0 %v4372
    %4463 = vmatprep.subr.mxu0 %v4376
    %4464 = vmatpush1.msra.mxu0 %v4375
    %4465 = vmatprep.subr.mxu0 %v4379
    %4466 = vmatpush1.msra.mxu0 %v4378
    %4467 = vmatprep.subr.mxu0 %v4382
    %4468 = vmatpush1.msra.mxu0 %v4381
    %4469 = vmatprep.subr.mxu0 %v4385
    %4470 = vmatpush1.msra.mxu0 %v4384
    %4471 = vmatprep.subr.mxu0 %v4388
    %4472 = vmatpush1.msra.mxu0 %v4387
    %4473 = vmatprep.subr.mxu0 %v4391
    %4474 = vmatpush1.msra.mxu0 %v4390
    %4475 = vmatprep.mubr.f32.mxu0 %v4026
    %4476 = vmatmul.mubr.f32.gmra.mrb[0].mxu0 %v4025
    %v4477 = vpop.f32.mrb[0].mxu0
    %v4478 = vadd.f32 %v4399, %v4477
    %v4479 = vpop.f32.mrb[0].mxu0
    %v4480 = vadd.f32 %v4403, %v4479
    %4481 = vmatprep.mubr.f32.mxu0 %v4028
    %4482 = vmatmul.mubr.f32.gmra.mrb[0].mxu0 %v4027
    %v4483 = vpop.f32.mrb[0].mxu0
    %v4484 = vadd.f32 %v4399, %v4483
    %v4485 = vpop.f32.mrb[0].mxu0
    %v4486 = vadd.f32 %v4403, %v4485
    %4487 = vdwg.mxu0
    %4488 = vmatprep.subr.mxu0 0.0
    %4489 = vmatpush1.msra.mxu0 %v4299
    %4490 = vmatprep.subr.mxu0 0.0
    %4491 = vmatpush1.msra.mxu0 %v4302
    %4492 = vmatprep.subr.mxu0 0.0
    %4493 = vmatpush1.msra.mxu0 %v4305
    %4494 = vmatprep.subr.mxu0 0.0
    %4495 = vmatpush1.msra.mxu0 %v4308
    %4496 = vmatprep.subr.mxu0 0.0
    %4497 = vmatpush1.msra.mxu0 %v4311
    %4498 = vmatprep.subr.mxu0 0.0
    %4499 = vmatpush1.msra.mxu0 %v4314
    %4500 = vmatprep.subr.mxu0 0.0
    %4501 = vmatpush1.msra.mxu0 %v4317
    %4502 = vmatprep.subr.mxu0 0.0
    %4503 = vmatpush1.msra.mxu0 %v4320
    %4504 = vmatprep.subr.mxu0 0.0
    %4505 = vmatpush1.msra.mxu0 %v4323
    %4506 = vmatprep.subr.mxu0 0.0
    %4507 = vmatpush1.msra.mxu0 %v4326
    %4508 = vmatprep.subr.mxu0 0.0
    %4509 = vmatpush1.msra.mxu0 %v4329
    %4510 = vmatprep.subr.mxu0 0.0
    %4511 = vmatpush1.msra.mxu0 %v4332
    %4512 = vmatprep.subr.mxu0 0.0
    %4513 = vmatpush1.msra.mxu0 %v4335
    %4514 = vmatprep.subr.mxu0 0.0
    %4515 = vmatpush1.msra.mxu0 %v4338
    %4516 = vmatprep.subr.mxu0 0.0
    %4517 = vmatpush1.msra.mxu0 %v4341
    %4518 = vmatprep.subr.mxu0 0.0
    %4519 = vmatpush1.msra.mxu0 %v4344
    %4520 = vmatprep.subr.mxu0 0.0
    %4521 = vmatpush1.msra.mxu0 %v4347
    %4522 = vmatprep.subr.mxu0 0.0
    %4523 = vmatpush1.msra.mxu0 %v4350
    %4524 = vmatprep.subr.mxu0 0.0
    %4525 = vmatpush1.msra.mxu0 %v4353
    %4526 = vmatprep.subr.mxu0 0.0
    %4527 = vmatpush1.msra.mxu0 %v4356
    %4528 = vmatprep.subr.mxu0 0.0
    %4529 = vmatpush1.msra.mxu0 %v4359
    %4530 = vmatprep.subr.mxu0 0.0
    %4531 = vmatpush1.msra.mxu0 %v4362
    %4532 = vmatprep.subr.mxu0 0.0
    %4533 = vmatpush1.msra.mxu0 %v4365
    %4534 = vmatprep.subr.mxu0 0.0
    %4535 = vmatpush1.msra.mxu0 %v4368
    %4536 = vmatprep.subr.mxu0 0.0
    %4537 = vmatpush1.msra.mxu0 %v4371
    %4538 = vmatprep.subr.mxu0 0.0
    %4539 = vmatpush1.msra.mxu0 %v4374
    %4540 = vmatprep.subr.mxu0 0.0
    %4541 = vmatpush1.msra.mxu0 %v4377
    %4542 = vmatprep.subr.mxu0 0.0
    %4543 = vmatpush1.msra.mxu0 %v4380
    %4544 = vmatprep.subr.mxu0 0.0
    %4545 = vmatpush1.msra.mxu0 %v4383
    %4546 = vmatprep.subr.mxu0 0.0
    %4547 = vmatpush1.msra.mxu0 %v4386
    %4548 = vmatprep.subr.mxu0 0.0
    %4549 = vmatpush1.msra.mxu0 %v4389
    %4550 = vmatprep.subr.mxu0 0.0
    %4551 = vmatpush1.msra.mxu0 %v4392
    %4552 = vmatprep.mubr.f32.mxu0 %v4026
    %4553 = vmatmul.mubr.f32.gmra.mrb[0].mxu0 %v4025
    %v4554 = vpop.f32.mrb[0].mxu0
    %v4555 = vadd.f32 %v4407, %v4554
    %v4556 = vpop.f32.mrb[0].mxu0
    %4557 = vmatprep.mubr.f32.mxu0 %v4028
    %4558 = vmatmul.mubr.f32.gmra.mrb[0].mxu0 %v4027
    %v4559 = vpop.f32.mrb[0].mxu0
    %v4560 = vadd.f32 %v4407, %v4559
    %v4561 = vpop.f32.mrb[0].mxu0
    %4562 = vdwg.mxu0
    %s4563 = scalar_lea.vmem [#allocation9], 768
    %v4564 = vld [vmem:[%s4563] sm:$0xff]
    %v4565 = vld [vmem:[%s4563 + $0x8] sm:$0xff]
    %v4566 = vld [vmem:[%s4563 + $0x10] sm:$0xff]
    %v4567 = vld [vmem:[%s4563 + $0x18] sm:$0xff]
    %v4568 = vld [vmem:[%s4563 + $0x20] sm:$0xff]
    %v4569 = vld [vmem:[%s4563 + $0x28] sm:$0xff]
    %v4570 = vld [vmem:[%s4563 + $0x30] sm:$0xff]
    %v4571 = vld [vmem:[%s4563 + $0x38] sm:$0xff]
    %v4572 = vld [vmem:[%s4563 + $0x40] sm:$0xff]
    %v4573 = vld [vmem:[%s4563 + $0x48] sm:$0xff]
    %v4574 = vld [vmem:[%s4563 + $0x50] sm:$0xff]
    %v4575 = vld [vmem:[%s4563 + $0x58] sm:$0xff]
    %v4576 = vld [vmem:[%s4563 + $0x60] sm:$0xff]
    %v4577 = vld [vmem:[%s4563 + $0x68] sm:$0xff]
    %v4578 = vld [vmem:[%s4563 + $0x70] sm:$0xff]
    %v4579 = vld [vmem:[%s4563 + $0x78] sm:$0xff]
    %v4580 = vld [vmem:[%s4563 + $0x80] sm:$0xff]
    %v4581 = vld [vmem:[%s4563 + $0x88] sm:$0xff]
    %v4582 = vld [vmem:[%s4563 + $0x90] sm:$0xff]
    %v4583 = vld [vmem:[%s4563 + $0x98] sm:$0xff]
    %v4584 = vld [vmem:[%s4563 + $0xa0] sm:$0xff]
    %v4585 = vld [vmem:[%s4563 + $0xa8] sm:$0xff]
    %v4586 = vld [vmem:[%s4563 + $0xb0] sm:$0xff]
    %v4587 = vld [vmem:[%s4563 + $0xb8] sm:$0xff]
    %v4588 = vld [vmem:[%s4563 + $0xc0] sm:$0xff]
    %v4589 = vld [vmem:[%s4563 + $0xc8] sm:$0xff]
    %v4590 = vld [vmem:[%s4563 + $0xd0] sm:$0xff]
    %v4591 = vld [vmem:[%s4563 + $0xd8] sm:$0xff]
    %v4592 = vld [vmem:[%s4563 + $0xe0] sm:$0xff]
    %v4593 = vld [vmem:[%s4563 + $0xe8] sm:$0xff]
    %v4594 = vld [vmem:[%s4563 + $0xf0] sm:$0xff]
    %v4595 = vld [vmem:[%s4563 + $0xf8] sm:$0xff]
    %v4596 = vld [vmem:[%s4563 + $0x100] sm:$0xff]
    %v4597 = vld [vmem:[%s4563 + $0x108] sm:$0xff]
    %v4598 = vld [vmem:[%s4563 + $0x110] sm:$0xff]
    %v4599 = vld [vmem:[%s4563 + $0x118] sm:$0xff]
    %v4600 = vld [vmem:[%s4563 + $0x120] sm:$0xff]
    %v4601 = vld [vmem:[%s4563 + $0x128] sm:$0xff]
    %v4602 = vld [vmem:[%s4563 + $0x130] sm:$0xff]
    %v4603 = vld [vmem:[%s4563 + $0x138] sm:$0xff]
    %v4604 = vld [vmem:[%s4563 + $0x140] sm:$0xff]
    %v4605 = vld [vmem:[%s4563 + $0x148] sm:$0xff]
    %v4606 = vld [vmem:[%s4563 + $0x150] sm:$0xff]
    %v4607 = vld [vmem:[%s4563 + $0x158] sm:$0xff]
    %v4608 = vld [vmem:[%s4563 + $0x160] sm:$0xff]
    %v4609 = vld [vmem:[%s4563 + $0x168] sm:$0xff]
    %v4610 = vld [vmem:[%s4563 + $0x170] sm:$0xff]
    %v4611 = vld [vmem:[%s4563 + $0x178] sm:$0xff]
    %s4612 = scalar_lea.vmem [#allocation9], 1152
    %v4613 = vld [vmem:[%s4612] sm:$0xff]
    %v4614 = vld [vmem:[%s4612 + $0x8] sm:$0xff]
    %v4615 = vld [vmem:[%s4612 + $0x10] sm:$0xff]
    %v4616 = vld [vmem:[%s4612 + $0x18] sm:$0xff]
    %v4617 = vld [vmem:[%s4612 + $0x20] sm:$0xff]
    %v4618 = vld [vmem:[%s4612 + $0x28] sm:$0xff]
    %v4619 = vld [vmem:[%s4612 + $0x30] sm:$0xff]
    %v4620 = vld [vmem:[%s4612 + $0x38] sm:$0xff]
    %v4621 = vld [vmem:[%s4612 + $0x40] sm:$0xff]
    %v4622 = vld [vmem:[%s4612 + $0x48] sm:$0xff]
    %v4623 = vld [vmem:[%s4612 + $0x50] sm:$0xff]
    %v4624 = vld [vmem:[%s4612 + $0x58] sm:$0xff]
    %v4625 = vld [vmem:[%s4612 + $0x60] sm:$0xff]
    %v4626 = vld [vmem:[%s4612 + $0x68] sm:$0xff]
    %v4627 = vld [vmem:[%s4612 + $0x70] sm:$0xff]
    %v4628 = vld [vmem:[%s4612 + $0x78] sm:$0xff]
    %v4629 = vld [vmem:[%s4612 + $0x80] sm:$0xff]
    %v4630 = vld [vmem:[%s4612 + $0x88] sm:$0xff]
    %v4631 = vld [vmem:[%s4612 + $0x90] sm:$0xff]
    %v4632 = vld [vmem:[%s4612 + $0x98] sm:$0xff]
    %v4633 = vld [vmem:[%s4612 + $0xa0] sm:$0xff]
    %v4634 = vld [vmem:[%s4612 + $0xa8] sm:$0xff]
    %v4635 = vld [vmem:[%s4612 + $0xb0] sm:$0xff]
    %v4636 = vld [vmem:[%s4612 + $0xb8] sm:$0xff]
    %v4637 = vld [vmem:[%s4612 + $0xc0] sm:$0xff]
    %v4638 = vld [vmem:[%s4612 + $0xc8] sm:$0xff]
    %v4639 = vld [vmem:[%s4612 + $0xd0] sm:$0xff]
    %v4640 = vld [vmem:[%s4612 + $0xd8] sm:$0xff]
    %v4641 = vld [vmem:[%s4612 + $0xe0] sm:$0xff]
    %v4642 = vld [vmem:[%s4612 + $0xe8] sm:$0xff]
    %v4643 = vld [vmem:[%s4612 + $0xf0] sm:$0xff]
    %v4644 = vld [vmem:[%s4612 + $0xf8] sm:$0xff]
    %v4645 = vld [vmem:[%s4612 + $0x100] sm:$0xff]
    %v4646 = vld [vmem:[%s4612 + $0x108] sm:$0xff]
    %v4647 = vld [vmem:[%s4612 + $0x110] sm:$0xff]
    %v4648 = vld [vmem:[%s4612 + $0x118] sm:$0xff]
    %v4649 = vld [vmem:[%s4612 + $0x120] sm:$0xff]
    %v4650 = vld [vmem:[%s4612 + $0x128] sm:$0xff]
    %v4651 = vld [vmem:[%s4612 + $0x130] sm:$0xff]
    %v4652 = vld [vmem:[%s4612 + $0x138] sm:$0xff]
    %v4653 = vld [vmem:[%s4612 + $0x140] sm:$0xff]
    %v4654 = vld [vmem:[%s4612 + $0x148] sm:$0xff]
    %v4655 = vld [vmem:[%s4612 + $0x150] sm:$0xff]
    %v4656 = vld [vmem:[%s4612 + $0x158] sm:$0xff]
    %v4657 = vld [vmem:[%s4612 + $0x160] sm:$0xff]
    %v4658 = vld [vmem:[%s4612 + $0x168] sm:$0xff]
    %v4659 = vld [vmem:[%s4612 + $0x170] sm:$0xff]
    %v4660 = vld [vmem:[%s4612 + $0x178] sm:$0xff]
    %s4661 = scalar_lea.vmem [#allocation12], 6
    %v4662 = vld [vmem:[%s4661] sm:$0x7]
    %s4663 = scalar_lea.vmem [#allocation12], 9
    %v4664 = vld [vmem:[%s4663] sm:$0x7]
    %v4666 = vlaneseq
    %v4667 = vshrl.u32 %v4666, 7
    %v4668 = vsub.s32 0, %v4667
    %v4669 = vrot.slane %v4662, %v4668
    %v4670 = vlaneseq
    %v4671 = vshrl.u32 %v4670, 7
    %v4672 = vsub.s32 1, %v4671
    %v4673 = vrot.slane %v4662, %v4672
    %v4674 = vlaneseq
    %v4675 = vshrl.u32 %v4674, 7
    %v4676 = vsub.s32 2, %v4675
    %v4677 = vrot.slane %v4662, %v4676
    %4681 = vmatprep.subr.mxu0 %v4565
    %4682 = vmatpush1.msra.mxu0 %v4564
    %4683 = vmatprep.subr.mxu0 %v4568
    %4684 = vmatpush1.msra.mxu0 %v4567
    %4685 = vmatprep.subr.mxu0 %v4571
    %4686 = vmatpush1.msra.mxu0 %v4570
    %4687 = vmatprep.subr.mxu0 %v4574
    %4688 = vmatpush1.msra.mxu0 %v4573
    %4689 = vmatprep.subr.mxu0 %v4577
    %4690 = vmatpush1.msra.mxu0 %v4576
    %4691 = vmatprep.subr.mxu0 %v4580
    %4692 = vmatpush1.msra.mxu0 %v4579
    %4693 = vmatprep.subr.mxu0 %v4583
    %4694 = vmatpush1.msra.mxu0 %v4582
    %4695 = vmatprep.subr.mxu0 %v4586
    %4696 = vmatpush1.msra.mxu0 %v4585
    %4697 = vmatprep.subr.mxu0 %v4589
    %4698 = vmatpush1.msra.mxu0 %v4588
    %4699 = vmatprep.subr.mxu0 %v4592
    %4700 = vmatpush1.msra.mxu0 %v4591
    %4701 = vmatprep.subr.mxu0 %v4595
    %4702 = vmatpush1.msra.mxu0 %v4594
    %4703 = vmatprep.subr.mxu0 %v4598
    %4704 = vmatpush1.msra.mxu0 %v4597
    %4705 = vmatprep.subr.mxu0 %v4601
    %4706 = vmatpush1.msra.mxu0 %v4600
    %4707 = vmatprep.subr.mxu0 %v4604
    %4708 = vmatpush1.msra.mxu0 %v4603
    %4709 = vmatprep.subr.mxu0 %v4607
    %4710 = vmatpush1.msra.mxu0 %v4606
    %4711 = vmatprep.subr.mxu0 %v4610
    %4712 = vmatpush1.msra.mxu0 %v4609
    %4713 = vmatprep.subr.mxu0 0.0
    %4714 = vmatpush1.msra.mxu0 0.0
    %4715 = vmatprep.subr.mxu0 0.0
    %4716 = vmatpush1.msra.mxu0 0.0
    %4717 = vmatprep.subr.mxu0 0.0
    %4718 = vmatpush1.msra.mxu0 0.0
    %4719 = vmatprep.subr.mxu0 0.0
    %4720 = vmatpush1.msra.mxu0 0.0
    %4721 = vmatprep.subr.mxu0 0.0
    %4722 = vmatpush1.msra.mxu0 0.0
    %4723 = vmatprep.subr.mxu0 0.0
    %4724 = vmatpush1.msra.mxu0 0.0
    %4725 = vmatprep.subr.mxu0 0.0
    %4726 = vmatpush1.msra.mxu0 0.0
    %4727 = vmatprep.subr.mxu0 0.0
    %4728 = vmatpush1.msra.mxu0 0.0
    %4729 = vmatprep.subr.mxu0 0.0
    %4730 = vmatpush1.msra.mxu0 0.0
    %4731 = vmatprep.subr.mxu0 0.0
    %4732 = vmatpush1.msra.mxu0 0.0
    %4733 = vmatprep.subr.mxu0 0.0
    %4734 = vmatpush1.msra.mxu0 0.0
    %4735 = vmatprep.subr.mxu0 0.0
    %4736 = vmatpush1.msra.mxu0 0.0
    %4737 = vmatprep.subr.mxu0 0.0
    %4738 = vmatpush1.msra.mxu0 0.0
    %4739 = vmatprep.subr.mxu0 0.0
    %4740 = vmatpush1.msra.mxu0 0.0
    %4741 = vmatprep.subr.mxu0 0.0
    %4742 = vmatpush1.msra.mxu0 0.0
    %4743 = vmatprep.subr.mxu0 0.0
    %4744 = vmatpush1.msra.mxu0 0.0
    %4745 = vmatprep.mubr.f32.mxu0 0.0
    %4746 = vmatmul.mubr.f32.gmra.mrb[0].mxu0 0.0
    %v4747 = vpop.f32.mrb[0].mxu0
    %v4748 = vadd.f32 %v4669, %v4747
    %v4749 = vpop.f32.mrb[0].mxu0
    %v4750 = vadd.f32 %v4673, %v4749
    %4751 = vdwg.mxu0
    %4752 = vmatprep.subr.mxu0 0.0
    %4753 = vmatpush1.msra.mxu0 %v4566
    %4754 = vmatprep.subr.mxu0 0.0
    %4755 = vmatpush1.msra.mxu0 %v4569
    %4756 = vmatprep.subr.mxu0 0.0
    %4757 = vmatpush1.msra.mxu0 %v4572
    %4758 = vmatprep.subr.mxu0 0.0
    %4759 = vmatpush1.msra.mxu0 %v4575
    %4760 = vmatprep.subr.mxu0 0.0
    %4761 = vmatpush1.msra.mxu0 %v4578
    %4762 = vmatprep.subr.mxu0 0.0
    %4763 = vmatpush1.msra.mxu0 %v4581
    %4764 = vmatprep.subr.mxu0 0.0
    %4765 = vmatpush1.msra.mxu0 %v4584
    %4766 = vmatprep.subr.mxu0 0.0
    %4767 = vmatpush1.msra.mxu0 %v4587
    %4768 = vmatprep.subr.mxu0 0.0
    %4769 = vmatpush1.msra.mxu0 %v4590
    %4770 = vmatprep.subr.mxu0 0.0
    %4771 = vmatpush1.msra.mxu0 %v4593
    %4772 = vmatprep.subr.mxu0 0.0
    %4773 = vmatpush1.msra.mxu0 %v4596
    %4774 = vmatprep.subr.mxu0 0.0
    %4775 = vmatpush1.msra.mxu0 %v4599
    %4776 = vmatprep.subr.mxu0 0.0
    %4777 = vmatpush1.msra.mxu0 %v4602
    %4778 = vmatprep.subr.mxu0 0.0
    %4779 = vmatpush1.msra.mxu0 %v4605
    %4780 = vmatprep.subr.mxu0 0.0
    %4781 = vmatpush1.msra.mxu0 %v4608
    %4782 = vmatprep.subr.mxu0 0.0
    %4783 = vmatpush1.msra.mxu0 %v4611
    %4784 = vmatprep.subr.mxu0 0.0
    %4785 = vmatpush1.msra.mxu0 0.0
    %4786 = vmatprep.subr.mxu0 0.0
    %4787 = vmatpush1.msra.mxu0 0.0
    %4788 = vmatprep.subr.mxu0 0.0
    %4789 = vmatpush1.msra.mxu0 0.0
    %4790 = vmatprep.subr.mxu0 0.0
    %4791 = vmatpush1.msra.mxu0 0.0
    %4792 = vmatprep.subr.mxu0 0.0
    %4793 = vmatpush1.msra.mxu0 0.0
    %4794 = vmatprep.subr.mxu0 0.0
    %4795 = vmatpush1.msra.mxu0 0.0
    %4796 = vmatprep.subr.mxu0 0.0
    %4797 = vmatpush1.msra.mxu0 0.0
    %4798 = vmatprep.subr.mxu0 0.0
    %4799 = vmatpush1.msra.mxu0 0.0
    %4800 = vmatprep.subr.mxu0 0.0
    %4801 = vmatpush1.msra.mxu0 0.0
    %4802 = vmatprep.subr.mxu0 0.0
    %4803 = vmatpush1.msra.mxu0 0.0
    %4804 = vmatprep.subr.mxu0 0.0
    %4805 = vmatpush1.msra.mxu0 0.0
    %4806 = vmatprep.subr.mxu0 0.0
    %4807 = vmatpush1.msra.mxu0 0.0
    %4808 = vmatprep.subr.mxu0 0.0
    %4809 = vmatpush1.msra.mxu0 0.0
    %4810 = vmatprep.subr.mxu0 0.0
    %4811 = vmatpush1.msra.mxu0 0.0
    %4812 = vmatprep.subr.mxu0 0.0
    %4813 = vmatpush1.msra.mxu0 0.0
    %4814 = vmatprep.subr.mxu0 0.0
    %4815 = vmatpush1.msra.mxu0 0.0
    %4816 = vmatprep.mubr.f32.mxu0 0.0
    %4817 = vmatmul.mubr.f32.gmra.mrb[0].mxu0 0.0
    %v4818 = vpop.f32.mrb[0].mxu0
    %v4819 = vadd.f32 %v4677, %v4818
    %v4820 = vpop.f32.mrb[0].mxu0
    %4821 = vdwg.mxu0
    %v4823 = vrot.slane %v4748, 1
    %v4826 = vadd.f32 %v4211, %v4748
    %v4827 = vadd.f32 %v4217, %v4823
    %v4828 = vxor.u32 %v4826, 2147483648
    %v4829 = vxor.u32 %v4827, 2147483648
    %v4830 = vmul.f32 %v4828, 1.442695
    %v4831 = vpow.pop %v4830
    %v4832 = vmul.f32 %v4829, 1.442695
    %v4833 = vpow.pop %v4832
    %v4834 = vadd.f32 %v4831, 1.0
    %v4835 = vadd.f32 %v4833, 1.0
    %v4836 = vrcp.pop %v4834
    %v4837 = vmul.f32 1.0, %v4836
    %v4838 = vrcp.pop %v4835
    %v4839 = vmul.f32 1.0, %v4838
    %v4841 = vrot.slane %v4750, 1
    %v4844 = vadd.f32 %v4213, %v4750
    %v4845 = vadd.f32 %v4219, %v4841
    %v4846 = vxor.u32 %v4844, 2147483648
    %v4847 = vxor.u32 %v4845, 2147483648
    %v4848 = vmul.f32 %v4846, 1.442695
    %v4849 = vpow.pop %v4848
    %v4850 = vmul.f32 %v4847, 1.442695
    %v4851 = vpow.pop %v4850
    %v4852 = vadd.f32 %v4849, 1.0
    %v4853 = vadd.f32 %v4851, 1.0
    %v4854 = vrcp.pop %v4852
    %v4855 = vmul.f32 1.0, %v4854
    %v4856 = vrcp.pop %v4853
    %v4857 = vmul.f32 1.0, %v4856
    %v4859 = vrot.slane %v4819, 1
    %v4862 = vmul.f32 %v4837, %v4819
    %v4863 = vmul.f32 %v4839, %v4859
    %v4864 = vadd.f32 %v4288, %v4862
    %v4865 = vadd.f32 %v4293, %v4863
    %v4866 = vtanh.pop %v4864
    %v4867 = vtanh.pop %v4865
    %v4868 = vsub.f32 1.0, %v4855
    %v4869 = vsub.f32 1.0, %v4857
    %v4870 = vmul.f32 %v4868, %v4866
    %v4871 = vmul.f32 %v4869, %v4867
    %v4872 = vmul.f32 %v4855, 0.0
    %v4873 = vmul.f32 %v4857, 0.0
    %v4874 = vadd.f32 %v4870, %v4872
    %v4875 = vadd.f32 %v4871, %v4873
    %v4877 = vlaneseq
    %v4878 = vshrl.u32 %v4877, 7
    %v4879 = vsub.s32 0, %v4878
    %v4880 = vrot.slane %v4664, %v4879
    %v4881 = vlaneseq
    %v4882 = vshrl.u32 %v4881, 7
    %v4883 = vsub.s32 1, %v4882
    %v4884 = vrot.slane %v4664, %v4883
    %v4885 = vlaneseq
    %v4886 = vshrl.u32 %v4885, 7
    %v4887 = vsub.s32 2, %v4886
    %v4888 = vrot.slane %v4664, %v4887
    %4892 = vmatprep.subr.mxu0 %v4614
    %4893 = vmatpush1.msra.mxu0 %v4613
    %4894 = vmatprep.subr.mxu0 %v4617
    %4895 = vmatpush1.msra.mxu0 %v4616
    %4896 = vmatprep.subr.mxu0 %v4620
    %4897 = vmatpush1.msra.mxu0 %v4619
    %4898 = vmatprep.subr.mxu0 %v4623
    %4899 = vmatpush1.msra.mxu0 %v4622
    %4900 = vmatprep.subr.mxu0 %v4626
    %4901 = vmatpush1.msra.mxu0 %v4625
    %4902 = vmatprep.subr.mxu0 %v4629
    %4903 = vmatpush1.msra.mxu0 %v4628
    %4904 = vmatprep.subr.mxu0 %v4632
    %4905 = vmatpush1.msra.mxu0 %v4631
    %4906 = vmatprep.subr.mxu0 %v4635
    %4907 = vmatpush1.msra.mxu0 %v4634
    %4908 = vmatprep.subr.mxu0 %v4638
    %4909 = vmatpush1.msra.mxu0 %v4637
    %4910 = vmatprep.subr.mxu0 %v4641
    %4911 = vmatpush1.msra.mxu0 %v4640
    %4912 = vmatprep.subr.mxu0 %v4644
    %4913 = vmatpush1.msra.mxu0 %v4643
    %4914 = vmatprep.subr.mxu0 %v4647
    %4915 = vmatpush1.msra.mxu0 %v4646
    %4916 = vmatprep.subr.mxu0 %v4650
    %4917 = vmatpush1.msra.mxu0 %v4649
    %4918 = vmatprep.subr.mxu0 %v4653
    %4919 = vmatpush1.msra.mxu0 %v4652
    %4920 = vmatprep.subr.mxu0 %v4656
    %4921 = vmatpush1.msra.mxu0 %v4655
    %4922 = vmatprep.subr.mxu0 %v4659
    %4923 = vmatpush1.msra.mxu0 %v4658
    %4924 = vmatprep.subr.mxu0 0.0
    %4925 = vmatpush1.msra.mxu0 0.0
    %4926 = vmatprep.subr.mxu0 0.0
    %4927 = vmatpush1.msra.mxu0 0.0
    %4928 = vmatprep.subr.mxu0 0.0
    %4929 = vmatpush1.msra.mxu0 0.0
    %4930 = vmatprep.subr.mxu0 0.0
    %4931 = vmatpush1.msra.mxu0 0.0
    %4932 = vmatprep.subr.mxu0 0.0
    %4933 = vmatpush1.msra.mxu0 0.0
    %4934 = vmatprep.subr.mxu0 0.0
    %4935 = vmatpush1.msra.mxu0 0.0
    %4936 = vmatprep.subr.mxu0 0.0
    %4937 = vmatpush1.msra.mxu0 0.0
    %4938 = vmatprep.subr.mxu0 0.0
    %4939 = vmatpush1.msra.mxu0 0.0
    %4940 = vmatprep.subr.mxu0 0.0
    %4941 = vmatpush1.msra.mxu0 0.0
    %4942 = vmatprep.subr.mxu0 0.0
    %4943 = vmatpush1.msra.mxu0 0.0
    %4944 = vmatprep.subr.mxu0 0.0
    %4945 = vmatpush1.msra.mxu0 0.0
    %4946 = vmatprep.subr.mxu0 0.0
    %4947 = vmatpush1.msra.mxu0 0.0
    %4948 = vmatprep.subr.mxu0 0.0
    %4949 = vmatpush1.msra.mxu0 0.0
    %4950 = vmatprep.subr.mxu0 0.0
    %4951 = vmatpush1.msra.mxu0 0.0
    %4952 = vmatprep.subr.mxu0 0.0
    %4953 = vmatpush1.msra.mxu0 0.0
    %4954 = vmatprep.subr.mxu0 0.0
    %4955 = vmatpush1.msra.mxu0 0.0
    %4956 = vmatprep.mubr.f32.mxu0 0.0
    %4957 = vmatmul.mubr.f32.gmra.mrb[0].mxu0 0.0
    %v4958 = vpop.f32.mrb[0].mxu0
    %v4959 = vadd.f32 %v4880, %v4958
    %v4960 = vpop.f32.mrb[0].mxu0
    %v4961 = vadd.f32 %v4884, %v4960
    %4962 = vdwg.mxu0
    %4963 = vmatprep.subr.mxu0 0.0
    %4964 = vmatpush1.msra.mxu0 %v4615
    %4965 = vmatprep.subr.mxu0 0.0
    %4966 = vmatpush1.msra.mxu0 %v4618
    %4967 = vmatprep.subr.mxu0 0.0
    %4968 = vmatpush1.msra.mxu0 %v4621
    %4969 = vmatprep.subr.mxu0 0.0
    %4970 = vmatpush1.msra.mxu0 %v4624
    %4971 = vmatprep.subr.mxu0 0.0
    %4972 = vmatpush1.msra.mxu0 %v4627
    %4973 = vmatprep.subr.mxu0 0.0
    %4974 = vmatpush1.msra.mxu0 %v4630
    %4975 = vmatprep.subr.mxu0 0.0
    %4976 = vmatpush1.msra.mxu0 %v4633
    %4977 = vmatprep.subr.mxu0 0.0
    %4978 = vmatpush1.msra.mxu0 %v4636
    %4979 = vmatprep.subr.mxu0 0.0
    %4980 = vmatpush1.msra.mxu0 %v4639
    %4981 = vmatprep.subr.mxu0 0.0
    %4982 = vmatpush1.msra.mxu0 %v4642
    %4983 = vmatprep.subr.mxu0 0.0
    %4984 = vmatpush1.msra.mxu0 %v4645
    %4985 = vmatprep.subr.mxu0 0.0
    %4986 = vmatpush1.msra.mxu0 %v4648
    %4987 = vmatprep.subr.mxu0 0.0
    %4988 = vmatpush1.msra.mxu0 %v4651
    %4989 = vmatprep.subr.mxu0 0.0
    %4990 = vmatpush1.msra.mxu0 %v4654
    %4991 = vmatprep.subr.mxu0 0.0
    %4992 = vmatpush1.msra.mxu0 %v4657
    %4993 = vmatprep.subr.mxu0 0.0
    %4994 = vmatpush1.msra.mxu0 %v4660
    %4995 = vmatprep.subr.mxu0 0.0
    %4996 = vmatpush1.msra.mxu0 0.0
    %4997 = vmatprep.subr.mxu0 0.0
    %4998 = vmatpush1.msra.mxu0 0.0
    %4999 = vmatprep.subr.mxu0 0.0
    %5000 = vmatpush1.msra.mxu0 0.0
    %5001 = vmatprep.subr.mxu0 0.0
    %5002 = vmatpush1.msra.mxu0 0.0
    %5003 = vmatprep.subr.mxu0 0.0
    %5004 = vmatpush1.msra.mxu0 0.0
    %5005 = vmatprep.subr.mxu0 0.0
    %5006 = vmatpush1.msra.mxu0 0.0
    %5007 = vmatprep.subr.mxu0 0.0
    %5008 = vmatpush1.msra.mxu0 0.0
    %5009 = vmatprep.subr.mxu0 0.0
    %5010 = vmatpush1.msra.mxu0 0.0
    %5011 = vmatprep.subr.mxu0 0.0
    %5012 = vmatpush1.msra.mxu0 0.0
    %5013 = vmatprep.subr.mxu0 0.0
    %5014 = vmatpush1.msra.mxu0 0.0
    %5015 = vmatprep.subr.mxu0 0.0
    %5016 = vmatpush1.msra.mxu0 0.0
    %5017 = vmatprep.subr.mxu0 0.0
    %5018 = vmatpush1.msra.mxu0 0.0
    %5019 = vmatprep.subr.mxu0 0.0
    %5020 = vmatpush1.msra.mxu0 0.0
    %5021 = vmatprep.subr.mxu0 0.0
    %5022 = vmatpush1.msra.mxu0 0.0
    %5023 = vmatprep.subr.mxu0 0.0
    %5024 = vmatpush1.msra.mxu0 0.0
    %5025 = vmatprep.subr.mxu0 0.0
    %5026 = vmatpush1.msra.mxu0 0.0
    %5027 = vmatprep.mubr.f32.mxu0 0.0
    %5028 = vmatmul.mubr.f32.gmra.mrb[0].mxu0 0.0
    %v5029 = vpop.f32.mrb[0].mxu0
    %v5030 = vadd.f32 %v4888, %v5029
    %v5031 = vpop.f32.mrb[0].mxu0
    %5032 = vdwg.mxu0
    %v5034 = vrot.slane %v4959, 1
    %v5035 = vrot.slane %v4959, 2
    %v5038 = vadd.f32 %v4478, %v5034
    %v5039 = vadd.f32 %v4484, %v5035
    %v5040 = vxor.u32 %v5038, 2147483648
    %v5041 = vxor.u32 %v5039, 2147483648
    %v5042 = vmul.f32 %v5040, 1.442695
    %v5043 = vpow.pop %v5042
    %v5044 = vmul.f32 %v5041, 1.442695
    %v5045 = vpow.pop %v5044
    %v5046 = vadd.f32 %v5043, 1.0
    %v5047 = vadd.f32 %v5045, 1.0
    %v5048 = vrcp.pop %v5046
    %v5049 = vmul.f32 1.0, %v5048
    %v5050 = vrcp.pop %v5047
    %v5051 = vmul.f32 1.0, %v5050
    %v5053 = vrot.slane %v4961, 1
    %v5054 = vrot.slane %v4961, 2
    %v5057 = vadd.f32 %v4480, %v5053
    %v5058 = vadd.f32 %v4486, %v5054
    %v5059 = vxor.u32 %v5057, 2147483648
    %v5060 = vxor.u32 %v5058, 2147483648
    %v5061 = vmul.f32 %v5059, 1.442695
    %v5062 = vpow.pop %v5061
    %v5063 = vmul.f32 %v5060, 1.442695
    %v5064 = vpow.pop %v5063
    %v5065 = vadd.f32 %v5062, 1.0
    %v5066 = vadd.f32 %v5064, 1.0
    %v5067 = vrcp.pop %v5065
    %v5068 = vmul.f32 1.0, %v5067
    %v5069 = vrcp.pop %v5066
    %v5070 = vmul.f32 1.0, %v5069
    %v5072 = vrot.slane %v5030, 1
    %v5073 = vrot.slane %v5030, 2
    %v5076 = vmul.f32 %v5049, %v5072
    %v5077 = vmul.f32 %v5051, %v5073
    %v5078 = vadd.f32 %v4555, %v5076
    %v5079 = vadd.f32 %v4560, %v5077
    %v5080 = vtanh.pop %v5078
    %v5081 = vtanh.pop %v5079
    %v5082 = vsub.f32 1.0, %v5068
    %v5083 = vsub.f32 1.0, %v5070
    %v5084 = vmul.f32 %v5082, %v5080
    %v5085 = vmul.f32 %v5083, %v5081
    %v5086 = vmul.f32 %v5068, 0.0
    %v5087 = vmul.f32 %v5070, 0.0
    %v5088 = vadd.f32 %v5084, %v5086
    %v5089 = vadd.f32 %v5085, %v5087
    %v5090 = vsel %vm131, %v4874, 0.0
    %v5091 = vsel %vm132, %v4875, 0.0
    %v5092 = vsel %vm131, %v5088, 0.0
    %v5093 = vsel %vm132, %v5089, 0.0
    %5094 = vst [vmem:[#allocation3] sm:$0x1] %v5090
    %5095 = vst [vmem:[#allocation3 + $0x10] sm:$0x1] %v5091
    %v5098 = vrot.slane %v5092, 7
    %v5099 = vrot.slane %v5093, 7
    %5102 = vst [vmem:[#allocation3 + $0xf] sm:$0x1] %v5098
    %5103 = vst [vmem:[#allocation3 + $0x1f] sm:$0x1] %v5099
    %v5106 = vrot.slane %v5091, 7
    %v5107 = vsel %vm1038, %v5106, %v5090
    %5109 = vmatprep.subr.mxu0 %v4565
    %5110 = vmatpush1.msra.mxu0 %v4564
    %5111 = vmatprep.subr.mxu0 %v4568
    %5112 = vmatpush1.msra.mxu0 %v4567
    %5113 = vmatprep.subr.mxu0 %v4571
    %5114 = vmatpush1.msra.mxu0 %v4570
    %5115 = vmatprep.subr.mxu0 %v4574
    %5116 = vmatpush1.msra.mxu0 %v4573
    %5117 = vmatprep.subr.mxu0 %v4577
    %5118 = vmatpush1.msra.mxu0 %v4576
    %5119 = vmatprep.subr.mxu0 %v4580
    %5120 = vmatpush1.msra.mxu0 %v4579
    %5121 = vmatprep.subr.mxu0 %v4583
    %5122 = vmatpush1.msra.mxu0 %v4582
    %5123 = vmatprep.subr.mxu0 %v4586
    %5124 = vmatpush1.msra.mxu0 %v4585
    %5125 = vmatprep.subr.mxu0 %v4589
    %5126 = vmatpush1.msra.mxu0 %v4588
    %5127 = vmatprep.subr.mxu0 %v4592
    %5128 = vmatpush1.msra.mxu0 %v4591
    %5129 = vmatprep.subr.mxu0 %v4595
    %5130 = vmatpush1.msra.mxu0 %v4594
    %5131 = vmatprep.subr.mxu0 %v4598
    %5132 = vmatpush1.msra.mxu0 %v4597
    %5133 = vmatprep.subr.mxu0 %v4601
    %5134 = vmatpush1.msra.mxu0 %v4600
    %5135 = vmatprep.subr.mxu0 %v4604
    %5136 = vmatpush1.msra.mxu0 %v4603
    %5137 = vmatprep.subr.mxu0 %v4607
    %5138 = vmatpush1.msra.mxu0 %v4606
    %5139 = vmatprep.subr.mxu0 %v4610
    %5140 = vmatpush1.msra.mxu0 %v4609
    %5141 = vmatprep.subr.mxu0 0.0
    %5142 = vmatpush1.msra.mxu0 0.0
    %5143 = vmatprep.subr.mxu0 0.0
    %5144 = vmatpush1.msra.mxu0 0.0
    %5145 = vmatprep.subr.mxu0 0.0
    %5146 = vmatpush1.msra.mxu0 0.0
    %5147 = vmatprep.subr.mxu0 0.0
    %5148 = vmatpush1.msra.mxu0 0.0
    %5149 = vmatprep.subr.mxu0 0.0
    %5150 = vmatpush1.msra.mxu0 0.0
    %5151 = vmatprep.subr.mxu0 0.0
    %5152 = vmatpush1.msra.mxu0 0.0
    %5153 = vmatprep.subr.mxu0 0.0
    %5154 = vmatpush1.msra.mxu0 0.0
    %5155 = vmatprep.subr.mxu0 0.0
    %5156 = vmatpush1.msra.mxu0 0.0
    %5157 = vmatprep.subr.mxu0 0.0
    %5158 = vmatpush1.msra.mxu0 0.0
    %5159 = vmatprep.subr.mxu0 0.0
    %5160 = vmatpush1.msra.mxu0 0.0
    %5161 = vmatprep.subr.mxu0 0.0
    %5162 = vmatpush1.msra.mxu0 0.0
    %5163 = vmatprep.subr.mxu0 0.0
    %5164 = vmatpush1.msra.mxu0 0.0
    %5165 = vmatprep.subr.mxu0 0.0
    %5166 = vmatpush1.msra.mxu0 0.0
    %5167 = vmatprep.subr.mxu0 0.0
    %5168 = vmatpush1.msra.mxu0 0.0
    %5169 = vmatprep.subr.mxu0 0.0
    %5170 = vmatpush1.msra.mxu0 0.0
    %5171 = vmatprep.subr.mxu0 0.0
    %5172 = vmatpush1.msra.mxu0 0.0
    %5173 = vmatprep.mubr.f32.mxu0 0.0
    %5174 = vmatmul.mubr.f32.gmra.mrb[0].mxu0 %v5107
    %v5175 = vpop.f32.mrb[0].mxu0
    %v5176 = vadd.f32 %v4669, %v5175
    %v5177 = vpop.f32.mrb[0].mxu0
    %v5178 = vadd.f32 %v4673, %v5177
    %5179 = vdwg.mxu0
    %5180 = vmatprep.subr.mxu0 0.0
    %5181 = vmatpush1.msra.mxu0 %v4566
    %5182 = vmatprep.subr.mxu0 0.0
    %5183 = vmatpush1.msra.mxu0 %v4569
    %5184 = vmatprep.subr.mxu0 0.0
    %5185 = vmatpush1.msra.mxu0 %v4572
    %5186 = vmatprep.subr.mxu0 0.0
    %5187 = vmatpush1.msra.mxu0 %v4575
    %5188 = vmatprep.subr.mxu0 0.0
    %5189 = vmatpush1.msra.mxu0 %v4578
    %5190 = vmatprep.subr.mxu0 0.0
    %5191 = vmatpush1.msra.mxu0 %v4581
    %5192 = vmatprep.subr.mxu0 0.0
    %5193 = vmatpush1.msra.mxu0 %v4584
    %5194 = vmatprep.subr.mxu0 0.0
    %5195 = vmatpush1.msra.mxu0 %v4587
    %5196 = vmatprep.subr.mxu0 0.0
    %5197 = vmatpush1.msra.mxu0 %v4590
    %5198 = vmatprep.subr.mxu0 0.0
    %5199 = vmatpush1.msra.mxu0 %v4593
    %5200 = vmatprep.subr.mxu0 0.0
    %5201 = vmatpush1.msra.mxu0 %v4596
    %5202 = vmatprep.subr.mxu0 0.0
    %5203 = vmatpush1.msra.mxu0 %v4599
    %5204 = vmatprep.subr.mxu0 0.0
    %5205 = vmatpush1.msra.mxu0 %v4602
    %5206 = vmatprep.subr.mxu0 0.0
    %5207 = vmatpush1.msra.mxu0 %v4605
    %5208 = vmatprep.subr.mxu0 0.0
    %5209 = vmatpush1.msra.mxu0 %v4608
    %5210 = vmatprep.subr.mxu0 0.0
    %5211 = vmatpush1.msra.mxu0 %v4611
    %5212 = vmatprep.subr.mxu0 0.0
    %5213 = vmatpush1.msra.mxu0 0.0
    %5214 = vmatprep.subr.mxu0 0.0
    %5215 = vmatpush1.msra.mxu0 0.0
    %5216 = vmatprep.subr.mxu0 0.0
    %5217 = vmatpush1.msra.mxu0 0.0
    %5218 = vmatprep.subr.mxu0 0.0
    %5219 = vmatpush1.msra.mxu0 0.0
    %5220 = vmatprep.subr.mxu0 0.0
    %5221 = vmatpush1.msra.mxu0 0.0
    %5222 = vmatprep.subr.mxu0 0.0
    %5223 = vmatpush1.msra.mxu0 0.0
    %5224 = vmatprep.subr.mxu0 0.0
    %5225 = vmatpush1.msra.mxu0 0.0
    %5226 = vmatprep.subr.mxu0 0.0
    %5227 = vmatpush1.msra.mxu0 0.0
    %5228 = vmatprep.subr.mxu0 0.0
    %5229 = vmatpush1.msra.mxu0 0.0
    %5230 = vmatprep.subr.mxu0 0.0
    %5231 = vmatpush1.msra.mxu0 0.0
    %5232 = vmatprep.subr.mxu0 0.0
    %5233 = vmatpush1.msra.mxu0 0.0
    %5234 = vmatprep.subr.mxu0 0.0
    %5235 = vmatpush1.msra.mxu0 0.0
    %5236 = vmatprep.subr.mxu0 0.0
    %5237 = vmatpush1.msra.mxu0 0.0
    %5238 = vmatprep.subr.mxu0 0.0
    %5239 = vmatpush1.msra.mxu0 0.0
    %5240 = vmatprep.subr.mxu0 0.0
    %5241 = vmatpush1.msra.mxu0 0.0
    %5242 = vmatprep.subr.mxu0 0.0
    %5243 = vmatpush1.msra.mxu0 0.0
    %5244 = vmatprep.mubr.f32.mxu0 0.0
    %5245 = vmatmul.mubr.f32.gmra.mrb[0].mxu0 %v5107
    %v5246 = vpop.f32.mrb[0].mxu0
    %v5247 = vadd.f32 %v4677, %v5246
    %v5248 = vpop.f32.mrb[0].mxu0
    %5249 = vdwg.mxu0
    %v5251 = vrot.slane %v5176, 7
    %v5254 = vadd.f32 %v4211, %v5251
    %v5255 = vadd.f32 %v4217, %v5176
    %v5256 = vxor.u32 %v5254, 2147483648
    %v5257 = vxor.u32 %v5255, 2147483648
    %v5258 = vmul.f32 %v5256, 1.442695
    %v5259 = vpow.pop %v5258
    %v5260 = vmul.f32 %v5257, 1.442695
    %v5261 = vpow.pop %v5260
    %v5262 = vadd.f32 %v5259, 1.0
    %v5263 = vadd.f32 %v5261, 1.0
    %v5264 = vrcp.pop %v5262
    %v5265 = vmul.f32 1.0, %v5264
    %v5266 = vrcp.pop %v5263
    %v5267 = vmul.f32 1.0, %v5266
    %v5269 = vrot.slane %v5178, 7
    %v5272 = vadd.f32 %v4213, %v5269
    %v5273 = vadd.f32 %v4219, %v5178
    %v5274 = vxor.u32 %v5272, 2147483648
    %v5275 = vxor.u32 %v5273, 2147483648
    %v5276 = vmul.f32 %v5274, 1.442695
    %v5277 = vpow.pop %v5276
    %v5278 = vmul.f32 %v5275, 1.442695
    %v5279 = vpow.pop %v5278
    %v5280 = vadd.f32 %v5277, 1.0
    %v5281 = vadd.f32 %v5279, 1.0
    %v5282 = vrcp.pop %v5280
    %v5283 = vmul.f32 1.0, %v5282
    %v5284 = vrcp.pop %v5281
    %v5285 = vmul.f32 1.0, %v5284
    %v5287 = vrot.slane %v5247, 7
    %v5290 = vmul.f32 %v5265, %v5287
    %v5291 = vmul.f32 %v5267, %v5247
    %v5292 = vadd.f32 %v4288, %v5290
    %v5293 = vadd.f32 %v4293, %v5291
    %v5294 = vtanh.pop %v5292
    %v5295 = vtanh.pop %v5293
    %v5296 = vsub.f32 1.0, %v5283
    %v5297 = vsub.f32 1.0, %v5285
    %v5298 = vmul.f32 %v5296, %v5294
    %v5299 = vmul.f32 %v5297, %v5295
    %v5300 = vrot.slane %v5090, 7
    %v5303 = vmul.f32 %v5283, %v5300
    %v5304 = vmul.f32 %v5285, %v5106
    %v5305 = vadd.f32 %v5298, %v5303
    %v5306 = vadd.f32 %v5299, %v5304
    %v5307 = vrot.slane %v5093, 6
    %v5308 = vsel %vm1038, %v5307, %v5098
    %5310 = vmatprep.subr.mxu0 %v4614
    %5311 = vmatpush1.msra.mxu0 %v4613
    %5312 = vmatprep.subr.mxu0 %v4617
    %5313 = vmatpush1.msra.mxu0 %v4616
    %5314 = vmatprep.subr.mxu0 %v4620
    %5315 = vmatpush1.msra.mxu0 %v4619
    %5316 = vmatprep.subr.mxu0 %v4623
    %5317 = vmatpush1.msra.mxu0 %v4622
    %5318 = vmatprep.subr.mxu0 %v4626
    %5319 = vmatpush1.msra.mxu0 %v4625
    %5320 = vmatprep.subr.mxu0 %v4629
    %5321 = vmatpush1.msra.mxu0 %v4628
    %5322 = vmatprep.subr.mxu0 %v4632
    %5323 = vmatpush1.msra.mxu0 %v4631
    %5324 = vmatprep.subr.mxu0 %v4635
    %5325 = vmatpush1.msra.mxu0 %v4634
    %5326 = vmatprep.subr.mxu0 %v4638
    %5327 = vmatpush1.msra.mxu0 %v4637
    %5328 = vmatprep.subr.mxu0 %v4641
    %5329 = vmatpush1.msra.mxu0 %v4640
    %5330 = vmatprep.subr.mxu0 %v4644
    %5331 = vmatpush1.msra.mxu0 %v4643
    %5332 = vmatprep.subr.mxu0 %v4647
    %5333 = vmatpush1.msra.mxu0 %v4646
    %5334 = vmatprep.subr.mxu0 %v4650
    %5335 = vmatpush1.msra.mxu0 %v4649
    %5336 = vmatprep.subr.mxu0 %v4653
    %5337 = vmatpush1.msra.mxu0 %v4652
    %5338 = vmatprep.subr.mxu0 %v4656
    %5339 = vmatpush1.msra.mxu0 %v4655
    %5340 = vmatprep.subr.mxu0 %v4659
    %5341 = vmatpush1.msra.mxu0 %v4658
    %5342 = vmatprep.subr.mxu0 0.0
    %5343 = vmatpush1.msra.mxu0 0.0
    %5344 = vmatprep.subr.mxu0 0.0
    %5345 = vmatpush1.msra.mxu0 0.0
    %5346 = vmatprep.subr.mxu0 0.0
    %5347 = vmatpush1.msra.mxu0 0.0
    %5348 = vmatprep.subr.mxu0 0.0
    %5349 = vmatpush1.msra.mxu0 0.0
    %5350 = vmatprep.subr.mxu0 0.0
    %5351 = vmatpush1.msra.mxu0 0.0
    %5352 = vmatprep.subr.mxu0 0.0
    %5353 = vmatpush1.msra.mxu0 0.0
    %5354 = vmatprep.subr.mxu0 0.0
    %5355 = vmatpush1.msra.mxu0 0.0
    %5356 = vmatprep.subr.mxu0 0.0
    %5357 = vmatpush1.msra.mxu0 0.0
    %5358 = vmatprep.subr.mxu0 0.0
    %5359 = vmatpush1.msra.mxu0 0.0
    %5360 = vmatprep.subr.mxu0 0.0
    %5361 = vmatpush1.msra.mxu0 0.0
    %5362 = vmatprep.subr.mxu0 0.0
    %5363 = vmatpush1.msra.mxu0 0.0
    %5364 = vmatprep.subr.mxu0 0.0
    %5365 = vmatpush1.msra.mxu0 0.0
    %5366 = vmatprep.subr.mxu0 0.0
    %5367 = vmatpush1.msra.mxu0 0.0
    %5368 = vmatprep.subr.mxu0 0.0
    %5369 = vmatpush1.msra.mxu0 0.0
    %5370 = vmatprep.subr.mxu0 0.0
    %5371 = vmatpush1.msra.mxu0 0.0
    %5372 = vmatprep.subr.mxu0 0.0
    %5373 = vmatpush1.msra.mxu0 0.0
    %5374 = vmatprep.mubr.f32.mxu0 0.0
    %5375 = vmatmul.mubr.f32.gmra.mrb[0].mxu0 %v5308
    %v5376 = vpop.f32.mrb[0].mxu0
    %v5377 = vadd.f32 %v4880, %v5376
    %v5378 = vpop.f32.mrb[0].mxu0
    %v5379 = vadd.f32 %v4884, %v5378
    %5380 = vdwg.mxu0
    %5381 = vmatprep.subr.mxu0 0.0
    %5382 = vmatpush1.msra.mxu0 %v4615
    %5383 = vmatprep.subr.mxu0 0.0
    %5384 = vmatpush1.msra.mxu0 %v4618
    %5385 = vmatprep.subr.mxu0 0.0
    %5386 = vmatpush1.msra.mxu0 %v4621
    %5387 = vmatprep.subr.mxu0 0.0
    %5388 = vmatpush1.msra.mxu0 %v4624
    %5389 = vmatprep.subr.mxu0 0.0
    %5390 = vmatpush1.msra.mxu0 %v4627
    %5391 = vmatprep.subr.mxu0 0.0
    %5392 = vmatpush1.msra.mxu0 %v4630
    %5393 = vmatprep.subr.mxu0 0.0
    %5394 = vmatpush1.msra.mxu0 %v4633
    %5395 = vmatprep.subr.mxu0 0.0
    %5396 = vmatpush1.msra.mxu0 %v4636
    %5397 = vmatprep.subr.mxu0 0.0
    %5398 = vmatpush1.msra.mxu0 %v4639
    %5399 = vmatprep.subr.mxu0 0.0
    %5400 = vmatpush1.msra.mxu0 %v4642
    %5401 = vmatprep.subr.mxu0 0.0
    %5402 = vmatpush1.msra.mxu0 %v4645
    %5403 = vmatprep.subr.mxu0 0.0
    %5404 = vmatpush1.msra.mxu0 %v4648
    %5405 = vmatprep.subr.mxu0 0.0
    %5406 = vmatpush1.msra.mxu0 %v4651
    %5407 = vmatprep.subr.mxu0 0.0
    %5408 = vmatpush1.msra.mxu0 %v4654
    %5409 = vmatprep.subr.mxu0 0.0
    %5410 = vmatpush1.msra.mxu0 %v4657
    %5411 = vmatprep.subr.mxu0 0.0
    %5412 = vmatpush1.msra.mxu0 %v4660
    %5413 = vmatprep.subr.mxu0 0.0
    %5414 = vmatpush1.msra.mxu0 0.0
    %5415 = vmatprep.subr.mxu0 0.0
    %5416 = vmatpush1.msra.mxu0 0.0
    %5417 = vmatprep.subr.mxu0 0.0
    %5418 = vmatpush1.msra.mxu0 0.0
    %5419 = vmatprep.subr.mxu0 0.0
    %5420 = vmatpush1.msra.mxu0 0.0
    %5421 = vmatprep.subr.mxu0 0.0
    %5422 = vmatpush1.msra.mxu0 0.0
    %5423 = vmatprep.subr.mxu0 0.0
    %5424 = vmatpush1.msra.mxu0 0.0
    %5425 = vmatprep.subr.mxu0 0.0
    %5426 = vmatpush1.msra.mxu0 0.0
    %5427 = vmatprep.subr.mxu0 0.0
    %5428 = vmatpush1.msra.mxu0 0.0
    %5429 = vmatprep.subr.mxu0 0.0
    %5430 = vmatpush1.msra.mxu0 0.0
    %5431 = vmatprep.subr.mxu0 0.0
    %5432 = vmatpush1.msra.mxu0 0.0
    %5433 = vmatprep.subr.mxu0 0.0
    %5434 = vmatpush1.msra.mxu0 0.0
    %5435 = vmatprep.subr.mxu0 0.0
    %5436 = vmatpush1.msra.mxu0 0.0
    %5437 = vmatprep.subr.mxu0 0.0
    %5438 = vmatpush1.msra.mxu0 0.0
    %5439 = vmatprep.subr.mxu0 0.0
    %5440 = vmatpush1.msra.mxu0 0.0
    %5441 = vmatprep.subr.mxu0 0.0
    %5442 = vmatpush1.msra.mxu0 0.0
    %5443 = vmatprep.subr.mxu0 0.0
    %5444 = vmatpush1.msra.mxu0 0.0
    %5445 = vmatprep.mubr.f32.mxu0 0.0
    %5446 = vmatmul.mubr.f32.gmra.mrb[0].mxu0 %v5308
    %v5447 = vpop.f32.mrb[0].mxu0
    %v5448 = vadd.f32 %v4888, %v5447
    %v5449 = vpop.f32.mrb[0].mxu0
    %5450 = vdwg.mxu0
    %v5452 = vrot.slane %v5377, 2
    %v5453 = vrot.slane %v5377, 3
    %v5456 = vadd.f32 %v4478, %v5452
    %v5457 = vadd.f32 %v4484, %v5453
    %v5458 = vxor.u32 %v5456, 2147483648
    %v5459 = vxor.u32 %v5457, 2147483648
    %v5460 = vmul.f32 %v5458, 1.442695
    %v5461 = vpow.pop %v5460
    %v5462 = vmul.f32 %v5459, 1.442695
    %v5463 = vpow.pop %v5462
    %v5464 = vadd.f32 %v5461, 1.0
    %v5465 = vadd.f32 %v5463, 1.0
    %v5466 = vrcp.pop %v5464
    %v5467 = vmul.f32 1.0, %v5466
    %v5468 = vrcp.pop %v5465
    %v5469 = vmul.f32 1.0, %v5468
    %v5471 = vrot.slane %v5379, 2
    %v5472 = vrot.slane %v5379, 3
    %v5475 = vadd.f32 %v4480, %v5471
    %v5476 = vadd.f32 %v4486, %v5472
    %v5477 = vxor.u32 %v5475, 2147483648
    %v5478 = vxor.u32 %v5476, 2147483648
    %v5479 = vmul.f32 %v5477, 1.442695
    %v5480 = vpow.pop %v5479
    %v5481 = vmul.f32 %v5478, 1.442695
    %v5482 = vpow.pop %v5481
    %v5483 = vadd.f32 %v5480, 1.0
    %v5484 = vadd.f32 %v5482, 1.0
    %v5485 = vrcp.pop %v5483
    %v5486 = vmul.f32 1.0, %v5485
    %v5487 = vrcp.pop %v5484
    %v5488 = vmul.f32 1.0, %v5487
    %v5490 = vrot.slane %v5448, 2
    %v5491 = vrot.slane %v5448, 3
    %v5494 = vmul.f32 %v5467, %v5490
    %v5495 = vmul.f32 %v5469, %v5491
    %v5496 = vadd.f32 %v4555, %v5494
    %v5497 = vadd.f32 %v4560, %v5495
    %v5498 = vtanh.pop %v5496
    %v5499 = vtanh.pop %v5497
    %v5500 = vsub.f32 1.0, %v5486
    %v5501 = vsub.f32 1.0, %v5488
    %v5502 = vmul.f32 %v5500, %v5498
    %v5503 = vmul.f32 %v5501, %v5499
    %v5504 = vrot.slane %v5092, 1
    %v5505 = vrot.slane %v5093, 1
    %v5508 = vmul.f32 %v5486, %v5504
    %v5509 = vmul.f32 %v5488, %v5505
    %v5510 = vadd.f32 %v5502, %v5508
    %v5511 = vadd.f32 %v5503, %v5509
    %v5512 = vsel %vm131, %v5305, %v5300
    %v5513 = vsel %vm132, %v5306, %v5106
    %v5514 = vsel %vm131, %v5510, %v5504
    %v5515 = vsel %vm132, %v5511, %v5505
    %v5518 = vrot.slane %v5512, 1
    %v5519 = vrot.slane %v5513, 1
    %5522 = vst [vmem:[#allocation3 + $0x1] sm:$0x1] %v5518
    %5523 = vst [vmem:[#allocation3 + $0x11] sm:$0x1] %v5519
    %v5526 = vrot.slane %v5514, 6
    %v5527 = vrot.slane %v5515, 6
    %5530 = vst [vmem:[#allocation3 + $0xe] sm:$0x1] %v5526
    %5531 = vst [vmem:[#allocation3 + $0x1e] sm:$0x1] %v5527
    %v5532 = vsel %vm1038, %v5513, %v5518
    %5534 = vmatprep.subr.mxu0 %v4565
    %5535 = vmatpush1.msra.mxu0 %v4564
    %5536 = vmatprep.subr.mxu0 %v4568
    %5537 = vmatpush1.msra.mxu0 %v4567
    %5538 = vmatprep.subr.mxu0 %v4571
    %5539 = vmatpush1.msra.mxu0 %v4570
    %5540 = vmatprep.subr.mxu0 %v4574
    %5541 = vmatpush1.msra.mxu0 %v4573
    %5542 = vmatprep.subr.mxu0 %v4577
    %5543 = vmatpush1.msra.mxu0 %v4576
    %5544 = vmatprep.subr.mxu0 %v4580
    %5545 = vmatpush1.msra.mxu0 %v4579
    %5546 = vmatprep.subr.mxu0 %v4583
    %5547 = vmatpush1.msra.mxu0 %v4582
    %5548 = vmatprep.subr.mxu0 %v4586
    %5549 = vmatpush1.msra.mxu0 %v4585
    %5550 = vmatprep.subr.mxu0 %v4589
    %5551 = vmatpush1.msra.mxu0 %v4588
    %5552 = vmatprep.subr.mxu0 %v4592
    %5553 = vmatpush1.msra.mxu0 %v4591
    %5554 = vmatprep.subr.mxu0 %v4595
    %5555 = vmatpush1.msra.mxu0 %v4594
    %5556 = vmatprep.subr.mxu0 %v4598
    %5557 = vmatpush1.msra.mxu0 %v4597
    %5558 = vmatprep.subr.mxu0 %v4601
    %5559 = vmatpush1.msra.mxu0 %v4600
    %5560 = vmatprep.subr.mxu0 %v4604
    %5561 = vmatpush1.msra.mxu0 %v4603
    %5562 = vmatprep.subr.mxu0 %v4607
    %5563 = vmatpush1.msra.mxu0 %v4606
    %5564 = vmatprep.subr.mxu0 %v4610
    %5565 = vmatpush1.msra.mxu0 %v4609
    %5566 = vmatprep.subr.mxu0 0.0
    %5567 = vmatpush1.msra.mxu0 0.0
    %5568 = vmatprep.subr.mxu0 0.0
    %5569 = vmatpush1.msra.mxu0 0.0
    %5570 = vmatprep.subr.mxu0 0.0
    %5571 = vmatpush1.msra.mxu0 0.0
    %5572 = vmatprep.subr.mxu0 0.0
    %5573 = vmatpush1.msra.mxu0 0.0
    %5574 = vmatprep.subr.mxu0 0.0
    %5575 = vmatpush1.msra.mxu0 0.0
    %5576 = vmatprep.subr.mxu0 0.0
    %5577 = vmatpush1.msra.mxu0 0.0
    %5578 = vmatprep.subr.mxu0 0.0
    %5579 = vmatpush1.msra.mxu0 0.0
    %5580 = vmatprep.subr.mxu0 0.0
    %5581 = vmatpush1.msra.mxu0 0.0
    %5582 = vmatprep.subr.mxu0 0.0
    %5583 = vmatpush1.msra.mxu0 0.0
    %5584 = vmatprep.subr.mxu0 0.0
    %5585 = vmatpush1.msra.mxu0 0.0
    %5586 = vmatprep.subr.mxu0 0.0
    %5587 = vmatpush1.msra.mxu0 0.0
    %5588 = vmatprep.subr.mxu0 0.0
    %5589 = vmatpush1.msra.mxu0 0.0
    %5590 = vmatprep.subr.mxu0 0.0
    %5591 = vmatpush1.msra.mxu0 0.0
    %5592 = vmatprep.subr.mxu0 0.0
    %5593 = vmatpush1.msra.mxu0 0.0
    %5594 = vmatprep.subr.mxu0 0.0
    %5595 = vmatpush1.msra.mxu0 0.0
    %5596 = vmatprep.subr.mxu0 0.0
    %5597 = vmatpush1.msra.mxu0 0.0
    %5598 = vmatprep.mubr.f32.mxu0 0.0
    %5599 = vmatmul.mubr.f32.gmra.mrb[0].mxu0 %v5532
    %v5600 = vpop.f32.mrb[0].mxu0
    %v5601 = vadd.f32 %v4669, %v5600
    %v5602 = vpop.f32.mrb[0].mxu0
    %v5603 = vadd.f32 %v4673, %v5602
    %5604 = vdwg.mxu0
    %5605 = vmatprep.subr.mxu0 0.0
    %5606 = vmatpush1.msra.mxu0 %v4566
    %5607 = vmatprep.subr.mxu0 0.0
    %5608 = vmatpush1.msra.mxu0 %v4569
    %5609 = vmatprep.subr.mxu0 0.0
    %5610 = vmatpush1.msra.mxu0 %v4572
    %5611 = vmatprep.subr.mxu0 0.0
    %5612 = vmatpush1.msra.mxu0 %v4575
    %5613 = vmatprep.subr.mxu0 0.0
    %5614 = vmatpush1.msra.mxu0 %v4578
    %5615 = vmatprep.subr.mxu0 0.0
    %5616 = vmatpush1.msra.mxu0 %v4581
    %5617 = vmatprep.subr.mxu0 0.0
    %5618 = vmatpush1.msra.mxu0 %v4584
    %5619 = vmatprep.subr.mxu0 0.0
    %5620 = vmatpush1.msra.mxu0 %v4587
    %5621 = vmatprep.subr.mxu0 0.0
    %5622 = vmatpush1.msra.mxu0 %v4590
    %5623 = vmatprep.subr.mxu0 0.0
    %5624 = vmatpush1.msra.mxu0 %v4593
    %5625 = vmatprep.subr.mxu0 0.0
    %5626 = vmatpush1.msra.mxu0 %v4596
    %5627 = vmatprep.subr.mxu0 0.0
    %5628 = vmatpush1.msra.mxu0 %v4599
    %5629 = vmatprep.subr.mxu0 0.0
    %5630 = vmatpush1.msra.mxu0 %v4602
    %5631 = vmatprep.subr.mxu0 0.0
    %5632 = vmatpush1.msra.mxu0 %v4605
    %5633 = vmatprep.subr.mxu0 0.0
    %5634 = vmatpush1.msra.mxu0 %v4608
    %5635 = vmatprep.subr.mxu0 0.0
    %5636 = vmatpush1.msra.mxu0 %v4611
    %5637 = vmatprep.subr.mxu0 0.0
    %5638 = vmatpush1.msra.mxu0 0.0
    %5639 = vmatprep.subr.mxu0 0.0
    %5640 = vmatpush1.msra.mxu0 0.0
    %5641 = vmatprep.subr.mxu0 0.0
    %5642 = vmatpush1.msra.mxu0 0.0
    %5643 = vmatprep.subr.mxu0 0.0
    %5644 = vmatpush1.msra.mxu0 0.0
    %5645 = vmatprep.subr.mxu0 0.0
    %5646 = vmatpush1.msra.mxu0 0.0
    %5647 = vmatprep.subr.mxu0 0.0
    %5648 = vmatpush1.msra.mxu0 0.0
    %5649 = vmatprep.subr.mxu0 0.0
    %5650 = vmatpush1.msra.mxu0 0.0
    %5651 = vmatprep.subr.mxu0 0.0
    %5652 = vmatpush1.msra.mxu0 0.0
    %5653 = vmatprep.subr.mxu0 0.0
    %5654 = vmatpush1.msra.mxu0 0.0
    %5655 = vmatprep.subr.mxu0 0.0
    %5656 = vmatpush1.msra.mxu0 0.0
    %5657 = vmatprep.subr.mxu0 0.0
    %5658 = vmatpush1.msra.mxu0 0.0
    %5659 = vmatprep.subr.mxu0 0.0
    %5660 = vmatpush1.msra.mxu0 0.0
    %5661 = vmatprep.subr.mxu0 0.0
    %5662 = vmatpush1.msra.mxu0 0.0
    %5663 = vmatprep.subr.mxu0 0.0
    %5664 = vmatpush1.msra.mxu0 0.0
    %5665 = vmatprep.subr.mxu0 0.0
    %5666 = vmatpush1.msra.mxu0 0.0
    %5667 = vmatprep.subr.mxu0 0.0
    %5668 = vmatpush1.msra.mxu0 0.0
    %5669 = vmatprep.mubr.f32.mxu0 0.0
    %5670 = vmatmul.mubr.f32.gmra.mrb[0].mxu0 %v5532
    %v5671 = vpop.f32.mrb[0].mxu0
    %v5672 = vadd.f32 %v4677, %v5671
    %v5673 = vpop.f32.mrb[0].mxu0
    %5674 = vdwg.mxu0
    %v5676 = vrot.slane %v5601, 6
    %v5677 = vrot.slane %v5601, 7
    %v5680 = vadd.f32 %v4211, %v5676
    %v5681 = vadd.f32 %v4217, %v5677
    %v5682 = vxor.u32 %v5680, 2147483648
    %v5683 = vxor.u32 %v5681, 2147483648
    %v5684 = vmul.f32 %v5682, 1.442695
    %v5685 = vpow.pop %v5684
    %v5686 = vmul.f32 %v5683, 1.442695
    %v5687 = vpow.pop %v5686
    %v5688 = vadd.f32 %v5685, 1.0
    %v5689 = vadd.f32 %v5687, 1.0
    %v5690 = vrcp.pop %v5688
    %v5691 = vmul.f32 1.0, %v5690
    %v5692 = vrcp.pop %v5689
    %v5693 = vmul.f32 1.0, %v5692
    %v5695 = vrot.slane %v5603, 6
    %v5696 = vrot.slane %v5603, 7
    %v5699 = vadd.f32 %v4213, %v5695
    %v5700 = vadd.f32 %v4219, %v5696
    %v5701 = vxor.u32 %v5699, 2147483648
    %v5702 = vxor.u32 %v5700, 2147483648
    %v5703 = vmul.f32 %v5701, 1.442695
    %v5704 = vpow.pop %v5703
    %v5705 = vmul.f32 %v5702, 1.442695
    %v5706 = vpow.pop %v5705
    %v5707 = vadd.f32 %v5704, 1.0
    %v5708 = vadd.f32 %v5706, 1.0
    %v5709 = vrcp.pop %v5707
    %v5710 = vmul.f32 1.0, %v5709
    %v5711 = vrcp.pop %v5708
    %v5712 = vmul.f32 1.0, %v5711
    %v5714 = vrot.slane %v5672, 6
    %v5715 = vrot.slane %v5672, 7
    %v5718 = vmul.f32 %v5691, %v5714
    %v5719 = vmul.f32 %v5693, %v5715
    %v5720 = vadd.f32 %v4288, %v5718
    %v5721 = vadd.f32 %v4293, %v5719
    %v5722 = vtanh.pop %v5720
    %v5723 = vtanh.pop %v5721
    %v5724 = vsub.f32 1.0, %v5710
    %v5725 = vsub.f32 1.0, %v5712
    %v5726 = vmul.f32 %v5724, %v5722
    %v5727 = vmul.f32 %v5725, %v5723
    %v5728 = vrot.slane %v5512, 7
    %v5729 = vrot.slane %v5513, 7
    %v5732 = vmul.f32 %v5710, %v5728
    %v5733 = vmul.f32 %v5712, %v5729
    %v5734 = vadd.f32 %v5726, %v5732
    %v5735 = vadd.f32 %v5727, %v5733
    %v5736 = vrot.slane %v5515, 5
    %v5737 = vsel %vm1038, %v5736, %v5526
    %5739 = vmatprep.subr.mxu0 %v4614
    %5740 = vmatpush1.msra.mxu0 %v4613
    %5741 = vmatprep.subr.mxu0 %v4617
    %5742 = vmatpush1.msra.mxu0 %v4616
    %5743 = vmatprep.subr.mxu0 %v4620
    %5744 = vmatpush1.msra.mxu0 %v4619
    %5745 = vmatprep.subr.mxu0 %v4623
    %5746 = vmatpush1.msra.mxu0 %v4622
    %5747 = vmatprep.subr.mxu0 %v4626
    %5748 = vmatpush1.msra.mxu0 %v4625
    %5749 = vmatprep.subr.mxu0 %v4629
    %5750 = vmatpush1.msra.mxu0 %v4628
    %5751 = vmatprep.subr.mxu0 %v4632
    %5752 = vmatpush1.msra.mxu0 %v4631
    %5753 = vmatprep.subr.mxu0 %v4635
    %5754 = vmatpush1.msra.mxu0 %v4634
    %5755 = vmatprep.subr.mxu0 %v4638
    %5756 = vmatpush1.msra.mxu0 %v4637
    %5757 = vmatprep.subr.mxu0 %v4641
    %5758 = vmatpush1.msra.mxu0 %v4640
    %5759 = vmatprep.subr.mxu0 %v4644
    %5760 = vmatpush1.msra.mxu0 %v4643
    %5761 = vmatprep.subr.mxu0 %v4647
    %5762 = vmatpush1.msra.mxu0 %v4646
    %5763 = vmatprep.subr.mxu0 %v4650
    %5764 = vmatpush1.msra.mxu0 %v4649
    %5765 = vmatprep.subr.mxu0 %v4653
    %5766 = vmatpush1.msra.mxu0 %v4652
    %5767 = vmatprep.subr.mxu0 %v4656
    %5768 = vmatpush1.msra.mxu0 %v4655
    %5769 = vmatprep.subr.mxu0 %v4659
    %5770 = vmatpush1.msra.mxu0 %v4658
    %5771 = vmatprep.subr.mxu0 0.0
    %5772 = vmatpush1.msra.mxu0 0.0
    %5773 = vmatprep.subr.mxu0 0.0
    %5774 = vmatpush1.msra.mxu0 0.0
    %5775 = vmatprep.subr.mxu0 0.0
    %5776 = vmatpush1.msra.mxu0 0.0
    %5777 = vmatprep.subr.mxu0 0.0
    %5778 = vmatpush1.msra.mxu0 0.0
    %5779 = vmatprep.subr.mxu0 0.0
    %5780 = vmatpush1.msra.mxu0 0.0
    %5781 = vmatprep.subr.mxu0 0.0
    %5782 = vmatpush1.msra.mxu0 0.0
    %5783 = vmatprep.subr.mxu0 0.0
    %5784 = vmatpush1.msra.mxu0 0.0
    %5785 = vmatprep.subr.mxu0 0.0
    %5786 = vmatpush1.msra.mxu0 0.0
    %5787 = vmatprep.subr.mxu0 0.0
    %5788 = vmatpush1.msra.mxu0 0.0
    %5789 = vmatprep.subr.mxu0 0.0
    %5790 = vmatpush1.msra.mxu0 0.0
    %5791 = vmatprep.subr.mxu0 0.0
    %5792 = vmatpush1.msra.mxu0 0.0
    %5793 = vmatprep.subr.mxu0 0.0
    %5794 = vmatpush1.msra.mxu0 0.0
    %5795 = vmatprep.subr.mxu0 0.0
    %5796 = vmatpush1.msra.mxu0 0.0
    %5797 = vmatprep.subr.mxu0 0.0
    %5798 = vmatpush1.msra.mxu0 0.0
    %5799 = vmatprep.subr.mxu0 0.0
    %5800 = vmatpush1.msra.mxu0 0.0
    %5801 = vmatprep.subr.mxu0 0.0
    %5802 = vmatpush1.msra.mxu0 0.0
    %5803 = vmatprep.mubr.f32.mxu0 0.0
    %5804 = vmatmul.mubr.f32.gmra.mrb[0].mxu0 %v5737
    %v5805 = vpop.f32.mrb[0].mxu0
    %v5806 = vadd.f32 %v4880, %v5805
    %v5807 = vpop.f32.mrb[0].mxu0
    %v5808 = vadd.f32 %v4884, %v5807
    %5809 = vdwg.mxu0
    %5810 = vmatprep.subr.mxu0 0.0
    %5811 = vmatpush1.msra.mxu0 %v4615
    %5812 = vmatprep.subr.mxu0 0.0
    %5813 = vmatpush1.msra.mxu0 %v4618
    %5814 = vmatprep.subr.mxu0 0.0
    %5815 = vmatpush1.msra.mxu0 %v4621
    %5816 = vmatprep.subr.mxu0 0.0
    %5817 = vmatpush1.msra.mxu0 %v4624
    %5818 = vmatprep.subr.mxu0 0.0
    %5819 = vmatpush1.msra.mxu0 %v4627
    %5820 = vmatprep.subr.mxu0 0.0
    %5821 = vmatpush1.msra.mxu0 %v4630
    %5822 = vmatprep.subr.mxu0 0.0
    %5823 = vmatpush1.msra.mxu0 %v4633
    %5824 = vmatprep.subr.mxu0 0.0
    %5825 = vmatpush1.msra.mxu0 %v4636
    %5826 = vmatprep.subr.mxu0 0.0
    %5827 = vmatpush1.msra.mxu0 %v4639
    %5828 = vmatprep.subr.mxu0 0.0
    %5829 = vmatpush1.msra.mxu0 %v4642
    %5830 = vmatprep.subr.mxu0 0.0
    %5831 = vmatpush1.msra.mxu0 %v4645
    %5832 = vmatprep.subr.mxu0 0.0
    %5833 = vmatpush1.msra.mxu0 %v4648
    %5834 = vmatprep.subr.mxu0 0.0
    %5835 = vmatpush1.msra.mxu0 %v4651
    %5836 = vmatprep.subr.mxu0 0.0
    %5837 = vmatpush1.msra.mxu0 %v4654
    %5838 = vmatprep.subr.mxu0 0.0
    %5839 = vmatpush1.msra.mxu0 %v4657
    %5840 = vmatprep.subr.mxu0 0.0
    %5841 = vmatpush1.msra.mxu0 %v4660
    %5842 = vmatprep.subr.mxu0 0.0
    %5843 = vmatpush1.msra.mxu0 0.0
    %5844 = vmatprep.subr.mxu0 0.0
    %5845 = vmatpush1.msra.mxu0 0.0
    %5846 = vmatprep.subr.mxu0 0.0
    %5847 = vmatpush1.msra.mxu0 0.0
    %5848 = vmatprep.subr.mxu0 0.0
    %5849 = vmatpush1.msra.mxu0 0.0
    %5850 = vmatprep.subr.mxu0 0.0
    %5851 = vmatpush1.msra.mxu0 0.0
    %5852 = vmatprep.subr.mxu0 0.0
    %5853 = vmatpush1.msra.mxu0 0.0
    %5854 = vmatprep.subr.mxu0 0.0
    %5855 = vmatpush1.msra.mxu0 0.0
    %5856 = vmatprep.subr.mxu0 0.0
    %5857 = vmatpush1.msra.mxu0 0.0
    %5858 = vmatprep.subr.mxu0 0.0
    %5859 = vmatpush1.msra.mxu0 0.0
    %5860 = vmatprep.subr.mxu0 0.0
    %5861 = vmatpush1.msra.mxu0 0.0
    %5862 = vmatprep.subr.mxu0 0.0
    %5863 = vmatpush1.msra.mxu0 0.0
    %5864 = vmatprep.subr.mxu0 0.0
    %5865 = vmatpush1.msra.mxu0 0.0
    %5866 = vmatprep.subr.mxu0 0.0
    %5867 = vmatpush1.msra.mxu0 0.0
    %5868 = vmatprep.subr.mxu0 0.0
    %5869 = vmatpush1.msra.mxu0 0.0
    %5870 = vmatprep.subr.mxu0 0.0
    %5871 = vmatpush1.msra.mxu0 0.0
    %5872 = vmatprep.subr.mxu0 0.0
    %5873 = vmatpush1.msra.mxu0 0.0
    %5874 = vmatprep.mubr.f32.mxu0 0.0
    %5875 = vmatmul.mubr.f32.gmra.mrb[0].mxu0 %v5737
    %v5876 = vpop.f32.mrb[0].mxu0
    %v5877 = vadd.f32 %v4888, %v5876
    %v5878 = vpop.f32.mrb[0].mxu0
    %5879 = vdwg.mxu0
    %v5881 = vrot.slane %v5806, 3
    %v5882 = vrot.slane %v5806, 4
    %v5885 = vadd.f32 %v4478, %v5881
    %v5886 = vadd.f32 %v4484, %v5882
    %v5887 = vxor.u32 %v5885, 2147483648
    %v5888 = vxor.u32 %v5886, 2147483648
    %v5889 = vmul.f32 %v5887, 1.442695
    %v5890 = vpow.pop %v5889
    %v5891 = vmul.f32 %v5888, 1.442695
    %v5892 = vpow.pop %v5891
    %v5893 = vadd.f32 %v5890, 1.0
    %v5894 = vadd.f32 %v5892, 1.0
    %v5895 = vrcp.pop %v5893
    %v5896 = vmul.f32 1.0, %v5895
    %v5897 = vrcp.pop %v5894
    %v5898 = vmul.f32 1.0, %v5897
    %v5900 = vrot.slane %v5808, 3
    %v5901 = vrot.slane %v5808, 4
    %v5904 = vadd.f32 %v4480, %v5900
    %v5905 = vadd.f32 %v4486, %v5901
    %v5906 = vxor.u32 %v5904, 2147483648
    %v5907 = vxor.u32 %v5905, 2147483648
    %v5908 = vmul.f32 %v5906, 1.442695
    %v5909 = vpow.pop %v5908
    %v5910 = vmul.f32 %v5907, 1.442695
    %v5911 = vpow.pop %v5910
    %v5912 = vadd.f32 %v5909, 1.0
    %v5913 = vadd.f32 %v5911, 1.0
    %v5914 = vrcp.pop %v5912
    %v5915 = vmul.f32 1.0, %v5914
    %v5916 = vrcp.pop %v5913
    %v5917 = vmul.f32 1.0, %v5916
    %v5919 = vrot.slane %v5877, 3
    %v5920 = vrot.slane %v5877, 4
    %v5923 = vmul.f32 %v5896, %v5919
    %v5924 = vmul.f32 %v5898, %v5920
    %v5925 = vadd.f32 %v4555, %v5923
    %v5926 = vadd.f32 %v4560, %v5924
    %v5927 = vtanh.pop %v5925
    %v5928 = vtanh.pop %v5926
    %v5929 = vsub.f32 1.0, %v5915
    %v5930 = vsub.f32 1.0, %v5917
    %v5931 = vmul.f32 %v5929, %v5927
    %v5932 = vmul.f32 %v5930, %v5928
    %v5933 = vrot.slane %v5514, 1
    %v5934 = vrot.slane %v5515, 1
    %v5937 = vmul.f32 %v5915, %v5933
    %v5938 = vmul.f32 %v5917, %v5934
    %v5939 = vadd.f32 %v5931, %v5937
    %v5940 = vadd.f32 %v5932, %v5938
    %v5941 = vsel %vm131, %v5734, %v5728
    %v5942 = vsel %vm132, %v5735, %v5729
    %v5943 = vsel %vm131, %v5939, %v5933
    %v5944 = vsel %vm132, %v5940, %v5934
    %v5947 = vrot.slane %v5941, 2
    %v5948 = vrot.slane %v5942, 2
    %5951 = vst [vmem:[#allocation3 + $0x2] sm:$0x1] %v5947
    %5952 = vst [vmem:[#allocation3 + $0x12] sm:$0x1] %v5948
    %v5955 = vrot.slane %v5943, 5
    %v5956 = vrot.slane %v5944, 5
    %5959 = vst [vmem:[#allocation3 + $0xd] sm:$0x1] %v5955
    %5960 = vst [vmem:[#allocation3 + $0x1d] sm:$0x1] %v5956
    %v5961 = vrot.slane %v5942, 1
    %v5962 = vsel %vm1038, %v5961, %v5947
    %5964 = vmatprep.subr.mxu0 %v4565
    %5965 = vmatpush1.msra.mxu0 %v4564
    %5966 = vmatprep.subr.mxu0 %v4568
    %5967 = vmatpush1.msra.mxu0 %v4567
    %5968 = vmatprep.subr.mxu0 %v4571
    %5969 = vmatpush1.msra.mxu0 %v4570
    %5970 = vmatprep.subr.mxu0 %v4574
    %5971 = vmatpush1.msra.mxu0 %v4573
    %5972 = vmatprep.subr.mxu0 %v4577
    %5973 = vmatpush1.msra.mxu0 %v4576
    %5974 = vmatprep.subr.mxu0 %v4580
    %5975 = vmatpush1.msra.mxu0 %v4579
    %5976 = vmatprep.subr.mxu0 %v4583
    %5977 = vmatpush1.msra.mxu0 %v4582
    %5978 = vmatprep.subr.mxu0 %v4586
    %5979 = vmatpush1.msra.mxu0 %v4585
    %5980 = vmatprep.subr.mxu0 %v4589
    %5981 = vmatpush1.msra.mxu0 %v4588
    %5982 = vmatprep.subr.mxu0 %v4592
    %5983 = vmatpush1.msra.mxu0 %v4591
    %5984 = vmatprep.subr.mxu0 %v4595
    %5985 = vmatpush1.msra.mxu0 %v4594
    %5986 = vmatprep.subr.mxu0 %v4598
    %5987 = vmatpush1.msra.mxu0 %v4597
    %5988 = vmatprep.subr.mxu0 %v4601
    %5989 = vmatpush1.msra.mxu0 %v4600
    %5990 = vmatprep.subr.mxu0 %v4604
    %5991 = vmatpush1.msra.mxu0 %v4603
    %5992 = vmatprep.subr.mxu0 %v4607
    %5993 = vmatpush1.msra.mxu0 %v4606
    %5994 = vmatprep.subr.mxu0 %v4610
    %5995 = vmatpush1.msra.mxu0 %v4609
    %5996 = vmatprep.subr.mxu0 0.0
    %5997 = vmatpush1.msra.mxu0 0.0
    %5998 = vmatprep.subr.mxu0 0.0
    %5999 = vmatpush1.msra.mxu0 0.0
    %6000 = vmatprep.subr.mxu0 0.0
    %6001 = vmatpush1.msra.mxu0 0.0
    %6002 = vmatprep.subr.mxu0 0.0
    %6003 = vmatpush1.msra.mxu0 0.0
    %6004 = vmatprep.subr.mxu0 0.0
    %6005 = vmatpush1.msra.mxu0 0.0
    %6006 = vmatprep.subr.mxu0 0.0
    %6007 = vmatpush1.msra.mxu0 0.0
    %6008 = vmatprep.subr.mxu0 0.0
    %6009 = vmatpush1.msra.mxu0 0.0
    %6010 = vmatprep.subr.mxu0 0.0
    %6011 = vmatpush1.msra.mxu0 0.0
    %6012 = vmatprep.subr.mxu0 0.0
    %6013 = vmatpush1.msra.mxu0 0.0
    %6014 = vmatprep.subr.mxu0 0.0
    %6015 = vmatpush1.msra.mxu0 0.0
    %6016 = vmatprep.subr.mxu0 0.0
    %6017 = vmatpush1.msra.mxu0 0.0
    %6018 = vmatprep.subr.mxu0 0.0
    %6019 = vmatpush1.msra.mxu0 0.0
    %6020 = vmatprep.subr.mxu0 0.0
    %6021 = vmatpush1.msra.mxu0 0.0
    %6022 = vmatprep.subr.mxu0 0.0
    %6023 = vmatpush1.msra.mxu0 0.0
    %6024 = vmatprep.subr.mxu0 0.0
    %6025 = vmatpush1.msra.mxu0 0.0
    %6026 = vmatprep.subr.mxu0 0.0
    %6027 = vmatpush1.msra.mxu0 0.0
    %6028 = vmatprep.mubr.f32.mxu0 0.0
    %6029 = vmatmul.mubr.f32.gmra.mrb[0].mxu0 %v5962
    %v6030 = vpop.f32.mrb[0].mxu0
    %v6031 = vadd.f32 %v4669, %v6030
    %v6032 = vpop.f32.mrb[0].mxu0
    %v6033 = vadd.f32 %v4673, %v6032
    %6034 = vdwg.mxu0
    %6035 = vmatprep.subr.mxu0 0.0
    %6036 = vmatpush1.msra.mxu0 %v4566
    %6037 = vmatprep.subr.mxu0 0.0
    %6038 = vmatpush1.msra.mxu0 %v4569
    %6039 = vmatprep.subr.mxu0 0.0
    %6040 = vmatpush1.msra.mxu0 %v4572
    %6041 = vmatprep.subr.mxu0 0.0
    %6042 = vmatpush1.msra.mxu0 %v4575
    %6043 = vmatprep.subr.mxu0 0.0
    %6044 = vmatpush1.msra.mxu0 %v4578
    %6045 = vmatprep.subr.mxu0 0.0
    %6046 = vmatpush1.msra.mxu0 %v4581
    %6047 = vmatprep.subr.mxu0 0.0
    %6048 = vmatpush1.msra.mxu0 %v4584
    %6049 = vmatprep.subr.mxu0 0.0
    %6050 = vmatpush1.msra.mxu0 %v4587
    %6051 = vmatprep.subr.mxu0 0.0
    %6052 = vmatpush1.msra.mxu0 %v4590
    %6053 = vmatprep.subr.mxu0 0.0
    %6054 = vmatpush1.msra.mxu0 %v4593
    %6055 = vmatprep.subr.mxu0 0.0
    %6056 = vmatpush1.msra.mxu0 %v4596
    %6057 = vmatprep.subr.mxu0 0.0
    %6058 = vmatpush1.msra.mxu0 %v4599
    %6059 = vmatprep.subr.mxu0 0.0
    %6060 = vmatpush1.msra.mxu0 %v4602
    %6061 = vmatprep.subr.mxu0 0.0
    %6062 = vmatpush1.msra.mxu0 %v4605
    %6063 = vmatprep.subr.mxu0 0.0
    %6064 = vmatpush1.msra.mxu0 %v4608
    %6065 = vmatprep.subr.mxu0 0.0
    %6066 = vmatpush1.msra.mxu0 %v4611
    %6067 = vmatprep.subr.mxu0 0.0
    %6068 = vmatpush1.msra.mxu0 0.0
    %6069 = vmatprep.subr.mxu0 0.0
    %6070 = vmatpush1.msra.mxu0 0.0
    %6071 = vmatprep.subr.mxu0 0.0
    %6072 = vmatpush1.msra.mxu0 0.0
    %6073 = vmatprep.subr.mxu0 0.0
    %6074 = vmatpush1.msra.mxu0 0.0
    %6075 = vmatprep.subr.mxu0 0.0
    %6076 = vmatpush1.msra.mxu0 0.0
    %6077 = vmatprep.subr.mxu0 0.0
    %6078 = vmatpush1.msra.mxu0 0.0
    %6079 = vmatprep.subr.mxu0 0.0
    %6080 = vmatpush1.msra.mxu0 0.0
    %6081 = vmatprep.subr.mxu0 0.0
    %6082 = vmatpush1.msra.mxu0 0.0
    %6083 = vmatprep.subr.mxu0 0.0
    %6084 = vmatpush1.msra.mxu0 0.0
    %6085 = vmatprep.subr.mxu0 0.0
    %6086 = vmatpush1.msra.mxu0 0.0
    %6087 = vmatprep.subr.mxu0 0.0
    %6088 = vmatpush1.msra.mxu0 0.0
    %6089 = vmatprep.subr.mxu0 0.0
    %6090 = vmatpush1.msra.mxu0 0.0
    %6091 = vmatprep.subr.mxu0 0.0
    %6092 = vmatpush1.msra.mxu0 0.0
    %6093 = vmatprep.subr.mxu0 0.0
    %6094 = vmatpush1.msra.mxu0 0.0
    %6095 = vmatprep.subr.mxu0 0.0
    %6096 = vmatpush1.msra.mxu0 0.0
    %6097 = vmatprep.subr.mxu0 0.0
    %6098 = vmatpush1.msra.mxu0 0.0
    %6099 = vmatprep.mubr.f32.mxu0 0.0
    %6100 = vmatmul.mubr.f32.gmra.mrb[0].mxu0 %v5962
    %v6101 = vpop.f32.mrb[0].mxu0
    %v6102 = vadd.f32 %v4677, %v6101
    %v6103 = vpop.f32.mrb[0].mxu0
    %6104 = vdwg.mxu0
    %v6106 = vrot.slane %v6031, 5
    %v6107 = vrot.slane %v6031, 6
    %v6110 = vadd.f32 %v4211, %v6106
    %v6111 = vadd.f32 %v4217, %v6107
    %v6112 = vxor.u32 %v6110, 2147483648
    %v6113 = vxor.u32 %v6111, 2147483648
    %v6114 = vmul.f32 %v6112, 1.442695
    %v6115 = vpow.pop %v6114
    %v6116 = vmul.f32 %v6113, 1.442695
    %v6117 = vpow.pop %v6116
    %v6118 = vadd.f32 %v6115, 1.0
    %v6119 = vadd.f32 %v6117, 1.0
    %v6120 = vrcp.pop %v6118
    %v6121 = vmul.f32 1.0, %v6120
    %v6122 = vrcp.pop %v6119
    %v6123 = vmul.f32 1.0, %v6122
    %v6125 = vrot.slane %v6033, 5
    %v6126 = vrot.slane %v6033, 6
    %v6129 = vadd.f32 %v4213, %v6125
    %v6130 = vadd.f32 %v4219, %v6126
    %v6131 = vxor.u32 %v6129, 2147483648
    %v6132 = vxor.u32 %v6130, 2147483648
    %v6133 = vmul.f32 %v6131, 1.442695
    %v6134 = vpow.pop %v6133
    %v6135 = vmul.f32 %v6132, 1.442695
    %v6136 = vpow.pop %v6135
    %v6137 = vadd.f32 %v6134, 1.0
    %v6138 = vadd.f32 %v6136, 1.0
    %v6139 = vrcp.pop %v6137
    %v6140 = vmul.f32 1.0, %v6139
    %v6141 = vrcp.pop %v6138
    %v6142 = vmul.f32 1.0, %v6141
    %v6144 = vrot.slane %v6102, 5
    %v6145 = vrot.slane %v6102, 6
    %v6148 = vmul.f32 %v6121, %v6144
    %v6149 = vmul.f32 %v6123, %v6145
    %v6150 = vadd.f32 %v4288, %v6148
    %v6151 = vadd.f32 %v4293, %v6149
    %v6152 = vtanh.pop %v6150
    %v6153 = vtanh.pop %v6151
    %v6154 = vsub.f32 1.0, %v6140
    %v6155 = vsub.f32 1.0, %v6142
    %v6156 = vmul.f32 %v6154, %v6152
    %v6157 = vmul.f32 %v6155, %v6153
    %v6158 = vrot.slane %v5941, 7
    %v6159 = vrot.slane %v5942, 7
    %v6162 = vmul.f32 %v6140, %v6158
    %v6163 = vmul.f32 %v6142, %v6159
    %v6164 = vadd.f32 %v6156, %v6162
    %v6165 = vadd.f32 %v6157, %v6163
    %v6166 = vrot.slane %v5944, 4
    %v6167 = vsel %vm1038, %v6166, %v5955
    %6169 = vmatprep.subr.mxu0 %v4614
    %6170 = vmatpush1.msra.mxu0 %v4613
    %6171 = vmatprep.subr.mxu0 %v4617
    %6172 = vmatpush1.msra.mxu0 %v4616
    %6173 = vmatprep.subr.mxu0 %v4620
    %6174 = vmatpush1.msra.mxu0 %v4619
    %6175 = vmatprep.subr.mxu0 %v4623
    %6176 = vmatpush1.msra.mxu0 %v4622
    %6177 = vmatprep.subr.mxu0 %v4626
    %6178 = vmatpush1.msra.mxu0 %v4625
    %6179 = vmatprep.subr.mxu0 %v4629
    %6180 = vmatpush1.msra.mxu0 %v4628
    %6181 = vmatprep.subr.mxu0 %v4632
    %6182 = vmatpush1.msra.mxu0 %v4631
    %6183 = vmatprep.subr.mxu0 %v4635
    %6184 = vmatpush1.msra.mxu0 %v4634
    %6185 = vmatprep.subr.mxu0 %v4638
    %6186 = vmatpush1.msra.mxu0 %v4637
    %6187 = vmatprep.subr.mxu0 %v4641
    %6188 = vmatpush1.msra.mxu0 %v4640
    %6189 = vmatprep.subr.mxu0 %v4644
    %6190 = vmatpush1.msra.mxu0 %v4643
    %6191 = vmatprep.subr.mxu0 %v4647
    %6192 = vmatpush1.msra.mxu0 %v4646
    %6193 = vmatprep.subr.mxu0 %v4650
    %6194 = vmatpush1.msra.mxu0 %v4649
    %6195 = vmatprep.subr.mxu0 %v4653
    %6196 = vmatpush1.msra.mxu0 %v4652
    %6197 = vmatprep.subr.mxu0 %v4656
    %6198 = vmatpush1.msra.mxu0 %v4655
    %6199 = vmatprep.subr.mxu0 %v4659
    %6200 = vmatpush1.msra.mxu0 %v4658
    %6201 = vmatprep.subr.mxu0 0.0
    %6202 = vmatpush1.msra.mxu0 0.0
    %6203 = vmatprep.subr.mxu0 0.0
    %6204 = vmatpush1.msra.mxu0 0.0
    %6205 = vmatprep.subr.mxu0 0.0
    %6206 = vmatpush1.msra.mxu0 0.0
    %6207 = vmatprep.subr.mxu0 0.0
    %6208 = vmatpush1.msra.mxu0 0.0
    %6209 = vmatprep.subr.mxu0 0.0
    %6210 = vmatpush1.msra.mxu0 0.0
    %6211 = vmatprep.subr.mxu0 0.0
    %6212 = vmatpush1.msra.mxu0 0.0
    %6213 = vmatprep.subr.mxu0 0.0
    %6214 = vmatpush1.msra.mxu0 0.0
    %6215 = vmatprep.subr.mxu0 0.0
    %6216 = vmatpush1.msra.mxu0 0.0
    %6217 = vmatprep.subr.mxu0 0.0
    %6218 = vmatpush1.msra.mxu0 0.0
    %6219 = vmatprep.subr.mxu0 0.0
    %6220 = vmatpush1.msra.mxu0 0.0
    %6221 = vmatprep.subr.mxu0 0.0
    %6222 = vmatpush1.msra.mxu0 0.0
    %6223 = vmatprep.subr.mxu0 0.0
    %6224 = vmatpush1.msra.mxu0 0.0
    %6225 = vmatprep.subr.mxu0 0.0
    %6226 = vmatpush1.msra.mxu0 0.0
    %6227 = vmatprep.subr.mxu0 0.0
    %6228 = vmatpush1.msra.mxu0 0.0
    %6229 = vmatprep.subr.mxu0 0.0
    %6230 = vmatpush1.msra.mxu0 0.0
    %6231 = vmatprep.subr.mxu0 0.0
    %6232 = vmatpush1.msra.mxu0 0.0
    %6233 = vmatprep.mubr.f32.mxu0 0.0
    %6234 = vmatmul.mubr.f32.gmra.mrb[0].mxu0 %v6167
    %v6235 = vpop.f32.mrb[0].mxu0
    %v6236 = vadd.f32 %v4880, %v6235
    %v6237 = vpop.f32.mrb[0].mxu0
    %v6238 = vadd.f32 %v4884, %v6237
    %6239 = vdwg.mxu0
    %6240 = vmatprep.subr.mxu0 0.0
    %6241 = vmatpush1.msra.mxu0 %v4615
    %6242 = vmatprep.subr.mxu0 0.0
    %6243 = vmatpush1.msra.mxu0 %v4618
    %6244 = vmatprep.subr.mxu0 0.0
    %6245 = vmatpush1.msra.mxu0 %v4621
    %6246 = vmatprep.subr.mxu0 0.0
    %6247 = vmatpush1.msra.mxu0 %v4624
    %6248 = vmatprep.subr.mxu0 0.0
    %6249 = vmatpush1.msra.mxu0 %v4627
    %6250 = vmatprep.subr.mxu0 0.0
    %6251 = vmatpush1.msra.mxu0 %v4630
    %6252 = vmatprep.subr.mxu0 0.0
    %6253 = vmatpush1.msra.mxu0 %v4633
    %6254 = vmatprep.subr.mxu0 0.0
    %6255 = vmatpush1.msra.mxu0 %v4636
    %6256 = vmatprep.subr.mxu0 0.0
    %6257 = vmatpush1.msra.mxu0 %v4639
    %6258 = vmatprep.subr.mxu0 0.0
    %6259 = vmatpush1.msra.mxu0 %v4642
    %6260 = vmatprep.subr.mxu0 0.0
    %6261 = vmatpush1.msra.mxu0 %v4645
    %6262 = vmatprep.subr.mxu0 0.0
    %6263 = vmatpush1.msra.mxu0 %v4648
    %6264 = vmatprep.subr.mxu0 0.0
    %6265 = vmatpush1.msra.mxu0 %v4651
    %6266 = vmatprep.subr.mxu0 0.0
    %6267 = vmatpush1.msra.mxu0 %v4654
    %6268 = vmatprep.subr.mxu0 0.0
    %6269 = vmatpush1.msra.mxu0 %v4657
    %6270 = vmatprep.subr.mxu0 0.0
    %6271 = vmatpush1.msra.mxu0 %v4660
    %6272 = vmatprep.subr.mxu0 0.0
    %6273 = vmatpush1.msra.mxu0 0.0
    %6274 = vmatprep.subr.mxu0 0.0
    %6275 = vmatpush1.msra.mxu0 0.0
    %6276 = vmatprep.subr.mxu0 0.0
    %6277 = vmatpush1.msra.mxu0 0.0
    %6278 = vmatprep.subr.mxu0 0.0
    %6279 = vmatpush1.msra.mxu0 0.0
    %6280 = vmatprep.subr.mxu0 0.0
    %6281 = vmatpush1.msra.mxu0 0.0
    %6282 = vmatprep.subr.mxu0 0.0
    %6283 = vmatpush1.msra.mxu0 0.0
    %6284 = vmatprep.subr.mxu0 0.0
    %6285 = vmatpush1.msra.mxu0 0.0
    %6286 = vmatprep.subr.mxu0 0.0
    %6287 = vmatpush1.msra.mxu0 0.0
    %6288 = vmatprep.subr.mxu0 0.0
    %6289 = vmatpush1.msra.mxu0 0.0
    %6290 = vmatprep.subr.mxu0 0.0
    %6291 = vmatpush1.msra.mxu0 0.0
    %6292 = vmatprep.subr.mxu0 0.0
    %6293 = vmatpush1.msra.mxu0 0.0
    %6294 = vmatprep.subr.mxu0 0.0
    %6295 = vmatpush1.msra.mxu0 0.0
    %6296 = vmatprep.subr.mxu0 0.0
    %6297 = vmatpush1.msra.mxu0 0.0
    %6298 = vmatprep.subr.mxu0 0.0
    %6299 = vmatpush1.msra.mxu0 0.0
    %6300 = vmatprep.subr.mxu0 0.0
    %6301 = vmatpush1.msra.mxu0 0.0
    %6302 = vmatprep.subr.mxu0 0.0
    %6303 = vmatpush1.msra.mxu0 0.0
    %6304 = vmatprep.mubr.f32.mxu0 0.0
    %6305 = vmatmul.mubr.f32.gmra.mrb[0].mxu0 %v6167
    %v6306 = vpop.f32.mrb[0].mxu0
    %v6307 = vadd.f32 %v4888, %v6306
    %v6308 = vpop.f32.mrb[0].mxu0
    %6309 = vdwg.mxu0
    %v6311 = vrot.slane %v6236, 4
    %v6312 = vrot.slane %v6236, 5
    %v6315 = vadd.f32 %v4478, %v6311
    %v6316 = vadd.f32 %v4484, %v6312
    %v6317 = vxor.u32 %v6315, 2147483648
    %v6318 = vxor.u32 %v6316, 2147483648
    %v6319 = vmul.f32 %v6317, 1.442695
    %v6320 = vpow.pop %v6319
    %v6321 = vmul.f32 %v6318, 1.442695
    %v6322 = vpow.pop %v6321
    %v6323 = vadd.f32 %v6320, 1.0
    %v6324 = vadd.f32 %v6322, 1.0
    %v6325 = vrcp.pop %v6323
    %v6326 = vmul.f32 1.0, %v6325
    %v6327 = vrcp.pop %v6324
    %v6328 = vmul.f32 1.0, %v6327
    %v6330 = vrot.slane %v6238, 4
    %v6331 = vrot.slane %v6238, 5
    %v6334 = vadd.f32 %v4480, %v6330
    %v6335 = vadd.f32 %v4486, %v6331
    %v6336 = vxor.u32 %v6334, 2147483648
    %v6337 = vxor.u32 %v6335, 2147483648
    %v6338 = vmul.f32 %v6336, 1.442695
    %v6339 = vpow.pop %v6338
    %v6340 = vmul.f32 %v6337, 1.442695
    %v6341 = vpow.pop %v6340
    %v6342 = vadd.f32 %v6339, 1.0
    %v6343 = vadd.f32 %v6341, 1.0
    %v6344 = vrcp.pop %v6342
    %v6345 = vmul.f32 1.0, %v6344
    %v6346 = vrcp.pop %v6343
    %v6347 = vmul.f32 1.0, %v6346
    %v6349 = vrot.slane %v6307, 4
    %v6350 = vrot.slane %v6307, 5
    %v6353 = vmul.f32 %v6326, %v6349
    %v6354 = vmul.f32 %v6328, %v6350
    %v6355 = vadd.f32 %v4555, %v6353
    %v6356 = vadd.f32 %v4560, %v6354
    %v6357 = vtanh.pop %v6355
    %v6358 = vtanh.pop %v6356
    %v6359 = vsub.f32 1.0, %v6345
    %v6360 = vsub.f32 1.0, %v6347
    %v6361 = vmul.f32 %v6359, %v6357
    %v6362 = vmul.f32 %v6360, %v6358
    %v6363 = vrot.slane %v5943, 1
    %v6364 = vrot.slane %v5944, 1
    %v6367 = vmul.f32 %v6345, %v6363
    %v6368 = vmul.f32 %v6347, %v6364
    %v6369 = vadd.f32 %v6361, %v6367
    %v6370 = vadd.f32 %v6362, %v6368
    %v6371 = vsel %vm131, %v6164, %v6158
    %v6372 = vsel %vm132, %v6165, %v6159
    %v6373 = vsel %vm131, %v6369, %v6363
    %v6374 = vsel %vm132, %v6370, %v6364
    %v6377 = vrot.slane %v6371, 3
    %v6378 = vrot.slane %v6372, 3
    %6381 = vst [vmem:[#allocation3 + $0x3] sm:$0x1] %v6377
    %6382 = vst [vmem:[#allocation3 + $0x13] sm:$0x1] %v6378
    %v6385 = vrot.slane %v6373, 4
    %v6386 = vrot.slane %v6374, 4
    %6389 = vst [vmem:[#allocation3 + $0xc] sm:$0x1] %v6385
    %6390 = vst [vmem:[#allocation3 + $0x1c] sm:$0x1] %v6386
    %v6391 = vrot.slane %v6372, 2
    %v6392 = vsel %vm1038, %v6391, %v6377
    %6394 = vmatprep.subr.mxu0 %v4565
    %6395 = vmatpush1.msra.mxu0 %v4564
    %6396 = vmatprep.subr.mxu0 %v4568
    %6397 = vmatpush1.msra.mxu0 %v4567
    %6398 = vmatprep.subr.mxu0 %v4571
    %6399 = vmatpush1.msra.mxu0 %v4570
    %6400 = vmatprep.subr.mxu0 %v4574
    %6401 = vmatpush1.msra.mxu0 %v4573
    %6402 = vmatprep.subr.mxu0 %v4577
    %6403 = vmatpush1.msra.mxu0 %v4576
    %6404 = vmatprep.subr.mxu0 %v4580
    %6405 = vmatpush1.msra.mxu0 %v4579
    %6406 = vmatprep.subr.mxu0 %v4583
    %6407 = vmatpush1.msra.mxu0 %v4582
    %6408 = vmatprep.subr.mxu0 %v4586
    %6409 = vmatpush1.msra.mxu0 %v4585
    %6410 = vmatprep.subr.mxu0 %v4589
    %6411 = vmatpush1.msra.mxu0 %v4588
    %6412 = vmatprep.subr.mxu0 %v4592
    %6413 = vmatpush1.msra.mxu0 %v4591
    %6414 = vmatprep.subr.mxu0 %v4595
    %6415 = vmatpush1.msra.mxu0 %v4594
    %6416 = vmatprep.subr.mxu0 %v4598
    %6417 = vmatpush1.msra.mxu0 %v4597
    %6418 = vmatprep.subr.mxu0 %v4601
    %6419 = vmatpush1.msra.mxu0 %v4600
    %6420 = vmatprep.subr.mxu0 %v4604
    %6421 = vmatpush1.msra.mxu0 %v4603
    %6422 = vmatprep.subr.mxu0 %v4607
    %6423 = vmatpush1.msra.mxu0 %v4606
    %6424 = vmatprep.subr.mxu0 %v4610
    %6425 = vmatpush1.msra.mxu0 %v4609
    %6426 = vmatprep.subr.mxu0 0.0
    %6427 = vmatpush1.msra.mxu0 0.0
    %6428 = vmatprep.subr.mxu0 0.0
    %6429 = vmatpush1.msra.mxu0 0.0
    %6430 = vmatprep.subr.mxu0 0.0
    %6431 = vmatpush1.msra.mxu0 0.0
    %6432 = vmatprep.subr.mxu0 0.0
    %6433 = vmatpush1.msra.mxu0 0.0
    %6434 = vmatprep.subr.mxu0 0.0
    %6435 = vmatpush1.msra.mxu0 0.0
    %6436 = vmatprep.subr.mxu0 0.0
    %6437 = vmatpush1.msra.mxu0 0.0
    %6438 = vmatprep.subr.mxu0 0.0
    %6439 = vmatpush1.msra.mxu0 0.0
    %6440 = vmatprep.subr.mxu0 0.0
    %6441 = vmatpush1.msra.mxu0 0.0
    %6442 = vmatprep.subr.mxu0 0.0
    %6443 = vmatpush1.msra.mxu0 0.0
    %6444 = vmatprep.subr.mxu0 0.0
    %6445 = vmatpush1.msra.mxu0 0.0
    %6446 = vmatprep.subr.mxu0 0.0
    %6447 = vmatpush1.msra.mxu0 0.0
    %6448 = vmatprep.subr.mxu0 0.0
    %6449 = vmatpush1.msra.mxu0 0.0
    %6450 = vmatprep.subr.mxu0 0.0
    %6451 = vmatpush1.msra.mxu0 0.0
    %6452 = vmatprep.subr.mxu0 0.0
    %6453 = vmatpush1.msra.mxu0 0.0
    %6454 = vmatprep.subr.mxu0 0.0
    %6455 = vmatpush1.msra.mxu0 0.0
    %6456 = vmatprep.subr.mxu0 0.0
    %6457 = vmatpush1.msra.mxu0 0.0
    %6458 = vmatprep.mubr.f32.mxu0 0.0
    %6459 = vmatmul.mubr.f32.gmra.mrb[0].mxu0 %v6392
    %v6460 = vpop.f32.mrb[0].mxu0
    %v6461 = vadd.f32 %v4669, %v6460
    %v6462 = vpop.f32.mrb[0].mxu0
    %v6463 = vadd.f32 %v4673, %v6462
    %6464 = vdwg.mxu0
    %6465 = vmatprep.subr.mxu0 0.0
    %6466 = vmatpush1.msra.mxu0 %v4566
    %6467 = vmatprep.subr.mxu0 0.0
    %6468 = vmatpush1.msra.mxu0 %v4569
    %6469 = vmatprep.subr.mxu0 0.0
    %6470 = vmatpush1.msra.mxu0 %v4572
    %6471 = vmatprep.subr.mxu0 0.0
    %6472 = vmatpush1.msra.mxu0 %v4575
    %6473 = vmatprep.subr.mxu0 0.0
    %6474 = vmatpush1.msra.mxu0 %v4578
    %6475 = vmatprep.subr.mxu0 0.0
    %6476 = vmatpush1.msra.mxu0 %v4581
    %6477 = vmatprep.subr.mxu0 0.0
    %6478 = vmatpush1.msra.mxu0 %v4584
    %6479 = vmatprep.subr.mxu0 0.0
    %6480 = vmatpush1.msra.mxu0 %v4587
    %6481 = vmatprep.subr.mxu0 0.0
    %6482 = vmatpush1.msra.mxu0 %v4590
    %6483 = vmatprep.subr.mxu0 0.0
    %6484 = vmatpush1.msra.mxu0 %v4593
    %6485 = vmatprep.subr.mxu0 0.0
    %6486 = vmatpush1.msra.mxu0 %v4596
    %6487 = vmatprep.subr.mxu0 0.0
    %6488 = vmatpush1.msra.mxu0 %v4599
    %6489 = vmatprep.subr.mxu0 0.0
    %6490 = vmatpush1.msra.mxu0 %v4602
    %6491 = vmatprep.subr.mxu0 0.0
    %6492 = vmatpush1.msra.mxu0 %v4605
    %6493 = vmatprep.subr.mxu0 0.0
    %6494 = vmatpush1.msra.mxu0 %v4608
    %6495 = vmatprep.subr.mxu0 0.0
    %6496 = vmatpush1.msra.mxu0 %v4611
    %6497 = vmatprep.subr.mxu0 0.0
    %6498 = vmatpush1.msra.mxu0 0.0
    %6499 = vmatprep.subr.mxu0 0.0
    %6500 = vmatpush1.msra.mxu0 0.0
    %6501 = vmatprep.subr.mxu0 0.0
    %6502 = vmatpush1.msra.mxu0 0.0
    %6503 = vmatprep.subr.mxu0 0.0
    %6504 = vmatpush1.msra.mxu0 0.0
    %6505 = vmatprep.subr.mxu0 0.0
    %6506 = vmatpush1.msra.mxu0 0.0
    %6507 = vmatprep.subr.mxu0 0.0
    %6508 = vmatpush1.msra.mxu0 0.0
    %6509 = vmatprep.subr.mxu0 0.0
    %6510 = vmatpush1.msra.mxu0 0.0
    %6511 = vmatprep.subr.mxu0 0.0
    %6512 = vmatpush1.msra.mxu0 0.0
    %6513 = vmatprep.subr.mxu0 0.0
    %6514 = vmatpush1.msra.mxu0 0.0
    %6515 = vmatprep.subr.mxu0 0.0
    %6516 = vmatpush1.msra.mxu0 0.0
    %6517 = vmatprep.subr.mxu0 0.0
    %6518 = vmatpush1.msra.mxu0 0.0
    %6519 = vmatprep.subr.mxu0 0.0
    %6520 = vmatpush1.msra.mxu0 0.0
    %6521 = vmatprep.subr.mxu0 0.0
    %6522 = vmatpush1.msra.mxu0 0.0
    %6523 = vmatprep.subr.mxu0 0.0
    %6524 = vmatpush1.msra.mxu0 0.0
    %6525 = vmatprep.subr.mxu0 0.0
    %6526 = vmatpush1.msra.mxu0 0.0
    %6527 = vmatprep.subr.mxu0 0.0
    %6528 = vmatpush1.msra.mxu0 0.0
    %6529 = vmatprep.mubr.f32.mxu0 0.0
    %6530 = vmatmul.mubr.f32.gmra.mrb[0].mxu0 %v6392
    %v6531 = vpop.f32.mrb[0].mxu0
    %v6532 = vadd.f32 %v4677, %v6531
    %v6533 = vpop.f32.mrb[0].mxu0
    %6534 = vdwg.mxu0
    %v6536 = vrot.slane %v6461, 4
    %v6537 = vrot.slane %v6461, 5
    %v6540 = vadd.f32 %v4211, %v6536
    %v6541 = vadd.f32 %v4217, %v6537
    %v6542 = vxor.u32 %v6540, 2147483648
    %v6543 = vxor.u32 %v6541, 2147483648
    %v6544 = vmul.f32 %v6542, 1.442695
    %v6545 = vpow.pop %v6544
    %v6546 = vmul.f32 %v6543, 1.442695
    %v6547 = vpow.pop %v6546
    %v6548 = vadd.f32 %v6545, 1.0
    %v6549 = vadd.f32 %v6547, 1.0
    %v6550 = vrcp.pop %v6548
    %v6551 = vmul.f32 1.0, %v6550
    %v6552 = vrcp.pop %v6549
    %v6553 = vmul.f32 1.0, %v6552
    %v6555 = vrot.slane %v6463, 4
    %v6556 = vrot.slane %v6463, 5
    %v6559 = vadd.f32 %v4213, %v6555
    %v6560 = vadd.f32 %v4219, %v6556
    %v6561 = vxor.u32 %v6559, 2147483648
    %v6562 = vxor.u32 %v6560, 2147483648
    %v6563 = vmul.f32 %v6561, 1.442695
    %v6564 = vpow.pop %v6563
    %v6565 = vmul.f32 %v6562, 1.442695
    %v6566 = vpow.pop %v6565
    %v6567 = vadd.f32 %v6564, 1.0
    %v6568 = vadd.f32 %v6566, 1.0
    %v6569 = vrcp.pop %v6567
    %v6570 = vmul.f32 1.0, %v6569
    %v6571 = vrcp.pop %v6568
    %v6572 = vmul.f32 1.0, %v6571
    %v6574 = vrot.slane %v6532, 4
    %v6575 = vrot.slane %v6532, 5
    %v6578 = vmul.f32 %v6551, %v6574
    %v6579 = vmul.f32 %v6553, %v6575
    %v6580 = vadd.f32 %v4288, %v6578
    %v6581 = vadd.f32 %v4293, %v6579
    %v6582 = vtanh.pop %v6580
    %v6583 = vtanh.pop %v6581
    %v6584 = vsub.f32 1.0, %v6570
    %v6585 = vsub.f32 1.0, %v6572
    %v6586 = vmul.f32 %v6584, %v6582
    %v6587 = vmul.f32 %v6585, %v6583
    %v6588 = vrot.slane %v6371, 7
    %v6589 = vrot.slane %v6372, 7
    %v6592 = vmul.f32 %v6570, %v6588
    %v6593 = vmul.f32 %v6572, %v6589
    %v6594 = vadd.f32 %v6586, %v6592
    %v6595 = vadd.f32 %v6587, %v6593
    %v6596 = vrot.slane %v6374, 3
    %v6597 = vsel %vm1038, %v6596, %v6385
    %6599 = vmatprep.subr.mxu0 %v4614
    %6600 = vmatpush1.msra.mxu0 %v4613
    %6601 = vmatprep.subr.mxu0 %v4617
    %6602 = vmatpush1.msra.mxu0 %v4616
    %6603 = vmatprep.subr.mxu0 %v4620
    %6604 = vmatpush1.msra.mxu0 %v4619
    %6605 = vmatprep.subr.mxu0 %v4623
    %6606 = vmatpush1.msra.mxu0 %v4622
    %6607 = vmatprep.subr.mxu0 %v4626
    %6608 = vmatpush1.msra.mxu0 %v4625
    %6609 = vmatprep.subr.mxu0 %v4629
    %6610 = vmatpush1.msra.mxu0 %v4628
    %6611 = vmatprep.subr.mxu0 %v4632
    %6612 = vmatpush1.msra.mxu0 %v4631
    %6613 = vmatprep.subr.mxu0 %v4635
    %6614 = vmatpush1.msra.mxu0 %v4634
    %6615 = vmatprep.subr.mxu0 %v4638
    %6616 = vmatpush1.msra.mxu0 %v4637
    %6617 = vmatprep.subr.mxu0 %v4641
    %6618 = vmatpush1.msra.mxu0 %v4640
    %6619 = vmatprep.subr.mxu0 %v4644
    %6620 = vmatpush1.msra.mxu0 %v4643
    %6621 = vmatprep.subr.mxu0 %v4647
    %6622 = vmatpush1.msra.mxu0 %v4646
    %6623 = vmatprep.subr.mxu0 %v4650
    %6624 = vmatpush1.msra.mxu0 %v4649
    %6625 = vmatprep.subr.mxu0 %v4653
    %6626 = vmatpush1.msra.mxu0 %v4652
    %6627 = vmatprep.subr.mxu0 %v4656
    %6628 = vmatpush1.msra.mxu0 %v4655
    %6629 = vmatprep.subr.mxu0 %v4659
    %6630 = vmatpush1.msra.mxu0 %v4658
    %6631 = vmatprep.subr.mxu0 0.0
    %6632 = vmatpush1.msra.mxu0 0.0
    %6633 = vmatprep.subr.mxu0 0.0
    %6634 = vmatpush1.msra.mxu0 0.0
    %6635 = vmatprep.subr.mxu0 0.0
    %6636 = vmatpush1.msra.mxu0 0.0
    %6637 = vmatprep.subr.mxu0 0.0
    %6638 = vmatpush1.msra.mxu0 0.0
    %6639 = vmatprep.subr.mxu0 0.0
    %6640 = vmatpush1.msra.mxu0 0.0
    %6641 = vmatprep.subr.mxu0 0.0
    %6642 = vmatpush1.msra.mxu0 0.0
    %6643 = vmatprep.subr.mxu0 0.0
    %6644 = vmatpush1.msra.mxu0 0.0
    %6645 = vmatprep.subr.mxu0 0.0
    %6646 = vmatpush1.msra.mxu0 0.0
    %6647 = vmatprep.subr.mxu0 0.0
    %6648 = vmatpush1.msra.mxu0 0.0
    %6649 = vmatprep.subr.mxu0 0.0
    %6650 = vmatpush1.msra.mxu0 0.0
    %6651 = vmatprep.subr.mxu0 0.0
    %6652 = vmatpush1.msra.mxu0 0.0
    %6653 = vmatprep.subr.mxu0 0.0
    %6654 = vmatpush1.msra.mxu0 0.0
    %6655 = vmatprep.subr.mxu0 0.0
    %6656 = vmatpush1.msra.mxu0 0.0
    %6657 = vmatprep.subr.mxu0 0.0
    %6658 = vmatpush1.msra.mxu0 0.0
    %6659 = vmatprep.subr.mxu0 0.0
    %6660 = vmatpush1.msra.mxu0 0.0
    %6661 = vmatprep.subr.mxu0 0.0
    %6662 = vmatpush1.msra.mxu0 0.0
    %6663 = vmatprep.mubr.f32.mxu0 0.0
    %6664 = vmatmul.mubr.f32.gmra.mrb[0].mxu0 %v6597
    %v6665 = vpop.f32.mrb[0].mxu0
    %v6666 = vadd.f32 %v4880, %v6665
    %v6667 = vpop.f32.mrb[0].mxu0
    %v6668 = vadd.f32 %v4884, %v6667
    %6669 = vdwg.mxu0
    %6670 = vmatprep.subr.mxu0 0.0
    %6671 = vmatpush1.msra.mxu0 %v4615
    %6672 = vmatprep.subr.mxu0 0.0
    %6673 = vmatpush1.msra.mxu0 %v4618
    %6674 = vmatprep.subr.mxu0 0.0
    %6675 = vmatpush1.msra.mxu0 %v4621
    %6676 = vmatprep.subr.mxu0 0.0
    %6677 = vmatpush1.msra.mxu0 %v4624
    %6678 = vmatprep.subr.mxu0 0.0
    %6679 = vmatpush1.msra.mxu0 %v4627
    %6680 = vmatprep.subr.mxu0 0.0
    %6681 = vmatpush1.msra.mxu0 %v4630
    %6682 = vmatprep.subr.mxu0 0.0
    %6683 = vmatpush1.msra.mxu0 %v4633
    %6684 = vmatprep.subr.mxu0 0.0
    %6685 = vmatpush1.msra.mxu0 %v4636
    %6686 = vmatprep.subr.mxu0 0.0
    %6687 = vmatpush1.msra.mxu0 %v4639
    %6688 = vmatprep.subr.mxu0 0.0
    %6689 = vmatpush1.msra.mxu0 %v4642
    %6690 = vmatprep.subr.mxu0 0.0
    %6691 = vmatpush1.msra.mxu0 %v4645
    %6692 = vmatprep.subr.mxu0 0.0
    %6693 = vmatpush1.msra.mxu0 %v4648
    %6694 = vmatprep.subr.mxu0 0.0
    %6695 = vmatpush1.msra.mxu0 %v4651
    %6696 = vmatprep.subr.mxu0 0.0
    %6697 = vmatpush1.msra.mxu0 %v4654
    %6698 = vmatprep.subr.mxu0 0.0
    %6699 = vmatpush1.msra.mxu0 %v4657
    %6700 = vmatprep.subr.mxu0 0.0
    %6701 = vmatpush1.msra.mxu0 %v4660
    %6702 = vmatprep.subr.mxu0 0.0
    %6703 = vmatpush1.msra.mxu0 0.0
    %6704 = vmatprep.subr.mxu0 0.0
    %6705 = vmatpush1.msra.mxu0 0.0
    %6706 = vmatprep.subr.mxu0 0.0
    %6707 = vmatpush1.msra.mxu0 0.0
    %6708 = vmatprep.subr.mxu0 0.0
    %6709 = vmatpush1.msra.mxu0 0.0
    %6710 = vmatprep.subr.mxu0 0.0
    %6711 = vmatpush1.msra.mxu0 0.0
    %6712 = vmatprep.subr.mxu0 0.0
    %6713 = vmatpush1.msra.mxu0 0.0
    %6714 = vmatprep.subr.mxu0 0.0
    %6715 = vmatpush1.msra.mxu0 0.0
    %6716 = vmatprep.subr.mxu0 0.0
    %6717 = vmatpush1.msra.mxu0 0.0
    %6718 = vmatprep.subr.mxu0 0.0
    %6719 = vmatpush1.msra.mxu0 0.0
    %6720 = vmatprep.subr.mxu0 0.0
    %6721 = vmatpush1.msra.mxu0 0.0
    %6722 = vmatprep.subr.mxu0 0.0
    %6723 = vmatpush1.msra.mxu0 0.0
    %6724 = vmatprep.subr.mxu0 0.0
    %6725 = vmatpush1.msra.mxu0 0.0
    %6726 = vmatprep.subr.mxu0 0.0
    %6727 = vmatpush1.msra.mxu0 0.0
    %6728 = vmatprep.subr.mxu0 0.0
    %6729 = vmatpush1.msra.mxu0 0.0
    %6730 = vmatprep.subr.mxu0 0.0
    %6731 = vmatpush1.msra.mxu0 0.0
    %6732 = vmatprep.subr.mxu0 0.0
    %6733 = vmatpush1.msra.mxu0 0.0
    %6734 = vmatprep.mubr.f32.mxu0 0.0
    %6735 = vmatmul.mubr.f32.gmra.mrb[0].mxu0 %v6597
    %v6736 = vpop.f32.mrb[0].mxu0
    %v6737 = vadd.f32 %v4888, %v6736
    %v6738 = vpop.f32.mrb[0].mxu0
    %6739 = vdwg.mxu0
    %v6741 = vrot.slane %v6666, 5
    %v6742 = vrot.slane %v6666, 6
    %v6745 = vadd.f32 %v4478, %v6741
    %v6746 = vadd.f32 %v4484, %v6742
    %v6747 = vxor.u32 %v6745, 2147483648
    %v6748 = vxor.u32 %v6746, 2147483648
    %v6749 = vmul.f32 %v6747, 1.442695
    %v6750 = vpow.pop %v6749
    %v6751 = vmul.f32 %v6748, 1.442695
    %v6752 = vpow.pop %v6751
    %v6753 = vadd.f32 %v6750, 1.0
    %v6754 = vadd.f32 %v6752, 1.0
    %v6755 = vrcp.pop %v6753
    %v6756 = vmul.f32 1.0, %v6755
    %v6757 = vrcp.pop %v6754
    %v6758 = vmul.f32 1.0, %v6757
    %v6760 = vrot.slane %v6668, 5
    %v6761 = vrot.slane %v6668, 6
    %v6764 = vadd.f32 %v4480, %v6760
    %v6765 = vadd.f32 %v4486, %v6761
    %v6766 = vxor.u32 %v6764, 2147483648
    %v6767 = vxor.u32 %v6765, 2147483648
    %v6768 = vmul.f32 %v6766, 1.442695
    %v6769 = vpow.pop %v6768
    %v6770 = vmul.f32 %v6767, 1.442695
    %v6771 = vpow.pop %v6770
    %v6772 = vadd.f32 %v6769, 1.0
    %v6773 = vadd.f32 %v6771, 1.0
    %v6774 = vrcp.pop %v6772
    %v6775 = vmul.f32 1.0, %v6774
    %v6776 = vrcp.pop %v6773
    %v6777 = vmul.f32 1.0, %v6776
    %v6779 = vrot.slane %v6737, 5
    %v6780 = vrot.slane %v6737, 6
    %v6783 = vmul.f32 %v6756, %v6779
    %v6784 = vmul.f32 %v6758, %v6780
    %v6785 = vadd.f32 %v4555, %v6783
    %v6786 = vadd.f32 %v4560, %v6784
    %v6787 = vtanh.pop %v6785
    %v6788 = vtanh.pop %v6786
    %v6789 = vsub.f32 1.0, %v6775
    %v6790 = vsub.f32 1.0, %v6777
    %v6791 = vmul.f32 %v6789, %v6787
    %v6792 = vmul.f32 %v6790, %v6788
    %v6793 = vrot.slane %v6373, 1
    %v6794 = vrot.slane %v6374, 1
    %v6797 = vmul.f32 %v6775, %v6793
    %v6798 = vmul.f32 %v6777, %v6794
    %v6799 = vadd.f32 %v6791, %v6797
    %v6800 = vadd.f32 %v6792, %v6798
    %v6801 = vsel %vm131, %v6594, %v6588
    %v6802 = vsel %vm132, %v6595, %v6589
    %v6803 = vsel %vm131, %v6799, %v6793
    %v6804 = vsel %vm132, %v6800, %v6794
    %v6807 = vrot.slane %v6801, 4
    %v6808 = vrot.slane %v6802, 4
    %6811 = vst [vmem:[#allocation3 + $0x4] sm:$0x1] %v6807
    %6812 = vst [vmem:[#allocation3 + $0x14] sm:$0x1] %v6808
    %v6815 = vrot.slane %v6803, 3
    %v6816 = vrot.slane %v6804, 3
    %6819 = vst [vmem:[#allocation3 + $0xb] sm:$0x1] %v6815
    %6820 = vst [vmem:[#allocation3 + $0x1b] sm:$0x1] %v6816
    %v6821 = vrot.slane %v6802, 3
    %v6822 = vsel %vm1038, %v6821, %v6807
    %6824 = vmatprep.subr.mxu0 %v4565
    %6825 = vmatpush1.msra.mxu0 %v4564
    %6826 = vmatprep.subr.mxu0 %v4568
    %6827 = vmatpush1.msra.mxu0 %v4567
    %6828 = vmatprep.subr.mxu0 %v4571
    %6829 = vmatpush1.msra.mxu0 %v4570
    %6830 = vmatprep.subr.mxu0 %v4574
    %6831 = vmatpush1.msra.mxu0 %v4573
    %6832 = vmatprep.subr.mxu0 %v4577
    %6833 = vmatpush1.msra.mxu0 %v4576
    %6834 = vmatprep.subr.mxu0 %v4580
    %6835 = vmatpush1.msra.mxu0 %v4579
    %6836 = vmatprep.subr.mxu0 %v4583
    %6837 = vmatpush1.msra.mxu0 %v4582
    %6838 = vmatprep.subr.mxu0 %v4586
    %6839 = vmatpush1.msra.mxu0 %v4585
    %6840 = vmatprep.subr.mxu0 %v4589
    %6841 = vmatpush1.msra.mxu0 %v4588
    %6842 = vmatprep.subr.mxu0 %v4592
    %6843 = vmatpush1.msra.mxu0 %v4591
    %6844 = vmatprep.subr.mxu0 %v4595
    %6845 = vmatpush1.msra.mxu0 %v4594
    %6846 = vmatprep.subr.mxu0 %v4598
    %6847 = vmatpush1.msra.mxu0 %v4597
    %6848 = vmatprep.subr.mxu0 %v4601
    %6849 = vmatpush1.msra.mxu0 %v4600
    %6850 = vmatprep.subr.mxu0 %v4604
    %6851 = vmatpush1.msra.mxu0 %v4603
    %6852 = vmatprep.subr.mxu0 %v4607
    %6853 = vmatpush1.msra.mxu0 %v4606
    %6854 = vmatprep.subr.mxu0 %v4610
    %6855 = vmatpush1.msra.mxu0 %v4609
    %6856 = vmatprep.subr.mxu0 0.0
    %6857 = vmatpush1.msra.mxu0 0.0
    %6858 = vmatprep.subr.mxu0 0.0
    %6859 = vmatpush1.msra.mxu0 0.0
    %6860 = vmatprep.subr.mxu0 0.0
    %6861 = vmatpush1.msra.mxu0 0.0
    %6862 = vmatprep.subr.mxu0 0.0
    %6863 = vmatpush1.msra.mxu0 0.0
    %6864 = vmatprep.subr.mxu0 0.0
    %6865 = vmatpush1.msra.mxu0 0.0
    %6866 = vmatprep.subr.mxu0 0.0
    %6867 = vmatpush1.msra.mxu0 0.0
    %6868 = vmatprep.subr.mxu0 0.0
    %6869 = vmatpush1.msra.mxu0 0.0
    %6870 = vmatprep.subr.mxu0 0.0
    %6871 = vmatpush1.msra.mxu0 0.0
    %6872 = vmatprep.subr.mxu0 0.0
    %6873 = vmatpush1.msra.mxu0 0.0
    %6874 = vmatprep.subr.mxu0 0.0
    %6875 = vmatpush1.msra.mxu0 0.0
    %6876 = vmatprep.subr.mxu0 0.0
    %6877 = vmatpush1.msra.mxu0 0.0
    %6878 = vmatprep.subr.mxu0 0.0
    %6879 = vmatpush1.msra.mxu0 0.0
    %6880 = vmatprep.subr.mxu0 0.0
    %6881 = vmatpush1.msra.mxu0 0.0
    %6882 = vmatprep.subr.mxu0 0.0
    %6883 = vmatpush1.msra.mxu0 0.0
    %6884 = vmatprep.subr.mxu0 0.0
    %6885 = vmatpush1.msra.mxu0 0.0
    %6886 = vmatprep.subr.mxu0 0.0
    %6887 = vmatpush1.msra.mxu0 0.0
    %6888 = vmatprep.mubr.f32.mxu0 0.0
    %6889 = vmatmul.mubr.f32.gmra.mrb[0].mxu0 %v6822
    %v6890 = vpop.f32.mrb[0].mxu0
    %v6891 = vadd.f32 %v4669, %v6890
    %v6892 = vpop.f32.mrb[0].mxu0
    %v6893 = vadd.f32 %v4673, %v6892
    %6894 = vdwg.mxu0
    %6895 = vmatprep.subr.mxu0 0.0
    %6896 = vmatpush1.msra.mxu0 %v4566
    %6897 = vmatprep.subr.mxu0 0.0
    %6898 = vmatpush1.msra.mxu0 %v4569
    %6899 = vmatprep.subr.mxu0 0.0
    %6900 = vmatpush1.msra.mxu0 %v4572
    %6901 = vmatprep.subr.mxu0 0.0
    %6902 = vmatpush1.msra.mxu0 %v4575
    %6903 = vmatprep.subr.mxu0 0.0
    %6904 = vmatpush1.msra.mxu0 %v4578
    %6905 = vmatprep.subr.mxu0 0.0
    %6906 = vmatpush1.msra.mxu0 %v4581
    %6907 = vmatprep.subr.mxu0 0.0
    %6908 = vmatpush1.msra.mxu0 %v4584
    %6909 = vmatprep.subr.mxu0 0.0
    %6910 = vmatpush1.msra.mxu0 %v4587
    %6911 = vmatprep.subr.mxu0 0.0
    %6912 = vmatpush1.msra.mxu0 %v4590
    %6913 = vmatprep.subr.mxu0 0.0
    %6914 = vmatpush1.msra.mxu0 %v4593
    %6915 = vmatprep.subr.mxu0 0.0
    %6916 = vmatpush1.msra.mxu0 %v4596
    %6917 = vmatprep.subr.mxu0 0.0
    %6918 = vmatpush1.msra.mxu0 %v4599
    %6919 = vmatprep.subr.mxu0 0.0
    %6920 = vmatpush1.msra.mxu0 %v4602
    %6921 = vmatprep.subr.mxu0 0.0
    %6922 = vmatpush1.msra.mxu0 %v4605
    %6923 = vmatprep.subr.mxu0 0.0
    %6924 = vmatpush1.msra.mxu0 %v4608
    %6925 = vmatprep.subr.mxu0 0.0
    %6926 = vmatpush1.msra.mxu0 %v4611
    %6927 = vmatprep.subr.mxu0 0.0
    %6928 = vmatpush1.msra.mxu0 0.0
    %6929 = vmatprep.subr.mxu0 0.0
    %6930 = vmatpush1.msra.mxu0 0.0
    %6931 = vmatprep.subr.mxu0 0.0
    %6932 = vmatpush1.msra.mxu0 0.0
    %6933 = vmatprep.subr.mxu0 0.0
    %6934 = vmatpush1.msra.mxu0 0.0
    %6935 = vmatprep.subr.mxu0 0.0
    %6936 = vmatpush1.msra.mxu0 0.0
    %6937 = vmatprep.subr.mxu0 0.0
    %6938 = vmatpush1.msra.mxu0 0.0
    %6939 = vmatprep.subr.mxu0 0.0
    %6940 = vmatpush1.msra.mxu0 0.0
    %6941 = vmatprep.subr.mxu0 0.0
    %6942 = vmatpush1.msra.mxu0 0.0
    %6943 = vmatprep.subr.mxu0 0.0
    %6944 = vmatpush1.msra.mxu0 0.0
    %6945 = vmatprep.subr.mxu0 0.0
    %6946 = vmatpush1.msra.mxu0 0.0
    %6947 = vmatprep.subr.mxu0 0.0
    %6948 = vmatpush1.msra.mxu0 0.0
    %6949 = vmatprep.subr.mxu0 0.0
    %6950 = vmatpush1.msra.mxu0 0.0
    %6951 = vmatprep.subr.mxu0 0.0
    %6952 = vmatpush1.msra.mxu0 0.0
    %6953 = vmatprep.subr.mxu0 0.0
    %6954 = vmatpush1.msra.mxu0 0.0
    %6955 = vmatprep.subr.mxu0 0.0
    %6956 = vmatpush1.msra.mxu0 0.0
    %6957 = vmatprep.subr.mxu0 0.0
    %6958 = vmatpush1.msra.mxu0 0.0
    %6959 = vmatprep.mubr.f32.mxu0 0.0
    %6960 = vmatmul.mubr.f32.gmra.mrb[0].mxu0 %v6822
    %v6961 = vpop.f32.mrb[0].mxu0
    %v6962 = vadd.f32 %v4677, %v6961
    %v6963 = vpop.f32.mrb[0].mxu0
    %6964 = vdwg.mxu0
    %v6966 = vrot.slane %v6891, 3
    %v6967 = vrot.slane %v6891, 4
    %v6970 = vadd.f32 %v4211, %v6966
    %v6971 = vadd.f32 %v4217, %v6967
    %v6972 = vxor.u32 %v6970, 2147483648
    %v6973 = vxor.u32 %v6971, 2147483648
    %v6974 = vmul.f32 %v6972, 1.442695
    %v6975 = vpow.pop %v6974
    %v6976 = vmul.f32 %v6973, 1.442695
    %v6977 = vpow.pop %v6976
    %v6978 = vadd.f32 %v6975, 1.0
    %v6979 = vadd.f32 %v6977, 1.0
    %v6980 = vrcp.pop %v6978
    %v6981 = vmul.f32 1.0, %v6980
    %v6982 = vrcp.pop %v6979
    %v6983 = vmul.f32 1.0, %v6982
    %v6985 = vrot.slane %v6893, 3
    %v6986 = vrot.slane %v6893, 4
    %v6989 = vadd.f32 %v4213, %v6985
    %v6990 = vadd.f32 %v4219, %v6986
    %v6991 = vxor.u32 %v6989, 2147483648
    %v6992 = vxor.u32 %v6990, 2147483648
    %v6993 = vmul.f32 %v6991, 1.442695
    %v6994 = vpow.pop %v6993
    %v6995 = vmul.f32 %v6992, 1.442695
    %v6996 = vpow.pop %v6995
    %v6997 = vadd.f32 %v6994, 1.0
    %v6998 = vadd.f32 %v6996, 1.0
    %v6999 = vrcp.pop %v6997
    %v7000 = vmul.f32 1.0, %v6999
    %v7001 = vrcp.pop %v6998
    %v7002 = vmul.f32 1.0, %v7001
    %v7004 = vrot.slane %v6962, 3
    %v7005 = vrot.slane %v6962, 4
    %v7008 = vmul.f32 %v6981, %v7004
    %v7009 = vmul.f32 %v6983, %v7005
    %v7010 = vadd.f32 %v4288, %v7008
    %v7011 = vadd.f32 %v4293, %v7009
    %v7012 = vtanh.pop %v7010
    %v7013 = vtanh.pop %v7011
    %v7014 = vsub.f32 1.0, %v7000
    %v7015 = vsub.f32 1.0, %v7002
    %v7016 = vmul.f32 %v7014, %v7012
    %v7017 = vmul.f32 %v7015, %v7013
    %v7018 = vrot.slane %v6801, 7
    %v7019 = vrot.slane %v6802, 7
    %v7022 = vmul.f32 %v7000, %v7018
    %v7023 = vmul.f32 %v7002, %v7019
    %v7024 = vadd.f32 %v7016, %v7022
    %v7025 = vadd.f32 %v7017, %v7023
    %v7026 = vrot.slane %v6804, 2
    %v7027 = vsel %vm1038, %v7026, %v6815
    %7029 = vmatprep.subr.mxu0 %v4614
    %7030 = vmatpush1.msra.mxu0 %v4613
    %7031 = vmatprep.subr.mxu0 %v4617
    %7032 = vmatpush1.msra.mxu0 %v4616
    %7033 = vmatprep.subr.mxu0 %v4620
    %7034 = vmatpush1.msra.mxu0 %v4619
    %7035 = vmatprep.subr.mxu0 %v4623
    %7036 = vmatpush1.msra.mxu0 %v4622
    %7037 = vmatprep.subr.mxu0 %v4626
    %7038 = vmatpush1.msra.mxu0 %v4625
    %7039 = vmatprep.subr.mxu0 %v4629
    %7040 = vmatpush1.msra.mxu0 %v4628
    %7041 = vmatprep.subr.mxu0 %v4632
    %7042 = vmatpush1.msra.mxu0 %v4631
    %7043 = vmatprep.subr.mxu0 %v4635
    %7044 = vmatpush1.msra.mxu0 %v4634
    %7045 = vmatprep.subr.mxu0 %v4638
    %7046 = vmatpush1.msra.mxu0 %v4637
    %7047 = vmatprep.subr.mxu0 %v4641
    %7048 = vmatpush1.msra.mxu0 %v4640
    %7049 = vmatprep.subr.mxu0 %v4644
    %7050 = vmatpush1.msra.mxu0 %v4643
    %7051 = vmatprep.subr.mxu0 %v4647
    %7052 = vmatpush1.msra.mxu0 %v4646
    %7053 = vmatprep.subr.mxu0 %v4650
    %7054 = vmatpush1.msra.mxu0 %v4649
    %7055 = vmatprep.subr.mxu0 %v4653
    %7056 = vmatpush1.msra.mxu0 %v4652
    %7057 = vmatprep.subr.mxu0 %v4656
    %7058 = vmatpush1.msra.mxu0 %v4655
    %7059 = vmatprep.subr.mxu0 %v4659
    %7060 = vmatpush1.msra.mxu0 %v4658
    %7061 = vmatprep.subr.mxu0 0.0
    %7062 = vmatpush1.msra.mxu0 0.0
    %7063 = vmatprep.subr.mxu0 0.0
    %7064 = vmatpush1.msra.mxu0 0.0
    %7065 = vmatprep.subr.mxu0 0.0
    %7066 = vmatpush1.msra.mxu0 0.0
    %7067 = vmatprep.subr.mxu0 0.0
    %7068 = vmatpush1.msra.mxu0 0.0
    %7069 = vmatprep.subr.mxu0 0.0
    %7070 = vmatpush1.msra.mxu0 0.0
    %7071 = vmatprep.subr.mxu0 0.0
    %7072 = vmatpush1.msra.mxu0 0.0
    %7073 = vmatprep.subr.mxu0 0.0
    %7074 = vmatpush1.msra.mxu0 0.0
    %7075 = vmatprep.subr.mxu0 0.0
    %7076 = vmatpush1.msra.mxu0 0.0
    %7077 = vmatprep.subr.mxu0 0.0
    %7078 = vmatpush1.msra.mxu0 0.0
    %7079 = vmatprep.subr.mxu0 0.0
    %7080 = vmatpush1.msra.mxu0 0.0
    %7081 = vmatprep.subr.mxu0 0.0
    %7082 = vmatpush1.msra.mxu0 0.0
    %7083 = vmatprep.subr.mxu0 0.0
    %7084 = vmatpush1.msra.mxu0 0.0
    %7085 = vmatprep.subr.mxu0 0.0
    %7086 = vmatpush1.msra.mxu0 0.0
    %7087 = vmatprep.subr.mxu0 0.0
    %7088 = vmatpush1.msra.mxu0 0.0
    %7089 = vmatprep.subr.mxu0 0.0
    %7090 = vmatpush1.msra.mxu0 0.0
    %7091 = vmatprep.subr.mxu0 0.0
    %7092 = vmatpush1.msra.mxu0 0.0
    %7093 = vmatprep.mubr.f32.mxu0 0.0
    %7094 = vmatmul.mubr.f32.gmra.mrb[0].mxu0 %v7027
    %v7095 = vpop.f32.mrb[0].mxu0
    %v7096 = vadd.f32 %v4880, %v7095
    %v7097 = vpop.f32.mrb[0].mxu0
    %v7098 = vadd.f32 %v4884, %v7097
    %7099 = vdwg.mxu0
    %7100 = vmatprep.subr.mxu0 0.0
    %7101 = vmatpush1.msra.mxu0 %v4615
    %7102 = vmatprep.subr.mxu0 0.0
    %7103 = vmatpush1.msra.mxu0 %v4618
    %7104 = vmatprep.subr.mxu0 0.0
    %7105 = vmatpush1.msra.mxu0 %v4621
    %7106 = vmatprep.subr.mxu0 0.0
    %7107 = vmatpush1.msra.mxu0 %v4624
    %7108 = vmatprep.subr.mxu0 0.0
    %7109 = vmatpush1.msra.mxu0 %v4627
    %7110 = vmatprep.subr.mxu0 0.0
    %7111 = vmatpush1.msra.mxu0 %v4630
    %7112 = vmatprep.subr.mxu0 0.0
    %7113 = vmatpush1.msra.mxu0 %v4633
    %7114 = vmatprep.subr.mxu0 0.0
    %7115 = vmatpush1.msra.mxu0 %v4636
    %7116 = vmatprep.subr.mxu0 0.0
    %7117 = vmatpush1.msra.mxu0 %v4639
    %7118 = vmatprep.subr.mxu0 0.0
    %7119 = vmatpush1.msra.mxu0 %v4642
    %7120 = vmatprep.subr.mxu0 0.0
    %7121 = vmatpush1.msra.mxu0 %v4645
    %7122 = vmatprep.subr.mxu0 0.0
    %7123 = vmatpush1.msra.mxu0 %v4648
    %7124 = vmatprep.subr.mxu0 0.0
    %7125 = vmatpush1.msra.mxu0 %v4651
    %7126 = vmatprep.subr.mxu0 0.0
    %7127 = vmatpush1.msra.mxu0 %v4654
    %7128 = vmatprep.subr.mxu0 0.0
    %7129 = vmatpush1.msra.mxu0 %v4657
    %7130 = vmatprep.subr.mxu0 0.0
    %7131 = vmatpush1.msra.mxu0 %v4660
    %7132 = vmatprep.subr.mxu0 0.0
    %7133 = vmatpush1.msra.mxu0 0.0
    %7134 = vmatprep.subr.mxu0 0.0
    %7135 = vmatpush1.msra.mxu0 0.0
    %7136 = vmatprep.subr.mxu0 0.0
    %7137 = vmatpush1.msra.mxu0 0.0
    %7138 = vmatprep.subr.mxu0 0.0
    %7139 = vmatpush1.msra.mxu0 0.0
    %7140 = vmatprep.subr.mxu0 0.0
    %7141 = vmatpush1.msra.mxu0 0.0
    %7142 = vmatprep.subr.mxu0 0.0
    %7143 = vmatpush1.msra.mxu0 0.0
    %7144 = vmatprep.subr.mxu0 0.0
    %7145 = vmatpush1.msra.mxu0 0.0
    %7146 = vmatprep.subr.mxu0 0.0
    %7147 = vmatpush1.msra.mxu0 0.0
    %7148 = vmatprep.subr.mxu0 0.0
    %7149 = vmatpush1.msra.mxu0 0.0
    %7150 = vmatprep.subr.mxu0 0.0
    %7151 = vmatpush1.msra.mxu0 0.0
    %7152 = vmatprep.subr.mxu0 0.0
    %7153 = vmatpush1.msra.mxu0 0.0
    %7154 = vmatprep.subr.mxu0 0.0
    %7155 = vmatpush1.msra.mxu0 0.0
    %7156 = vmatprep.subr.mxu0 0.0
    %7157 = vmatpush1.msra.mxu0 0.0
    %7158 = vmatprep.subr.mxu0 0.0
    %7159 = vmatpush1.msra.mxu0 0.0
    %7160 = vmatprep.subr.mxu0 0.0
    %7161 = vmatpush1.msra.mxu0 0.0
    %7162 = vmatprep.subr.mxu0 0.0
    %7163 = vmatpush1.msra.mxu0 0.0
    %7164 = vmatprep.mubr.f32.mxu0 0.0
    %7165 = vmatmul.mubr.f32.gmra.mrb[0].mxu0 %v7027
    %v7166 = vpop.f32.mrb[0].mxu0
    %v7167 = vadd.f32 %v4888, %v7166
    %v7168 = vpop.f32.mrb[0].mxu0
    %7169 = vdwg.mxu0
    %v7171 = vrot.slane %v7096, 6
    %v7172 = vrot.slane %v7096, 7
    %v7175 = vadd.f32 %v4478, %v7171
    %v7176 = vadd.f32 %v4484, %v7172
    %v7177 = vxor.u32 %v7175, 2147483648
    %v7178 = vxor.u32 %v7176, 2147483648
    %v7179 = vmul.f32 %v7177, 1.442695
    %v7180 = vpow.pop %v7179
    %v7181 = vmul.f32 %v7178, 1.442695
    %v7182 = vpow.pop %v7181
    %v7183 = vadd.f32 %v7180, 1.0
    %v7184 = vadd.f32 %v7182, 1.0
    %v7185 = vrcp.pop %v7183
    %v7186 = vmul.f32 1.0, %v7185
    %v7187 = vrcp.pop %v7184
    %v7188 = vmul.f32 1.0, %v7187
    %v7190 = vrot.slane %v7098, 6
    %v7191 = vrot.slane %v7098, 7
    %v7194 = vadd.f32 %v4480, %v7190
    %v7195 = vadd.f32 %v4486, %v7191
    %v7196 = vxor.u32 %v7194, 2147483648
    %v7197 = vxor.u32 %v7195, 2147483648
    %v7198 = vmul.f32 %v7196, 1.442695
    %v7199 = vpow.pop %v7198
    %v7200 = vmul.f32 %v7197, 1.442695
    %v7201 = vpow.pop %v7200
    %v7202 = vadd.f32 %v7199, 1.0
    %v7203 = vadd.f32 %v7201, 1.0
    %v7204 = vrcp.pop %v7202
    %v7205 = vmul.f32 1.0, %v7204
    %v7206 = vrcp.pop %v7203
    %v7207 = vmul.f32 1.0, %v7206
    %v7209 = vrot.slane %v7167, 6
    %v7210 = vrot.slane %v7167, 7
    %v7213 = vmul.f32 %v7186, %v7209
    %v7214 = vmul.f32 %v7188, %v7210
    %v7215 = vadd.f32 %v4555, %v7213
    %v7216 = vadd.f32 %v4560, %v7214
    %v7217 = vtanh.pop %v7215
    %v7218 = vtanh.pop %v7216
    %v7219 = vsub.f32 1.0, %v7205
    %v7220 = vsub.f32 1.0, %v7207
    %v7221 = vmul.f32 %v7219, %v7217
    %v7222 = vmul.f32 %v7220, %v7218
    %v7223 = vrot.slane %v6803, 1
    %v7224 = vrot.slane %v6804, 1
    %v7227 = vmul.f32 %v7205, %v7223
    %v7228 = vmul.f32 %v7207, %v7224
    %v7229 = vadd.f32 %v7221, %v7227
    %v7230 = vadd.f32 %v7222, %v7228
    %v7231 = vsel %vm131, %v7024, %v7018
    %v7232 = vsel %vm132, %v7025, %v7019
    %v7233 = vsel %vm131, %v7229, %v7223
    %v7234 = vsel %vm132, %v7230, %v7224
    %v7237 = vrot.slane %v7231, 5
    %v7238 = vrot.slane %v7232, 5
    %7241 = vst [vmem:[#allocation3 + $0x5] sm:$0x1] %v7237
    %7242 = vst [vmem:[#allocation3 + $0x15] sm:$0x1] %v7238
    %v7245 = vrot.slane %v7233, 2
    %v7246 = vrot.slane %v7234, 2
    %7249 = vst [vmem:[#allocation3 + $0xa] sm:$0x1] %v7245
    %7250 = vst [vmem:[#allocation3 + $0x1a] sm:$0x1] %v7246
    %v7251 = vrot.slane %v7232, 4
    %v7252 = vsel %vm1038, %v7251, %v7237
    %7254 = vmatprep.subr.mxu0 %v4565
    %7255 = vmatpush1.msra.mxu0 %v4564
    %7256 = vmatprep.subr.mxu0 %v4568
    %7257 = vmatpush1.msra.mxu0 %v4567
    %7258 = vmatprep.subr.mxu0 %v4571
    %7259 = vmatpush1.msra.mxu0 %v4570
    %7260 = vmatprep.subr.mxu0 %v4574
    %7261 = vmatpush1.msra.mxu0 %v4573
    %7262 = vmatprep.subr.mxu0 %v4577
    %7263 = vmatpush1.msra.mxu0 %v4576
    %7264 = vmatprep.subr.mxu0 %v4580
    %7265 = vmatpush1.msra.mxu0 %v4579
    %7266 = vmatprep.subr.mxu0 %v4583
    %7267 = vmatpush1.msra.mxu0 %v4582
    %7268 = vmatprep.subr.mxu0 %v4586
    %7269 = vmatpush1.msra.mxu0 %v4585
    %7270 = vmatprep.subr.mxu0 %v4589
    %7271 = vmatpush1.msra.mxu0 %v4588
    %7272 = vmatprep.subr.mxu0 %v4592
    %7273 = vmatpush1.msra.mxu0 %v4591
    %7274 = vmatprep.subr.mxu0 %v4595
    %7275 = vmatpush1.msra.mxu0 %v4594
    %7276 = vmatprep.subr.mxu0 %v4598
    %7277 = vmatpush1.msra.mxu0 %v4597
    %7278 = vmatprep.subr.mxu0 %v4601
    %7279 = vmatpush1.msra.mxu0 %v4600
    %7280 = vmatprep.subr.mxu0 %v4604
    %7281 = vmatpush1.msra.mxu0 %v4603
    %7282 = vmatprep.subr.mxu0 %v4607
    %7283 = vmatpush1.msra.mxu0 %v4606
    %7284 = vmatprep.subr.mxu0 %v4610
    %7285 = vmatpush1.msra.mxu0 %v4609
    %7286 = vmatprep.subr.mxu0 0.0
    %7287 = vmatpush1.msra.mxu0 0.0
    %7288 = vmatprep.subr.mxu0 0.0
    %7289 = vmatpush1.msra.mxu0 0.0
    %7290 = vmatprep.subr.mxu0 0.0
    %7291 = vmatpush1.msra.mxu0 0.0
    %7292 = vmatprep.subr.mxu0 0.0
    %7293 = vmatpush1.msra.mxu0 0.0
    %7294 = vmatprep.subr.mxu0 0.0
    %7295 = vmatpush1.msra.mxu0 0.0
    %7296 = vmatprep.subr.mxu0 0.0
    %7297 = vmatpush1.msra.mxu0 0.0
    %7298 = vmatprep.subr.mxu0 0.0
    %7299 = vmatpush1.msra.mxu0 0.0
    %7300 = vmatprep.subr.mxu0 0.0
    %7301 = vmatpush1.msra.mxu0 0.0
    %7302 = vmatprep.subr.mxu0 0.0
    %7303 = vmatpush1.msra.mxu0 0.0
    %7304 = vmatprep.subr.mxu0 0.0
    %7305 = vmatpush1.msra.mxu0 0.0
    %7306 = vmatprep.subr.mxu0 0.0
    %7307 = vmatpush1.msra.mxu0 0.0
    %7308 = vmatprep.subr.mxu0 0.0
    %7309 = vmatpush1.msra.mxu0 0.0
    %7310 = vmatprep.subr.mxu0 0.0
    %7311 = vmatpush1.msra.mxu0 0.0
    %7312 = vmatprep.subr.mxu0 0.0
    %7313 = vmatpush1.msra.mxu0 0.0
    %7314 = vmatprep.subr.mxu0 0.0
    %7315 = vmatpush1.msra.mxu0 0.0
    %7316 = vmatprep.subr.mxu0 0.0
    %7317 = vmatpush1.msra.mxu0 0.0
    %7318 = vmatprep.mubr.f32.mxu0 0.0
    %7319 = vmatmul.mubr.f32.gmra.mrb[0].mxu0 %v7252
    %v7320 = vpop.f32.mrb[0].mxu0
    %v7321 = vadd.f32 %v4669, %v7320
    %v7322 = vpop.f32.mrb[0].mxu0
    %v7323 = vadd.f32 %v4673, %v7322
    %7324 = vdwg.mxu0
    %7325 = vmatprep.subr.mxu0 0.0
    %7326 = vmatpush1.msra.mxu0 %v4566
    %7327 = vmatprep.subr.mxu0 0.0
    %7328 = vmatpush1.msra.mxu0 %v4569
    %7329 = vmatprep.subr.mxu0 0.0
    %7330 = vmatpush1.msra.mxu0 %v4572
    %7331 = vmatprep.subr.mxu0 0.0
    %7332 = vmatpush1.msra.mxu0 %v4575
    %7333 = vmatprep.subr.mxu0 0.0
    %7334 = vmatpush1.msra.mxu0 %v4578
    %7335 = vmatprep.subr.mxu0 0.0
    %7336 = vmatpush1.msra.mxu0 %v4581
    %7337 = vmatprep.subr.mxu0 0.0
    %7338 = vmatpush1.msra.mxu0 %v4584
    %7339 = vmatprep.subr.mxu0 0.0
    %7340 = vmatpush1.msra.mxu0 %v4587
    %7341 = vmatprep.subr.mxu0 0.0
    %7342 = vmatpush1.msra.mxu0 %v4590
    %7343 = vmatprep.subr.mxu0 0.0
    %7344 = vmatpush1.msra.mxu0 %v4593
    %7345 = vmatprep.subr.mxu0 0.0
    %7346 = vmatpush1.msra.mxu0 %v4596
    %7347 = vmatprep.subr.mxu0 0.0
    %7348 = vmatpush1.msra.mxu0 %v4599
    %7349 = vmatprep.subr.mxu0 0.0
    %7350 = vmatpush1.msra.mxu0 %v4602
    %7351 = vmatprep.subr.mxu0 0.0
    %7352 = vmatpush1.msra.mxu0 %v4605
    %7353 = vmatprep.subr.mxu0 0.0
    %7354 = vmatpush1.msra.mxu0 %v4608
    %7355 = vmatprep.subr.mxu0 0.0
    %7356 = vmatpush1.msra.mxu0 %v4611
    %7357 = vmatprep.subr.mxu0 0.0
    %7358 = vmatpush1.msra.mxu0 0.0
    %7359 = vmatprep.subr.mxu0 0.0
    %7360 = vmatpush1.msra.mxu0 0.0
    %7361 = vmatprep.subr.mxu0 0.0
    %7362 = vmatpush1.msra.mxu0 0.0
    %7363 = vmatprep.subr.mxu0 0.0
    %7364 = vmatpush1.msra.mxu0 0.0
    %7365 = vmatprep.subr.mxu0 0.0
    %7366 = vmatpush1.msra.mxu0 0.0
    %7367 = vmatprep.subr.mxu0 0.0
    %7368 = vmatpush1.msra.mxu0 0.0
    %7369 = vmatprep.subr.mxu0 0.0
    %7370 = vmatpush1.msra.mxu0 0.0
    %7371 = vmatprep.subr.mxu0 0.0
    %7372 = vmatpush1.msra.mxu0 0.0
    %7373 = vmatprep.subr.mxu0 0.0
    %7374 = vmatpush1.msra.mxu0 0.0
    %7375 = vmatprep.subr.mxu0 0.0
    %7376 = vmatpush1.msra.mxu0 0.0
    %7377 = vmatprep.subr.mxu0 0.0
    %7378 = vmatpush1.msra.mxu0 0.0
    %7379 = vmatprep.subr.mxu0 0.0
    %7380 = vmatpush1.msra.mxu0 0.0
    %7381 = vmatprep.subr.mxu0 0.0
    %7382 = vmatpush1.msra.mxu0 0.0
    %7383 = vmatprep.subr.mxu0 0.0
    %7384 = vmatpush1.msra.mxu0 0.0
    %7385 = vmatprep.subr.mxu0 0.0
    %7386 = vmatpush1.msra.mxu0 0.0
    %7387 = vmatprep.subr.mxu0 0.0
    %7388 = vmatpush1.msra.mxu0 0.0
    %7389 = vmatprep.mubr.f32.mxu0 0.0
    %7390 = vmatmul.mubr.f32.gmra.mrb[0].mxu0 %v7252
    %v7391 = vpop.f32.mrb[0].mxu0
    %v7392 = vadd.f32 %v4677, %v7391
    %v7393 = vpop.f32.mrb[0].mxu0
    %7394 = vdwg.mxu0
    %v7396 = vrot.slane %v7321, 2
    %v7397 = vrot.slane %v7321, 3
    %v7400 = vadd.f32 %v4211, %v7396
    %v7401 = vadd.f32 %v4217, %v7397
    %v7402 = vxor.u32 %v7400, 2147483648
    %v7403 = vxor.u32 %v7401, 2147483648
    %v7404 = vmul.f32 %v7402, 1.442695
    %v7405 = vpow.pop %v7404
    %v7406 = vmul.f32 %v7403, 1.442695
    %v7407 = vpow.pop %v7406
    %v7408 = vadd.f32 %v7405, 1.0
    %v7409 = vadd.f32 %v7407, 1.0
    %v7410 = vrcp.pop %v7408
    %v7411 = vmul.f32 1.0, %v7410
    %v7412 = vrcp.pop %v7409
    %v7413 = vmul.f32 1.0, %v7412
    %v7415 = vrot.slane %v7323, 2
    %v7416 = vrot.slane %v7323, 3
    %v7419 = vadd.f32 %v4213, %v7415
    %v7420 = vadd.f32 %v4219, %v7416
    %v7421 = vxor.u32 %v7419, 2147483648
    %v7422 = vxor.u32 %v7420, 2147483648
    %v7423 = vmul.f32 %v7421, 1.442695
    %v7424 = vpow.pop %v7423
    %v7425 = vmul.f32 %v7422, 1.442695
    %v7426 = vpow.pop %v7425
    %v7427 = vadd.f32 %v7424, 1.0
    %v7428 = vadd.f32 %v7426, 1.0
    %v7429 = vrcp.pop %v7427
    %v7430 = vmul.f32 1.0, %v7429
    %v7431 = vrcp.pop %v7428
    %v7432 = vmul.f32 1.0, %v7431
    %v7434 = vrot.slane %v7392, 2
    %v7435 = vrot.slane %v7392, 3
    %v7438 = vmul.f32 %v7411, %v7434
    %v7439 = vmul.f32 %v7413, %v7435
    %v7440 = vadd.f32 %v4288, %v7438
    %v7441 = vadd.f32 %v4293, %v7439
    %v7442 = vtanh.pop %v7440
    %v7443 = vtanh.pop %v7441
    %v7444 = vsub.f32 1.0, %v7430
    %v7445 = vsub.f32 1.0, %v7432
    %v7446 = vmul.f32 %v7444, %v7442
    %v7447 = vmul.f32 %v7445, %v7443
    %v7448 = vrot.slane %v7231, 7
    %v7449 = vrot.slane %v7232, 7
    %v7452 = vmul.f32 %v7430, %v7448
    %v7453 = vmul.f32 %v7432, %v7449
    %v7454 = vadd.f32 %v7446, %v7452
    %v7455 = vadd.f32 %v7447, %v7453
    %v7456 = vrot.slane %v7234, 1
    %v7457 = vsel %vm1038, %v7456, %v7245
    %7459 = vmatprep.subr.mxu0 %v4614
    %7460 = vmatpush1.msra.mxu0 %v4613
    %7461 = vmatprep.subr.mxu0 %v4617
    %7462 = vmatpush1.msra.mxu0 %v4616
    %7463 = vmatprep.subr.mxu0 %v4620
    %7464 = vmatpush1.msra.mxu0 %v4619
    %7465 = vmatprep.subr.mxu0 %v4623
    %7466 = vmatpush1.msra.mxu0 %v4622
    %7467 = vmatprep.subr.mxu0 %v4626
    %7468 = vmatpush1.msra.mxu0 %v4625
    %7469 = vmatprep.subr.mxu0 %v4629
    %7470 = vmatpush1.msra.mxu0 %v4628
    %7471 = vmatprep.subr.mxu0 %v4632
    %7472 = vmatpush1.msra.mxu0 %v4631
    %7473 = vmatprep.subr.mxu0 %v4635
    %7474 = vmatpush1.msra.mxu0 %v4634
    %7475 = vmatprep.subr.mxu0 %v4638
    %7476 = vmatpush1.msra.mxu0 %v4637
    %7477 = vmatprep.subr.mxu0 %v4641
    %7478 = vmatpush1.msra.mxu0 %v4640
    %7479 = vmatprep.subr.mxu0 %v4644
    %7480 = vmatpush1.msra.mxu0 %v4643
    %7481 = vmatprep.subr.mxu0 %v4647
    %7482 = vmatpush1.msra.mxu0 %v4646
    %7483 = vmatprep.subr.mxu0 %v4650
    %7484 = vmatpush1.msra.mxu0 %v4649
    %7485 = vmatprep.subr.mxu0 %v4653
    %7486 = vmatpush1.msra.mxu0 %v4652
    %7487 = vmatprep.subr.mxu0 %v4656
    %7488 = vmatpush1.msra.mxu0 %v4655
    %7489 = vmatprep.subr.mxu0 %v4659
    %7490 = vmatpush1.msra.mxu0 %v4658
    %7491 = vmatprep.subr.mxu0 0.0
    %7492 = vmatpush1.msra.mxu0 0.0
    %7493 = vmatprep.subr.mxu0 0.0
    %7494 = vmatpush1.msra.mxu0 0.0
    %7495 = vmatprep.subr.mxu0 0.0
    %7496 = vmatpush1.msra.mxu0 0.0
    %7497 = vmatprep.subr.mxu0 0.0
    %7498 = vmatpush1.msra.mxu0 0.0
    %7499 = vmatprep.subr.mxu0 0.0
    %7500 = vmatpush1.msra.mxu0 0.0
    %7501 = vmatprep.subr.mxu0 0.0
    %7502 = vmatpush1.msra.mxu0 0.0
    %7503 = vmatprep.subr.mxu0 0.0
    %7504 = vmatpush1.msra.mxu0 0.0
    %7505 = vmatprep.subr.mxu0 0.0
    %7506 = vmatpush1.msra.mxu0 0.0
    %7507 = vmatprep.subr.mxu0 0.0
    %7508 = vmatpush1.msra.mxu0 0.0
    %7509 = vmatprep.subr.mxu0 0.0
    %7510 = vmatpush1.msra.mxu0 0.0
    %7511 = vmatprep.subr.mxu0 0.0
    %7512 = vmatpush1.msra.mxu0 0.0
    %7513 = vmatprep.subr.mxu0 0.0
    %7514 = vmatpush1.msra.mxu0 0.0
    %7515 = vmatprep.subr.mxu0 0.0
    %7516 = vmatpush1.msra.mxu0 0.0
    %7517 = vmatprep.subr.mxu0 0.0
    %7518 = vmatpush1.msra.mxu0 0.0
    %7519 = vmatprep.subr.mxu0 0.0
    %7520 = vmatpush1.msra.mxu0 0.0
    %7521 = vmatprep.subr.mxu0 0.0
    %7522 = vmatpush1.msra.mxu0 0.0
    %7523 = vmatprep.mubr.f32.mxu0 0.0
    %7524 = vmatmul.mubr.f32.gmra.mrb[0].mxu0 %v7457
    %v7525 = vpop.f32.mrb[0].mxu0
    %v7526 = vadd.f32 %v4880, %v7525
    %v7527 = vpop.f32.mrb[0].mxu0
    %v7528 = vadd.f32 %v4884, %v7527
    %7529 = vdwg.mxu0
    %7530 = vmatprep.subr.mxu0 0.0
    %7531 = vmatpush1.msra.mxu0 %v4615
    %7532 = vmatprep.subr.mxu0 0.0
    %7533 = vmatpush1.msra.mxu0 %v4618
    %7534 = vmatprep.subr.mxu0 0.0
    %7535 = vmatpush1.msra.mxu0 %v4621
    %7536 = vmatprep.subr.mxu0 0.0
    %7537 = vmatpush1.msra.mxu0 %v4624
    %7538 = vmatprep.subr.mxu0 0.0
    %7539 = vmatpush1.msra.mxu0 %v4627
    %7540 = vmatprep.subr.mxu0 0.0
    %7541 = vmatpush1.msra.mxu0 %v4630
    %7542 = vmatprep.subr.mxu0 0.0
    %7543 = vmatpush1.msra.mxu0 %v4633
    %7544 = vmatprep.subr.mxu0 0.0
    %7545 = vmatpush1.msra.mxu0 %v4636
    %7546 = vmatprep.subr.mxu0 0.0
    %7547 = vmatpush1.msra.mxu0 %v4639
    %7548 = vmatprep.subr.mxu0 0.0
    %7549 = vmatpush1.msra.mxu0 %v4642
    %7550 = vmatprep.subr.mxu0 0.0
    %7551 = vmatpush1.msra.mxu0 %v4645
    %7552 = vmatprep.subr.mxu0 0.0
    %7553 = vmatpush1.msra.mxu0 %v4648
    %7554 = vmatprep.subr.mxu0 0.0
    %7555 = vmatpush1.msra.mxu0 %v4651
    %7556 = vmatprep.subr.mxu0 0.0
    %7557 = vmatpush1.msra.mxu0 %v4654
    %7558 = vmatprep.subr.mxu0 0.0
    %7559 = vmatpush1.msra.mxu0 %v4657
    %7560 = vmatprep.subr.mxu0 0.0
    %7561 = vmatpush1.msra.mxu0 %v4660
    %7562 = vmatprep.subr.mxu0 0.0
    %7563 = vmatpush1.msra.mxu0 0.0
    %7564 = vmatprep.subr.mxu0 0.0
    %7565 = vmatpush1.msra.mxu0 0.0
    %7566 = vmatprep.subr.mxu0 0.0
    %7567 = vmatpush1.msra.mxu0 0.0
    %7568 = vmatprep.subr.mxu0 0.0
    %7569 = vmatpush1.msra.mxu0 0.0
    %7570 = vmatprep.subr.mxu0 0.0
    %7571 = vmatpush1.msra.mxu0 0.0
    %7572 = vmatprep.subr.mxu0 0.0
    %7573 = vmatpush1.msra.mxu0 0.0
    %7574 = vmatprep.subr.mxu0 0.0
    %7575 = vmatpush1.msra.mxu0 0.0
    %7576 = vmatprep.subr.mxu0 0.0
    %7577 = vmatpush1.msra.mxu0 0.0
    %7578 = vmatprep.subr.mxu0 0.0
    %7579 = vmatpush1.msra.mxu0 0.0
    %7580 = vmatprep.subr.mxu0 0.0
    %7581 = vmatpush1.msra.mxu0 0.0
    %7582 = vmatprep.subr.mxu0 0.0
    %7583 = vmatpush1.msra.mxu0 0.0
    %7584 = vmatprep.subr.mxu0 0.0
    %7585 = vmatpush1.msra.mxu0 0.0
    %7586 = vmatprep.subr.mxu0 0.0
    %7587 = vmatpush1.msra.mxu0 0.0
    %7588 = vmatprep.subr.mxu0 0.0
    %7589 = vmatpush1.msra.mxu0 0.0
    %7590 = vmatprep.subr.mxu0 0.0
    %7591 = vmatpush1.msra.mxu0 0.0
    %7592 = vmatprep.subr.mxu0 0.0
    %7593 = vmatpush1.msra.mxu0 0.0
    %7594 = vmatprep.mubr.f32.mxu0 0.0
    %7595 = vmatmul.mubr.f32.gmra.mrb[0].mxu0 %v7457
    %v7596 = vpop.f32.mrb[0].mxu0
    %v7597 = vadd.f32 %v4888, %v7596
    %v7598 = vpop.f32.mrb[0].mxu0
    %7599 = vdwg.mxu0
    %v7601 = vrot.slane %v7526, 7
    %v7604 = vadd.f32 %v4478, %v7601
    %v7605 = vadd.f32 %v4484, %v7526
    %v7606 = vxor.u32 %v7604, 2147483648
    %v7607 = vxor.u32 %v7605, 2147483648
    %v7608 = vmul.f32 %v7606, 1.442695
    %v7609 = vpow.pop %v7608
    %v7610 = vmul.f32 %v7607, 1.442695
    %v7611 = vpow.pop %v7610
    %v7612 = vadd.f32 %v7609, 1.0
    %v7613 = vadd.f32 %v7611, 1.0
    %v7614 = vrcp.pop %v7612
    %v7615 = vmul.f32 1.0, %v7614
    %v7616 = vrcp.pop %v7613
    %v7617 = vmul.f32 1.0, %v7616
    %v7619 = vrot.slane %v7528, 7
    %v7622 = vadd.f32 %v4480, %v7619
    %v7623 = vadd.f32 %v4486, %v7528
    %v7624 = vxor.u32 %v7622, 2147483648
    %v7625 = vxor.u32 %v7623, 2147483648
    %v7626 = vmul.f32 %v7624, 1.442695
    %v7627 = vpow.pop %v7626
    %v7628 = vmul.f32 %v7625, 1.442695
    %v7629 = vpow.pop %v7628
    %v7630 = vadd.f32 %v7627, 1.0
    %v7631 = vadd.f32 %v7629, 1.0
    %v7632 = vrcp.pop %v7630
    %v7633 = vmul.f32 1.0, %v7632
    %v7634 = vrcp.pop %v7631
    %v7635 = vmul.f32 1.0, %v7634
    %v7637 = vrot.slane %v7597, 7
    %v7640 = vmul.f32 %v7615, %v7637
    %v7641 = vmul.f32 %v7617, %v7597
    %v7642 = vadd.f32 %v4555, %v7640
    %v7643 = vadd.f32 %v4560, %v7641
    %v7644 = vtanh.pop %v7642
    %v7645 = vtanh.pop %v7643
    %v7646 = vsub.f32 1.0, %v7633
    %v7647 = vsub.f32 1.0, %v7635
    %v7648 = vmul.f32 %v7646, %v7644
    %v7649 = vmul.f32 %v7647, %v7645
    %v7650 = vrot.slane %v7233, 1
    %v7653 = vmul.f32 %v7633, %v7650
    %v7654 = vmul.f32 %v7635, %v7456
    %v7655 = vadd.f32 %v7648, %v7653
    %v7656 = vadd.f32 %v7649, %v7654
    %v7657 = vsel %vm131, %v7454, %v7448
    %v7658 = vsel %vm132, %v7455, %v7449
    %v7659 = vsel %vm131, %v7655, %v7650
    %v7660 = vsel %vm132, %v7656, %v7456
    %v7663 = vrot.slane %v7657, 6
    %v7664 = vrot.slane %v7658, 6
    %7667 = vst [vmem:[#allocation3 + $0x6] sm:$0x1] %v7663
    %7668 = vst [vmem:[#allocation3 + $0x16] sm:$0x1] %v7664
    %v7671 = vrot.slane %v7659, 1
    %v7672 = vrot.slane %v7660, 1
    %7675 = vst [vmem:[#allocation3 + $0x9] sm:$0x1] %v7671
    %7676 = vst [vmem:[#allocation3 + $0x19] sm:$0x1] %v7672
    %v7677 = vrot.slane %v7658, 5
    %v7678 = vsel %vm1038, %v7677, %v7663
    %7680 = vmatprep.subr.mxu0 %v4565
    %7681 = vmatpush1.msra.mxu0 %v4564
    %7682 = vmatprep.subr.mxu0 %v4568
    %7683 = vmatpush1.msra.mxu0 %v4567
    %7684 = vmatprep.subr.mxu0 %v4571
    %7685 = vmatpush1.msra.mxu0 %v4570
    %7686 = vmatprep.subr.mxu0 %v4574
    %7687 = vmatpush1.msra.mxu0 %v4573
    %7688 = vmatprep.subr.mxu0 %v4577
    %7689 = vmatpush1.msra.mxu0 %v4576
    %7690 = vmatprep.subr.mxu0 %v4580
    %7691 = vmatpush1.msra.mxu0 %v4579
    %7692 = vmatprep.subr.mxu0 %v4583
    %7693 = vmatpush1.msra.mxu0 %v4582
    %7694 = vmatprep.subr.mxu0 %v4586
    %7695 = vmatpush1.msra.mxu0 %v4585
    %7696 = vmatprep.subr.mxu0 %v4589
    %7697 = vmatpush1.msra.mxu0 %v4588
    %7698 = vmatprep.subr.mxu0 %v4592
    %7699 = vmatpush1.msra.mxu0 %v4591
    %7700 = vmatprep.subr.mxu0 %v4595
    %7701 = vmatpush1.msra.mxu0 %v4594
    %7702 = vmatprep.subr.mxu0 %v4598
    %7703 = vmatpush1.msra.mxu0 %v4597
    %7704 = vmatprep.subr.mxu0 %v4601
    %7705 = vmatpush1.msra.mxu0 %v4600
    %7706 = vmatprep.subr.mxu0 %v4604
    %7707 = vmatpush1.msra.mxu0 %v4603
    %7708 = vmatprep.subr.mxu0 %v4607
    %7709 = vmatpush1.msra.mxu0 %v4606
    %7710 = vmatprep.subr.mxu0 %v4610
    %7711 = vmatpush1.msra.mxu0 %v4609
    %7712 = vmatprep.subr.mxu0 0.0
    %7713 = vmatpush1.msra.mxu0 0.0
    %7714 = vmatprep.subr.mxu0 0.0
    %7715 = vmatpush1.msra.mxu0 0.0
    %7716 = vmatprep.subr.mxu0 0.0
    %7717 = vmatpush1.msra.mxu0 0.0
    %7718 = vmatprep.subr.mxu0 0.0
    %7719 = vmatpush1.msra.mxu0 0.0
    %7720 = vmatprep.subr.mxu0 0.0
    %7721 = vmatpush1.msra.mxu0 0.0
    %7722 = vmatprep.subr.mxu0 0.0
    %7723 = vmatpush1.msra.mxu0 0.0
    %7724 = vmatprep.subr.mxu0 0.0
    %7725 = vmatpush1.msra.mxu0 0.0
    %7726 = vmatprep.subr.mxu0 0.0
    %7727 = vmatpush1.msra.mxu0 0.0
    %7728 = vmatprep.subr.mxu0 0.0
    %7729 = vmatpush1.msra.mxu0 0.0
    %7730 = vmatprep.subr.mxu0 0.0
    %7731 = vmatpush1.msra.mxu0 0.0
    %7732 = vmatprep.subr.mxu0 0.0
    %7733 = vmatpush1.msra.mxu0 0.0
    %7734 = vmatprep.subr.mxu0 0.0
    %7735 = vmatpush1.msra.mxu0 0.0
    %7736 = vmatprep.subr.mxu0 0.0
    %7737 = vmatpush1.msra.mxu0 0.0
    %7738 = vmatprep.subr.mxu0 0.0
    %7739 = vmatpush1.msra.mxu0 0.0
    %7740 = vmatprep.subr.mxu0 0.0
    %7741 = vmatpush1.msra.mxu0 0.0
    %7742 = vmatprep.subr.mxu0 0.0
    %7743 = vmatpush1.msra.mxu0 0.0
    %7744 = vmatprep.mubr.f32.mxu0 0.0
    %7745 = vmatmul.mubr.f32.gmra.mrb[0].mxu0 %v7678
    %v7746 = vpop.f32.mrb[0].mxu0
    %v7747 = vadd.f32 %v4669, %v7746
    %v7748 = vpop.f32.mrb[0].mxu0
    %v7749 = vadd.f32 %v4673, %v7748
    %7750 = vdwg.mxu0
    %7751 = vmatprep.subr.mxu0 0.0
    %7752 = vmatpush1.msra.mxu0 %v4566
    %7753 = vmatprep.subr.mxu0 0.0
    %7754 = vmatpush1.msra.mxu0 %v4569
    %7755 = vmatprep.subr.mxu0 0.0
    %7756 = vmatpush1.msra.mxu0 %v4572
    %7757 = vmatprep.subr.mxu0 0.0
    %7758 = vmatpush1.msra.mxu0 %v4575
    %7759 = vmatprep.subr.mxu0 0.0
    %7760 = vmatpush1.msra.mxu0 %v4578
    %7761 = vmatprep.subr.mxu0 0.0
    %7762 = vmatpush1.msra.mxu0 %v4581
    %7763 = vmatprep.subr.mxu0 0.0
    %7764 = vmatpush1.msra.mxu0 %v4584
    %7765 = vmatprep.subr.mxu0 0.0
    %7766 = vmatpush1.msra.mxu0 %v4587
    %7767 = vmatprep.subr.mxu0 0.0
    %7768 = vmatpush1.msra.mxu0 %v4590
    %7769 = vmatprep.subr.mxu0 0.0
    %7770 = vmatpush1.msra.mxu0 %v4593
    %7771 = vmatprep.subr.mxu0 0.0
    %7772 = vmatpush1.msra.mxu0 %v4596
    %7773 = vmatprep.subr.mxu0 0.0
    %7774 = vmatpush1.msra.mxu0 %v4599
    %7775 = vmatprep.subr.mxu0 0.0
    %7776 = vmatpush1.msra.mxu0 %v4602
    %7777 = vmatprep.subr.mxu0 0.0
    %7778 = vmatpush1.msra.mxu0 %v4605
    %7779 = vmatprep.subr.mxu0 0.0
    %7780 = vmatpush1.msra.mxu0 %v4608
    %7781 = vmatprep.subr.mxu0 0.0
    %7782 = vmatpush1.msra.mxu0 %v4611
    %7783 = vmatprep.subr.mxu0 0.0
    %7784 = vmatpush1.msra.mxu0 0.0
    %7785 = vmatprep.subr.mxu0 0.0
    %7786 = vmatpush1.msra.mxu0 0.0
    %7787 = vmatprep.subr.mxu0 0.0
    %7788 = vmatpush1.msra.mxu0 0.0
    %7789 = vmatprep.subr.mxu0 0.0
    %7790 = vmatpush1.msra.mxu0 0.0
    %7791 = vmatprep.subr.mxu0 0.0
    %7792 = vmatpush1.msra.mxu0 0.0
    %7793 = vmatprep.subr.mxu0 0.0
    %7794 = vmatpush1.msra.mxu0 0.0
    %7795 = vmatprep.subr.mxu0 0.0
    %7796 = vmatpush1.msra.mxu0 0.0
    %7797 = vmatprep.subr.mxu0 0.0
    %7798 = vmatpush1.msra.mxu0 0.0
    %7799 = vmatprep.subr.mxu0 0.0
    %7800 = vmatpush1.msra.mxu0 0.0
    %7801 = vmatprep.subr.mxu0 0.0
    %7802 = vmatpush1.msra.mxu0 0.0
    %7803 = vmatprep.subr.mxu0 0.0
    %7804 = vmatpush1.msra.mxu0 0.0
    %7805 = vmatprep.subr.mxu0 0.0
    %7806 = vmatpush1.msra.mxu0 0.0
    %7807 = vmatprep.subr.mxu0 0.0
    %7808 = vmatpush1.msra.mxu0 0.0
    %7809 = vmatprep.subr.mxu0 0.0
    %7810 = vmatpush1.msra.mxu0 0.0
    %7811 = vmatprep.subr.mxu0 0.0
    %7812 = vmatpush1.msra.mxu0 0.0
    %7813 = vmatprep.subr.mxu0 0.0
    %7814 = vmatpush1.msra.mxu0 0.0
    %7815 = vmatprep.mubr.f32.mxu0 0.0
    %7816 = vmatmul.mubr.f32.gmra.mrb[0].mxu0 %v7678
    %v7817 = vpop.f32.mrb[0].mxu0
    %v7818 = vadd.f32 %v4677, %v7817
    %v7819 = vpop.f32.mrb[0].mxu0
    %7820 = vdwg.mxu0
    %v7822 = vrot.slane %v7747, 1
    %v7823 = vrot.slane %v7747, 2
    %v7826 = vadd.f32 %v4211, %v7822
    %v7827 = vadd.f32 %v4217, %v7823
    %v7828 = vxor.u32 %v7826, 2147483648
    %v7829 = vxor.u32 %v7827, 2147483648
    %v7830 = vmul.f32 %v7828, 1.442695
    %v7831 = vpow.pop %v7830
    %v7832 = vmul.f32 %v7829, 1.442695
    %v7833 = vpow.pop %v7832
    %v7834 = vadd.f32 %v7831, 1.0
    %v7835 = vadd.f32 %v7833, 1.0
    %v7836 = vrcp.pop %v7834
    %v7837 = vmul.f32 1.0, %v7836
    %v7838 = vrcp.pop %v7835
    %v7839 = vmul.f32 1.0, %v7838
    %v7841 = vrot.slane %v7749, 1
    %v7842 = vrot.slane %v7749, 2
    %v7845 = vadd.f32 %v4213, %v7841
    %v7846 = vadd.f32 %v4219, %v7842
    %v7847 = vxor.u32 %v7845, 2147483648
    %v7848 = vxor.u32 %v7846, 2147483648
    %v7849 = vmul.f32 %v7847, 1.442695
    %v7850 = vpow.pop %v7849
    %v7851 = vmul.f32 %v7848, 1.442695
    %v7852 = vpow.pop %v7851
    %v7853 = vadd.f32 %v7850, 1.0
    %v7854 = vadd.f32 %v7852, 1.0
    %v7855 = vrcp.pop %v7853
    %v7856 = vmul.f32 1.0, %v7855
    %v7857 = vrcp.pop %v7854
    %v7858 = vmul.f32 1.0, %v7857
    %v7860 = vrot.slane %v7818, 1
    %v7861 = vrot.slane %v7818, 2
    %v7864 = vmul.f32 %v7837, %v7860
    %v7865 = vmul.f32 %v7839, %v7861
    %v7866 = vadd.f32 %v4288, %v7864
    %v7867 = vadd.f32 %v4293, %v7865
    %v7868 = vtanh.pop %v7866
    %v7869 = vtanh.pop %v7867
    %v7870 = vsub.f32 1.0, %v7856
    %v7871 = vsub.f32 1.0, %v7858
    %v7872 = vmul.f32 %v7870, %v7868
    %v7873 = vmul.f32 %v7871, %v7869
    %v7874 = vrot.slane %v7657, 7
    %v7875 = vrot.slane %v7658, 7
    %v7878 = vmul.f32 %v7856, %v7874
    %v7879 = vmul.f32 %v7858, %v7875
    %v7880 = vadd.f32 %v7872, %v7878
    %v7881 = vadd.f32 %v7873, %v7879
    %v7882 = vsel %vm1038, %v7660, %v7671
    %7884 = vmatprep.subr.mxu0 %v4614
    %7885 = vmatpush1.msra.mxu0 %v4613
    %7886 = vmatprep.subr.mxu0 %v4617
    %7887 = vmatpush1.msra.mxu0 %v4616
    %7888 = vmatprep.subr.mxu0 %v4620
    %7889 = vmatpush1.msra.mxu0 %v4619
    %7890 = vmatprep.subr.mxu0 %v4623
    %7891 = vmatpush1.msra.mxu0 %v4622
    %7892 = vmatprep.subr.mxu0 %v4626
    %7893 = vmatpush1.msra.mxu0 %v4625
    %7894 = vmatprep.subr.mxu0 %v4629
    %7895 = vmatpush1.msra.mxu0 %v4628
    %7896 = vmatprep.subr.mxu0 %v4632
    %7897 = vmatpush1.msra.mxu0 %v4631
    %7898 = vmatprep.subr.mxu0 %v4635
    %7899 = vmatpush1.msra.mxu0 %v4634
    %7900 = vmatprep.subr.mxu0 %v4638
    %7901 = vmatpush1.msra.mxu0 %v4637
    %7902 = vmatprep.subr.mxu0 %v4641
    %7903 = vmatpush1.msra.mxu0 %v4640
    %7904 = vmatprep.subr.mxu0 %v4644
    %7905 = vmatpush1.msra.mxu0 %v4643
    %7906 = vmatprep.subr.mxu0 %v4647
    %7907 = vmatpush1.msra.mxu0 %v4646
    %7908 = vmatprep.subr.mxu0 %v4650
    %7909 = vmatpush1.msra.mxu0 %v4649
    %7910 = vmatprep.subr.mxu0 %v4653
    %7911 = vmatpush1.msra.mxu0 %v4652
    %7912 = vmatprep.subr.mxu0 %v4656
    %7913 = vmatpush1.msra.mxu0 %v4655
    %7914 = vmatprep.subr.mxu0 %v4659
    %7915 = vmatpush1.msra.mxu0 %v4658
    %7916 = vmatprep.subr.mxu0 0.0
    %7917 = vmatpush1.msra.mxu0 0.0
    %7918 = vmatprep.subr.mxu0 0.0
    %7919 = vmatpush1.msra.mxu0 0.0
    %7920 = vmatprep.subr.mxu0 0.0
    %7921 = vmatpush1.msra.mxu0 0.0
    %7922 = vmatprep.subr.mxu0 0.0
    %7923 = vmatpush1.msra.mxu0 0.0
    %7924 = vmatprep.subr.mxu0 0.0
    %7925 = vmatpush1.msra.mxu0 0.0
    %7926 = vmatprep.subr.mxu0 0.0
    %7927 = vmatpush1.msra.mxu0 0.0
    %7928 = vmatprep.subr.mxu0 0.0
    %7929 = vmatpush1.msra.mxu0 0.0
    %7930 = vmatprep.subr.mxu0 0.0
    %7931 = vmatpush1.msra.mxu0 0.0
    %7932 = vmatprep.subr.mxu0 0.0
    %7933 = vmatpush1.msra.mxu0 0.0
    %7934 = vmatprep.subr.mxu0 0.0
    %7935 = vmatpush1.msra.mxu0 0.0
    %7936 = vmatprep.subr.mxu0 0.0
    %7937 = vmatpush1.msra.mxu0 0.0
    %7938 = vmatprep.subr.mxu0 0.0
    %7939 = vmatpush1.msra.mxu0 0.0
    %7940 = vmatprep.subr.mxu0 0.0
    %7941 = vmatpush1.msra.mxu0 0.0
    %7942 = vmatprep.subr.mxu0 0.0
    %7943 = vmatpush1.msra.mxu0 0.0
    %7944 = vmatprep.subr.mxu0 0.0
    %7945 = vmatpush1.msra.mxu0 0.0
    %7946 = vmatprep.subr.mxu0 0.0
    %7947 = vmatpush1.msra.mxu0 0.0
    %7948 = vmatprep.mubr.f32.mxu0 0.0
    %7949 = vmatmul.mubr.f32.gmra.mrb[0].mxu0 %v7882
    %v7950 = vpop.f32.mrb[0].mxu0
    %v7951 = vadd.f32 %v4880, %v7950
    %v7952 = vpop.f32.mrb[0].mxu0
    %v7953 = vadd.f32 %v4884, %v7952
    %7954 = vdwg.mxu0
    %7955 = vmatprep.subr.mxu0 0.0
    %7956 = vmatpush1.msra.mxu0 %v4615
    %7957 = vmatprep.subr.mxu0 0.0
    %7958 = vmatpush1.msra.mxu0 %v4618
    %7959 = vmatprep.subr.mxu0 0.0
    %7960 = vmatpush1.msra.mxu0 %v4621
    %7961 = vmatprep.subr.mxu0 0.0
    %7962 = vmatpush1.msra.mxu0 %v4624
    %7963 = vmatprep.subr.mxu0 0.0
    %7964 = vmatpush1.msra.mxu0 %v4627
    %7965 = vmatprep.subr.mxu0 0.0
    %7966 = vmatpush1.msra.mxu0 %v4630
    %7967 = vmatprep.subr.mxu0 0.0
    %7968 = vmatpush1.msra.mxu0 %v4633
    %7969 = vmatprep.subr.mxu0 0.0
    %7970 = vmatpush1.msra.mxu0 %v4636
    %7971 = vmatprep.subr.mxu0 0.0
    %7972 = vmatpush1.msra.mxu0 %v4639
    %7973 = vmatprep.subr.mxu0 0.0
    %7974 = vmatpush1.msra.mxu0 %v4642
    %7975 = vmatprep.subr.mxu0 0.0
    %7976 = vmatpush1.msra.mxu0 %v4645
    %7977 = vmatprep.subr.mxu0 0.0
    %7978 = vmatpush1.msra.mxu0 %v4648
    %7979 = vmatprep.subr.mxu0 0.0
    %7980 = vmatpush1.msra.mxu0 %v4651
    %7981 = vmatprep.subr.mxu0 0.0
    %7982 = vmatpush1.msra.mxu0 %v4654
    %7983 = vmatprep.subr.mxu0 0.0
    %7984 = vmatpush1.msra.mxu0 %v4657
    %7985 = vmatprep.subr.mxu0 0.0
    %7986 = vmatpush1.msra.mxu0 %v4660
    %7987 = vmatprep.subr.mxu0 0.0
    %7988 = vmatpush1.msra.mxu0 0.0
    %7989 = vmatprep.subr.mxu0 0.0
    %7990 = vmatpush1.msra.mxu0 0.0
    %7991 = vmatprep.subr.mxu0 0.0
    %7992 = vmatpush1.msra.mxu0 0.0
    %7993 = vmatprep.subr.mxu0 0.0
    %7994 = vmatpush1.msra.mxu0 0.0
    %7995 = vmatprep.subr.mxu0 0.0
    %7996 = vmatpush1.msra.mxu0 0.0
    %7997 = vmatprep.subr.mxu0 0.0
    %7998 = vmatpush1.msra.mxu0 0.0
    %7999 = vmatprep.subr.mxu0 0.0
    %8000 = vmatpush1.msra.mxu0 0.0
    %8001 = vmatprep.subr.mxu0 0.0
    %8002 = vmatpush1.msra.mxu0 0.0
    %8003 = vmatprep.subr.mxu0 0.0
    %8004 = vmatpush1.msra.mxu0 0.0
    %8005 = vmatprep.subr.mxu0 0.0
    %8006 = vmatpush1.msra.mxu0 0.0
    %8007 = vmatprep.subr.mxu0 0.0
    %8008 = vmatpush1.msra.mxu0 0.0
    %8009 = vmatprep.subr.mxu0 0.0
    %8010 = vmatpush1.msra.mxu0 0.0
    %8011 = vmatprep.subr.mxu0 0.0
    %8012 = vmatpush1.msra.mxu0 0.0
    %8013 = vmatprep.subr.mxu0 0.0
    %8014 = vmatpush1.msra.mxu0 0.0
    %8015 = vmatprep.subr.mxu0 0.0
    %8016 = vmatpush1.msra.mxu0 0.0
    %8017 = vmatprep.subr.mxu0 0.0
    %8018 = vmatpush1.msra.mxu0 0.0
    %8019 = vmatprep.mubr.f32.mxu0 0.0
    %8020 = vmatmul.mubr.f32.gmra.mrb[0].mxu0 %v7882
    %v8021 = vpop.f32.mrb[0].mxu0
    %v8022 = vadd.f32 %v4888, %v8021
    %v8023 = vpop.f32.mrb[0].mxu0
    %8024 = vdwg.mxu0
    %v8026 = vrot.slane %v7951, 1
    %v8029 = vadd.f32 %v4478, %v7951
    %v8030 = vadd.f32 %v4484, %v8026
    %v8031 = vxor.u32 %v8029, 2147483648
    %v8032 = vxor.u32 %v8030, 2147483648
    %v8033 = vmul.f32 %v8031, 1.442695
    %v8034 = vpow.pop %v8033
    %v8035 = vmul.f32 %v8032, 1.442695
    %v8036 = vpow.pop %v8035
    %v8037 = vadd.f32 %v8034, 1.0
    %v8038 = vadd.f32 %v8036, 1.0
    %v8039 = vrcp.pop %v8037
    %v8040 = vmul.f32 1.0, %v8039
    %v8041 = vrcp.pop %v8038
    %v8042 = vmul.f32 1.0, %v8041
    %v8044 = vrot.slane %v7953, 1
    %v8047 = vadd.f32 %v4480, %v7953
    %v8048 = vadd.f32 %v4486, %v8044
    %v8049 = vxor.u32 %v8047, 2147483648
    %v8050 = vxor.u32 %v8048, 2147483648
    %v8051 = vmul.f32 %v8049, 1.442695
    %v8052 = vpow.pop %v8051
    %v8053 = vmul.f32 %v8050, 1.442695
    %v8054 = vpow.pop %v8053
    %v8055 = vadd.f32 %v8052, 1.0
    %v8056 = vadd.f32 %v8054, 1.0
    %v8057 = vrcp.pop %v8055
    %v8058 = vmul.f32 1.0, %v8057
    %v8059 = vrcp.pop %v8056
    %v8060 = vmul.f32 1.0, %v8059
    %v8062 = vrot.slane %v8022, 1
    %v8065 = vmul.f32 %v8040, %v8022
    %v8066 = vmul.f32 %v8042, %v8062
    %v8067 = vadd.f32 %v4555, %v8065
    %v8068 = vadd.f32 %v4560, %v8066
    %v8069 = vtanh.pop %v8067
    %v8070 = vtanh.pop %v8068
    %v8071 = vsub.f32 1.0, %v8058
    %v8072 = vsub.f32 1.0, %v8060
    %v8073 = vmul.f32 %v8071, %v8069
    %v8074 = vmul.f32 %v8072, %v8070
    %v8075 = vmul.f32 %v8058, %v7671
    %v8076 = vmul.f32 %v8060, %v7672
    %v8077 = vadd.f32 %v8073, %v8075
    %v8078 = vadd.f32 %v8074, %v8076
    %v8079 = vsel %vm131, %v7880, %v7874
    %v8080 = vsel %vm132, %v7881, %v7875
    %v8081 = vsel %vm131, %v8077, %v7671
    %v8082 = vsel %vm132, %v8078, %v7672
    %v8085 = vrot.slane %v8079, 7
    %v8086 = vrot.slane %v8080, 7
    %8089 = vst [vmem:[#allocation3 + $0x7] sm:$0x1] %v8085
    %8090 = vst [vmem:[#allocation3 + $0x17] sm:$0x1] %v8086
    %8091 = vst [vmem:[#allocation3 + $0x8] sm:$0x1] %v8081
    %8092 = vst [vmem:[#allocation3 + $0x18] sm:$0x1] %v8082
    %v8093 = vld [vmem:[#allocation3] sm:$0xff]
    %v8094 = vld [vmem:[#allocation3 + $0x8] sm:$0xff]
    %v8095 = vld [vmem:[#allocation3 + $0x10] sm:$0xff]
    %v8096 = vld [vmem:[#allocation3 + $0x18] sm:$0xff]
    %v8097 = vsel %vm133, 1, 0
    %v8098 = vsel %vm134, 1, 0
    %8099 = vset.pattern.permute.xlu0 0
    %8100 = vperm.xlu0 %8099, %v8097
    %v8101 = vpop.permute.xlu0 %8100
    %8102 = vset.pattern.permute.xlu0 0
    %8103 = vperm.xlu0 %8102, %v8098
    %v8104 = vpop.permute.xlu0 %8103
    %vm8105 = vcmp.eq.s32.totalorder %v8101, 1
    %vm8106 = vcmp.eq.s32.totalorder %v8104, 1
    %v8107 = vsel %vm8105, %v8093, 0.0
    %v8108 = vsel %vm8105, %v8094, 0.0
    %v8109 = vsel %vm8106, %v8095, 0.0
    %v8110 = vsel %vm8106, %v8096, 0.0
    %8111 = vst [vmem:[#allocation13] sm:$0xff] %v8107
    %8112 = vst [vmem:[#allocation13 + $0x8] sm:$0xff] %v8108
    %8113 = vst [vmem:[#allocation13 + $0x10] sm:$0xff] %v8109
    %8114 = vst [vmem:[#allocation13 + $0x18] sm:$0xff] %v8110
    // Predicated region
    $region46: #{tpu_custom_call.1} parent=1 // pred_check
      _
    $region47: #{tpu_custom_call.1} parent=1 // pred_check_branch
      %8116 = sbr.rel (0) target = $region49
    $region48: #{tpu_custom_call.1} parent=1 // pred_region
      %s8118 = ssub.s32 512, 512
      %8119 = vsyncadd [#allocation6], %s8118
      %s8120 = sshll.u32 [#allocation13], 4
      %s8121 = int_to_ptr.vmem [resolvable:$true] %s8120
      %8126 = dma.vmem_to_hbm [thread:$0]  %s8121, 512, %s6, [#allocation6], 256, 256, 16
    $region49: #{tpu_custom_call.1} parent=1 // pred_fallthru
      _
    // Predicated region
    $region50: #{tpu_custom_call.1} parent=1 // pred_check
      _
    $region51: #{tpu_custom_call.1} parent=1 // pred_check_branch
      %8128 = sbr.rel (0) target = $region53
    $region52: #{tpu_custom_call.1} parent=1 // pred_region
      %8129 = dma.done [#allocation6], 512
    $region53: #{tpu_custom_call.1} parent=1 // pred_fallthru
      _
    %8130 = vsyncpa [#allocation5], 1
    %8131 = vsyncpa [#allocation8], 1
    %8132 = vsyncpa [#allocation11], 1
    %8133 = vsyncpa [#allocation6], 1

</llo_original>
